<compile_context>
chip_gen: v5e
topology: v5e:2x2
jax: 0.10.0
libtpu: 0.0.40
codegen_flags: <defaults>
</compile_context>

<pallas_src>
import functools

import jax
import jax.numpy as jnp
from jax import lax
from jax.experimental import pallas as pl
from jax.experimental.pallas import tpu as pltpu

cfg = {
    "rsn_score_threshold": 0.5,
    "wh_add": 0.1,
    "ocr_out_dim": 16,   # stands in for len(identification_dict)
}
# deterministic stand-in for process_data.read_identification_dict()
identification_dict = {i: chr(ord("a") + i) for i in range(cfg["ocr_out_dim"])}


# ----------------------------------------------------------------------------
# Fused LDN Pallas kernel: conv3x3(3->16)+ReLU, conv3x3(16->32)+ReLU, 1x1(32->2)+sigmoid
# Layout: channels on sublanes, flattened pixels (H*W) on lanes.
# ----------------------------------------------------------------------------
def _ldn_fused_kernel(xpad_ref, w1_ref, b1_ref, w2_ref, b2_ref, w3_ref, b3_ref,
                      ldn_ref, feat_ref, h1pad_ref, *, H, W):
    HW = H * W
    PAD = W + 1  # flat zero-pad covers the largest row shift (W + 1)

    # Per-pixel column index along the lane axis (float trick avoids int div/mod).
    pix = lax.broadcasted_iota(jnp.int32, (1, HW), 1).astype(jnp.float32)
    col = pix - jnp.floor(pix * (1.0 / W)) * W
    # f32 validity masks for the horizontal taps (source column x-1 / x+1 in range).
    col_mask = {
        0: (col >= 1.0).astype(jnp.float32),
        2: (col <= float(W - 2)).astype(jnp.float32),
    }

    def conv3x3(src_ref, w_ref, b_ref, c_in):
        """src_ref: [c_in, HW + 2*PAD] flat zero-padded planes.
           w_ref:   [c_out, 9*c_in] (columns ordered (dy, dx, c)).
           b_ref:   [c_out, 1]."""
        c_out = b_ref.shape[0]
        acc = jnp.zeros((c_out, HW), jnp.float32)
        for dy in range(3):
            for dx in range(3):
                start = PAD + (dy - 1) * W + (dx - 1)
                win = src_ref[:, start:start + HW]                 # [c_in, HW]
                if dx != 1:                                        # zero wrapped columns
                    win = win * col_mask[dx]
                wblk = w_ref[:, (dy * 3 + dx) * c_in:(dy * 3 + dx + 1) * c_in]
                acc = acc + jnp.dot(wblk, win, preferred_element_type=jnp.float32)
        return acc + b_ref[...]

    # conv1: 3 -> 16, ReLU (input already flat-padded by the wrapper)
    h1 = jnp.maximum(conv3x3(xpad_ref, w1_ref, b1_ref, 3), 0.0)    # [16, HW]

    # stage h1 (flat zero-padded) in VMEM scratch so conv2's taps are static slices
    h1pad_ref[...] = jnp.zeros_like(h1pad_ref)
    h1pad_ref[:, PAD:PAD + HW] = h1

    # conv2: 16 -> 32, ReLU
    feature = jnp.maximum(conv3x3(h1pad_ref, w2_ref, b2_ref, h1.shape[0]), 0.0)
    feat_ref[...] = feature                                        # [32, HW]

    # 1x1 conv: 32 -> 2, sigmoid
    ldn = jax.nn.sigmoid(
        jnp.dot(w3_ref[...], feature, preferred_element_type=jnp.float32) + b3_ref[...])
    ldn_ref[...] = ldn                                             # [2, HW]


def ldn_forward(params, x_nchw):
    n, c_in, H, W = x_nchw.shape
    assert n == 1, "forward (like the PyTorch reference) assumes batch size 1"
    HW = H * W
    PAD = W + 1

    w1, w2, w3 = params["ldn_w1"], params["ldn_w2"], params["ldn_w3"]
    b1 = params["ldn_b1"][:, None]
    b2 = params["ldn_b2"][:, None]
    b3 = params["ldn_b3"][:, None]
    c_mid, c_feat, c_ldn = w1.shape[0], w2.shape[0], w3.shape[0]

    # NCHW -> channel planes on sublanes, flattened pixels on lanes, flat zero pad
    # of (W+1) pixels on each side so every 3x3 tap is a static lane-shifted slice.
    x_flat = x_nchw.reshape(n * c_in, HW)
    xpad = jnp.pad(x_flat, ((0, 0), (PAD, PAD)))

    full = lambda shape: pl.BlockSpec(shape, lambda i: (0, 0))

    ldn_t, feat_t = pl.pallas_call(
        functools.partial(_ldn_fused_kernel, H=H, W=W),
        out_shape=(jax.ShapeDtypeStruct((c_ldn, HW), jnp.float32),
                   jax.ShapeDtypeStruct((c_feat, HW), jnp.float32)),
        grid_spec=pltpu.PrefetchScalarGridSpec(
            num_scalar_prefetch=0,
            grid=(1,),                     # single block: whole problem fits in VMEM
            in_specs=[full(xpad.shape), full(w1.shape), full(b1.shape),
                      full(w2.shape), full(b2.shape), full(w3.shape), full(b3.shape)],
            out_specs=[full((c_ldn, HW)), full((c_feat, HW))],
            scratch_shapes=[pltpu.VMEM((c_mid, HW + 2 * PAD), jnp.float32)],
        ),
        # Single-step grid: semantics choice is immaterial (nothing to shard).
        compiler_params=pltpu.CompilerParams(dimension_semantics=("arbitrary",)),
    )(xpad, w1, b1, w2, b2, w3, b3)

    ldn_out = ldn_t.reshape(1, c_ldn, H, W)     # NCHW, like PyTorch
    feature = feat_t.reshape(1, c_feat, H, W)   # NCHW
    return ldn_out, feature


# ----------------------------------------------------------------------------
# Synthetic, deterministic weights
# ----------------------------------------------------------------------------
def init_params(key):
    ks = jax.random.split(key, 8)
    w = lambda k, s: 0.1 * jax.random.normal(k, s, jnp.float32)
    return {
        # LDN conv weights in kernel layout [C_out, k*k*C_in] (columns ordered (dy,dx,c))
        "ldn_w1": w(ks[0], (16, 3 * 3 * 3)),   "ldn_b1": jnp.zeros((16,), jnp.float32),
        "ldn_w2": w(ks[1], (32, 3 * 3 * 16)),  "ldn_b2": jnp.zeros((32,), jnp.float32),
        "ldn_w3": w(ks[2], (2, 32)),           "ldn_b3": jnp.zeros((2,), jnp.float32),
        # RSN head: pooled 32 -> [score | 8 point dims]
        "rsn_w": w(ks[3], (32, 9)),            "rsn_b": jnp.zeros((9,), jnp.float32),
        # OCR: 3x3 conv 3->16 (im2col layout [k*k*C_in, C_out]) + FC 16 -> ocr_out_dim
        "ocr_w1": w(ks[4], (3 * 3 * 3, 16)),   "ocr_b1": jnp.zeros((16,), jnp.float32),
        "ocr_w2": w(ks[5], (16, cfg["ocr_out_dim"])),
        "ocr_b2": jnp.zeros((cfg["ocr_out_dim"],), jnp.float32),
    }


# ----------------------------------------------------------------------------
# Device-side forward (one jit, no host syncs): Pallas LDN + jnp bbox/RSN/OCR heads
# ----------------------------------------------------------------------------
@jax.jit
def _forward_device(params, x_nchw):
    ldn_out, feature = ldn_forward(params, x_nchw)
    H, W = x_nchw.shape[2], x_nchw.shape[3]

    # --- get_area (simplified): axis-aligned bbox over the positive mask ----------
    # TODO(synk): cv2.connectedComponentsWithStats / cv2.minAreaRect (rotated rect per
    # connected component) have no Pallas/JAX equivalent; use one axis-aligned bbox.
    diff = ldn_out[0, 0] - ldn_out[0, 1]
    binary = diff > 0.0
    has_any = jnp.any(binary)
    ridx = jnp.arange(H, dtype=jnp.int32)
    cidx = jnp.arange(W, dtype=jnp.int32)
    rows_any = jnp.any(binary, axis=1)
    cols_any = jnp.any(binary, axis=0)
    y0 = jnp.where(has_any, jnp.min(jnp.where(rows_any, ridx, H)), H // 4)
    y1 = jnp.where(has_any, jnp.max(jnp.where(rows_any, ridx, -1)), 3 * H // 4)
    x0 = jnp.where(has_any, jnp.min(jnp.where(cols_any, cidx, W)), W // 4)
    x1 = jnp.where(has_any, jnp.max(jnp.where(cols_any, cidx, -1)), 3 * W // 4)
    cx = 0.5 * (x0 + x1).astype(jnp.float32)
    cy = 0.5 * (y0 + y1).astype(jnp.float32)
    bw = (x1 - x0 + 1).astype(jnp.float32)
    bh = (y1 - y0 + 1).astype(jnp.float32)
    xywhr = jnp.stack([cx, cy, bw, bh, jnp.float32(0.0)])

    zero = jnp.int32(0)

    # --- RSN head: fixed 8x8 crop of the feature map, mean pool, FC ---------------
    c_feat = feature.shape[1]
    sy = jnp.clip(jnp.round(cy) - 4.0, 0, H - 8).astype(jnp.int32)
    sx = jnp.clip(jnp.round(cx) - 4.0, 0, W - 8).astype(jnp.int32)
    crop = lax.dynamic_slice(feature, (zero, zero, sy, sx), (1, c_feat, 8, 8))
    pooled = jnp.mean(crop, axis=(0, 2, 3))[None, :]               # [1, 32]
    rsn = pooled @ params["rsn_w"] + params["rsn_b"][None, :]      # [1, 9]
    score = jax.nn.sigmoid(rsn[0, 0])
    points_dim = rsn[0, 1:]

    # --- OCR head: fixed 16x16 crop of the input, conv3x3+ReLU, mean pool, FC -----
    # TODO(synk): process_data.key_points_align (perspective warp by predicted key
    # points) has no clean JAX/Pallas equivalent; a fixed 16x16 crop is used instead.
    # (Computed unconditionally on device to avoid a data-dependent host sync; the
    # threshold gating only decides Python-list membership afterwards.)
    sy2 = jnp.clip(jnp.round(cy) - 8.0, 0, H - 16).astype(jnp.int32)
    sx2 = jnp.clip(jnp.round(cx) - 8.0, 0, W - 16).astype(jnp.int32)
    crop_img = lax.dynamic_slice(x_nchw, (zero, zero, sy2, sx2), (1, 3, 16, 16))
    img = jnp.transpose(crop_img[0], (1, 2, 0))                    # [16, 16, 3]
    imgp = jnp.pad(img, ((1, 1), (1, 1), (0, 0)))
    patches = jnp.concatenate(
        [imgp[dy:dy + 16, dx:dx + 16, :] for dy in range(3) for dx in range(3)],
        axis=-1).reshape(16 * 16, 9 * 3)
    h1 = jax.nn.relu(patches @ params["ocr_w1"] + params["ocr_b1"][None, :])
    ocr_logits = (jnp.mean(h1, axis=0, keepdims=True) @ params["ocr_w2"]
                  + params["ocr_b2"][None, :])                     # [1, ocr_out_dim]

    return ldn_out, xywhr, score, points_dim, ocr_logits


# ----------------------------------------------------------------------------
# Full forward pass (mirrors Net.forward's output structure)
# ----------------------------------------------------------------------------
def net_forward(params, x_nchw):
    ldn_out, xywhr, score, points_dim, ocr_logits = _forward_device(params, x_nchw)

    target_score = -1.0
    text_label = None
    rsn_out = [[xywhr, score, target_score, points_dim, None, text_label]]

    threshold = cfg["rsn_score_threshold"]
    ocr_out = []
    # Single end-of-pipeline host read for Python-list gating (all device compute is
    # already dispatched as one jitted program at this point).
    score_f = float(score)
    if (score_f >= threshold and target_score != 0) or target_score == 1:
        ocr_out.append([xywhr, score, ocr_logits, text_label])

    return [ldn_out, rsn_out, ocr_out]


# ----------------------------------------------------------------------------
if __name__ == "__main__":
    key = jax.random.PRNGKey(0)
    k_x, k_p = jax.random.split(key)
    x = jax.random.normal(k_x, (1, 3, 32, 32), jnp.float32)   # NCHW like PyTorch
    params = init_params(k_p)

    ldn_out, rsn_out, ocr_out = net_forward(params, x)

    jax.block_until_ready(ldn_out)
    for item in rsn_out:
        jax.block_until_ready(item[1])   # score
        jax.block_until_ready(item[3])   # points_dim
    for item in ocr_out:
        jax.block_until_ready(item[2])   # ocr logits

    print("KERNEL_OK")
</pallas_src>

<mosaic_0001>
module attributes {stable_mosaic.version = 11 : i64} {
  func.func @_ldn_fused_kernel(%arg0: i32, %arg1: memref<3x1090xf32, #tpu.memory_space<vmem>>, %arg2: memref<16x27xf32, #tpu.memory_space<vmem>>, %arg3: memref<16x1xf32, #tpu.memory_space<vmem>>, %arg4: memref<32x144xf32, #tpu.memory_space<vmem>>, %arg5: memref<32x1xf32, #tpu.memory_space<vmem>>, %arg6: memref<2x32xf32, #tpu.memory_space<vmem>>, %arg7: memref<2x1xf32, #tpu.memory_space<vmem>>, %arg8: memref<2x1024xf32, #tpu.memory_space<vmem>>, %arg9: memref<32x1024xf32, #tpu.memory_space<vmem>>, %arg10: memref<16x1090xf32, #tpu.memory_space<vmem>>) attributes {dimension_semantics = [#tpu.dimension_semantics<arbitrary>], iteration_bounds = array<i64: 1>, scalar_prefetch = 0 : i64, scratch_operands = 1 : i64, tpu.core_type = #tpu.core_type<tc>, window_params = [{pipeline_mode = #tpu.pipeline_mode<synchronous>, transform_indices = @transform_0, window_bounds = array<i64: 3, 1090>}, {pipeline_mode = #tpu.pipeline_mode<synchronous>, transform_indices = @transform_1, window_bounds = array<i64: 16, 27>}, {pipeline_mode = #tpu.pipeline_mode<synchronous>, transform_indices = @transform_2, window_bounds = array<i64: 16, 1>}, {pipeline_mode = #tpu.pipeline_mode<synchronous>, transform_indices = @transform_3, window_bounds = array<i64: 32, 144>}, {pipeline_mode = #tpu.pipeline_mode<synchronous>, transform_indices = @transform_4, window_bounds = array<i64: 32, 1>}, {pipeline_mode = #tpu.pipeline_mode<synchronous>, transform_indices = @transform_5, window_bounds = array<i64: 2, 32>}, {pipeline_mode = #tpu.pipeline_mode<synchronous>, transform_indices = @transform_6, window_bounds = array<i64: 2, 1>}, {pipeline_mode = #tpu.pipeline_mode<synchronous>, transform_indices = @transform_7, window_bounds = array<i64: 2, 1024>}, {pipeline_mode = #tpu.pipeline_mode<synchronous>, transform_indices = @transform_8, window_bounds = array<i64: 32, 1024>}]} {
    %0 = tpu.iota {dimensions = array<i32: 1>} : vector<1x1024xi32>
    %1 = arith.sitofp %0 : vector<1x1024xi32> to vector<1x1024xf32>
    %cst = arith.constant 3.125000e-02 : f32
    %2 = vector.broadcast %cst : f32 to vector<1x1024xf32>
    %3 = arith.mulf %1, %2 : vector<1x1024xf32>
    %4 = math.floor %3 : vector<1x1024xf32>
    %cst_0 = arith.constant 3.200000e+01 : f32
    %5 = vector.broadcast %cst_0 : f32 to vector<1x1024xf32>
    %6 = arith.mulf %4, %5 : vector<1x1024xf32>
    %7 = arith.subf %1, %6 : vector<1x1024xf32>
    %cst_1 = arith.constant 1.000000e+00 : f32
    %8 = vector.broadcast %cst_1 : f32 to vector<1x1024xf32>
    %9 = arith.cmpf oge, %7, %8 : vector<1x1024xf32>
    %10 = arith.extui %9 : vector<1x1024xi1> to vector<1x1024xi32>
    %11 = arith.sitofp %10 : vector<1x1024xi32> to vector<1x1024xf32>
    %cst_2 = arith.constant 3.000000e+01 : f32
    %12 = vector.broadcast %cst_2 : f32 to vector<1x1024xf32>
    %13 = arith.cmpf ole, %7, %12 : vector<1x1024xf32>
    %14 = arith.extui %13 : vector<1x1024xi1> to vector<1x1024xi32>
    %15 = arith.sitofp %14 : vector<1x1024xi32> to vector<1x1024xf32>
    %cst_3 = arith.constant 0.000000e+00 : f32
    %16 = vector.broadcast %cst_3 : f32 to vector<16x1024xf32>
    %c0 = arith.constant 0 : index
    %c0_4 = arith.constant 0 : index
    %17 = vector.load %arg1[%c0, %c0_4] : memref<3x1090xf32, #tpu.memory_space<vmem>>, vector<3x1024xf32>
    %18 = vector.broadcast %11 : vector<1x1024xf32> to vector<3x1024xf32>
    %19 = arith.mulf %17, %18 : vector<3x1024xf32>
    %c0_5 = arith.constant 0 : index
    %c0_6 = arith.constant 0 : index
    %20 = vector.load %arg2[%c0_5, %c0_6] : memref<16x27xf32, #tpu.memory_space<vmem>>, vector<16x3xf32>
    %cst_7 = arith.constant dense<0.000000e+00> : vector<16x1024xf32>
    %21 = tpu.matmul %20, %19, %cst_7 {dimension_numbers = #tpu.dot_dimension_numbers<[1], [0], [0], [1], [0, 0, 1, 1], [], []>} : vector<16x3xf32>, vector<3x1024xf32>, vector<16x1024xf32> -> vector<16x1024xf32>
    %22 = arith.addf %16, %21 : vector<16x1024xf32>
    %c0_8 = arith.constant 0 : index
    %c1 = arith.constant 1 : index
    %23 = vector.load %arg1[%c0_8, %c1] : memref<3x1090xf32, #tpu.memory_space<vmem>>, vector<3x1024xf32>
    %c0_9 = arith.constant 0 : index
    %c3 = arith.constant 3 : index
    %24 = vector.load %arg2[%c0_9, %c3] : memref<16x27xf32, #tpu.memory_space<vmem>>, vector<16x3xf32>
    %cst_10 = arith.constant dense<0.000000e+00> : vector<16x1024xf32>
    %25 = tpu.matmul %24, %23, %cst_10 {dimension_numbers = #tpu.dot_dimension_numbers<[1], [0], [0], [1], [0, 0, 1, 1], [], []>} : vector<16x3xf32>, vector<3x1024xf32>, vector<16x1024xf32> -> vector<16x1024xf32>
    %26 = arith.addf %22, %25 : vector<16x1024xf32>
    %c0_11 = arith.constant 0 : index
    %c2 = arith.constant 2 : index
    %27 = vector.load %arg1[%c0_11, %c2] : memref<3x1090xf32, #tpu.memory_space<vmem>>, vector<3x1024xf32>
    %28 = vector.broadcast %15 : vector<1x1024xf32> to vector<3x1024xf32>
    %29 = arith.mulf %27, %28 : vector<3x1024xf32>
    %c0_12 = arith.constant 0 : index
    %c6 = arith.constant 6 : index
    %30 = vector.load %arg2[%c0_12, %c6] : memref<16x27xf32, #tpu.memory_space<vmem>>, vector<16x3xf32>
    %cst_13 = arith.constant dense<0.000000e+00> : vector<16x1024xf32>
    %31 = tpu.matmul %30, %29, %cst_13 {dimension_numbers = #tpu.dot_dimension_numbers<[1], [0], [0], [1], [0, 0, 1, 1], [], []>} : vector<16x3xf32>, vector<3x1024xf32>, vector<16x1024xf32> -> vector<16x1024xf32>
    %32 = arith.addf %26, %31 : vector<16x1024xf32>
    %c0_14 = arith.constant 0 : index
    %c32 = arith.constant 32 : index
    %33 = vector.load %arg1[%c0_14, %c32] : memref<3x1090xf32, #tpu.memory_space<vmem>>, vector<3x1024xf32>
    %34 = vector.broadcast %11 : vector<1x1024xf32> to vector<3x1024xf32>
    %35 = arith.mulf %33, %34 : vector<3x1024xf32>
    %c0_15 = arith.constant 0 : index
    %c9 = arith.constant 9 : index
    %36 = vector.load %arg2[%c0_15, %c9] : memref<16x27xf32, #tpu.memory_space<vmem>>, vector<16x3xf32>
    %cst_16 = arith.constant dense<0.000000e+00> : vector<16x1024xf32>
    %37 = tpu.matmul %36, %35, %cst_16 {dimension_numbers = #tpu.dot_dimension_numbers<[1], [0], [0], [1], [0, 0, 1, 1], [], []>} : vector<16x3xf32>, vector<3x1024xf32>, vector<16x1024xf32> -> vector<16x1024xf32>
    %38 = arith.addf %32, %37 : vector<16x1024xf32>
    %c0_17 = arith.constant 0 : index
    %c33 = arith.constant 33 : index
    %39 = vector.load %arg1[%c0_17, %c33] : memref<3x1090xf32, #tpu.memory_space<vmem>>, vector<3x1024xf32>
    %c0_18 = arith.constant 0 : index
    %c12 = arith.constant 12 : index
    %40 = vector.load %arg2[%c0_18, %c12] : memref<16x27xf32, #tpu.memory_space<vmem>>, vector<16x3xf32>
    %cst_19 = arith.constant dense<0.000000e+00> : vector<16x1024xf32>
    %41 = tpu.matmul %40, %39, %cst_19 {dimension_numbers = #tpu.dot_dimension_numbers<[1], [0], [0], [1], [0, 0, 1, 1], [], []>} : vector<16x3xf32>, vector<3x1024xf32>, vector<16x1024xf32> -> vector<16x1024xf32>
    %42 = arith.addf %38, %41 : vector<16x1024xf32>
    %c0_20 = arith.constant 0 : index
    %c34 = arith.constant 34 : index
    %43 = vector.load %arg1[%c0_20, %c34] : memref<3x1090xf32, #tpu.memory_space<vmem>>, vector<3x1024xf32>
    %44 = vector.broadcast %15 : vector<1x1024xf32> to vector<3x1024xf32>
    %45 = arith.mulf %43, %44 : vector<3x1024xf32>
    %c0_21 = arith.constant 0 : index
    %c15 = arith.constant 15 : index
    %46 = vector.load %arg2[%c0_21, %c15] : memref<16x27xf32, #tpu.memory_space<vmem>>, vector<16x3xf32>
    %cst_22 = arith.constant dense<0.000000e+00> : vector<16x1024xf32>
    %47 = tpu.matmul %46, %45, %cst_22 {dimension_numbers = #tpu.dot_dimension_numbers<[1], [0], [0], [1], [0, 0, 1, 1], [], []>} : vector<16x3xf32>, vector<3x1024xf32>, vector<16x1024xf32> -> vector<16x1024xf32>
    %48 = arith.addf %42, %47 : vector<16x1024xf32>
    %c0_23 = arith.constant 0 : index
    %c64 = arith.constant 64 : index
    %49 = vector.load %arg1[%c0_23, %c64] : memref<3x1090xf32, #tpu.memory_space<vmem>>, vector<3x1024xf32>
    %50 = vector.broadcast %11 : vector<1x1024xf32> to vector<3x1024xf32>
    %51 = arith.mulf %49, %50 : vector<3x1024xf32>
    %c0_24 = arith.constant 0 : index
    %c18 = arith.constant 18 : index
    %52 = vector.load %arg2[%c0_24, %c18] : memref<16x27xf32, #tpu.memory_space<vmem>>, vector<16x3xf32>
    %cst_25 = arith.constant dense<0.000000e+00> : vector<16x1024xf32>
    %53 = tpu.matmul %52, %51, %cst_25 {dimension_numbers = #tpu.dot_dimension_numbers<[1], [0], [0], [1], [0, 0, 1, 1], [], []>} : vector<16x3xf32>, vector<3x1024xf32>, vector<16x1024xf32> -> vector<16x1024xf32>
    %54 = arith.addf %48, %53 : vector<16x1024xf32>
    %c0_26 = arith.constant 0 : index
    %c65 = arith.constant 65 : index
    %55 = vector.load %arg1[%c0_26, %c65] : memref<3x1090xf32, #tpu.memory_space<vmem>>, vector<3x1024xf32>
    %c0_27 = arith.constant 0 : index
    %c21 = arith.constant 21 : index
    %56 = vector.load %arg2[%c0_27, %c21] : memref<16x27xf32, #tpu.memory_space<vmem>>, vector<16x3xf32>
    %cst_28 = arith.constant dense<0.000000e+00> : vector<16x1024xf32>
    %57 = tpu.matmul %56, %55, %cst_28 {dimension_numbers = #tpu.dot_dimension_numbers<[1], [0], [0], [1], [0, 0, 1, 1], [], []>} : vector<16x3xf32>, vector<3x1024xf32>, vector<16x1024xf32> -> vector<16x1024xf32>
    %58 = arith.addf %54, %57 : vector<16x1024xf32>
    %c0_29 = arith.constant 0 : index
    %c66 = arith.constant 66 : index
    %59 = vector.load %arg1[%c0_29, %c66] : memref<3x1090xf32, #tpu.memory_space<vmem>>, vector<3x1024xf32>
    %60 = vector.broadcast %15 : vector<1x1024xf32> to vector<3x1024xf32>
    %61 = arith.mulf %59, %60 : vector<3x1024xf32>
    %c0_30 = arith.constant 0 : index
    %c24 = arith.constant 24 : index
    %62 = vector.load %arg2[%c0_30, %c24] : memref<16x27xf32, #tpu.memory_space<vmem>>, vector<16x3xf32>
    %cst_31 = arith.constant dense<0.000000e+00> : vector<16x1024xf32>
    %63 = tpu.matmul %62, %61, %cst_31 {dimension_numbers = #tpu.dot_dimension_numbers<[1], [0], [0], [1], [0, 0, 1, 1], [], []>} : vector<16x3xf32>, vector<3x1024xf32>, vector<16x1024xf32> -> vector<16x1024xf32>
    %64 = arith.addf %58, %63 : vector<16x1024xf32>
    %c0_32 = arith.constant 0 : index
    %c0_33 = arith.constant 0 : index
    %65 = vector.load %arg3[%c0_32, %c0_33] : memref<16x1xf32, #tpu.memory_space<vmem>>, vector<16x1xf32>
    %66 = vector.broadcast %65 : vector<16x1xf32> to vector<16x1024xf32>
    %67 = arith.addf %64, %66 : vector<16x1024xf32>
    %cst_34 = arith.constant 0.000000e+00 : f32
    %68 = vector.broadcast %cst_34 : f32 to vector<16x1024xf32>
    %69 = arith.maximumf %67, %68 : vector<16x1024xf32>
    %cst_35 = arith.constant 0.000000e+00 : f32
    %70 = vector.broadcast %cst_35 : f32 to vector<16x1090xf32>
    %c0_36 = arith.constant 0 : index
    %c0_37 = arith.constant 0 : index
    %71 = vector.load %arg10[%c0_36, %c0_37] : memref<16x1090xf32, #tpu.memory_space<vmem>>, vector<16x1090xf32>
    tpu.vector_store %arg10[%c0_36, %c0_37], %70 {strides = array<i32>} : memref<16x1090xf32, #tpu.memory_space<vmem>>, vector<16x1090xf32>,
    %c0_38 = arith.constant 0 : index
    %c33_39 = arith.constant 33 : index
    %72 = vector.load %arg10[%c0_38, %c33_39] : memref<16x1090xf32, #tpu.memory_space<vmem>>, vector<16x1024xf32>
    tpu.vector_store %arg10[%c0_38, %c33_39], %69 {strides = array<i32>} : memref<16x1090xf32, #tpu.memory_space<vmem>>, vector<16x1024xf32>,
    %cst_40 = arith.constant 0.000000e+00 : f32
    %73 = vector.broadcast %cst_40 : f32 to vector<32x1024xf32>
    %c0_41 = arith.constant 0 : index
    %c0_42 = arith.constant 0 : index
    %74 = vector.load %arg10[%c0_41, %c0_42] : memref<16x1090xf32, #tpu.memory_space<vmem>>, vector<16x1024xf32>
    %75 = vector.broadcast %11 : vector<1x1024xf32> to vector<16x1024xf32>
    %76 = arith.mulf %74, %75 : vector<16x1024xf32>
    %c0_43 = arith.constant 0 : index
    %c0_44 = arith.constant 0 : index
    %77 = vector.load %arg4[%c0_43, %c0_44] : memref<32x144xf32, #tpu.memory_space<vmem>>, vector<32x16xf32>
    %cst_45 = arith.constant dense<0.000000e+00> : vector<32x1024xf32>
    %78 = tpu.matmul %77, %76, %cst_45 {dimension_numbers = #tpu.dot_dimension_numbers<[1], [0], [0], [1], [0, 0, 1, 1], [], []>} : vector<32x16xf32>, vector<16x1024xf32>, vector<32x1024xf32> -> vector<32x1024xf32>
    %79 = arith.addf %73, %78 : vector<32x1024xf32>
    %c0_46 = arith.constant 0 : index
    %c1_47 = arith.constant 1 : index
    %80 = vector.load %arg10[%c0_46, %c1_47] : memref<16x1090xf32, #tpu.memory_space<vmem>>, vector<16x1024xf32>
    %c0_48 = arith.constant 0 : index
    %c16 = arith.constant 16 : index
    %81 = vector.load %arg4[%c0_48, %c16] : memref<32x144xf32, #tpu.memory_space<vmem>>, vector<32x16xf32>
    %cst_49 = arith.constant dense<0.000000e+00> : vector<32x1024xf32>
    %82 = tpu.matmul %81, %80, %cst_49 {dimension_numbers = #tpu.dot_dimension_numbers<[1], [0], [0], [1], [0, 0, 1, 1], [], []>} : vector<32x16xf32>, vector<16x1024xf32>, vector<32x1024xf32> -> vector<32x1024xf32>
    %83 = arith.addf %79, %82 : vector<32x1024xf32>
    %c0_50 = arith.constant 0 : index
    %c2_51 = arith.constant 2 : index
    %84 = vector.load %arg10[%c0_50, %c2_51] : memref<16x1090xf32, #tpu.memory_space<vmem>>, vector<16x1024xf32>
    %85 = vector.broadcast %15 : vector<1x1024xf32> to vector<16x1024xf32>
    %86 = arith.mulf %84, %85 : vector<16x1024xf32>
    %c0_52 = arith.constant 0 : index
    %c32_53 = arith.constant 32 : index
    %87 = vector.load %arg4[%c0_52, %c32_53] : memref<32x144xf32, #tpu.memory_space<vmem>>, vector<32x16xf32>
    %cst_54 = arith.constant dense<0.000000e+00> : vector<32x1024xf32>
    %88 = tpu.matmul %87, %86, %cst_54 {dimension_numbers = #tpu.dot_dimension_numbers<[1], [0], [0], [1], [0, 0, 1, 1], [], []>} : vector<32x16xf32>, vector<16x1024xf32>, vector<32x1024xf32> -> vector<32x1024xf32>
    %89 = arith.addf %83, %88 : vector<32x1024xf32>
    %c0_55 = arith.constant 0 : index
    %c32_56 = arith.constant 32 : index
    %90 = vector.load %arg10[%c0_55, %c32_56] : memref<16x1090xf32, #tpu.memory_space<vmem>>, vector<16x1024xf32>
    %91 = vector.broadcast %11 : vector<1x1024xf32> to vector<16x1024xf32>
    %92 = arith.mulf %90, %91 : vector<16x1024xf32>
    %c0_57 = arith.constant 0 : index
    %c48 = arith.constant 48 : index
    %93 = vector.load %arg4[%c0_57, %c48] : memref<32x144xf32, #tpu.memory_space<vmem>>, vector<32x16xf32>
    %cst_58 = arith.constant dense<0.000000e+00> : vector<32x1024xf32>
    %94 = tpu.matmul %93, %92, %cst_58 {dimension_numbers = #tpu.dot_dimension_numbers<[1], [0], [0], [1], [0, 0, 1, 1], [], []>} : vector<32x16xf32>, vector<16x1024xf32>, vector<32x1024xf32> -> vector<32x1024xf32>
    %95 = arith.addf %89, %94 : vector<32x1024xf32>
    %c0_59 = arith.constant 0 : index
    %c33_60 = arith.constant 33 : index
    %96 = vector.load %arg10[%c0_59, %c33_60] : memref<16x1090xf32, #tpu.memory_space<vmem>>, vector<16x1024xf32>
    %c0_61 = arith.constant 0 : index
    %c64_62 = arith.constant 64 : index
    %97 = vector.load %arg4[%c0_61, %c64_62] : memref<32x144xf32, #tpu.memory_space<vmem>>, vector<32x16xf32>
    %cst_63 = arith.constant dense<0.000000e+00> : vector<32x1024xf32>
    %98 = tpu.matmul %97, %96, %cst_63 {dimension_numbers = #tpu.dot_dimension_numbers<[1], [0], [0], [1], [0, 0, 1, 1], [], []>} : vector<32x16xf32>, vector<16x1024xf32>, vector<32x1024xf32> -> vector<32x1024xf32>
    %99 = arith.addf %95, %98 : vector<32x1024xf32>
    %c0_64 = arith.constant 0 : index
    %c34_65 = arith.constant 34 : index
    %100 = vector.load %arg10[%c0_64, %c34_65] : memref<16x1090xf32, #tpu.memory_space<vmem>>, vector<16x1024xf32>
    %101 = vector.broadcast %15 : vector<1x1024xf32> to vector<16x1024xf32>
    %102 = arith.mulf %100, %101 : vector<16x1024xf32>
    %c0_66 = arith.constant 0 : index
    %c80 = arith.constant 80 : index
    %103 = vector.load %arg4[%c0_66, %c80] : memref<32x144xf32, #tpu.memory_space<vmem>>, vector<32x16xf32>
    %cst_67 = arith.constant dense<0.000000e+00> : vector<32x1024xf32>
    %104 = tpu.matmul %103, %102, %cst_67 {dimension_numbers = #tpu.dot_dimension_numbers<[1], [0], [0], [1], [0, 0, 1, 1], [], []>} : vector<32x16xf32>, vector<16x1024xf32>, vector<32x1024xf32> -> vector<32x1024xf32>
    %105 = arith.addf %99, %104 : vector<32x1024xf32>
    %c0_68 = arith.constant 0 : index
    %c64_69 = arith.constant 64 : index
    %106 = vector.load %arg10[%c0_68, %c64_69] : memref<16x1090xf32, #tpu.memory_space<vmem>>, vector<16x1024xf32>
    %107 = vector.broadcast %11 : vector<1x1024xf32> to vector<16x1024xf32>
    %108 = arith.mulf %106, %107 : vector<16x1024xf32>
    %c0_70 = arith.constant 0 : index
    %c96 = arith.constant 96 : index
    %109 = vector.load %arg4[%c0_70, %c96] : memref<32x144xf32, #tpu.memory_space<vmem>>, vector<32x16xf32>
    %cst_71 = arith.constant dense<0.000000e+00> : vector<32x1024xf32>
    %110 = tpu.matmul %109, %108, %cst_71 {dimension_numbers = #tpu.dot_dimension_numbers<[1], [0], [0], [1], [0, 0, 1, 1], [], []>} : vector<32x16xf32>, vector<16x1024xf32>, vector<32x1024xf32> -> vector<32x1024xf32>
    %111 = arith.addf %105, %110 : vector<32x1024xf32>
    %c0_72 = arith.constant 0 : index
    %c65_73 = arith.constant 65 : index
    %112 = vector.load %arg10[%c0_72, %c65_73] : memref<16x1090xf32, #tpu.memory_space<vmem>>, vector<16x1024xf32>
    %c0_74 = arith.constant 0 : index
    %c112 = arith.constant 112 : index
    %113 = vector.load %arg4[%c0_74, %c112] : memref<32x144xf32, #tpu.memory_space<vmem>>, vector<32x16xf32>
    %cst_75 = arith.constant dense<0.000000e+00> : vector<32x1024xf32>
    %114 = tpu.matmul %113, %112, %cst_75 {dimension_numbers = #tpu.dot_dimension_numbers<[1], [0], [0], [1], [0, 0, 1, 1], [], []>} : vector<32x16xf32>, vector<16x1024xf32>, vector<32x1024xf32> -> vector<32x1024xf32>
    %115 = arith.addf %111, %114 : vector<32x1024xf32>
    %c0_76 = arith.constant 0 : index
    %c66_77 = arith.constant 66 : index
    %116 = vector.load %arg10[%c0_76, %c66_77] : memref<16x1090xf32, #tpu.memory_space<vmem>>, vector<16x1024xf32>
    %117 = vector.broadcast %15 : vector<1x1024xf32> to vector<16x1024xf32>
    %118 = arith.mulf %116, %117 : vector<16x1024xf32>
    %c0_78 = arith.constant 0 : index
    %c128 = arith.constant 128 : index
    %119 = vector.load %arg4[%c0_78, %c128] : memref<32x144xf32, #tpu.memory_space<vmem>>, vector<32x16xf32>
    %cst_79 = arith.constant dense<0.000000e+00> : vector<32x1024xf32>
    %120 = tpu.matmul %119, %118, %cst_79 {dimension_numbers = #tpu.dot_dimension_numbers<[1], [0], [0], [1], [0, 0, 1, 1], [], []>} : vector<32x16xf32>, vector<16x1024xf32>, vector<32x1024xf32> -> vector<32x1024xf32>
    %121 = arith.addf %115, %120 : vector<32x1024xf32>
    %c0_80 = arith.constant 0 : index
    %c0_81 = arith.constant 0 : index
    %122 = vector.load %arg5[%c0_80, %c0_81] : memref<32x1xf32, #tpu.memory_space<vmem>>, vector<32x1xf32>
    %123 = vector.broadcast %122 : vector<32x1xf32> to vector<32x1024xf32>
    %124 = arith.addf %121, %123 : vector<32x1024xf32>
    %cst_82 = arith.constant 0.000000e+00 : f32
    %125 = vector.broadcast %cst_82 : f32 to vector<32x1024xf32>
    %126 = arith.maximumf %124, %125 : vector<32x1024xf32>
    %c0_83 = arith.constant 0 : index
    %c0_84 = arith.constant 0 : index
    %127 = vector.load %arg9[%c0_83, %c0_84] : memref<32x1024xf32, #tpu.memory_space<vmem>>, vector<32x1024xf32>
    tpu.vector_store %arg9[%c0_83, %c0_84], %126 {strides = array<i32>} : memref<32x1024xf32, #tpu.memory_space<vmem>>, vector<32x1024xf32>,
    %c0_85 = arith.constant 0 : index
    %c0_86 = arith.constant 0 : index
    %128 = vector.load %arg6[%c0_85, %c0_86] : memref<2x32xf32, #tpu.memory_space<vmem>>, vector<2x32xf32>
    %cst_87 = arith.constant dense<0.000000e+00> : vector<2x1024xf32>
    %129 = tpu.matmul %128, %126, %cst_87 {dimension_numbers = #tpu.dot_dimension_numbers<[1], [0], [0], [1], [0, 0, 1, 1], [], []>} : vector<2x32xf32>, vector<32x1024xf32>, vector<2x1024xf32> -> vector<2x1024xf32>
    %c0_88 = arith.constant 0 : index
    %c0_89 = arith.constant 0 : index
    %130 = vector.load %arg7[%c0_88, %c0_89] : memref<2x1xf32, #tpu.memory_space<vmem>>, vector<2x1xf32>
    %131 = vector.broadcast %130 : vector<2x1xf32> to vector<2x1024xf32>
    %132 = arith.addf %129, %131 : vector<2x1024xf32>
    %133 = arith.negf %132 : vector<2x1024xf32>
    %134 = math.exp %133 : vector<2x1024xf32>
    %cst_90 = arith.constant 1.000000e+00 : f32
    %135 = vector.broadcast %cst_90 : f32 to vector<2x1024xf32>
    %136 = arith.addf %135, %134 : vector<2x1024xf32>
    %137 = arith.divf %135, %136 : vector<2x1024xf32>
    %c0_91 = arith.constant 0 : index
    %c0_92 = arith.constant 0 : index
    %138 = vector.load %arg8[%c0_91, %c0_92] : memref<2x1024xf32, #tpu.memory_space<vmem>>, vector<2x1024xf32>
    tpu.vector_store %arg8[%c0_91, %c0_92], %137 {strides = array<i32>} : memref<2x1024xf32, #tpu.memory_space<vmem>>, vector<2x1024xf32>,
    return
  }
  func.func @transform_0(%arg0: i32) -> (i32, i32) {
    %c0_i32 = arith.constant 0 : i32
    %c0_i32_0 = arith.constant 0 : i32
    %c0_i32_1 = arith.constant 0 : i32
    return %c0_i32, %c0_i32_0 : i32, i32
  }
  func.func @transform_1(%arg0: i32) -> (i32, i32) {
    %c0_i32 = arith.constant 0 : i32
    %c0_i32_0 = arith.constant 0 : i32
    %c0_i32_1 = arith.constant 0 : i32
    return %c0_i32, %c0_i32_0 : i32, i32
  }
  func.func @transform_2(%arg0: i32) -> (i32, i32) {
    %c0_i32 = arith.constant 0 : i32
    %c0_i32_0 = arith.constant 0 : i32
    %c0_i32_1 = arith.constant 0 : i32
    return %c0_i32, %c0_i32_0 : i32, i32
  }
  func.func @transform_3(%arg0: i32) -> (i32, i32) {
    %c0_i32 = arith.constant 0 : i32
    %c0_i32_0 = arith.constant 0 : i32
    %c0_i32_1 = arith.constant 0 : i32
    return %c0_i32, %c0_i32_0 : i32, i32
  }
  func.func @transform_4(%arg0: i32) -> (i32, i32) {
    %c0_i32 = arith.constant 0 : i32
    %c0_i32_0 = arith.constant 0 : i32
    %c0_i32_1 = arith.constant 0 : i32
    return %c0_i32, %c0_i32_0 : i32, i32
  }
  func.func @transform_5(%arg0: i32) -> (i32, i32) {
    %c0_i32 = arith.constant 0 : i32
    %c0_i32_0 = arith.constant 0 : i32
    %c0_i32_1 = arith.constant 0 : i32
    return %c0_i32, %c0_i32_0 : i32, i32
  }
  func.func @transform_6(%arg0: i32) -> (i32, i32) {
    %c0_i32 = arith.constant 0 : i32
    %c0_i32_0 = arith.constant 0 : i32
    %c0_i32_1 = arith.constant 0 : i32
    return %c0_i32, %c0_i32_0 : i32, i32
  }
  func.func @transform_7(%arg0: i32) -> (i32, i32) {
    %c0_i32 = arith.constant 0 : i32
    %c0_i32_0 = arith.constant 0 : i32
    %c0_i32_1 = arith.constant 0 : i32
    return %c0_i32, %c0_i32_0 : i32, i32
  }
  func.func @transform_8(%arg0: i32) -> (i32, i32) {
    %c0_i32 = arith.constant 0 : i32
    %c0_i32_0 = arith.constant 0 : i32
    %c0_i32_1 = arith.constant 0 : i32
    return %c0_i32, %c0_i32_0 : i32, i32
  }
}

</mosaic_0001>

<llo_original>
// kernel: _forward_device.1
$region0: #{_forward_device.1}
  #allocation0 [shape = 'u32[]', space=smem, size = 0x4, offset = 0x4, fixed_abs, tag = 'smem constant byte address 0x4 - core index']
  #allocation1 [shape = 'u32[72,128]{1,0:T(1,128)}', space=vmem, size = 0x9000, scoped, tag = 'internal scratch']
  #allocation2 [shape = 'f32[16,1090]{1,0:T(8,128)}', space=vmem, size = 0x12000, scoped, tag = 'scratch operand']
  %s0 = inlined_call_operand.vmem [shape: f32[3,1090], index: 0, kind: input, shape index: {}]
  %s1 = inlined_call_operand.vmem [shape: f32[16,27], index: 1, kind: input, shape index: {}]
  %s2 = inlined_call_operand.vmem [shape: f32[16,1], index: 2, kind: input, shape index: {}]
  %s3 = inlined_call_operand.vmem [shape: f32[32,144], index: 3, kind: input, shape index: {}]
  %s4 = inlined_call_operand.vmem [shape: f32[32,1], index: 4, kind: input, shape index: {}]
  %s5 = inlined_call_operand.vmem [shape: f32[2,32], index: 5, kind: input, shape index: {}]
  %s6 = inlined_call_operand.vmem [shape: f32[2,1], index: 6, kind: input, shape index: {}]
  %s7 = inlined_call_operand.vmem [shape: f32[2,1024], index: 7, kind: output, shape index: {0}]
  %s8 = inlined_call_operand.vmem [shape: f32[32,1024], index: 8, kind: output, shape index: {1}]
  %9 = xla_tuple %s7, %s8
  %s10 = sld [smem:[#allocation0]]
  $region46: #{_forward_device.1} parent=0
    _
  %s12 = ssub.s32 1, %s10
  %s13 = scalar_select 0, %s12, %s10
  // Predicated region
  $region2: #{_forward_device.1} parent=0 // pred_check
    _
  $region3: #{_forward_device.1} parent=0 // pred_check_branch
    %15 = sbr.rel (0) target = $region5
  $region4: #{_forward_device.1} parent=0 // pred_region
    _
  $region5: #{_forward_device.1} parent=0 // pred_fallthru
    _
  // Predicated region
  $region6: #{_forward_device.1} parent=0 // pred_check
    _
  $region7: #{_forward_device.1} parent=0 // pred_check_branch
    %17 = sbr.rel (0) target = $region9
  $region8: #{_forward_device.1} parent=0 // pred_region
    _
  $region9: #{_forward_device.1} parent=0 // pred_fallthru
    _
  // Predicated region
  $region10: #{_forward_device.1} parent=0 // pred_check
    _
  $region11: #{_forward_device.1} parent=0 // pred_check_branch
    %19 = sbr.rel (0) target = $region13
  $region12: #{_forward_device.1} parent=0 // pred_region
    _
  $region13: #{_forward_device.1} parent=0 // pred_fallthru
    _
  // Predicated region
  $region14: #{_forward_device.1} parent=0 // pred_check
    _
  $region15: #{_forward_device.1} parent=0 // pred_check_branch
    %21 = sbr.rel (0) target = $region17
  $region16: #{_forward_device.1} parent=0 // pred_region
    _
  $region17: #{_forward_device.1} parent=0 // pred_fallthru
    _
  // Predicated region
  $region18: #{_forward_device.1} parent=0 // pred_check
    _
  $region19: #{_forward_device.1} parent=0 // pred_check_branch
    %23 = sbr.rel (0) target = $region21
  $region20: #{_forward_device.1} parent=0 // pred_region
    _
  $region21: #{_forward_device.1} parent=0 // pred_fallthru
    _
  // Predicated region
  $region22: #{_forward_device.1} parent=0 // pred_check
    _
  $region23: #{_forward_device.1} parent=0 // pred_check_branch
    %25 = sbr.rel (0) target = $region25
  $region24: #{_forward_device.1} parent=0 // pred_region
    _
  $region25: #{_forward_device.1} parent=0 // pred_fallthru
    _
  // Predicated region
  $region26: #{_forward_device.1} parent=0 // pred_check
    _
  $region27: #{_forward_device.1} parent=0 // pred_check_branch
    %27 = sbr.rel (0) target = $region29
  $region28: #{_forward_device.1} parent=0 // pred_region
    _
  $region29: #{_forward_device.1} parent=0 // pred_fallthru
    _
  %v28 = vlaneseq
  %v29 = vand.u32 %v28, 127
  %v30 = vadd.s32 %v29, 128
  %v31 = vadd.s32 %v29, 256
  %v32 = vadd.s32 %v29, 384
  %v33 = vadd.s32 %v29, 512
  %v34 = vadd.s32 %v29, 640
  %v35 = vadd.s32 %v29, 768
  %v36 = vadd.s32 %v29, 896
  %v37 = vcvt.s32.f32 %v29
  %v38 = vcvt.s32.f32 %v30
  %v39 = vcvt.s32.f32 %v31
  %v40 = vcvt.s32.f32 %v32
  %v41 = vcvt.s32.f32 %v33
  %v42 = vcvt.s32.f32 %v34
  %v43 = vcvt.s32.f32 %v35
  %v44 = vcvt.s32.f32 %v36
  %v45 = vmul.f32 %v37, 0.03125
  %v46 = vmul.f32 %v38, 0.03125
  %v47 = vmul.f32 %v39, 0.03125
  %v48 = vmul.f32 %v40, 0.03125
  %v49 = vmul.f32 %v41, 0.03125
  %v50 = vmul.f32 %v42, 0.03125
  %v51 = vmul.f32 %v43, 0.03125
  %v52 = vmul.f32 %v44, 0.03125
  %v53 = vfloor.f32 %v45
  %v54 = vfloor.f32 %v46
  %v55 = vfloor.f32 %v47
  %v56 = vfloor.f32 %v48
  %v57 = vfloor.f32 %v49
  %v58 = vfloor.f32 %v50
  %v59 = vfloor.f32 %v51
  %v60 = vfloor.f32 %v52
  %v61 = vmul.f32 %v53, 32.0
  %v62 = vmul.f32 %v54, 32.0
  %v63 = vmul.f32 %v55, 32.0
  %v64 = vmul.f32 %v56, 32.0
  %v65 = vmul.f32 %v57, 32.0
  %v66 = vmul.f32 %v58, 32.0
  %v67 = vmul.f32 %v59, 32.0
  %v68 = vmul.f32 %v60, 32.0
  %v69 = vsub.f32 %v37, %v61
  %v70 = vsub.f32 %v38, %v62
  %v71 = vsub.f32 %v39, %v63
  %v72 = vsub.f32 %v40, %v64
  %v73 = vsub.f32 %v41, %v65
  %v74 = vsub.f32 %v42, %v66
  %v75 = vsub.f32 %v43, %v67
  %v76 = vsub.f32 %v44, %v68
  %vm77 = vcmp.ge.f32.partialorder %v69, 1.0
  %vm78 = vcmp.ge.f32.partialorder %v70, 1.0
  %vm79 = vcmp.ge.f32.partialorder %v71, 1.0
  %vm80 = vcmp.ge.f32.partialorder %v72, 1.0
  %vm81 = vcmp.ge.f32.partialorder %v73, 1.0
  %vm82 = vcmp.ge.f32.partialorder %v74, 1.0
  %vm83 = vcmp.ge.f32.partialorder %v75, 1.0
  %vm84 = vcmp.ge.f32.partialorder %v76, 1.0
  %v85 = vsel %vm77, 1, 0
  %v86 = vsel %vm78, 1, 0
  %v87 = vsel %vm79, 1, 0
  %v88 = vsel %vm80, 1, 0
  %v89 = vsel %vm81, 1, 0
  %v90 = vsel %vm82, 1, 0
  %v91 = vsel %vm83, 1, 0
  %v92 = vsel %vm84, 1, 0
  %v93 = vcvt.s32.f32 %v85
  %v94 = vcvt.s32.f32 %v86
  %v95 = vcvt.s32.f32 %v87
  %v96 = vcvt.s32.f32 %v88
  %v97 = vcvt.s32.f32 %v89
  %v98 = vcvt.s32.f32 %v90
  %v99 = vcvt.s32.f32 %v91
  %v100 = vcvt.s32.f32 %v92
  %vm101 = vcmp.le.f32.partialorder %v69, 30.0
  %vm102 = vcmp.le.f32.partialorder %v70, 30.0
  %vm103 = vcmp.le.f32.partialorder %v71, 30.0
  %vm104 = vcmp.le.f32.partialorder %v72, 30.0
  %vm105 = vcmp.le.f32.partialorder %v73, 30.0
  %vm106 = vcmp.le.f32.partialorder %v74, 30.0
  %vm107 = vcmp.le.f32.partialorder %v75, 30.0
  %vm108 = vcmp.le.f32.partialorder %v76, 30.0
  %v109 = vsel %vm101, 1, 0
  %v110 = vsel %vm102, 1, 0
  %v111 = vsel %vm103, 1, 0
  %v112 = vsel %vm104, 1, 0
  %v113 = vsel %vm105, 1, 0
  %v114 = vsel %vm106, 1, 0
  %v115 = vsel %vm107, 1, 0
  %v116 = vsel %vm108, 1, 0
  %v117 = vcvt.s32.f32 %v109
  %v118 = vcvt.s32.f32 %v110
  %v119 = vcvt.s32.f32 %v111
  %v120 = vcvt.s32.f32 %v112
  %v121 = vcvt.s32.f32 %v113
  %v122 = vcvt.s32.f32 %v114
  %v123 = vcvt.s32.f32 %v115
  %v124 = vcvt.s32.f32 %v116
  %v125 = vld [vmem:[%s0] sm:$0x77]
  %v126 = vld [vmem:[%s0 + $0x8] sm:$0x77]
  %v127 = vld [vmem:[%s0 + $0x10] sm:$0x77]
  %v128 = vld [vmem:[%s0 + $0x18] sm:$0x77]
  %v137 = vrot.slane %v94, 4
  %v138 = vrot.slane %v96, 4
  %v139 = vrot.slane %v98, 4
  %v140 = vrot.slane %v100, 4
  %vm141 = vcmask 1043456
  %v142 = vsel %vm141, %v93, %v137
  %v143 = vsel %vm141, %v95, %v138
  %v144 = vsel %vm141, %v97, %v139
  %v145 = vsel %vm141, %v99, %v140
  %v150 = vmul.f32 %v125, %v142
  %v151 = vmul.f32 %v126, %v143
  %v152 = vmul.f32 %v127, %v144
  %v153 = vmul.f32 %v128, %v145
  %v154 = vld [vmem:[%s1] sm:$0xff]
  %v155 = vld [vmem:[%s1 + $0x8] sm:$0xff]
  %v156 = vld [vmem:[%s0 + $0x20] sm:$0x7]
  %159 = vrot.lane.b32.xlu0 %v154, 125
  %v160 = vpop.permute.xlu0 %159
  %161 = vrot.lane.b32.xlu0 %v155, 125
  %v162 = vpop.permute.xlu0 %161
  %168 = vst [vmem:[#allocation1] ss:$2 sm:$0xff] %v125
  %s169 = scalar_lea.vmem [#allocation1], 16
  %170 = vst [vmem:[%s169] ss:$2 sm:$0xff] %v126
  %s171 = scalar_lea.vmem [#allocation1], 32
  %172 = vst [vmem:[%s171] ss:$2 sm:$0xff] %v127
  %s173 = scalar_lea.vmem [#allocation1], 48
  %174 = vst [vmem:[%s173] ss:$2 sm:$0xff] %v128
  %v175 = vld.sshfl [vmem:[#allocation1] sm:$0xff pattern:$0x75316420]
  %v176 = vld.sshfl [vmem:[#allocation1 + $0x8] sm:$0xff pattern:$0x75316420]
  %v177 = vld.sshfl [vmem:[#allocation1 + $0x10] sm:$0xff pattern:$0x75316420]
  %v178 = vld.sshfl [vmem:[#allocation1 + $0x18] sm:$0xff pattern:$0x75316420]
  %v179 = vld.sshfl [vmem:[#allocation1 + $0x20] sm:$0xff pattern:$0x75316420]
  %v180 = vld.sshfl [vmem:[#allocation1 + $0x28] sm:$0xff pattern:$0x75316420]
  %v181 = vld.sshfl [vmem:[#allocation1 + $0x30] sm:$0xff pattern:$0x75316420]
  %v182 = vld.sshfl [vmem:[#allocation1 + $0x38] sm:$0xff pattern:$0x75316420]
  %183 = vst [vmem:[#allocation1] ss:$2 sm:$0xff] %v156
  %v184 = vld.sshfl [vmem:[#allocation1] sm:$0xff pattern:$0x75316420]
  %185 = vrot.lane.b32.xlu0 %v175, 127
  %v186 = vpop.permute.xlu0 %185
  %187 = vrot.lane.b32.xlu0 %v176, 127
  %v188 = vpop.permute.xlu0 %187
  %189 = vrot.lane.b32.xlu0 %v177, 127
  %v190 = vpop.permute.xlu0 %189
  %191 = vrot.lane.b32.xlu0 %v178, 127
  %v192 = vpop.permute.xlu0 %191
  %193 = vrot.lane.b32.xlu0 %v179, 127
  %v194 = vpop.permute.xlu0 %193
  %195 = vrot.lane.b32.xlu0 %v180, 127
  %v196 = vpop.permute.xlu0 %195
  %197 = vrot.lane.b32.xlu0 %v181, 127
  %v198 = vpop.permute.xlu0 %197
  %199 = vrot.lane.b32.xlu0 %v182, 127
  %v200 = vpop.permute.xlu0 %199
  %201 = vrot.lane.b32.xlu0 %v184, 127
  %v202 = vpop.permute.xlu0 %201
  %vm203 = vcmask 1039360
  %v204 = vsel %vm203, %v186, %v188
  %v205 = vsel %vm203, %v188, %v190
  %v206 = vsel %vm203, %v190, %v192
  %v207 = vsel %vm203, %v192, %v194
  %v208 = vsel %vm203, %v194, %v196
  %v209 = vsel %vm203, %v196, %v198
  %v210 = vsel %vm203, %v198, %v200
  %v211 = vsel %vm203, %v200, %v202
  %vm212 = vcmask 23552
  %v213 = vsel %vm212, %v160, 0
  %v215 = vsel %vm212, %v162, 0
  %vm217 = vcmask 1042432
  %v218 = vsel %vm217, %v204, 0
  %v220 = vsel %vm217, %v205, 0
  %v222 = vsel %vm217, %v206, 0
  %v224 = vsel %vm217, %v207, 0
  %v226 = vsel %vm217, %v208, 0
  %v228 = vsel %vm217, %v209, 0
  %v230 = vsel %vm217, %v210, 0
  %v232 = vsel %vm217, %v211, 0
  %234 = vmatpush.msra.mxu0 0.0
  %235 = vmatpush.msra.mxu0 0.0
  %236 = vmatpush.msra.mxu0 0.0
  %237 = vmatpush.msra.mxu0 0.0
  %238 = vmatpush.msra.mxu0 0.0
  %239 = vmatpush.msra.mxu0 0.0
  %240 = vmatpush.msra.mxu0 0.0
  %241 = vmatpush.msra.mxu0 0.0
  %242 = vmatpush.msra.mxu0 0.0
  %243 = vmatpush.msra.mxu0 0.0
  %244 = vmatpush.msra.mxu0 0.0
  %245 = vmatpush.msra.mxu0 0.0
  %246 = vmatpush.msra.mxu0 0.0
  %247 = vmatpush.msra.mxu0 0.0
  %248 = vmatpush.msra.mxu0 0.0
  %249 = vmatpush.msra.mxu0 %v218
  %250 = vmatmul.f32.gmra.mxu0 %v213
  %v251 = vpop.f32.mrf.mxu0
  %v252 = vadd.f32 0.0, %v251
  %253 = vmatmul.f32.gmra.mxu0 %v215
  %v254 = vpop.f32.mrf.mxu0
  %v255 = vadd.f32 0.0, %v254
  %256 = vdwg.mxu0
  %257 = vmatpush.msra.mxu0 0.0
  %258 = vmatpush.msra.mxu0 0.0
  %259 = vmatpush.msra.mxu0 0.0
  %260 = vmatpush.msra.mxu0 0.0
  %261 = vmatpush.msra.mxu0 0.0
  %262 = vmatpush.msra.mxu0 0.0
  %263 = vmatpush.msra.mxu0 0.0
  %264 = vmatpush.msra.mxu0 0.0
  %265 = vmatpush.msra.mxu0 0.0
  %266 = vmatpush.msra.mxu0 0.0
  %267 = vmatpush.msra.mxu0 0.0
  %268 = vmatpush.msra.mxu0 0.0
  %269 = vmatpush.msra.mxu0 0.0
  %270 = vmatpush.msra.mxu0 0.0
  %271 = vmatpush.msra.mxu0 0.0
  %272 = vmatpush.msra.mxu0 %v220
  %273 = vmatmul.f32.gmra.mxu0 %v213
  %v274 = vpop.f32.mrf.mxu0
  %v275 = vadd.f32 0.0, %v274
  %276 = vmatmul.f32.gmra.mxu0 %v215
  %v277 = vpop.f32.mrf.mxu0
  %v278 = vadd.f32 0.0, %v277
  %279 = vdwg.mxu0
  %280 = vmatpush.msra.mxu0 0.0
  %281 = vmatpush.msra.mxu0 0.0
  %282 = vmatpush.msra.mxu0 0.0
  %283 = vmatpush.msra.mxu0 0.0
  %284 = vmatpush.msra.mxu0 0.0
  %285 = vmatpush.msra.mxu0 0.0
  %286 = vmatpush.msra.mxu0 0.0
  %287 = vmatpush.msra.mxu0 0.0
  %288 = vmatpush.msra.mxu0 0.0
  %289 = vmatpush.msra.mxu0 0.0
  %290 = vmatpush.msra.mxu0 0.0
  %291 = vmatpush.msra.mxu0 0.0
  %292 = vmatpush.msra.mxu0 0.0
  %293 = vmatpush.msra.mxu0 0.0
  %294 = vmatpush.msra.mxu0 0.0
  %295 = vmatpush.msra.mxu0 %v222
  %296 = vmatmul.f32.gmra.mxu0 %v213
  %v297 = vpop.f32.mrf.mxu0
  %v298 = vadd.f32 0.0, %v297
  %299 = vmatmul.f32.gmra.mxu0 %v215
  %v300 = vpop.f32.mrf.mxu0
  %v301 = vadd.f32 0.0, %v300
  %302 = vdwg.mxu0
  %303 = vmatpush.msra.mxu0 0.0
  %304 = vmatpush.msra.mxu0 0.0
  %305 = vmatpush.msra.mxu0 0.0
  %306 = vmatpush.msra.mxu0 0.0
  %307 = vmatpush.msra.mxu0 0.0
  %308 = vmatpush.msra.mxu0 0.0
  %309 = vmatpush.msra.mxu0 0.0
  %310 = vmatpush.msra.mxu0 0.0
  %311 = vmatpush.msra.mxu0 0.0
  %312 = vmatpush.msra.mxu0 0.0
  %313 = vmatpush.msra.mxu0 0.0
  %314 = vmatpush.msra.mxu0 0.0
  %315 = vmatpush.msra.mxu0 0.0
  %316 = vmatpush.msra.mxu0 0.0
  %317 = vmatpush.msra.mxu0 0.0
  %318 = vmatpush.msra.mxu0 %v224
  %319 = vmatmul.f32.gmra.mxu0 %v213
  %v320 = vpop.f32.mrf.mxu0
  %v321 = vadd.f32 0.0, %v320
  %322 = vmatmul.f32.gmra.mxu0 %v215
  %v323 = vpop.f32.mrf.mxu0
  %v324 = vadd.f32 0.0, %v323
  %325 = vdwg.mxu0
  %326 = vmatpush.msra.mxu0 0.0
  %327 = vmatpush.msra.mxu0 0.0
  %328 = vmatpush.msra.mxu0 0.0
  %329 = vmatpush.msra.mxu0 0.0
  %330 = vmatpush.msra.mxu0 0.0
  %331 = vmatpush.msra.mxu0 0.0
  %332 = vmatpush.msra.mxu0 0.0
  %333 = vmatpush.msra.mxu0 0.0
  %334 = vmatpush.msra.mxu0 0.0
  %335 = vmatpush.msra.mxu0 0.0
  %336 = vmatpush.msra.mxu0 0.0
  %337 = vmatpush.msra.mxu0 0.0
  %338 = vmatpush.msra.mxu0 0.0
  %339 = vmatpush.msra.mxu0 0.0
  %340 = vmatpush.msra.mxu0 0.0
  %341 = vmatpush.msra.mxu0 %v226
  %342 = vmatmul.f32.gmra.mxu0 %v213
  %v343 = vpop.f32.mrf.mxu0
  %v344 = vadd.f32 0.0, %v343
  %345 = vmatmul.f32.gmra.mxu0 %v215
  %v346 = vpop.f32.mrf.mxu0
  %v347 = vadd.f32 0.0, %v346
  %348 = vdwg.mxu0
  %349 = vmatpush.msra.mxu0 0.0
  %350 = vmatpush.msra.mxu0 0.0
  %351 = vmatpush.msra.mxu0 0.0
  %352 = vmatpush.msra.mxu0 0.0
  %353 = vmatpush.msra.mxu0 0.0
  %354 = vmatpush.msra.mxu0 0.0
  %355 = vmatpush.msra.mxu0 0.0
  %356 = vmatpush.msra.mxu0 0.0
  %357 = vmatpush.msra.mxu0 0.0
  %358 = vmatpush.msra.mxu0 0.0
  %359 = vmatpush.msra.mxu0 0.0
  %360 = vmatpush.msra.mxu0 0.0
  %361 = vmatpush.msra.mxu0 0.0
  %362 = vmatpush.msra.mxu0 0.0
  %363 = vmatpush.msra.mxu0 0.0
  %364 = vmatpush.msra.mxu0 %v228
  %365 = vmatmul.f32.gmra.mxu0 %v213
  %v366 = vpop.f32.mrf.mxu0
  %v367 = vadd.f32 0.0, %v366
  %368 = vmatmul.f32.gmra.mxu0 %v215
  %v369 = vpop.f32.mrf.mxu0
  %v370 = vadd.f32 0.0, %v369
  %371 = vdwg.mxu0
  %372 = vmatpush.msra.mxu0 0.0
  %373 = vmatpush.msra.mxu0 0.0
  %374 = vmatpush.msra.mxu0 0.0
  %375 = vmatpush.msra.mxu0 0.0
  %376 = vmatpush.msra.mxu0 0.0
  %377 = vmatpush.msra.mxu0 0.0
  %378 = vmatpush.msra.mxu0 0.0
  %379 = vmatpush.msra.mxu0 0.0
  %380 = vmatpush.msra.mxu0 0.0
  %381 = vmatpush.msra.mxu0 0.0
  %382 = vmatpush.msra.mxu0 0.0
  %383 = vmatpush.msra.mxu0 0.0
  %384 = vmatpush.msra.mxu0 0.0
  %385 = vmatpush.msra.mxu0 0.0
  %386 = vmatpush.msra.mxu0 0.0
  %387 = vmatpush.msra.mxu0 %v230
  %388 = vmatmul.f32.gmra.mxu0 %v213
  %v389 = vpop.f32.mrf.mxu0
  %v390 = vadd.f32 0.0, %v389
  %391 = vmatmul.f32.gmra.mxu0 %v215
  %v392 = vpop.f32.mrf.mxu0
  %v393 = vadd.f32 0.0, %v392
  %394 = vdwg.mxu0
  %395 = vmatpush.msra.mxu0 0.0
  %396 = vmatpush.msra.mxu0 0.0
  %397 = vmatpush.msra.mxu0 0.0
  %398 = vmatpush.msra.mxu0 0.0
  %399 = vmatpush.msra.mxu0 0.0
  %400 = vmatpush.msra.mxu0 0.0
  %401 = vmatpush.msra.mxu0 0.0
  %402 = vmatpush.msra.mxu0 0.0
  %403 = vmatpush.msra.mxu0 0.0
  %404 = vmatpush.msra.mxu0 0.0
  %405 = vmatpush.msra.mxu0 0.0
  %406 = vmatpush.msra.mxu0 0.0
  %407 = vmatpush.msra.mxu0 0.0
  %408 = vmatpush.msra.mxu0 0.0
  %409 = vmatpush.msra.mxu0 0.0
  %410 = vmatpush.msra.mxu0 %v232
  %411 = vmatmul.f32.gmra.mxu0 %v213
  %v412 = vpop.f32.mrf.mxu0
  %v413 = vadd.f32 0.0, %v412
  %414 = vmatmul.f32.gmra.mxu0 %v215
  %v415 = vpop.f32.mrf.mxu0
  %v416 = vadd.f32 0.0, %v415
  %417 = vdwg.mxu0
  %422 = vst [vmem:[#allocation1] ss:$2 sm:$0xff] %v150
  %s423 = scalar_lea.vmem [#allocation1], 16
  %424 = vst [vmem:[%s423] ss:$2 sm:$0xff] %v151
  %s425 = scalar_lea.vmem [#allocation1], 32
  %426 = vst [vmem:[%s425] ss:$2 sm:$0xff] %v152
  %s427 = scalar_lea.vmem [#allocation1], 48
  %428 = vst [vmem:[%s427] ss:$2 sm:$0xff] %v153
  %v429 = vld.sshfl [vmem:[#allocation1] sm:$0xff pattern:$0x75316420]
  %v430 = vld.sshfl [vmem:[#allocation1 + $0x8] sm:$0xff pattern:$0x75316420]
  %v431 = vld.sshfl [vmem:[#allocation1 + $0x10] sm:$0xff pattern:$0x75316420]
  %v432 = vld.sshfl [vmem:[#allocation1 + $0x18] sm:$0xff pattern:$0x75316420]
  %v433 = vld.sshfl [vmem:[#allocation1 + $0x20] sm:$0xff pattern:$0x75316420]
  %v434 = vld.sshfl [vmem:[#allocation1 + $0x28] sm:$0xff pattern:$0x75316420]
  %v435 = vld.sshfl [vmem:[#allocation1 + $0x30] sm:$0xff pattern:$0x75316420]
  %v436 = vld.sshfl [vmem:[#allocation1 + $0x38] sm:$0xff pattern:$0x75316420]
  %v437 = vsel %vm212, %v154, 0
  %v439 = vsel %vm212, %v155, 0
  %v441 = vsel %vm217, %v429, 0
  %v443 = vsel %vm217, %v430, 0
  %v445 = vsel %vm217, %v431, 0
  %v447 = vsel %vm217, %v432, 0
  %v449 = vsel %vm217, %v433, 0
  %v451 = vsel %vm217, %v434, 0
  %v453 = vsel %vm217, %v435, 0
  %v455 = vsel %vm217, %v436, 0
  %457 = vmatpush.msra.mxu0 0.0
  %458 = vmatpush.msra.mxu0 0.0
  %459 = vmatpush.msra.mxu0 0.0
  %460 = vmatpush.msra.mxu0 0.0
  %461 = vmatpush.msra.mxu0 0.0
  %462 = vmatpush.msra.mxu0 0.0
  %463 = vmatpush.msra.mxu0 0.0
  %464 = vmatpush.msra.mxu0 0.0
  %465 = vmatpush.msra.mxu0 0.0
  %466 = vmatpush.msra.mxu0 0.0
  %467 = vmatpush.msra.mxu0 0.0
  %468 = vmatpush.msra.mxu0 0.0
  %469 = vmatpush.msra.mxu0 0.0
  %470 = vmatpush.msra.mxu0 0.0
  %471 = vmatpush.msra.mxu0 0.0
  %472 = vmatpush.msra.mxu0 %v441
  %473 = vmatmul.f32.gmra.mxu0 %v437
  %v474 = vpop.f32.mrf.mxu0
  %v475 = vadd.f32 %v252, %v474
  %476 = vmatmul.f32.gmra.mxu0 %v439
  %v477 = vpop.f32.mrf.mxu0
  %v478 = vadd.f32 %v255, %v477
  %479 = vdwg.mxu0
  %480 = vmatpush.msra.mxu0 0.0
  %481 = vmatpush.msra.mxu0 0.0
  %482 = vmatpush.msra.mxu0 0.0
  %483 = vmatpush.msra.mxu0 0.0
  %484 = vmatpush.msra.mxu0 0.0
  %485 = vmatpush.msra.mxu0 0.0
  %486 = vmatpush.msra.mxu0 0.0
  %487 = vmatpush.msra.mxu0 0.0
  %488 = vmatpush.msra.mxu0 0.0
  %489 = vmatpush.msra.mxu0 0.0
  %490 = vmatpush.msra.mxu0 0.0
  %491 = vmatpush.msra.mxu0 0.0
  %492 = vmatpush.msra.mxu0 0.0
  %493 = vmatpush.msra.mxu0 0.0
  %494 = vmatpush.msra.mxu0 0.0
  %495 = vmatpush.msra.mxu0 %v443
  %496 = vmatmul.f32.gmra.mxu0 %v437
  %v497 = vpop.f32.mrf.mxu0
  %v498 = vadd.f32 %v275, %v497
  %499 = vmatmul.f32.gmra.mxu0 %v439
  %v500 = vpop.f32.mrf.mxu0
  %v501 = vadd.f32 %v278, %v500
  %502 = vdwg.mxu0
  %503 = vmatpush.msra.mxu0 0.0
  %504 = vmatpush.msra.mxu0 0.0
  %505 = vmatpush.msra.mxu0 0.0
  %506 = vmatpush.msra.mxu0 0.0
  %507 = vmatpush.msra.mxu0 0.0
  %508 = vmatpush.msra.mxu0 0.0
  %509 = vmatpush.msra.mxu0 0.0
  %510 = vmatpush.msra.mxu0 0.0
  %511 = vmatpush.msra.mxu0 0.0
  %512 = vmatpush.msra.mxu0 0.0
  %513 = vmatpush.msra.mxu0 0.0
  %514 = vmatpush.msra.mxu0 0.0
  %515 = vmatpush.msra.mxu0 0.0
  %516 = vmatpush.msra.mxu0 0.0
  %517 = vmatpush.msra.mxu0 0.0
  %518 = vmatpush.msra.mxu0 %v445
  %519 = vmatmul.f32.gmra.mxu0 %v437
  %v520 = vpop.f32.mrf.mxu0
  %v521 = vadd.f32 %v298, %v520
  %522 = vmatmul.f32.gmra.mxu0 %v439
  %v523 = vpop.f32.mrf.mxu0
  %v524 = vadd.f32 %v301, %v523
  %525 = vdwg.mxu0
  %526 = vmatpush.msra.mxu0 0.0
  %527 = vmatpush.msra.mxu0 0.0
  %528 = vmatpush.msra.mxu0 0.0
  %529 = vmatpush.msra.mxu0 0.0
  %530 = vmatpush.msra.mxu0 0.0
  %531 = vmatpush.msra.mxu0 0.0
  %532 = vmatpush.msra.mxu0 0.0
  %533 = vmatpush.msra.mxu0 0.0
  %534 = vmatpush.msra.mxu0 0.0
  %535 = vmatpush.msra.mxu0 0.0
  %536 = vmatpush.msra.mxu0 0.0
  %537 = vmatpush.msra.mxu0 0.0
  %538 = vmatpush.msra.mxu0 0.0
  %539 = vmatpush.msra.mxu0 0.0
  %540 = vmatpush.msra.mxu0 0.0
  %541 = vmatpush.msra.mxu0 %v447
  %542 = vmatmul.f32.gmra.mxu0 %v437
  %v543 = vpop.f32.mrf.mxu0
  %v544 = vadd.f32 %v321, %v543
  %545 = vmatmul.f32.gmra.mxu0 %v439
  %v546 = vpop.f32.mrf.mxu0
  %v547 = vadd.f32 %v324, %v546
  %548 = vdwg.mxu0
  %549 = vmatpush.msra.mxu0 0.0
  %550 = vmatpush.msra.mxu0 0.0
  %551 = vmatpush.msra.mxu0 0.0
  %552 = vmatpush.msra.mxu0 0.0
  %553 = vmatpush.msra.mxu0 0.0
  %554 = vmatpush.msra.mxu0 0.0
  %555 = vmatpush.msra.mxu0 0.0
  %556 = vmatpush.msra.mxu0 0.0
  %557 = vmatpush.msra.mxu0 0.0
  %558 = vmatpush.msra.mxu0 0.0
  %559 = vmatpush.msra.mxu0 0.0
  %560 = vmatpush.msra.mxu0 0.0
  %561 = vmatpush.msra.mxu0 0.0
  %562 = vmatpush.msra.mxu0 0.0
  %563 = vmatpush.msra.mxu0 0.0
  %564 = vmatpush.msra.mxu0 %v449
  %565 = vmatmul.f32.gmra.mxu0 %v437
  %v566 = vpop.f32.mrf.mxu0
  %v567 = vadd.f32 %v344, %v566
  %568 = vmatmul.f32.gmra.mxu0 %v439
  %v569 = vpop.f32.mrf.mxu0
  %v570 = vadd.f32 %v347, %v569
  %571 = vdwg.mxu0
  %572 = vmatpush.msra.mxu0 0.0
  %573 = vmatpush.msra.mxu0 0.0
  %574 = vmatpush.msra.mxu0 0.0
  %575 = vmatpush.msra.mxu0 0.0
  %576 = vmatpush.msra.mxu0 0.0
  %577 = vmatpush.msra.mxu0 0.0
  %578 = vmatpush.msra.mxu0 0.0
  %579 = vmatpush.msra.mxu0 0.0
  %580 = vmatpush.msra.mxu0 0.0
  %581 = vmatpush.msra.mxu0 0.0
  %582 = vmatpush.msra.mxu0 0.0
  %583 = vmatpush.msra.mxu0 0.0
  %584 = vmatpush.msra.mxu0 0.0
  %585 = vmatpush.msra.mxu0 0.0
  %586 = vmatpush.msra.mxu0 0.0
  %587 = vmatpush.msra.mxu0 %v451
  %588 = vmatmul.f32.gmra.mxu0 %v437
  %v589 = vpop.f32.mrf.mxu0
  %v590 = vadd.f32 %v367, %v589
  %591 = vmatmul.f32.gmra.mxu0 %v439
  %v592 = vpop.f32.mrf.mxu0
  %v593 = vadd.f32 %v370, %v592
  %594 = vdwg.mxu0
  %595 = vmatpush.msra.mxu0 0.0
  %596 = vmatpush.msra.mxu0 0.0
  %597 = vmatpush.msra.mxu0 0.0
  %598 = vmatpush.msra.mxu0 0.0
  %599 = vmatpush.msra.mxu0 0.0
  %600 = vmatpush.msra.mxu0 0.0
  %601 = vmatpush.msra.mxu0 0.0
  %602 = vmatpush.msra.mxu0 0.0
  %603 = vmatpush.msra.mxu0 0.0
  %604 = vmatpush.msra.mxu0 0.0
  %605 = vmatpush.msra.mxu0 0.0
  %606 = vmatpush.msra.mxu0 0.0
  %607 = vmatpush.msra.mxu0 0.0
  %608 = vmatpush.msra.mxu0 0.0
  %609 = vmatpush.msra.mxu0 0.0
  %610 = vmatpush.msra.mxu0 %v453
  %611 = vmatmul.f32.gmra.mxu0 %v437
  %v612 = vpop.f32.mrf.mxu0
  %v613 = vadd.f32 %v390, %v612
  %614 = vmatmul.f32.gmra.mxu0 %v439
  %v615 = vpop.f32.mrf.mxu0
  %v616 = vadd.f32 %v393, %v615
  %617 = vdwg.mxu0
  %618 = vmatpush.msra.mxu0 0.0
  %619 = vmatpush.msra.mxu0 0.0
  %620 = vmatpush.msra.mxu0 0.0
  %621 = vmatpush.msra.mxu0 0.0
  %622 = vmatpush.msra.mxu0 0.0
  %623 = vmatpush.msra.mxu0 0.0
  %624 = vmatpush.msra.mxu0 0.0
  %625 = vmatpush.msra.mxu0 0.0
  %626 = vmatpush.msra.mxu0 0.0
  %627 = vmatpush.msra.mxu0 0.0
  %628 = vmatpush.msra.mxu0 0.0
  %629 = vmatpush.msra.mxu0 0.0
  %630 = vmatpush.msra.mxu0 0.0
  %631 = vmatpush.msra.mxu0 0.0
  %632 = vmatpush.msra.mxu0 0.0
  %633 = vmatpush.msra.mxu0 %v455
  %634 = vmatmul.f32.gmra.mxu0 %v437
  %v635 = vpop.f32.mrf.mxu0
  %v636 = vadd.f32 %v413, %v635
  %637 = vmatmul.f32.gmra.mxu0 %v439
  %v638 = vpop.f32.mrf.mxu0
  %v639 = vadd.f32 %v416, %v638
  %640 = vdwg.mxu0
  %v641 = vld [vmem:[%s0] sm:$0x77]
  %v642 = vld [vmem:[%s0 + $0x8] sm:$0x77]
  %v643 = vld [vmem:[%s0 + $0x10] sm:$0x77]
  %v644 = vld [vmem:[%s0 + $0x18] sm:$0x77]
  %v645 = vld [vmem:[%s0 + $0x20] sm:$0x7]
  %v654 = vrot.slane %v118, 4
  %v655 = vrot.slane %v120, 4
  %v656 = vrot.slane %v122, 4
  %v657 = vrot.slane %v124, 4
  %v658 = vsel %vm141, %v117, %v654
  %v659 = vsel %vm141, %v119, %v655
  %v660 = vsel %vm141, %v121, %v656
  %v661 = vsel %vm141, %v123, %v657
  %662 = vrot.lane.b32.xlu0 %v658, 2
  %v663 = vpop.permute.xlu0 %662
  %664 = vrot.lane.b32.xlu0 %v659, 2
  %v665 = vpop.permute.xlu0 %664
  %666 = vrot.lane.b32.xlu0 %v660, 2
  %v667 = vpop.permute.xlu0 %666
  %668 = vrot.lane.b32.xlu0 %v661, 2
  %v669 = vpop.permute.xlu0 %668
  %v670 = vrot.slane %v663, 4
  %v671 = vrot.slane %v665, 4
  %v672 = vrot.slane %v667, 4
  %v673 = vrot.slane %v669, 4
  %vm674 = vcmask 15360
  %v675 = vsel %vm674, %v670, %v663
  %v676 = vsel %vm141, %v670, %v671
  %v677 = vsel %vm674, %v676, %v665
  %v678 = vsel %vm141, %v671, %v672
  %v679 = vsel %vm674, %v678, %v667
  %v680 = vsel %vm141, %v672, %v673
  %v681 = vsel %vm674, %v680, %v669
  %v687 = vmul.f32 %v641, %v675
  %v688 = vmul.f32 %v642, %v677
  %v689 = vmul.f32 %v643, %v679
  %v690 = vmul.f32 %v644, %v681
  %v691 = vmul.f32 %v645, %v673
  %v692 = vld [vmem:[%s1] sm:$0xff]
  %v693 = vld [vmem:[%s1 + $0x8] sm:$0xff]
  %696 = vrot.lane.b32.xlu0 %v692, 122
  %v697 = vpop.permute.xlu0 %696
  %698 = vrot.lane.b32.xlu0 %v693, 122
  %v699 = vpop.permute.xlu0 %698
  %705 = vst [vmem:[#allocation1] ss:$2 sm:$0xff] %v687
  %s706 = scalar_lea.vmem [#allocation1], 16
  %707 = vst [vmem:[%s706] ss:$2 sm:$0xff] %v688
  %s708 = scalar_lea.vmem [#allocation1], 32
  %709 = vst [vmem:[%s708] ss:$2 sm:$0xff] %v689
  %s710 = scalar_lea.vmem [#allocation1], 48
  %711 = vst [vmem:[%s710] ss:$2 sm:$0xff] %v690
  %v712 = vld.sshfl [vmem:[#allocation1] sm:$0xff pattern:$0x75316420]
  %v713 = vld.sshfl [vmem:[#allocation1 + $0x8] sm:$0xff pattern:$0x75316420]
  %v714 = vld.sshfl [vmem:[#allocation1 + $0x10] sm:$0xff pattern:$0x75316420]
  %v715 = vld.sshfl [vmem:[#allocation1 + $0x18] sm:$0xff pattern:$0x75316420]
  %v716 = vld.sshfl [vmem:[#allocation1 + $0x20] sm:$0xff pattern:$0x75316420]
  %v717 = vld.sshfl [vmem:[#allocation1 + $0x28] sm:$0xff pattern:$0x75316420]
  %v718 = vld.sshfl [vmem:[#allocation1 + $0x30] sm:$0xff pattern:$0x75316420]
  %v719 = vld.sshfl [vmem:[#allocation1 + $0x38] sm:$0xff pattern:$0x75316420]
  %720 = vst [vmem:[#allocation1] ss:$2 sm:$0xff] %v691
  %v721 = vld.sshfl [vmem:[#allocation1] sm:$0xff pattern:$0x75316420]
  %722 = vrot.lane.b32.xlu0 %v712, 126
  %v723 = vpop.permute.xlu0 %722
  %724 = vrot.lane.b32.xlu0 %v713, 126
  %v725 = vpop.permute.xlu0 %724
  %726 = vrot.lane.b32.xlu0 %v714, 126
  %v727 = vpop.permute.xlu0 %726
  %728 = vrot.lane.b32.xlu0 %v715, 126
  %v729 = vpop.permute.xlu0 %728
  %730 = vrot.lane.b32.xlu0 %v716, 126
  %v731 = vpop.permute.xlu0 %730
  %732 = vrot.lane.b32.xlu0 %v717, 126
  %v733 = vpop.permute.xlu0 %732
  %734 = vrot.lane.b32.xlu0 %v718, 126
  %v735 = vpop.permute.xlu0 %734
  %736 = vrot.lane.b32.xlu0 %v719, 126
  %v737 = vpop.permute.xlu0 %736
  %738 = vrot.lane.b32.xlu0 %v721, 126
  %v739 = vpop.permute.xlu0 %738
  %vm740 = vcmask 1031168
  %v741 = vsel %vm740, %v723, %v725
  %v742 = vsel %vm740, %v725, %v727
  %v743 = vsel %vm740, %v727, %v729
  %v744 = vsel %vm740, %v729, %v731
  %v745 = vsel %vm740, %v731, %v733
  %v746 = vsel %vm740, %v733, %v735
  %v747 = vsel %vm740, %v735, %v737
  %v748 = vsel %vm740, %v737, %v739
  %v749 = vsel %vm212, %v697, 0
  %v751 = vsel %vm212, %v699, 0
  %v753 = vsel %vm217, %v741, 0
  %v755 = vsel %vm217, %v742, 0
  %v757 = vsel %vm217, %v743, 0
  %v759 = vsel %vm217, %v744, 0
  %v761 = vsel %vm217, %v745, 0
  %v763 = vsel %vm217, %v746, 0
  %v765 = vsel %vm217, %v747, 0
  %v767 = vsel %vm217, %v748, 0
  %769 = vmatpush.msra.mxu0 0.0
  %770 = vmatpush.msra.mxu0 0.0
  %771 = vmatpush.msra.mxu0 0.0
  %772 = vmatpush.msra.mxu0 0.0
  %773 = vmatpush.msra.mxu0 0.0
  %774 = vmatpush.msra.mxu0 0.0
  %775 = vmatpush.msra.mxu0 0.0
  %776 = vmatpush.msra.mxu0 0.0
  %777 = vmatpush.msra.mxu0 0.0
  %778 = vmatpush.msra.mxu0 0.0
  %779 = vmatpush.msra.mxu0 0.0
  %780 = vmatpush.msra.mxu0 0.0
  %781 = vmatpush.msra.mxu0 0.0
  %782 = vmatpush.msra.mxu0 0.0
  %783 = vmatpush.msra.mxu0 0.0
  %784 = vmatpush.msra.mxu0 %v753
  %785 = vmatmul.f32.gmra.mxu0 %v749
  %v786 = vpop.f32.mrf.mxu0
  %v787 = vadd.f32 0.0, %v786
  %788 = vmatmul.f32.gmra.mxu0 %v751
  %v789 = vpop.f32.mrf.mxu0
  %v790 = vadd.f32 0.0, %v789
  %791 = vdwg.mxu0
  %792 = vmatpush.msra.mxu0 0.0
  %793 = vmatpush.msra.mxu0 0.0
  %794 = vmatpush.msra.mxu0 0.0
  %795 = vmatpush.msra.mxu0 0.0
  %796 = vmatpush.msra.mxu0 0.0
  %797 = vmatpush.msra.mxu0 0.0
  %798 = vmatpush.msra.mxu0 0.0
  %799 = vmatpush.msra.mxu0 0.0
  %800 = vmatpush.msra.mxu0 0.0
  %801 = vmatpush.msra.mxu0 0.0
  %802 = vmatpush.msra.mxu0 0.0
  %803 = vmatpush.msra.mxu0 0.0
  %804 = vmatpush.msra.mxu0 0.0
  %805 = vmatpush.msra.mxu0 0.0
  %806 = vmatpush.msra.mxu0 0.0
  %807 = vmatpush.msra.mxu0 %v755
  %808 = vmatmul.f32.gmra.mxu0 %v749
  %v809 = vpop.f32.mrf.mxu0
  %v810 = vadd.f32 0.0, %v809
  %811 = vmatmul.f32.gmra.mxu0 %v751
  %v812 = vpop.f32.mrf.mxu0
  %v813 = vadd.f32 0.0, %v812
  %814 = vdwg.mxu0
  %815 = vmatpush.msra.mxu0 0.0
  %816 = vmatpush.msra.mxu0 0.0
  %817 = vmatpush.msra.mxu0 0.0
  %818 = vmatpush.msra.mxu0 0.0
  %819 = vmatpush.msra.mxu0 0.0
  %820 = vmatpush.msra.mxu0 0.0
  %821 = vmatpush.msra.mxu0 0.0
  %822 = vmatpush.msra.mxu0 0.0
  %823 = vmatpush.msra.mxu0 0.0
  %824 = vmatpush.msra.mxu0 0.0
  %825 = vmatpush.msra.mxu0 0.0
  %826 = vmatpush.msra.mxu0 0.0
  %827 = vmatpush.msra.mxu0 0.0
  %828 = vmatpush.msra.mxu0 0.0
  %829 = vmatpush.msra.mxu0 0.0
  %830 = vmatpush.msra.mxu0 %v757
  %831 = vmatmul.f32.gmra.mxu0 %v749
  %v832 = vpop.f32.mrf.mxu0
  %v833 = vadd.f32 0.0, %v832
  %834 = vmatmul.f32.gmra.mxu0 %v751
  %v835 = vpop.f32.mrf.mxu0
  %v836 = vadd.f32 0.0, %v835
  %837 = vdwg.mxu0
  %838 = vmatpush.msra.mxu0 0.0
  %839 = vmatpush.msra.mxu0 0.0
  %840 = vmatpush.msra.mxu0 0.0
  %841 = vmatpush.msra.mxu0 0.0
  %842 = vmatpush.msra.mxu0 0.0
  %843 = vmatpush.msra.mxu0 0.0
  %844 = vmatpush.msra.mxu0 0.0
  %845 = vmatpush.msra.mxu0 0.0
  %846 = vmatpush.msra.mxu0 0.0
  %847 = vmatpush.msra.mxu0 0.0
  %848 = vmatpush.msra.mxu0 0.0
  %849 = vmatpush.msra.mxu0 0.0
  %850 = vmatpush.msra.mxu0 0.0
  %851 = vmatpush.msra.mxu0 0.0
  %852 = vmatpush.msra.mxu0 0.0
  %853 = vmatpush.msra.mxu0 %v759
  %854 = vmatmul.f32.gmra.mxu0 %v749
  %v855 = vpop.f32.mrf.mxu0
  %v856 = vadd.f32 0.0, %v855
  %857 = vmatmul.f32.gmra.mxu0 %v751
  %v858 = vpop.f32.mrf.mxu0
  %v859 = vadd.f32 0.0, %v858
  %860 = vdwg.mxu0
  %861 = vmatpush.msra.mxu0 0.0
  %862 = vmatpush.msra.mxu0 0.0
  %863 = vmatpush.msra.mxu0 0.0
  %864 = vmatpush.msra.mxu0 0.0
  %865 = vmatpush.msra.mxu0 0.0
  %866 = vmatpush.msra.mxu0 0.0
  %867 = vmatpush.msra.mxu0 0.0
  %868 = vmatpush.msra.mxu0 0.0
  %869 = vmatpush.msra.mxu0 0.0
  %870 = vmatpush.msra.mxu0 0.0
  %871 = vmatpush.msra.mxu0 0.0
  %872 = vmatpush.msra.mxu0 0.0
  %873 = vmatpush.msra.mxu0 0.0
  %874 = vmatpush.msra.mxu0 0.0
  %875 = vmatpush.msra.mxu0 0.0
  %876 = vmatpush.msra.mxu0 %v761
  %877 = vmatmul.f32.gmra.mxu0 %v749
  %v878 = vpop.f32.mrf.mxu0
  %v879 = vadd.f32 0.0, %v878
  %880 = vmatmul.f32.gmra.mxu0 %v751
  %v881 = vpop.f32.mrf.mxu0
  %v882 = vadd.f32 0.0, %v881
  %883 = vdwg.mxu0
  %884 = vmatpush.msra.mxu0 0.0
  %885 = vmatpush.msra.mxu0 0.0
  %886 = vmatpush.msra.mxu0 0.0
  %887 = vmatpush.msra.mxu0 0.0
  %888 = vmatpush.msra.mxu0 0.0
  %889 = vmatpush.msra.mxu0 0.0
  %890 = vmatpush.msra.mxu0 0.0
  %891 = vmatpush.msra.mxu0 0.0
  %892 = vmatpush.msra.mxu0 0.0
  %893 = vmatpush.msra.mxu0 0.0
  %894 = vmatpush.msra.mxu0 0.0
  %895 = vmatpush.msra.mxu0 0.0
  %896 = vmatpush.msra.mxu0 0.0
  %897 = vmatpush.msra.mxu0 0.0
  %898 = vmatpush.msra.mxu0 0.0
  %899 = vmatpush.msra.mxu0 %v763
  %900 = vmatmul.f32.gmra.mxu0 %v749
  %v901 = vpop.f32.mrf.mxu0
  %v902 = vadd.f32 0.0, %v901
  %903 = vmatmul.f32.gmra.mxu0 %v751
  %v904 = vpop.f32.mrf.mxu0
  %v905 = vadd.f32 0.0, %v904
  %906 = vdwg.mxu0
  %907 = vmatpush.msra.mxu0 0.0
  %908 = vmatpush.msra.mxu0 0.0
  %909 = vmatpush.msra.mxu0 0.0
  %910 = vmatpush.msra.mxu0 0.0
  %911 = vmatpush.msra.mxu0 0.0
  %912 = vmatpush.msra.mxu0 0.0
  %913 = vmatpush.msra.mxu0 0.0
  %914 = vmatpush.msra.mxu0 0.0
  %915 = vmatpush.msra.mxu0 0.0
  %916 = vmatpush.msra.mxu0 0.0
  %917 = vmatpush.msra.mxu0 0.0
  %918 = vmatpush.msra.mxu0 0.0
  %919 = vmatpush.msra.mxu0 0.0
  %920 = vmatpush.msra.mxu0 0.0
  %921 = vmatpush.msra.mxu0 0.0
  %922 = vmatpush.msra.mxu0 %v765
  %923 = vmatmul.f32.gmra.mxu0 %v749
  %v924 = vpop.f32.mrf.mxu0
  %v925 = vadd.f32 0.0, %v924
  %926 = vmatmul.f32.gmra.mxu0 %v751
  %v927 = vpop.f32.mrf.mxu0
  %v928 = vadd.f32 0.0, %v927
  %929 = vdwg.mxu0
  %930 = vmatpush.msra.mxu0 0.0
  %931 = vmatpush.msra.mxu0 0.0
  %932 = vmatpush.msra.mxu0 0.0
  %933 = vmatpush.msra.mxu0 0.0
  %934 = vmatpush.msra.mxu0 0.0
  %935 = vmatpush.msra.mxu0 0.0
  %936 = vmatpush.msra.mxu0 0.0
  %937 = vmatpush.msra.mxu0 0.0
  %938 = vmatpush.msra.mxu0 0.0
  %939 = vmatpush.msra.mxu0 0.0
  %940 = vmatpush.msra.mxu0 0.0
  %941 = vmatpush.msra.mxu0 0.0
  %942 = vmatpush.msra.mxu0 0.0
  %943 = vmatpush.msra.mxu0 0.0
  %944 = vmatpush.msra.mxu0 0.0
  %945 = vmatpush.msra.mxu0 %v767
  %946 = vmatmul.f32.gmra.mxu0 %v749
  %v947 = vpop.f32.mrf.mxu0
  %v948 = vadd.f32 0.0, %v947
  %949 = vmatmul.f32.gmra.mxu0 %v751
  %v950 = vpop.f32.mrf.mxu0
  %v951 = vadd.f32 0.0, %v950
  %952 = vdwg.mxu0
  %v953 = vadd.f32 %v475, %v787
  %v954 = vadd.f32 %v498, %v810
  %v955 = vadd.f32 %v521, %v833
  %v956 = vadd.f32 %v544, %v856
  %v957 = vadd.f32 %v567, %v879
  %v958 = vadd.f32 %v590, %v902
  %v959 = vadd.f32 %v613, %v925
  %v960 = vadd.f32 %v636, %v948
  %v961 = vadd.f32 %v478, %v790
  %v962 = vadd.f32 %v501, %v813
  %v963 = vadd.f32 %v524, %v836
  %v964 = vadd.f32 %v547, %v859
  %v965 = vadd.f32 %v570, %v882
  %v966 = vadd.f32 %v593, %v905
  %v967 = vadd.f32 %v616, %v928
  %v968 = vadd.f32 %v639, %v951
  %v969 = vld [vmem:[%s0] sm:$0x77]
  %v970 = vld [vmem:[%s0 + $0x8] sm:$0x77]
  %v971 = vld [vmem:[%s0 + $0x10] sm:$0x77]
  %v972 = vld [vmem:[%s0 + $0x18] sm:$0x77]
  %v973 = vld [vmem:[%s0 + $0x20] sm:$0x7]
  %974 = vrot.lane.b32.xlu0 %v142, 32
  %v975 = vpop.permute.xlu0 %974
  %976 = vrot.lane.b32.xlu0 %v143, 32
  %v977 = vpop.permute.xlu0 %976
  %978 = vrot.lane.b32.xlu0 %v144, 32
  %v979 = vpop.permute.xlu0 %978
  %980 = vrot.lane.b32.xlu0 %v145, 32
  %v981 = vpop.permute.xlu0 %980
  %v982 = vrot.slane %v975, 4
  %v983 = vrot.slane %v977, 4
  %v984 = vrot.slane %v979, 4
  %v985 = vrot.slane %v981, 4
  %vm986 = vcmask 261120
  %v987 = vsel %vm986, %v982, %v975
  %v988 = vsel %vm141, %v982, %v983
  %v989 = vsel %vm986, %v988, %v977
  %v990 = vsel %vm141, %v983, %v984
  %v991 = vsel %vm986, %v990, %v979
  %v992 = vsel %vm141, %v984, %v985
  %v993 = vsel %vm986, %v992, %v981
  %v999 = vmul.f32 %v969, %v987
  %v1000 = vmul.f32 %v970, %v989
  %v1001 = vmul.f32 %v971, %v991
  %v1002 = vmul.f32 %v972, %v993
  %v1003 = vmul.f32 %v973, %v985
  %v1004 = vld [vmem:[%s1] sm:$0xff]
  %v1005 = vld [vmem:[%s1 + $0x8] sm:$0xff]
  %1008 = vrot.lane.b32.xlu0 %v1004, 119
  %v1009 = vpop.permute.xlu0 %1008
  %1010 = vrot.lane.b32.xlu0 %v1005, 119
  %v1011 = vpop.permute.xlu0 %1010
  %1017 = vst [vmem:[#allocation1] ss:$2 sm:$0xff] %v999
  %s1018 = scalar_lea.vmem [#allocation1], 16
  %1019 = vst [vmem:[%s1018] ss:$2 sm:$0xff] %v1000
  %s1020 = scalar_lea.vmem [#allocation1], 32
  %1021 = vst [vmem:[%s1020] ss:$2 sm:$0xff] %v1001
  %s1022 = scalar_lea.vmem [#allocation1], 48
  %1023 = vst [vmem:[%s1022] ss:$2 sm:$0xff] %v1002
  %v1024 = vld.sshfl [vmem:[#allocation1] sm:$0xff pattern:$0x75316420]
  %v1025 = vld.sshfl [vmem:[#allocation1 + $0x8] sm:$0xff pattern:$0x75316420]
  %v1026 = vld.sshfl [vmem:[#allocation1 + $0x10] sm:$0xff pattern:$0x75316420]
  %v1027 = vld.sshfl [vmem:[#allocation1 + $0x18] sm:$0xff pattern:$0x75316420]
  %v1028 = vld.sshfl [vmem:[#allocation1 + $0x20] sm:$0xff pattern:$0x75316420]
  %v1029 = vld.sshfl [vmem:[#allocation1 + $0x28] sm:$0xff pattern:$0x75316420]
  %v1030 = vld.sshfl [vmem:[#allocation1 + $0x30] sm:$0xff pattern:$0x75316420]
  %v1031 = vld.sshfl [vmem:[#allocation1 + $0x38] sm:$0xff pattern:$0x75316420]
  %1032 = vst [vmem:[#allocation1] ss:$2 sm:$0xff] %v1003
  %v1033 = vld.sshfl [vmem:[#allocation1] sm:$0xff pattern:$0x75316420]
  %1034 = vrot.lane.b32.xlu0 %v1024, 96
  %v1035 = vpop.permute.xlu0 %1034
  %1036 = vrot.lane.b32.xlu0 %v1025, 96
  %v1037 = vpop.permute.xlu0 %1036
  %1038 = vrot.lane.b32.xlu0 %v1026, 96
  %v1039 = vpop.permute.xlu0 %1038
  %1040 = vrot.lane.b32.xlu0 %v1027, 96
  %v1041 = vpop.permute.xlu0 %1040
  %1042 = vrot.lane.b32.xlu0 %v1028, 96
  %v1043 = vpop.permute.xlu0 %1042
  %1044 = vrot.lane.b32.xlu0 %v1029, 96
  %v1045 = vpop.permute.xlu0 %1044
  %1046 = vrot.lane.b32.xlu0 %v1030, 96
  %v1047 = vpop.permute.xlu0 %1046
  %1048 = vrot.lane.b32.xlu0 %v1031, 96
  %v1049 = vpop.permute.xlu0 %1048
  %1050 = vrot.lane.b32.xlu0 %v1033, 96
  %v1051 = vpop.permute.xlu0 %1050
  %vm1052 = vcmask 785408
  %v1053 = vsel %vm1052, %v1035, %v1037
  %v1054 = vsel %vm1052, %v1037, %v1039
  %v1055 = vsel %vm1052, %v1039, %v1041
  %v1056 = vsel %vm1052, %v1041, %v1043
  %v1057 = vsel %vm1052, %v1043, %v1045
  %v1058 = vsel %vm1052, %v1045, %v1047
  %v1059 = vsel %vm1052, %v1047, %v1049
  %v1060 = vsel %vm1052, %v1049, %v1051
  %v1061 = vsel %vm212, %v1009, 0
  %v1063 = vsel %vm212, %v1011, 0
  %v1065 = vsel %vm217, %v1053, 0
  %v1067 = vsel %vm217, %v1054, 0
  %v1069 = vsel %vm217, %v1055, 0
  %v1071 = vsel %vm217, %v1056, 0
  %v1073 = vsel %vm217, %v1057, 0
  %v1075 = vsel %vm217, %v1058, 0
  %v1077 = vsel %vm217, %v1059, 0
  %v1079 = vsel %vm217, %v1060, 0
  %1081 = vmatpush.msra.mxu0 0.0
  %1082 = vmatpush.msra.mxu0 0.0
  %1083 = vmatpush.msra.mxu0 0.0
  %1084 = vmatpush.msra.mxu0 0.0
  %1085 = vmatpush.msra.mxu0 0.0
  %1086 = vmatpush.msra.mxu0 0.0
  %1087 = vmatpush.msra.mxu0 0.0
  %1088 = vmatpush.msra.mxu0 0.0
  %1089 = vmatpush.msra.mxu0 0.0
  %1090 = vmatpush.msra.mxu0 0.0
  %1091 = vmatpush.msra.mxu0 0.0
  %1092 = vmatpush.msra.mxu0 0.0
  %1093 = vmatpush.msra.mxu0 0.0
  %1094 = vmatpush.msra.mxu0 0.0
  %1095 = vmatpush.msra.mxu0 0.0
  %1096 = vmatpush.msra.mxu0 %v1065
  %1097 = vmatmul.f32.gmra.mxu0 %v1061
  %v1098 = vpop.f32.mrf.mxu0
  %v1099 = vadd.f32 0.0, %v1098
  %1100 = vmatmul.f32.gmra.mxu0 %v1063
  %v1101 = vpop.f32.mrf.mxu0
  %v1102 = vadd.f32 0.0, %v1101
  %1103 = vdwg.mxu0
  %1104 = vmatpush.msra.mxu0 0.0
  %1105 = vmatpush.msra.mxu0 0.0
  %1106 = vmatpush.msra.mxu0 0.0
  %1107 = vmatpush.msra.mxu0 0.0
  %1108 = vmatpush.msra.mxu0 0.0
  %1109 = vmatpush.msra.mxu0 0.0
  %1110 = vmatpush.msra.mxu0 0.0
  %1111 = vmatpush.msra.mxu0 0.0
  %1112 = vmatpush.msra.mxu0 0.0
  %1113 = vmatpush.msra.mxu0 0.0
  %1114 = vmatpush.msra.mxu0 0.0
  %1115 = vmatpush.msra.mxu0 0.0
  %1116 = vmatpush.msra.mxu0 0.0
  %1117 = vmatpush.msra.mxu0 0.0
  %1118 = vmatpush.msra.mxu0 0.0
  %1119 = vmatpush.msra.mxu0 %v1067
  %1120 = vmatmul.f32.gmra.mxu0 %v1061
  %v1121 = vpop.f32.mrf.mxu0
  %v1122 = vadd.f32 0.0, %v1121
  %1123 = vmatmul.f32.gmra.mxu0 %v1063
  %v1124 = vpop.f32.mrf.mxu0
  %v1125 = vadd.f32 0.0, %v1124
  %1126 = vdwg.mxu0
  %1127 = vmatpush.msra.mxu0 0.0
  %1128 = vmatpush.msra.mxu0 0.0
  %1129 = vmatpush.msra.mxu0 0.0
  %1130 = vmatpush.msra.mxu0 0.0
  %1131 = vmatpush.msra.mxu0 0.0
  %1132 = vmatpush.msra.mxu0 0.0
  %1133 = vmatpush.msra.mxu0 0.0
  %1134 = vmatpush.msra.mxu0 0.0
  %1135 = vmatpush.msra.mxu0 0.0
  %1136 = vmatpush.msra.mxu0 0.0
  %1137 = vmatpush.msra.mxu0 0.0
  %1138 = vmatpush.msra.mxu0 0.0
  %1139 = vmatpush.msra.mxu0 0.0
  %1140 = vmatpush.msra.mxu0 0.0
  %1141 = vmatpush.msra.mxu0 0.0
  %1142 = vmatpush.msra.mxu0 %v1069
  %1143 = vmatmul.f32.gmra.mxu0 %v1061
  %v1144 = vpop.f32.mrf.mxu0
  %v1145 = vadd.f32 0.0, %v1144
  %1146 = vmatmul.f32.gmra.mxu0 %v1063
  %v1147 = vpop.f32.mrf.mxu0
  %v1148 = vadd.f32 0.0, %v1147
  %1149 = vdwg.mxu0
  %1150 = vmatpush.msra.mxu0 0.0
  %1151 = vmatpush.msra.mxu0 0.0
  %1152 = vmatpush.msra.mxu0 0.0
  %1153 = vmatpush.msra.mxu0 0.0
  %1154 = vmatpush.msra.mxu0 0.0
  %1155 = vmatpush.msra.mxu0 0.0
  %1156 = vmatpush.msra.mxu0 0.0
  %1157 = vmatpush.msra.mxu0 0.0
  %1158 = vmatpush.msra.mxu0 0.0
  %1159 = vmatpush.msra.mxu0 0.0
  %1160 = vmatpush.msra.mxu0 0.0
  %1161 = vmatpush.msra.mxu0 0.0
  %1162 = vmatpush.msra.mxu0 0.0
  %1163 = vmatpush.msra.mxu0 0.0
  %1164 = vmatpush.msra.mxu0 0.0
  %1165 = vmatpush.msra.mxu0 %v1071
  %1166 = vmatmul.f32.gmra.mxu0 %v1061
  %v1167 = vpop.f32.mrf.mxu0
  %v1168 = vadd.f32 0.0, %v1167
  %1169 = vmatmul.f32.gmra.mxu0 %v1063
  %v1170 = vpop.f32.mrf.mxu0
  %v1171 = vadd.f32 0.0, %v1170
  %1172 = vdwg.mxu0
  %1173 = vmatpush.msra.mxu0 0.0
  %1174 = vmatpush.msra.mxu0 0.0
  %1175 = vmatpush.msra.mxu0 0.0
  %1176 = vmatpush.msra.mxu0 0.0
  %1177 = vmatpush.msra.mxu0 0.0
  %1178 = vmatpush.msra.mxu0 0.0
  %1179 = vmatpush.msra.mxu0 0.0
  %1180 = vmatpush.msra.mxu0 0.0
  %1181 = vmatpush.msra.mxu0 0.0
  %1182 = vmatpush.msra.mxu0 0.0
  %1183 = vmatpush.msra.mxu0 0.0
  %1184 = vmatpush.msra.mxu0 0.0
  %1185 = vmatpush.msra.mxu0 0.0
  %1186 = vmatpush.msra.mxu0 0.0
  %1187 = vmatpush.msra.mxu0 0.0
  %1188 = vmatpush.msra.mxu0 %v1073
  %1189 = vmatmul.f32.gmra.mxu0 %v1061
  %v1190 = vpop.f32.mrf.mxu0
  %v1191 = vadd.f32 0.0, %v1190
  %1192 = vmatmul.f32.gmra.mxu0 %v1063
  %v1193 = vpop.f32.mrf.mxu0
  %v1194 = vadd.f32 0.0, %v1193
  %1195 = vdwg.mxu0
  %1196 = vmatpush.msra.mxu0 0.0
  %1197 = vmatpush.msra.mxu0 0.0
  %1198 = vmatpush.msra.mxu0 0.0
  %1199 = vmatpush.msra.mxu0 0.0
  %1200 = vmatpush.msra.mxu0 0.0
  %1201 = vmatpush.msra.mxu0 0.0
  %1202 = vmatpush.msra.mxu0 0.0
  %1203 = vmatpush.msra.mxu0 0.0
  %1204 = vmatpush.msra.mxu0 0.0
  %1205 = vmatpush.msra.mxu0 0.0
  %1206 = vmatpush.msra.mxu0 0.0
  %1207 = vmatpush.msra.mxu0 0.0
  %1208 = vmatpush.msra.mxu0 0.0
  %1209 = vmatpush.msra.mxu0 0.0
  %1210 = vmatpush.msra.mxu0 0.0
  %1211 = vmatpush.msra.mxu0 %v1075
  %1212 = vmatmul.f32.gmra.mxu0 %v1061
  %v1213 = vpop.f32.mrf.mxu0
  %v1214 = vadd.f32 0.0, %v1213
  %1215 = vmatmul.f32.gmra.mxu0 %v1063
  %v1216 = vpop.f32.mrf.mxu0
  %v1217 = vadd.f32 0.0, %v1216
  %1218 = vdwg.mxu0
  %1219 = vmatpush.msra.mxu0 0.0
  %1220 = vmatpush.msra.mxu0 0.0
  %1221 = vmatpush.msra.mxu0 0.0
  %1222 = vmatpush.msra.mxu0 0.0
  %1223 = vmatpush.msra.mxu0 0.0
  %1224 = vmatpush.msra.mxu0 0.0
  %1225 = vmatpush.msra.mxu0 0.0
  %1226 = vmatpush.msra.mxu0 0.0
  %1227 = vmatpush.msra.mxu0 0.0
  %1228 = vmatpush.msra.mxu0 0.0
  %1229 = vmatpush.msra.mxu0 0.0
  %1230 = vmatpush.msra.mxu0 0.0
  %1231 = vmatpush.msra.mxu0 0.0
  %1232 = vmatpush.msra.mxu0 0.0
  %1233 = vmatpush.msra.mxu0 0.0
  %1234 = vmatpush.msra.mxu0 %v1077
  %1235 = vmatmul.f32.gmra.mxu0 %v1061
  %v1236 = vpop.f32.mrf.mxu0
  %v1237 = vadd.f32 0.0, %v1236
  %1238 = vmatmul.f32.gmra.mxu0 %v1063
  %v1239 = vpop.f32.mrf.mxu0
  %v1240 = vadd.f32 0.0, %v1239
  %1241 = vdwg.mxu0
  %1242 = vmatpush.msra.mxu0 0.0
  %1243 = vmatpush.msra.mxu0 0.0
  %1244 = vmatpush.msra.mxu0 0.0
  %1245 = vmatpush.msra.mxu0 0.0
  %1246 = vmatpush.msra.mxu0 0.0
  %1247 = vmatpush.msra.mxu0 0.0
  %1248 = vmatpush.msra.mxu0 0.0
  %1249 = vmatpush.msra.mxu0 0.0
  %1250 = vmatpush.msra.mxu0 0.0
  %1251 = vmatpush.msra.mxu0 0.0
  %1252 = vmatpush.msra.mxu0 0.0
  %1253 = vmatpush.msra.mxu0 0.0
  %1254 = vmatpush.msra.mxu0 0.0
  %1255 = vmatpush.msra.mxu0 0.0
  %1256 = vmatpush.msra.mxu0 0.0
  %1257 = vmatpush.msra.mxu0 %v1079
  %1258 = vmatmul.f32.gmra.mxu0 %v1061
  %v1259 = vpop.f32.mrf.mxu0
  %v1260 = vadd.f32 0.0, %v1259
  %1261 = vmatmul.f32.gmra.mxu0 %v1063
  %v1262 = vpop.f32.mrf.mxu0
  %v1263 = vadd.f32 0.0, %v1262
  %1264 = vdwg.mxu0
  %v1265 = vadd.f32 %v953, %v1099
  %v1266 = vadd.f32 %v954, %v1122
  %v1267 = vadd.f32 %v955, %v1145
  %v1268 = vadd.f32 %v956, %v1168
  %v1269 = vadd.f32 %v957, %v1191
  %v1270 = vadd.f32 %v958, %v1214
  %v1271 = vadd.f32 %v959, %v1237
  %v1272 = vadd.f32 %v960, %v1260
  %v1273 = vadd.f32 %v961, %v1102
  %v1274 = vadd.f32 %v962, %v1125
  %v1275 = vadd.f32 %v963, %v1148
  %v1276 = vadd.f32 %v964, %v1171
  %v1277 = vadd.f32 %v965, %v1194
  %v1278 = vadd.f32 %v966, %v1217
  %v1279 = vadd.f32 %v967, %v1240
  %v1280 = vadd.f32 %v968, %v1263
  %v1281 = vld [vmem:[%s0] sm:$0x77]
  %v1282 = vld [vmem:[%s0 + $0x8] sm:$0x77]
  %v1283 = vld [vmem:[%s0 + $0x10] sm:$0x77]
  %v1284 = vld [vmem:[%s0 + $0x18] sm:$0x77]
  %v1285 = vld [vmem:[%s0 + $0x20] sm:$0x7]
  %v1286 = vld [vmem:[%s1] sm:$0xff]
  %v1287 = vld [vmem:[%s1 + $0x8] sm:$0xff]
  %1290 = vrot.lane.b32.xlu0 %v1286, 116
  %v1291 = vpop.permute.xlu0 %1290
  %1292 = vrot.lane.b32.xlu0 %v1287, 116
  %v1293 = vpop.permute.xlu0 %1292
  %1299 = vst [vmem:[#allocation1] ss:$2 sm:$0xff] %v1281
  %s1300 = scalar_lea.vmem [#allocation1], 16
  %1301 = vst [vmem:[%s1300] ss:$2 sm:$0xff] %v1282
  %s1302 = scalar_lea.vmem [#allocation1], 32
  %1303 = vst [vmem:[%s1302] ss:$2 sm:$0xff] %v1283
  %s1304 = scalar_lea.vmem [#allocation1], 48
  %1305 = vst [vmem:[%s1304] ss:$2 sm:$0xff] %v1284
  %v1306 = vld.sshfl [vmem:[#allocation1] sm:$0xff pattern:$0x75316420]
  %v1307 = vld.sshfl [vmem:[#allocation1 + $0x8] sm:$0xff pattern:$0x75316420]
  %v1308 = vld.sshfl [vmem:[#allocation1 + $0x10] sm:$0xff pattern:$0x75316420]
  %v1309 = vld.sshfl [vmem:[#allocation1 + $0x18] sm:$0xff pattern:$0x75316420]
  %v1310 = vld.sshfl [vmem:[#allocation1 + $0x20] sm:$0xff pattern:$0x75316420]
  %v1311 = vld.sshfl [vmem:[#allocation1 + $0x28] sm:$0xff pattern:$0x75316420]
  %v1312 = vld.sshfl [vmem:[#allocation1 + $0x30] sm:$0xff pattern:$0x75316420]
  %v1313 = vld.sshfl [vmem:[#allocation1 + $0x38] sm:$0xff pattern:$0x75316420]
  %1314 = vst [vmem:[#allocation1] ss:$2 sm:$0xff] %v1285
  %v1315 = vld.sshfl [vmem:[#allocation1] sm:$0xff pattern:$0x75316420]
  %1316 = vrot.lane.b32.xlu0 %v1306, 95
  %v1317 = vpop.permute.xlu0 %1316
  %1318 = vrot.lane.b32.xlu0 %v1307, 95
  %v1319 = vpop.permute.xlu0 %1318
  %1320 = vrot.lane.b32.xlu0 %v1308, 95
  %v1321 = vpop.permute.xlu0 %1320
  %1322 = vrot.lane.b32.xlu0 %v1309, 95
  %v1323 = vpop.permute.xlu0 %1322
  %1324 = vrot.lane.b32.xlu0 %v1310, 95
  %v1325 = vpop.permute.xlu0 %1324
  %1326 = vrot.lane.b32.xlu0 %v1311, 95
  %v1327 = vpop.permute.xlu0 %1326
  %1328 = vrot.lane.b32.xlu0 %v1312, 95
  %v1329 = vpop.permute.xlu0 %1328
  %1330 = vrot.lane.b32.xlu0 %v1313, 95
  %v1331 = vpop.permute.xlu0 %1330
  %1332 = vrot.lane.b32.xlu0 %v1315, 95
  %v1333 = vpop.permute.xlu0 %1332
  %vm1334 = vcmask 777216
  %v1335 = vsel %vm1334, %v1317, %v1319
  %v1336 = vsel %vm1334, %v1319, %v1321
  %v1337 = vsel %vm1334, %v1321, %v1323
  %v1338 = vsel %vm1334, %v1323, %v1325
  %v1339 = vsel %vm1334, %v1325, %v1327
  %v1340 = vsel %vm1334, %v1327, %v1329
  %v1341 = vsel %vm1334, %v1329, %v1331
  %v1342 = vsel %vm1334, %v1331, %v1333
  %v1343 = vsel %vm212, %v1291, 0
  %v1345 = vsel %vm212, %v1293, 0
  %v1347 = vsel %vm217, %v1335, 0
  %v1349 = vsel %vm217, %v1336, 0
  %v1351 = vsel %vm217, %v1337, 0
  %v1353 = vsel %vm217, %v1338, 0
  %v1355 = vsel %vm217, %v1339, 0
  %v1357 = vsel %vm217, %v1340, 0
  %v1359 = vsel %vm217, %v1341, 0
  %v1361 = vsel %vm217, %v1342, 0
  %1363 = vmatpush.msra.mxu0 0.0
  %1364 = vmatpush.msra.mxu0 0.0
  %1365 = vmatpush.msra.mxu0 0.0
  %1366 = vmatpush.msra.mxu0 0.0
  %1367 = vmatpush.msra.mxu0 0.0
  %1368 = vmatpush.msra.mxu0 0.0
  %1369 = vmatpush.msra.mxu0 0.0
  %1370 = vmatpush.msra.mxu0 0.0
  %1371 = vmatpush.msra.mxu0 0.0
  %1372 = vmatpush.msra.mxu0 0.0
  %1373 = vmatpush.msra.mxu0 0.0
  %1374 = vmatpush.msra.mxu0 0.0
  %1375 = vmatpush.msra.mxu0 0.0
  %1376 = vmatpush.msra.mxu0 0.0
  %1377 = vmatpush.msra.mxu0 0.0
  %1378 = vmatpush.msra.mxu0 %v1347
  %1379 = vmatmul.f32.gmra.mxu0 %v1343
  %v1380 = vpop.f32.mrf.mxu0
  %v1381 = vadd.f32 0.0, %v1380
  %1382 = vmatmul.f32.gmra.mxu0 %v1345
  %v1383 = vpop.f32.mrf.mxu0
  %v1384 = vadd.f32 0.0, %v1383
  %1385 = vdwg.mxu0
  %1386 = vmatpush.msra.mxu0 0.0
  %1387 = vmatpush.msra.mxu0 0.0
  %1388 = vmatpush.msra.mxu0 0.0
  %1389 = vmatpush.msra.mxu0 0.0
  %1390 = vmatpush.msra.mxu0 0.0
  %1391 = vmatpush.msra.mxu0 0.0
  %1392 = vmatpush.msra.mxu0 0.0
  %1393 = vmatpush.msra.mxu0 0.0
  %1394 = vmatpush.msra.mxu0 0.0
  %1395 = vmatpush.msra.mxu0 0.0
  %1396 = vmatpush.msra.mxu0 0.0
  %1397 = vmatpush.msra.mxu0 0.0
  %1398 = vmatpush.msra.mxu0 0.0
  %1399 = vmatpush.msra.mxu0 0.0
  %1400 = vmatpush.msra.mxu0 0.0
  %1401 = vmatpush.msra.mxu0 %v1349
  %1402 = vmatmul.f32.gmra.mxu0 %v1343
  %v1403 = vpop.f32.mrf.mxu0
  %v1404 = vadd.f32 0.0, %v1403
  %1405 = vmatmul.f32.gmra.mxu0 %v1345
  %v1406 = vpop.f32.mrf.mxu0
  %v1407 = vadd.f32 0.0, %v1406
  %1408 = vdwg.mxu0
  %1409 = vmatpush.msra.mxu0 0.0
  %1410 = vmatpush.msra.mxu0 0.0
  %1411 = vmatpush.msra.mxu0 0.0
  %1412 = vmatpush.msra.mxu0 0.0
  %1413 = vmatpush.msra.mxu0 0.0
  %1414 = vmatpush.msra.mxu0 0.0
  %1415 = vmatpush.msra.mxu0 0.0
  %1416 = vmatpush.msra.mxu0 0.0
  %1417 = vmatpush.msra.mxu0 0.0
  %1418 = vmatpush.msra.mxu0 0.0
  %1419 = vmatpush.msra.mxu0 0.0
  %1420 = vmatpush.msra.mxu0 0.0
  %1421 = vmatpush.msra.mxu0 0.0
  %1422 = vmatpush.msra.mxu0 0.0
  %1423 = vmatpush.msra.mxu0 0.0
  %1424 = vmatpush.msra.mxu0 %v1351
  %1425 = vmatmul.f32.gmra.mxu0 %v1343
  %v1426 = vpop.f32.mrf.mxu0
  %v1427 = vadd.f32 0.0, %v1426
  %1428 = vmatmul.f32.gmra.mxu0 %v1345
  %v1429 = vpop.f32.mrf.mxu0
  %v1430 = vadd.f32 0.0, %v1429
  %1431 = vdwg.mxu0
  %1432 = vmatpush.msra.mxu0 0.0
  %1433 = vmatpush.msra.mxu0 0.0
  %1434 = vmatpush.msra.mxu0 0.0
  %1435 = vmatpush.msra.mxu0 0.0
  %1436 = vmatpush.msra.mxu0 0.0
  %1437 = vmatpush.msra.mxu0 0.0
  %1438 = vmatpush.msra.mxu0 0.0
  %1439 = vmatpush.msra.mxu0 0.0
  %1440 = vmatpush.msra.mxu0 0.0
  %1441 = vmatpush.msra.mxu0 0.0
  %1442 = vmatpush.msra.mxu0 0.0
  %1443 = vmatpush.msra.mxu0 0.0
  %1444 = vmatpush.msra.mxu0 0.0
  %1445 = vmatpush.msra.mxu0 0.0
  %1446 = vmatpush.msra.mxu0 0.0
  %1447 = vmatpush.msra.mxu0 %v1353
  %1448 = vmatmul.f32.gmra.mxu0 %v1343
  %v1449 = vpop.f32.mrf.mxu0
  %v1450 = vadd.f32 0.0, %v1449
  %1451 = vmatmul.f32.gmra.mxu0 %v1345
  %v1452 = vpop.f32.mrf.mxu0
  %v1453 = vadd.f32 0.0, %v1452
  %1454 = vdwg.mxu0
  %1455 = vmatpush.msra.mxu0 0.0
  %1456 = vmatpush.msra.mxu0 0.0
  %1457 = vmatpush.msra.mxu0 0.0
  %1458 = vmatpush.msra.mxu0 0.0
  %1459 = vmatpush.msra.mxu0 0.0
  %1460 = vmatpush.msra.mxu0 0.0
  %1461 = vmatpush.msra.mxu0 0.0
  %1462 = vmatpush.msra.mxu0 0.0
  %1463 = vmatpush.msra.mxu0 0.0
  %1464 = vmatpush.msra.mxu0 0.0
  %1465 = vmatpush.msra.mxu0 0.0
  %1466 = vmatpush.msra.mxu0 0.0
  %1467 = vmatpush.msra.mxu0 0.0
  %1468 = vmatpush.msra.mxu0 0.0
  %1469 = vmatpush.msra.mxu0 0.0
  %1470 = vmatpush.msra.mxu0 %v1355
  %1471 = vmatmul.f32.gmra.mxu0 %v1343
  %v1472 = vpop.f32.mrf.mxu0
  %v1473 = vadd.f32 0.0, %v1472
  %1474 = vmatmul.f32.gmra.mxu0 %v1345
  %v1475 = vpop.f32.mrf.mxu0
  %v1476 = vadd.f32 0.0, %v1475
  %1477 = vdwg.mxu0
  %1478 = vmatpush.msra.mxu0 0.0
  %1479 = vmatpush.msra.mxu0 0.0
  %1480 = vmatpush.msra.mxu0 0.0
  %1481 = vmatpush.msra.mxu0 0.0
  %1482 = vmatpush.msra.mxu0 0.0
  %1483 = vmatpush.msra.mxu0 0.0
  %1484 = vmatpush.msra.mxu0 0.0
  %1485 = vmatpush.msra.mxu0 0.0
  %1486 = vmatpush.msra.mxu0 0.0
  %1487 = vmatpush.msra.mxu0 0.0
  %1488 = vmatpush.msra.mxu0 0.0
  %1489 = vmatpush.msra.mxu0 0.0
  %1490 = vmatpush.msra.mxu0 0.0
  %1491 = vmatpush.msra.mxu0 0.0
  %1492 = vmatpush.msra.mxu0 0.0
  %1493 = vmatpush.msra.mxu0 %v1357
  %1494 = vmatmul.f32.gmra.mxu0 %v1343
  %v1495 = vpop.f32.mrf.mxu0
  %v1496 = vadd.f32 0.0, %v1495
  %1497 = vmatmul.f32.gmra.mxu0 %v1345
  %v1498 = vpop.f32.mrf.mxu0
  %v1499 = vadd.f32 0.0, %v1498
  %1500 = vdwg.mxu0
  %1501 = vmatpush.msra.mxu0 0.0
  %1502 = vmatpush.msra.mxu0 0.0
  %1503 = vmatpush.msra.mxu0 0.0
  %1504 = vmatpush.msra.mxu0 0.0
  %1505 = vmatpush.msra.mxu0 0.0
  %1506 = vmatpush.msra.mxu0 0.0
  %1507 = vmatpush.msra.mxu0 0.0
  %1508 = vmatpush.msra.mxu0 0.0
  %1509 = vmatpush.msra.mxu0 0.0
  %1510 = vmatpush.msra.mxu0 0.0
  %1511 = vmatpush.msra.mxu0 0.0
  %1512 = vmatpush.msra.mxu0 0.0
  %1513 = vmatpush.msra.mxu0 0.0
  %1514 = vmatpush.msra.mxu0 0.0
  %1515 = vmatpush.msra.mxu0 0.0
  %1516 = vmatpush.msra.mxu0 %v1359
  %1517 = vmatmul.f32.gmra.mxu0 %v1343
  %v1518 = vpop.f32.mrf.mxu0
  %v1519 = vadd.f32 0.0, %v1518
  %1520 = vmatmul.f32.gmra.mxu0 %v1345
  %v1521 = vpop.f32.mrf.mxu0
  %v1522 = vadd.f32 0.0, %v1521
  %1523 = vdwg.mxu0
  %1524 = vmatpush.msra.mxu0 0.0
  %1525 = vmatpush.msra.mxu0 0.0
  %1526 = vmatpush.msra.mxu0 0.0
  %1527 = vmatpush.msra.mxu0 0.0
  %1528 = vmatpush.msra.mxu0 0.0
  %1529 = vmatpush.msra.mxu0 0.0
  %1530 = vmatpush.msra.mxu0 0.0
  %1531 = vmatpush.msra.mxu0 0.0
  %1532 = vmatpush.msra.mxu0 0.0
  %1533 = vmatpush.msra.mxu0 0.0
  %1534 = vmatpush.msra.mxu0 0.0
  %1535 = vmatpush.msra.mxu0 0.0
  %1536 = vmatpush.msra.mxu0 0.0
  %1537 = vmatpush.msra.mxu0 0.0
  %1538 = vmatpush.msra.mxu0 0.0
  %1539 = vmatpush.msra.mxu0 %v1361
  %1540 = vmatmul.f32.gmra.mxu0 %v1343
  %v1541 = vpop.f32.mrf.mxu0
  %v1542 = vadd.f32 0.0, %v1541
  %1543 = vmatmul.f32.gmra.mxu0 %v1345
  %v1544 = vpop.f32.mrf.mxu0
  %v1545 = vadd.f32 0.0, %v1544
  %1546 = vdwg.mxu0
  %v1547 = vadd.f32 %v1265, %v1381
  %v1548 = vadd.f32 %v1266, %v1404
  %v1549 = vadd.f32 %v1267, %v1427
  %v1550 = vadd.f32 %v1268, %v1450
  %v1551 = vadd.f32 %v1269, %v1473
  %v1552 = vadd.f32 %v1270, %v1496
  %v1553 = vadd.f32 %v1271, %v1519
  %v1554 = vadd.f32 %v1272, %v1542
  %v1555 = vadd.f32 %v1273, %v1384
  %v1556 = vadd.f32 %v1274, %v1407
  %v1557 = vadd.f32 %v1275, %v1430
  %v1558 = vadd.f32 %v1276, %v1453
  %v1559 = vadd.f32 %v1277, %v1476
  %v1560 = vadd.f32 %v1278, %v1499
  %v1561 = vadd.f32 %v1279, %v1522
  %v1562 = vadd.f32 %v1280, %v1545
  %v1563 = vld [vmem:[%s0] sm:$0x77]
  %v1564 = vld [vmem:[%s0 + $0x8] sm:$0x77]
  %v1565 = vld [vmem:[%s0 + $0x10] sm:$0x77]
  %v1566 = vld [vmem:[%s0 + $0x18] sm:$0x77]
  %v1567 = vld [vmem:[%s0 + $0x20] sm:$0x7]
  %1568 = vrot.lane.b32.xlu0 %v658, 34
  %v1569 = vpop.permute.xlu0 %1568
  %1570 = vrot.lane.b32.xlu0 %v659, 34
  %v1571 = vpop.permute.xlu0 %1570
  %1572 = vrot.lane.b32.xlu0 %v660, 34
  %v1573 = vpop.permute.xlu0 %1572
  %1574 = vrot.lane.b32.xlu0 %v661, 34
  %v1575 = vpop.permute.xlu0 %1574
  %v1576 = vrot.slane %v1569, 4
  %v1577 = vrot.slane %v1571, 4
  %v1578 = vrot.slane %v1573, 4
  %v1579 = vrot.slane %v1575, 4
  %vm1580 = vcmask 277504
  %v1581 = vsel %vm1580, %v1576, %v1569
  %v1582 = vsel %vm141, %v1576, %v1577
  %v1583 = vsel %vm1580, %v1582, %v1571
  %v1584 = vsel %vm141, %v1577, %v1578
  %v1585 = vsel %vm1580, %v1584, %v1573
  %v1586 = vsel %vm141, %v1578, %v1579
  %v1587 = vsel %vm1580, %v1586, %v1575
  %v1593 = vmul.f32 %v1563, %v1581
  %v1594 = vmul.f32 %v1564, %v1583
  %v1595 = vmul.f32 %v1565, %v1585
  %v1596 = vmul.f32 %v1566, %v1587
  %v1597 = vmul.f32 %v1567, %v1579
  %v1598 = vld [vmem:[%s1] sm:$0xff]
  %v1599 = vld [vmem:[%s1 + $0x8] sm:$0xff]
  %1602 = vrot.lane.b32.xlu0 %v1598, 113
  %v1603 = vpop.permute.xlu0 %1602
  %1604 = vrot.lane.b32.xlu0 %v1599, 113
  %v1605 = vpop.permute.xlu0 %1604
  %1611 = vst [vmem:[#allocation1] ss:$2 sm:$0xff] %v1593
  %s1612 = scalar_lea.vmem [#allocation1], 16
  %1613 = vst [vmem:[%s1612] ss:$2 sm:$0xff] %v1594
  %s1614 = scalar_lea.vmem [#allocation1], 32
  %1615 = vst [vmem:[%s1614] ss:$2 sm:$0xff] %v1595
  %s1616 = scalar_lea.vmem [#allocation1], 48
  %1617 = vst [vmem:[%s1616] ss:$2 sm:$0xff] %v1596
  %v1618 = vld.sshfl [vmem:[#allocation1] sm:$0xff pattern:$0x75316420]
  %v1619 = vld.sshfl [vmem:[#allocation1 + $0x8] sm:$0xff pattern:$0x75316420]
  %v1620 = vld.sshfl [vmem:[#allocation1 + $0x10] sm:$0xff pattern:$0x75316420]
  %v1621 = vld.sshfl [vmem:[#allocation1 + $0x18] sm:$0xff pattern:$0x75316420]
  %v1622 = vld.sshfl [vmem:[#allocation1 + $0x20] sm:$0xff pattern:$0x75316420]
  %v1623 = vld.sshfl [vmem:[#allocation1 + $0x28] sm:$0xff pattern:$0x75316420]
  %v1624 = vld.sshfl [vmem:[#allocation1 + $0x30] sm:$0xff pattern:$0x75316420]
  %v1625 = vld.sshfl [vmem:[#allocation1 + $0x38] sm:$0xff pattern:$0x75316420]
  %1626 = vst [vmem:[#allocation1] ss:$2 sm:$0xff] %v1597
  %v1627 = vld.sshfl [vmem:[#allocation1] sm:$0xff pattern:$0x75316420]
  %1628 = vrot.lane.b32.xlu0 %v1618, 94
  %v1629 = vpop.permute.xlu0 %1628
  %1630 = vrot.lane.b32.xlu0 %v1619, 94
  %v1631 = vpop.permute.xlu0 %1630
  %1632 = vrot.lane.b32.xlu0 %v1620, 94
  %v1633 = vpop.permute.xlu0 %1632
  %1634 = vrot.lane.b32.xlu0 %v1621, 94
  %v1635 = vpop.permute.xlu0 %1634
  %1636 = vrot.lane.b32.xlu0 %v1622, 94
  %v1637 = vpop.permute.xlu0 %1636
  %1638 = vrot.lane.b32.xlu0 %v1623, 94
  %v1639 = vpop.permute.xlu0 %1638
  %1640 = vrot.lane.b32.xlu0 %v1624, 94
  %v1641 = vpop.permute.xlu0 %1640
  %1642 = vrot.lane.b32.xlu0 %v1625, 94
  %v1643 = vpop.permute.xlu0 %1642
  %1644 = vrot.lane.b32.xlu0 %v1627, 94
  %v1645 = vpop.permute.xlu0 %1644
  %vm1646 = vcmask 769024
  %v1647 = vsel %vm1646, %v1629, %v1631
  %v1648 = vsel %vm1646, %v1631, %v1633
  %v1649 = vsel %vm1646, %v1633, %v1635
  %v1650 = vsel %vm1646, %v1635, %v1637
  %v1651 = vsel %vm1646, %v1637, %v1639
  %v1652 = vsel %vm1646, %v1639, %v1641
  %v1653 = vsel %vm1646, %v1641, %v1643
  %v1654 = vsel %vm1646, %v1643, %v1645
  %v1655 = vsel %vm212, %v1603, 0
  %v1657 = vsel %vm212, %v1605, 0
  %v1659 = vsel %vm217, %v1647, 0
  %v1661 = vsel %vm217, %v1648, 0
  %v1663 = vsel %vm217, %v1649, 0
  %v1665 = vsel %vm217, %v1650, 0
  %v1667 = vsel %vm217, %v1651, 0
  %v1669 = vsel %vm217, %v1652, 0
  %v1671 = vsel %vm217, %v1653, 0
  %v1673 = vsel %vm217, %v1654, 0
  %1675 = vmatpush.msra.mxu0 0.0
  %1676 = vmatpush.msra.mxu0 0.0
  %1677 = vmatpush.msra.mxu0 0.0
  %1678 = vmatpush.msra.mxu0 0.0
  %1679 = vmatpush.msra.mxu0 0.0
  %1680 = vmatpush.msra.mxu0 0.0
  %1681 = vmatpush.msra.mxu0 0.0
  %1682 = vmatpush.msra.mxu0 0.0
  %1683 = vmatpush.msra.mxu0 0.0
  %1684 = vmatpush.msra.mxu0 0.0
  %1685 = vmatpush.msra.mxu0 0.0
  %1686 = vmatpush.msra.mxu0 0.0
  %1687 = vmatpush.msra.mxu0 0.0
  %1688 = vmatpush.msra.mxu0 0.0
  %1689 = vmatpush.msra.mxu0 0.0
  %1690 = vmatpush.msra.mxu0 %v1659
  %1691 = vmatmul.f32.gmra.mxu0 %v1655
  %v1692 = vpop.f32.mrf.mxu0
  %v1693 = vadd.f32 0.0, %v1692
  %1694 = vmatmul.f32.gmra.mxu0 %v1657
  %v1695 = vpop.f32.mrf.mxu0
  %v1696 = vadd.f32 0.0, %v1695
  %1697 = vdwg.mxu0
  %1698 = vmatpush.msra.mxu0 0.0
  %1699 = vmatpush.msra.mxu0 0.0
  %1700 = vmatpush.msra.mxu0 0.0
  %1701 = vmatpush.msra.mxu0 0.0
  %1702 = vmatpush.msra.mxu0 0.0
  %1703 = vmatpush.msra.mxu0 0.0
  %1704 = vmatpush.msra.mxu0 0.0
  %1705 = vmatpush.msra.mxu0 0.0
  %1706 = vmatpush.msra.mxu0 0.0
  %1707 = vmatpush.msra.mxu0 0.0
  %1708 = vmatpush.msra.mxu0 0.0
  %1709 = vmatpush.msra.mxu0 0.0
  %1710 = vmatpush.msra.mxu0 0.0
  %1711 = vmatpush.msra.mxu0 0.0
  %1712 = vmatpush.msra.mxu0 0.0
  %1713 = vmatpush.msra.mxu0 %v1661
  %1714 = vmatmul.f32.gmra.mxu0 %v1655
  %v1715 = vpop.f32.mrf.mxu0
  %v1716 = vadd.f32 0.0, %v1715
  %1717 = vmatmul.f32.gmra.mxu0 %v1657
  %v1718 = vpop.f32.mrf.mxu0
  %v1719 = vadd.f32 0.0, %v1718
  %1720 = vdwg.mxu0
  %1721 = vmatpush.msra.mxu0 0.0
  %1722 = vmatpush.msra.mxu0 0.0
  %1723 = vmatpush.msra.mxu0 0.0
  %1724 = vmatpush.msra.mxu0 0.0
  %1725 = vmatpush.msra.mxu0 0.0
  %1726 = vmatpush.msra.mxu0 0.0
  %1727 = vmatpush.msra.mxu0 0.0
  %1728 = vmatpush.msra.mxu0 0.0
  %1729 = vmatpush.msra.mxu0 0.0
  %1730 = vmatpush.msra.mxu0 0.0
  %1731 = vmatpush.msra.mxu0 0.0
  %1732 = vmatpush.msra.mxu0 0.0
  %1733 = vmatpush.msra.mxu0 0.0
  %1734 = vmatpush.msra.mxu0 0.0
  %1735 = vmatpush.msra.mxu0 0.0
  %1736 = vmatpush.msra.mxu0 %v1663
  %1737 = vmatmul.f32.gmra.mxu0 %v1655
  %v1738 = vpop.f32.mrf.mxu0
  %v1739 = vadd.f32 0.0, %v1738
  %1740 = vmatmul.f32.gmra.mxu0 %v1657
  %v1741 = vpop.f32.mrf.mxu0
  %v1742 = vadd.f32 0.0, %v1741
  %1743 = vdwg.mxu0
  %1744 = vmatpush.msra.mxu0 0.0
  %1745 = vmatpush.msra.mxu0 0.0
  %1746 = vmatpush.msra.mxu0 0.0
  %1747 = vmatpush.msra.mxu0 0.0
  %1748 = vmatpush.msra.mxu0 0.0
  %1749 = vmatpush.msra.mxu0 0.0
  %1750 = vmatpush.msra.mxu0 0.0
  %1751 = vmatpush.msra.mxu0 0.0
  %1752 = vmatpush.msra.mxu0 0.0
  %1753 = vmatpush.msra.mxu0 0.0
  %1754 = vmatpush.msra.mxu0 0.0
  %1755 = vmatpush.msra.mxu0 0.0
  %1756 = vmatpush.msra.mxu0 0.0
  %1757 = vmatpush.msra.mxu0 0.0
  %1758 = vmatpush.msra.mxu0 0.0
  %1759 = vmatpush.msra.mxu0 %v1665
  %1760 = vmatmul.f32.gmra.mxu0 %v1655
  %v1761 = vpop.f32.mrf.mxu0
  %v1762 = vadd.f32 0.0, %v1761
  %1763 = vmatmul.f32.gmra.mxu0 %v1657
  %v1764 = vpop.f32.mrf.mxu0
  %v1765 = vadd.f32 0.0, %v1764
  %1766 = vdwg.mxu0
  %1767 = vmatpush.msra.mxu0 0.0
  %1768 = vmatpush.msra.mxu0 0.0
  %1769 = vmatpush.msra.mxu0 0.0
  %1770 = vmatpush.msra.mxu0 0.0
  %1771 = vmatpush.msra.mxu0 0.0
  %1772 = vmatpush.msra.mxu0 0.0
  %1773 = vmatpush.msra.mxu0 0.0
  %1774 = vmatpush.msra.mxu0 0.0
  %1775 = vmatpush.msra.mxu0 0.0
  %1776 = vmatpush.msra.mxu0 0.0
  %1777 = vmatpush.msra.mxu0 0.0
  %1778 = vmatpush.msra.mxu0 0.0
  %1779 = vmatpush.msra.mxu0 0.0
  %1780 = vmatpush.msra.mxu0 0.0
  %1781 = vmatpush.msra.mxu0 0.0
  %1782 = vmatpush.msra.mxu0 %v1667
  %1783 = vmatmul.f32.gmra.mxu0 %v1655
  %v1784 = vpop.f32.mrf.mxu0
  %v1785 = vadd.f32 0.0, %v1784
  %1786 = vmatmul.f32.gmra.mxu0 %v1657
  %v1787 = vpop.f32.mrf.mxu0
  %v1788 = vadd.f32 0.0, %v1787
  %1789 = vdwg.mxu0
  %1790 = vmatpush.msra.mxu0 0.0
  %1791 = vmatpush.msra.mxu0 0.0
  %1792 = vmatpush.msra.mxu0 0.0
  %1793 = vmatpush.msra.mxu0 0.0
  %1794 = vmatpush.msra.mxu0 0.0
  %1795 = vmatpush.msra.mxu0 0.0
  %1796 = vmatpush.msra.mxu0 0.0
  %1797 = vmatpush.msra.mxu0 0.0
  %1798 = vmatpush.msra.mxu0 0.0
  %1799 = vmatpush.msra.mxu0 0.0
  %1800 = vmatpush.msra.mxu0 0.0
  %1801 = vmatpush.msra.mxu0 0.0
  %1802 = vmatpush.msra.mxu0 0.0
  %1803 = vmatpush.msra.mxu0 0.0
  %1804 = vmatpush.msra.mxu0 0.0
  %1805 = vmatpush.msra.mxu0 %v1669
  %1806 = vmatmul.f32.gmra.mxu0 %v1655
  %v1807 = vpop.f32.mrf.mxu0
  %v1808 = vadd.f32 0.0, %v1807
  %1809 = vmatmul.f32.gmra.mxu0 %v1657
  %v1810 = vpop.f32.mrf.mxu0
  %v1811 = vadd.f32 0.0, %v1810
  %1812 = vdwg.mxu0
  %1813 = vmatpush.msra.mxu0 0.0
  %1814 = vmatpush.msra.mxu0 0.0
  %1815 = vmatpush.msra.mxu0 0.0
  %1816 = vmatpush.msra.mxu0 0.0
  %1817 = vmatpush.msra.mxu0 0.0
  %1818 = vmatpush.msra.mxu0 0.0
  %1819 = vmatpush.msra.mxu0 0.0
  %1820 = vmatpush.msra.mxu0 0.0
  %1821 = vmatpush.msra.mxu0 0.0
  %1822 = vmatpush.msra.mxu0 0.0
  %1823 = vmatpush.msra.mxu0 0.0
  %1824 = vmatpush.msra.mxu0 0.0
  %1825 = vmatpush.msra.mxu0 0.0
  %1826 = vmatpush.msra.mxu0 0.0
  %1827 = vmatpush.msra.mxu0 0.0
  %1828 = vmatpush.msra.mxu0 %v1671
  %1829 = vmatmul.f32.gmra.mxu0 %v1655
  %v1830 = vpop.f32.mrf.mxu0
  %v1831 = vadd.f32 0.0, %v1830
  %1832 = vmatmul.f32.gmra.mxu0 %v1657
  %v1833 = vpop.f32.mrf.mxu0
  %v1834 = vadd.f32 0.0, %v1833
  %1835 = vdwg.mxu0
  %1836 = vmatpush.msra.mxu0 0.0
  %1837 = vmatpush.msra.mxu0 0.0
  %1838 = vmatpush.msra.mxu0 0.0
  %1839 = vmatpush.msra.mxu0 0.0
  %1840 = vmatpush.msra.mxu0 0.0
  %1841 = vmatpush.msra.mxu0 0.0
  %1842 = vmatpush.msra.mxu0 0.0
  %1843 = vmatpush.msra.mxu0 0.0
  %1844 = vmatpush.msra.mxu0 0.0
  %1845 = vmatpush.msra.mxu0 0.0
  %1846 = vmatpush.msra.mxu0 0.0
  %1847 = vmatpush.msra.mxu0 0.0
  %1848 = vmatpush.msra.mxu0 0.0
  %1849 = vmatpush.msra.mxu0 0.0
  %1850 = vmatpush.msra.mxu0 0.0
  %1851 = vmatpush.msra.mxu0 %v1673
  %1852 = vmatmul.f32.gmra.mxu0 %v1655
  %v1853 = vpop.f32.mrf.mxu0
  %v1854 = vadd.f32 0.0, %v1853
  %1855 = vmatmul.f32.gmra.mxu0 %v1657
  %v1856 = vpop.f32.mrf.mxu0
  %v1857 = vadd.f32 0.0, %v1856
  %1858 = vdwg.mxu0
  %v1859 = vadd.f32 %v1547, %v1693
  %v1860 = vadd.f32 %v1548, %v1716
  %v1861 = vadd.f32 %v1549, %v1739
  %v1862 = vadd.f32 %v1550, %v1762
  %v1863 = vadd.f32 %v1551, %v1785
  %v1864 = vadd.f32 %v1552, %v1808
  %v1865 = vadd.f32 %v1553, %v1831
  %v1866 = vadd.f32 %v1554, %v1854
  %v1867 = vadd.f32 %v1555, %v1696
  %v1868 = vadd.f32 %v1556, %v1719
  %v1869 = vadd.f32 %v1557, %v1742
  %v1870 = vadd.f32 %v1558, %v1765
  %v1871 = vadd.f32 %v1559, %v1788
  %v1872 = vadd.f32 %v1560, %v1811
  %v1873 = vadd.f32 %v1561, %v1834
  %v1874 = vadd.f32 %v1562, %v1857
  %v1875 = vld [vmem:[%s0] sm:$0x77]
  %v1876 = vld [vmem:[%s0 + $0x8] sm:$0x77]
  %v1877 = vld [vmem:[%s0 + $0x10] sm:$0x77]
  %v1878 = vld [vmem:[%s0 + $0x18] sm:$0x77]
  %v1879 = vld [vmem:[%s0 + $0x20] sm:$0x7]
  %1880 = vrot.lane.b32.xlu0 %v142, 64
  %v1881 = vpop.permute.xlu0 %1880
  %1882 = vrot.lane.b32.xlu0 %v143, 64
  %v1883 = vpop.permute.xlu0 %1882
  %1884 = vrot.lane.b32.xlu0 %v144, 64
  %v1885 = vpop.permute.xlu0 %1884
  %1886 = vrot.lane.b32.xlu0 %v145, 64
  %v1887 = vpop.permute.xlu0 %1886
  %v1888 = vrot.slane %v1881, 4
  %v1889 = vrot.slane %v1883, 4
  %v1890 = vrot.slane %v1885, 4
  %v1891 = vrot.slane %v1887, 4
  %vm1892 = vcmask 523264
  %v1893 = vsel %vm1892, %v1888, %v1881
  %v1894 = vsel %vm141, %v1888, %v1889
  %v1895 = vsel %vm1892, %v1894, %v1883
  %v1896 = vsel %vm141, %v1889, %v1890
  %v1897 = vsel %vm1892, %v1896, %v1885
  %v1898 = vsel %vm141, %v1890, %v1891
  %v1899 = vsel %vm1892, %v1898, %v1887
  %v1905 = vmul.f32 %v1875, %v1893
  %v1906 = vmul.f32 %v1876, %v1895
  %v1907 = vmul.f32 %v1877, %v1897
  %v1908 = vmul.f32 %v1878, %v1899
  %v1909 = vmul.f32 %v1879, %v1891
  %v1910 = vld [vmem:[%s1] sm:$0xff]
  %v1911 = vld [vmem:[%s1 + $0x8] sm:$0xff]
  %1914 = vrot.lane.b32.xlu0 %v1910, 110
  %v1915 = vpop.permute.xlu0 %1914
  %1916 = vrot.lane.b32.xlu0 %v1911, 110
  %v1917 = vpop.permute.xlu0 %1916
  %1923 = vst [vmem:[#allocation1] ss:$2 sm:$0xff] %v1905
  %s1924 = scalar_lea.vmem [#allocation1], 16
  %1925 = vst [vmem:[%s1924] ss:$2 sm:$0xff] %v1906
  %s1926 = scalar_lea.vmem [#allocation1], 32
  %1927 = vst [vmem:[%s1926] ss:$2 sm:$0xff] %v1907
  %s1928 = scalar_lea.vmem [#allocation1], 48
  %1929 = vst [vmem:[%s1928] ss:$2 sm:$0xff] %v1908
  %v1930 = vld.sshfl [vmem:[#allocation1] sm:$0xff pattern:$0x75316420]
  %v1931 = vld.sshfl [vmem:[#allocation1 + $0x8] sm:$0xff pattern:$0x75316420]
  %v1932 = vld.sshfl [vmem:[#allocation1 + $0x10] sm:$0xff pattern:$0x75316420]
  %v1933 = vld.sshfl [vmem:[#allocation1 + $0x18] sm:$0xff pattern:$0x75316420]
  %v1934 = vld.sshfl [vmem:[#allocation1 + $0x20] sm:$0xff pattern:$0x75316420]
  %v1935 = vld.sshfl [vmem:[#allocation1 + $0x28] sm:$0xff pattern:$0x75316420]
  %v1936 = vld.sshfl [vmem:[#allocation1 + $0x30] sm:$0xff pattern:$0x75316420]
  %v1937 = vld.sshfl [vmem:[#allocation1 + $0x38] sm:$0xff pattern:$0x75316420]
  %1938 = vst [vmem:[#allocation1] ss:$2 sm:$0xff] %v1909
  %v1939 = vld.sshfl [vmem:[#allocation1] sm:$0xff pattern:$0x75316420]
  %1940 = vrot.lane.b32.xlu0 %v1930, 64
  %v1941 = vpop.permute.xlu0 %1940
  %1942 = vrot.lane.b32.xlu0 %v1931, 64
  %v1943 = vpop.permute.xlu0 %1942
  %1944 = vrot.lane.b32.xlu0 %v1932, 64
  %v1945 = vpop.permute.xlu0 %1944
  %1946 = vrot.lane.b32.xlu0 %v1933, 64
  %v1947 = vpop.permute.xlu0 %1946
  %1948 = vrot.lane.b32.xlu0 %v1934, 64
  %v1949 = vpop.permute.xlu0 %1948
  %1950 = vrot.lane.b32.xlu0 %v1935, 64
  %v1951 = vpop.permute.xlu0 %1950
  %1952 = vrot.lane.b32.xlu0 %v1936, 64
  %v1953 = vpop.permute.xlu0 %1952
  %1954 = vrot.lane.b32.xlu0 %v1937, 64
  %v1955 = vpop.permute.xlu0 %1954
  %1956 = vrot.lane.b32.xlu0 %v1939, 64
  %v1957 = vpop.permute.xlu0 %1956
  %v1958 = vsel %vm1892, %v1941, %v1943
  %v1959 = vsel %vm1892, %v1943, %v1945
  %v1960 = vsel %vm1892, %v1945, %v1947
  %v1961 = vsel %vm1892, %v1947, %v1949
  %v1962 = vsel %vm1892, %v1949, %v1951
  %v1963 = vsel %vm1892, %v1951, %v1953
  %v1964 = vsel %vm1892, %v1953, %v1955
  %v1965 = vsel %vm1892, %v1955, %v1957
  %v1966 = vsel %vm212, %v1915, 0
  %v1968 = vsel %vm212, %v1917, 0
  %v1970 = vsel %vm217, %v1958, 0
  %v1972 = vsel %vm217, %v1959, 0
  %v1974 = vsel %vm217, %v1960, 0
  %v1976 = vsel %vm217, %v1961, 0
  %v1978 = vsel %vm217, %v1962, 0
  %v1980 = vsel %vm217, %v1963, 0
  %v1982 = vsel %vm217, %v1964, 0
  %v1984 = vsel %vm217, %v1965, 0
  %1986 = vmatpush.msra.mxu0 0.0
  %1987 = vmatpush.msra.mxu0 0.0
  %1988 = vmatpush.msra.mxu0 0.0
  %1989 = vmatpush.msra.mxu0 0.0
  %1990 = vmatpush.msra.mxu0 0.0
  %1991 = vmatpush.msra.mxu0 0.0
  %1992 = vmatpush.msra.mxu0 0.0
  %1993 = vmatpush.msra.mxu0 0.0
  %1994 = vmatpush.msra.mxu0 0.0
  %1995 = vmatpush.msra.mxu0 0.0
  %1996 = vmatpush.msra.mxu0 0.0
  %1997 = vmatpush.msra.mxu0 0.0
  %1998 = vmatpush.msra.mxu0 0.0
  %1999 = vmatpush.msra.mxu0 0.0
  %2000 = vmatpush.msra.mxu0 0.0
  %2001 = vmatpush.msra.mxu0 %v1970
  %2002 = vmatmul.f32.gmra.mxu0 %v1966
  %v2003 = vpop.f32.mrf.mxu0
  %v2004 = vadd.f32 0.0, %v2003
  %2005 = vmatmul.f32.gmra.mxu0 %v1968
  %v2006 = vpop.f32.mrf.mxu0
  %v2007 = vadd.f32 0.0, %v2006
  %2008 = vdwg.mxu0
  %2009 = vmatpush.msra.mxu0 0.0
  %2010 = vmatpush.msra.mxu0 0.0
  %2011 = vmatpush.msra.mxu0 0.0
  %2012 = vmatpush.msra.mxu0 0.0
  %2013 = vmatpush.msra.mxu0 0.0
  %2014 = vmatpush.msra.mxu0 0.0
  %2015 = vmatpush.msra.mxu0 0.0
  %2016 = vmatpush.msra.mxu0 0.0
  %2017 = vmatpush.msra.mxu0 0.0
  %2018 = vmatpush.msra.mxu0 0.0
  %2019 = vmatpush.msra.mxu0 0.0
  %2020 = vmatpush.msra.mxu0 0.0
  %2021 = vmatpush.msra.mxu0 0.0
  %2022 = vmatpush.msra.mxu0 0.0
  %2023 = vmatpush.msra.mxu0 0.0
  %2024 = vmatpush.msra.mxu0 %v1972
  %2025 = vmatmul.f32.gmra.mxu0 %v1966
  %v2026 = vpop.f32.mrf.mxu0
  %v2027 = vadd.f32 0.0, %v2026
  %2028 = vmatmul.f32.gmra.mxu0 %v1968
  %v2029 = vpop.f32.mrf.mxu0
  %v2030 = vadd.f32 0.0, %v2029
  %2031 = vdwg.mxu0
  %2032 = vmatpush.msra.mxu0 0.0
  %2033 = vmatpush.msra.mxu0 0.0
  %2034 = vmatpush.msra.mxu0 0.0
  %2035 = vmatpush.msra.mxu0 0.0
  %2036 = vmatpush.msra.mxu0 0.0
  %2037 = vmatpush.msra.mxu0 0.0
  %2038 = vmatpush.msra.mxu0 0.0
  %2039 = vmatpush.msra.mxu0 0.0
  %2040 = vmatpush.msra.mxu0 0.0
  %2041 = vmatpush.msra.mxu0 0.0
  %2042 = vmatpush.msra.mxu0 0.0
  %2043 = vmatpush.msra.mxu0 0.0
  %2044 = vmatpush.msra.mxu0 0.0
  %2045 = vmatpush.msra.mxu0 0.0
  %2046 = vmatpush.msra.mxu0 0.0
  %2047 = vmatpush.msra.mxu0 %v1974
  %2048 = vmatmul.f32.gmra.mxu0 %v1966
  %v2049 = vpop.f32.mrf.mxu0
  %v2050 = vadd.f32 0.0, %v2049
  %2051 = vmatmul.f32.gmra.mxu0 %v1968
  %v2052 = vpop.f32.mrf.mxu0
  %v2053 = vadd.f32 0.0, %v2052
  %2054 = vdwg.mxu0
  %2055 = vmatpush.msra.mxu0 0.0
  %2056 = vmatpush.msra.mxu0 0.0
  %2057 = vmatpush.msra.mxu0 0.0
  %2058 = vmatpush.msra.mxu0 0.0
  %2059 = vmatpush.msra.mxu0 0.0
  %2060 = vmatpush.msra.mxu0 0.0
  %2061 = vmatpush.msra.mxu0 0.0
  %2062 = vmatpush.msra.mxu0 0.0
  %2063 = vmatpush.msra.mxu0 0.0
  %2064 = vmatpush.msra.mxu0 0.0
  %2065 = vmatpush.msra.mxu0 0.0
  %2066 = vmatpush.msra.mxu0 0.0
  %2067 = vmatpush.msra.mxu0 0.0
  %2068 = vmatpush.msra.mxu0 0.0
  %2069 = vmatpush.msra.mxu0 0.0
  %2070 = vmatpush.msra.mxu0 %v1976
  %2071 = vmatmul.f32.gmra.mxu0 %v1966
  %v2072 = vpop.f32.mrf.mxu0
  %v2073 = vadd.f32 0.0, %v2072
  %2074 = vmatmul.f32.gmra.mxu0 %v1968
  %v2075 = vpop.f32.mrf.mxu0
  %v2076 = vadd.f32 0.0, %v2075
  %2077 = vdwg.mxu0
  %2078 = vmatpush.msra.mxu0 0.0
  %2079 = vmatpush.msra.mxu0 0.0
  %2080 = vmatpush.msra.mxu0 0.0
  %2081 = vmatpush.msra.mxu0 0.0
  %2082 = vmatpush.msra.mxu0 0.0
  %2083 = vmatpush.msra.mxu0 0.0
  %2084 = vmatpush.msra.mxu0 0.0
  %2085 = vmatpush.msra.mxu0 0.0
  %2086 = vmatpush.msra.mxu0 0.0
  %2087 = vmatpush.msra.mxu0 0.0
  %2088 = vmatpush.msra.mxu0 0.0
  %2089 = vmatpush.msra.mxu0 0.0
  %2090 = vmatpush.msra.mxu0 0.0
  %2091 = vmatpush.msra.mxu0 0.0
  %2092 = vmatpush.msra.mxu0 0.0
  %2093 = vmatpush.msra.mxu0 %v1978
  %2094 = vmatmul.f32.gmra.mxu0 %v1966
  %v2095 = vpop.f32.mrf.mxu0
  %v2096 = vadd.f32 0.0, %v2095
  %2097 = vmatmul.f32.gmra.mxu0 %v1968
  %v2098 = vpop.f32.mrf.mxu0
  %v2099 = vadd.f32 0.0, %v2098
  %2100 = vdwg.mxu0
  %2101 = vmatpush.msra.mxu0 0.0
  %2102 = vmatpush.msra.mxu0 0.0
  %2103 = vmatpush.msra.mxu0 0.0
  %2104 = vmatpush.msra.mxu0 0.0
  %2105 = vmatpush.msra.mxu0 0.0
  %2106 = vmatpush.msra.mxu0 0.0
  %2107 = vmatpush.msra.mxu0 0.0
  %2108 = vmatpush.msra.mxu0 0.0
  %2109 = vmatpush.msra.mxu0 0.0
  %2110 = vmatpush.msra.mxu0 0.0
  %2111 = vmatpush.msra.mxu0 0.0
  %2112 = vmatpush.msra.mxu0 0.0
  %2113 = vmatpush.msra.mxu0 0.0
  %2114 = vmatpush.msra.mxu0 0.0
  %2115 = vmatpush.msra.mxu0 0.0
  %2116 = vmatpush.msra.mxu0 %v1980
  %2117 = vmatmul.f32.gmra.mxu0 %v1966
  %v2118 = vpop.f32.mrf.mxu0
  %v2119 = vadd.f32 0.0, %v2118
  %2120 = vmatmul.f32.gmra.mxu0 %v1968
  %v2121 = vpop.f32.mrf.mxu0
  %v2122 = vadd.f32 0.0, %v2121
  %2123 = vdwg.mxu0
  %2124 = vmatpush.msra.mxu0 0.0
  %2125 = vmatpush.msra.mxu0 0.0
  %2126 = vmatpush.msra.mxu0 0.0
  %2127 = vmatpush.msra.mxu0 0.0
  %2128 = vmatpush.msra.mxu0 0.0
  %2129 = vmatpush.msra.mxu0 0.0
  %2130 = vmatpush.msra.mxu0 0.0
  %2131 = vmatpush.msra.mxu0 0.0
  %2132 = vmatpush.msra.mxu0 0.0
  %2133 = vmatpush.msra.mxu0 0.0
  %2134 = vmatpush.msra.mxu0 0.0
  %2135 = vmatpush.msra.mxu0 0.0
  %2136 = vmatpush.msra.mxu0 0.0
  %2137 = vmatpush.msra.mxu0 0.0
  %2138 = vmatpush.msra.mxu0 0.0
  %2139 = vmatpush.msra.mxu0 %v1982
  %2140 = vmatmul.f32.gmra.mxu0 %v1966
  %v2141 = vpop.f32.mrf.mxu0
  %v2142 = vadd.f32 0.0, %v2141
  %2143 = vmatmul.f32.gmra.mxu0 %v1968
  %v2144 = vpop.f32.mrf.mxu0
  %v2145 = vadd.f32 0.0, %v2144
  %2146 = vdwg.mxu0
  %2147 = vmatpush.msra.mxu0 0.0
  %2148 = vmatpush.msra.mxu0 0.0
  %2149 = vmatpush.msra.mxu0 0.0
  %2150 = vmatpush.msra.mxu0 0.0
  %2151 = vmatpush.msra.mxu0 0.0
  %2152 = vmatpush.msra.mxu0 0.0
  %2153 = vmatpush.msra.mxu0 0.0
  %2154 = vmatpush.msra.mxu0 0.0
  %2155 = vmatpush.msra.mxu0 0.0
  %2156 = vmatpush.msra.mxu0 0.0
  %2157 = vmatpush.msra.mxu0 0.0
  %2158 = vmatpush.msra.mxu0 0.0
  %2159 = vmatpush.msra.mxu0 0.0
  %2160 = vmatpush.msra.mxu0 0.0
  %2161 = vmatpush.msra.mxu0 0.0
  %2162 = vmatpush.msra.mxu0 %v1984
  %2163 = vmatmul.f32.gmra.mxu0 %v1966
  %v2164 = vpop.f32.mrf.mxu0
  %v2165 = vadd.f32 0.0, %v2164
  %2166 = vmatmul.f32.gmra.mxu0 %v1968
  %v2167 = vpop.f32.mrf.mxu0
  %v2168 = vadd.f32 0.0, %v2167
  %2169 = vdwg.mxu0
  %v2170 = vadd.f32 %v1859, %v2004
  %v2171 = vadd.f32 %v1860, %v2027
  %v2172 = vadd.f32 %v1861, %v2050
  %v2173 = vadd.f32 %v1862, %v2073
  %v2174 = vadd.f32 %v1863, %v2096
  %v2175 = vadd.f32 %v1864, %v2119
  %v2176 = vadd.f32 %v1865, %v2142
  %v2177 = vadd.f32 %v1866, %v2165
  %v2178 = vadd.f32 %v1867, %v2007
  %v2179 = vadd.f32 %v1868, %v2030
  %v2180 = vadd.f32 %v1869, %v2053
  %v2181 = vadd.f32 %v1870, %v2076
  %v2182 = vadd.f32 %v1871, %v2099
  %v2183 = vadd.f32 %v1872, %v2122
  %v2184 = vadd.f32 %v1873, %v2145
  %v2185 = vadd.f32 %v1874, %v2168
  %v2186 = vld [vmem:[%s0] sm:$0x77]
  %v2187 = vld [vmem:[%s0 + $0x8] sm:$0x77]
  %v2188 = vld [vmem:[%s0 + $0x10] sm:$0x77]
  %v2189 = vld [vmem:[%s0 + $0x18] sm:$0x77]
  %v2190 = vld [vmem:[%s0 + $0x20] sm:$0x7]
  %v2191 = vld [vmem:[%s1] sm:$0xff]
  %v2192 = vld [vmem:[%s1 + $0x8] sm:$0xff]
  %2195 = vrot.lane.b32.xlu0 %v2191, 107
  %v2196 = vpop.permute.xlu0 %2195
  %2197 = vrot.lane.b32.xlu0 %v2192, 107
  %v2198 = vpop.permute.xlu0 %2197
  %2204 = vst [vmem:[#allocation1] ss:$2 sm:$0xff] %v2186
  %s2205 = scalar_lea.vmem [#allocation1], 16
  %2206 = vst [vmem:[%s2205] ss:$2 sm:$0xff] %v2187
  %s2207 = scalar_lea.vmem [#allocation1], 32
  %2208 = vst [vmem:[%s2207] ss:$2 sm:$0xff] %v2188
  %s2209 = scalar_lea.vmem [#allocation1], 48
  %2210 = vst [vmem:[%s2209] ss:$2 sm:$0xff] %v2189
  %v2211 = vld.sshfl [vmem:[#allocation1] sm:$0xff pattern:$0x75316420]
  %v2212 = vld.sshfl [vmem:[#allocation1 + $0x8] sm:$0xff pattern:$0x75316420]
  %v2213 = vld.sshfl [vmem:[#allocation1 + $0x10] sm:$0xff pattern:$0x75316420]
  %v2214 = vld.sshfl [vmem:[#allocation1 + $0x18] sm:$0xff pattern:$0x75316420]
  %v2215 = vld.sshfl [vmem:[#allocation1 + $0x20] sm:$0xff pattern:$0x75316420]
  %v2216 = vld.sshfl [vmem:[#allocation1 + $0x28] sm:$0xff pattern:$0x75316420]
  %v2217 = vld.sshfl [vmem:[#allocation1 + $0x30] sm:$0xff pattern:$0x75316420]
  %v2218 = vld.sshfl [vmem:[#allocation1 + $0x38] sm:$0xff pattern:$0x75316420]
  %2219 = vst [vmem:[#allocation1] ss:$2 sm:$0xff] %v2190
  %v2220 = vld.sshfl [vmem:[#allocation1] sm:$0xff pattern:$0x75316420]
  %2221 = vrot.lane.b32.xlu0 %v2211, 63
  %v2222 = vpop.permute.xlu0 %2221
  %2223 = vrot.lane.b32.xlu0 %v2212, 63
  %v2224 = vpop.permute.xlu0 %2223
  %2225 = vrot.lane.b32.xlu0 %v2213, 63
  %v2226 = vpop.permute.xlu0 %2225
  %2227 = vrot.lane.b32.xlu0 %v2214, 63
  %v2228 = vpop.permute.xlu0 %2227
  %2229 = vrot.lane.b32.xlu0 %v2215, 63
  %v2230 = vpop.permute.xlu0 %2229
  %2231 = vrot.lane.b32.xlu0 %v2216, 63
  %v2232 = vpop.permute.xlu0 %2231
  %2233 = vrot.lane.b32.xlu0 %v2217, 63
  %v2234 = vpop.permute.xlu0 %2233
  %2235 = vrot.lane.b32.xlu0 %v2218, 63
  %v2236 = vpop.permute.xlu0 %2235
  %2237 = vrot.lane.b32.xlu0 %v2220, 63
  %v2238 = vpop.permute.xlu0 %2237
  %vm2239 = vcmask 515072
  %v2240 = vsel %vm2239, %v2222, %v2224
  %v2241 = vsel %vm2239, %v2224, %v2226
  %v2242 = vsel %vm2239, %v2226, %v2228
  %v2243 = vsel %vm2239, %v2228, %v2230
  %v2244 = vsel %vm2239, %v2230, %v2232
  %v2245 = vsel %vm2239, %v2232, %v2234
  %v2246 = vsel %vm2239, %v2234, %v2236
  %v2247 = vsel %vm2239, %v2236, %v2238
  %v2248 = vsel %vm212, %v2196, 0
  %v2250 = vsel %vm212, %v2198, 0
  %v2252 = vsel %vm217, %v2240, 0
  %v2254 = vsel %vm217, %v2241, 0
  %v2256 = vsel %vm217, %v2242, 0
  %v2258 = vsel %vm217, %v2243, 0
  %v2260 = vsel %vm217, %v2244, 0
  %v2262 = vsel %vm217, %v2245, 0
  %v2264 = vsel %vm217, %v2246, 0
  %v2266 = vsel %vm217, %v2247, 0
  %2268 = vmatpush.msra.mxu0 0.0
  %2269 = vmatpush.msra.mxu0 0.0
  %2270 = vmatpush.msra.mxu0 0.0
  %2271 = vmatpush.msra.mxu0 0.0
  %2272 = vmatpush.msra.mxu0 0.0
  %2273 = vmatpush.msra.mxu0 0.0
  %2274 = vmatpush.msra.mxu0 0.0
  %2275 = vmatpush.msra.mxu0 0.0
  %2276 = vmatpush.msra.mxu0 0.0
  %2277 = vmatpush.msra.mxu0 0.0
  %2278 = vmatpush.msra.mxu0 0.0
  %2279 = vmatpush.msra.mxu0 0.0
  %2280 = vmatpush.msra.mxu0 0.0
  %2281 = vmatpush.msra.mxu0 0.0
  %2282 = vmatpush.msra.mxu0 0.0
  %2283 = vmatpush.msra.mxu0 %v2252
  %2284 = vmatmul.f32.gmra.mxu0 %v2248
  %v2285 = vpop.f32.mrf.mxu0
  %v2286 = vadd.f32 0.0, %v2285
  %2287 = vmatmul.f32.gmra.mxu0 %v2250
  %v2288 = vpop.f32.mrf.mxu0
  %v2289 = vadd.f32 0.0, %v2288
  %2290 = vdwg.mxu0
  %2291 = vmatpush.msra.mxu0 0.0
  %2292 = vmatpush.msra.mxu0 0.0
  %2293 = vmatpush.msra.mxu0 0.0
  %2294 = vmatpush.msra.mxu0 0.0
  %2295 = vmatpush.msra.mxu0 0.0
  %2296 = vmatpush.msra.mxu0 0.0
  %2297 = vmatpush.msra.mxu0 0.0
  %2298 = vmatpush.msra.mxu0 0.0
  %2299 = vmatpush.msra.mxu0 0.0
  %2300 = vmatpush.msra.mxu0 0.0
  %2301 = vmatpush.msra.mxu0 0.0
  %2302 = vmatpush.msra.mxu0 0.0
  %2303 = vmatpush.msra.mxu0 0.0
  %2304 = vmatpush.msra.mxu0 0.0
  %2305 = vmatpush.msra.mxu0 0.0
  %2306 = vmatpush.msra.mxu0 %v2254
  %2307 = vmatmul.f32.gmra.mxu0 %v2248
  %v2308 = vpop.f32.mrf.mxu0
  %v2309 = vadd.f32 0.0, %v2308
  %2310 = vmatmul.f32.gmra.mxu0 %v2250
  %v2311 = vpop.f32.mrf.mxu0
  %v2312 = vadd.f32 0.0, %v2311
  %2313 = vdwg.mxu0
  %2314 = vmatpush.msra.mxu0 0.0
  %2315 = vmatpush.msra.mxu0 0.0
  %2316 = vmatpush.msra.mxu0 0.0
  %2317 = vmatpush.msra.mxu0 0.0
  %2318 = vmatpush.msra.mxu0 0.0
  %2319 = vmatpush.msra.mxu0 0.0
  %2320 = vmatpush.msra.mxu0 0.0
  %2321 = vmatpush.msra.mxu0 0.0
  %2322 = vmatpush.msra.mxu0 0.0
  %2323 = vmatpush.msra.mxu0 0.0
  %2324 = vmatpush.msra.mxu0 0.0
  %2325 = vmatpush.msra.mxu0 0.0
  %2326 = vmatpush.msra.mxu0 0.0
  %2327 = vmatpush.msra.mxu0 0.0
  %2328 = vmatpush.msra.mxu0 0.0
  %2329 = vmatpush.msra.mxu0 %v2256
  %2330 = vmatmul.f32.gmra.mxu0 %v2248
  %v2331 = vpop.f32.mrf.mxu0
  %v2332 = vadd.f32 0.0, %v2331
  %2333 = vmatmul.f32.gmra.mxu0 %v2250
  %v2334 = vpop.f32.mrf.mxu0
  %v2335 = vadd.f32 0.0, %v2334
  %2336 = vdwg.mxu0
  %2337 = vmatpush.msra.mxu0 0.0
  %2338 = vmatpush.msra.mxu0 0.0
  %2339 = vmatpush.msra.mxu0 0.0
  %2340 = vmatpush.msra.mxu0 0.0
  %2341 = vmatpush.msra.mxu0 0.0
  %2342 = vmatpush.msra.mxu0 0.0
  %2343 = vmatpush.msra.mxu0 0.0
  %2344 = vmatpush.msra.mxu0 0.0
  %2345 = vmatpush.msra.mxu0 0.0
  %2346 = vmatpush.msra.mxu0 0.0
  %2347 = vmatpush.msra.mxu0 0.0
  %2348 = vmatpush.msra.mxu0 0.0
  %2349 = vmatpush.msra.mxu0 0.0
  %2350 = vmatpush.msra.mxu0 0.0
  %2351 = vmatpush.msra.mxu0 0.0
  %2352 = vmatpush.msra.mxu0 %v2258
  %2353 = vmatmul.f32.gmra.mxu0 %v2248
  %v2354 = vpop.f32.mrf.mxu0
  %v2355 = vadd.f32 0.0, %v2354
  %2356 = vmatmul.f32.gmra.mxu0 %v2250
  %v2357 = vpop.f32.mrf.mxu0
  %v2358 = vadd.f32 0.0, %v2357
  %2359 = vdwg.mxu0
  %2360 = vmatpush.msra.mxu0 0.0
  %2361 = vmatpush.msra.mxu0 0.0
  %2362 = vmatpush.msra.mxu0 0.0
  %2363 = vmatpush.msra.mxu0 0.0
  %2364 = vmatpush.msra.mxu0 0.0
  %2365 = vmatpush.msra.mxu0 0.0
  %2366 = vmatpush.msra.mxu0 0.0
  %2367 = vmatpush.msra.mxu0 0.0
  %2368 = vmatpush.msra.mxu0 0.0
  %2369 = vmatpush.msra.mxu0 0.0
  %2370 = vmatpush.msra.mxu0 0.0
  %2371 = vmatpush.msra.mxu0 0.0
  %2372 = vmatpush.msra.mxu0 0.0
  %2373 = vmatpush.msra.mxu0 0.0
  %2374 = vmatpush.msra.mxu0 0.0
  %2375 = vmatpush.msra.mxu0 %v2260
  %2376 = vmatmul.f32.gmra.mxu0 %v2248
  %v2377 = vpop.f32.mrf.mxu0
  %v2378 = vadd.f32 0.0, %v2377
  %2379 = vmatmul.f32.gmra.mxu0 %v2250
  %v2380 = vpop.f32.mrf.mxu0
  %v2381 = vadd.f32 0.0, %v2380
  %2382 = vdwg.mxu0
  %2383 = vmatpush.msra.mxu0 0.0
  %2384 = vmatpush.msra.mxu0 0.0
  %2385 = vmatpush.msra.mxu0 0.0
  %2386 = vmatpush.msra.mxu0 0.0
  %2387 = vmatpush.msra.mxu0 0.0
  %2388 = vmatpush.msra.mxu0 0.0
  %2389 = vmatpush.msra.mxu0 0.0
  %2390 = vmatpush.msra.mxu0 0.0
  %2391 = vmatpush.msra.mxu0 0.0
  %2392 = vmatpush.msra.mxu0 0.0
  %2393 = vmatpush.msra.mxu0 0.0
  %2394 = vmatpush.msra.mxu0 0.0
  %2395 = vmatpush.msra.mxu0 0.0
  %2396 = vmatpush.msra.mxu0 0.0
  %2397 = vmatpush.msra.mxu0 0.0
  %2398 = vmatpush.msra.mxu0 %v2262
  %2399 = vmatmul.f32.gmra.mxu0 %v2248
  %v2400 = vpop.f32.mrf.mxu0
  %v2401 = vadd.f32 0.0, %v2400
  %2402 = vmatmul.f32.gmra.mxu0 %v2250
  %v2403 = vpop.f32.mrf.mxu0
  %v2404 = vadd.f32 0.0, %v2403
  %2405 = vdwg.mxu0
  %2406 = vmatpush.msra.mxu0 0.0
  %2407 = vmatpush.msra.mxu0 0.0
  %2408 = vmatpush.msra.mxu0 0.0
  %2409 = vmatpush.msra.mxu0 0.0
  %2410 = vmatpush.msra.mxu0 0.0
  %2411 = vmatpush.msra.mxu0 0.0
  %2412 = vmatpush.msra.mxu0 0.0
  %2413 = vmatpush.msra.mxu0 0.0
  %2414 = vmatpush.msra.mxu0 0.0
  %2415 = vmatpush.msra.mxu0 0.0
  %2416 = vmatpush.msra.mxu0 0.0
  %2417 = vmatpush.msra.mxu0 0.0
  %2418 = vmatpush.msra.mxu0 0.0
  %2419 = vmatpush.msra.mxu0 0.0
  %2420 = vmatpush.msra.mxu0 0.0
  %2421 = vmatpush.msra.mxu0 %v2264
  %2422 = vmatmul.f32.gmra.mxu0 %v2248
  %v2423 = vpop.f32.mrf.mxu0
  %v2424 = vadd.f32 0.0, %v2423
  %2425 = vmatmul.f32.gmra.mxu0 %v2250
  %v2426 = vpop.f32.mrf.mxu0
  %v2427 = vadd.f32 0.0, %v2426
  %2428 = vdwg.mxu0
  %2429 = vmatpush.msra.mxu0 0.0
  %2430 = vmatpush.msra.mxu0 0.0
  %2431 = vmatpush.msra.mxu0 0.0
  %2432 = vmatpush.msra.mxu0 0.0
  %2433 = vmatpush.msra.mxu0 0.0
  %2434 = vmatpush.msra.mxu0 0.0
  %2435 = vmatpush.msra.mxu0 0.0
  %2436 = vmatpush.msra.mxu0 0.0
  %2437 = vmatpush.msra.mxu0 0.0
  %2438 = vmatpush.msra.mxu0 0.0
  %2439 = vmatpush.msra.mxu0 0.0
  %2440 = vmatpush.msra.mxu0 0.0
  %2441 = vmatpush.msra.mxu0 0.0
  %2442 = vmatpush.msra.mxu0 0.0
  %2443 = vmatpush.msra.mxu0 0.0
  %2444 = vmatpush.msra.mxu0 %v2266
  %2445 = vmatmul.f32.gmra.mxu0 %v2248
  %v2446 = vpop.f32.mrf.mxu0
  %v2447 = vadd.f32 0.0, %v2446
  %2448 = vmatmul.f32.gmra.mxu0 %v2250
  %v2449 = vpop.f32.mrf.mxu0
  %v2450 = vadd.f32 0.0, %v2449
  %2451 = vdwg.mxu0
  %v2452 = vadd.f32 %v2170, %v2286
  %v2453 = vadd.f32 %v2171, %v2309
  %v2454 = vadd.f32 %v2172, %v2332
  %v2455 = vadd.f32 %v2173, %v2355
  %v2456 = vadd.f32 %v2174, %v2378
  %v2457 = vadd.f32 %v2175, %v2401
  %v2458 = vadd.f32 %v2176, %v2424
  %v2459 = vadd.f32 %v2177, %v2447
  %v2460 = vadd.f32 %v2178, %v2289
  %v2461 = vadd.f32 %v2179, %v2312
  %v2462 = vadd.f32 %v2180, %v2335
  %v2463 = vadd.f32 %v2181, %v2358
  %v2464 = vadd.f32 %v2182, %v2381
  %v2465 = vadd.f32 %v2183, %v2404
  %v2466 = vadd.f32 %v2184, %v2427
  %v2467 = vadd.f32 %v2185, %v2450
  %v2468 = vld [vmem:[%s0] sm:$0x77]
  %v2469 = vld [vmem:[%s0 + $0x8] sm:$0x77]
  %v2470 = vld [vmem:[%s0 + $0x10] sm:$0x77]
  %v2471 = vld [vmem:[%s0 + $0x18] sm:$0x77]
  %v2472 = vld [vmem:[%s0 + $0x20] sm:$0x7]
  %2473 = vrot.lane.b32.xlu0 %v658, 66
  %v2474 = vpop.permute.xlu0 %2473
  %2475 = vrot.lane.b32.xlu0 %v659, 66
  %v2476 = vpop.permute.xlu0 %2475
  %2477 = vrot.lane.b32.xlu0 %v660, 66
  %v2478 = vpop.permute.xlu0 %2477
  %2479 = vrot.lane.b32.xlu0 %v661, 66
  %v2480 = vpop.permute.xlu0 %2479
  %v2481 = vrot.slane %v2474, 4
  %v2482 = vrot.slane %v2476, 4
  %v2483 = vrot.slane %v2478, 4
  %v2484 = vrot.slane %v2480, 4
  %vm2485 = vcmask 539648
  %v2486 = vsel %vm2485, %v2481, %v2474
  %v2487 = vsel %vm141, %v2481, %v2482
  %v2488 = vsel %vm2485, %v2487, %v2476
  %v2489 = vsel %vm141, %v2482, %v2483
  %v2490 = vsel %vm2485, %v2489, %v2478
  %v2491 = vsel %vm141, %v2483, %v2484
  %v2492 = vsel %vm2485, %v2491, %v2480
  %v2498 = vmul.f32 %v2468, %v2486
  %v2499 = vmul.f32 %v2469, %v2488
  %v2500 = vmul.f32 %v2470, %v2490
  %v2501 = vmul.f32 %v2471, %v2492
  %v2502 = vmul.f32 %v2472, %v2484
  %v2503 = vld [vmem:[%s1] sm:$0xff]
  %v2504 = vld [vmem:[%s1 + $0x8] sm:$0xff]
  %2507 = vrot.lane.b32.xlu0 %v2503, 104
  %v2508 = vpop.permute.xlu0 %2507
  %2509 = vrot.lane.b32.xlu0 %v2504, 104
  %v2510 = vpop.permute.xlu0 %2509
  %2516 = vst [vmem:[#allocation1] ss:$2 sm:$0xff] %v2498
  %s2517 = scalar_lea.vmem [#allocation1], 16
  %2518 = vst [vmem:[%s2517] ss:$2 sm:$0xff] %v2499
  %s2519 = scalar_lea.vmem [#allocation1], 32
  %2520 = vst [vmem:[%s2519] ss:$2 sm:$0xff] %v2500
  %s2521 = scalar_lea.vmem [#allocation1], 48
  %2522 = vst [vmem:[%s2521] ss:$2 sm:$0xff] %v2501
  %v2523 = vld.sshfl [vmem:[#allocation1] sm:$0xff pattern:$0x75316420]
  %v2524 = vld.sshfl [vmem:[#allocation1 + $0x8] sm:$0xff pattern:$0x75316420]
  %v2525 = vld.sshfl [vmem:[#allocation1 + $0x10] sm:$0xff pattern:$0x75316420]
  %v2526 = vld.sshfl [vmem:[#allocation1 + $0x18] sm:$0xff pattern:$0x75316420]
  %v2527 = vld.sshfl [vmem:[#allocation1 + $0x20] sm:$0xff pattern:$0x75316420]
  %v2528 = vld.sshfl [vmem:[#allocation1 + $0x28] sm:$0xff pattern:$0x75316420]
  %v2529 = vld.sshfl [vmem:[#allocation1 + $0x30] sm:$0xff pattern:$0x75316420]
  %v2530 = vld.sshfl [vmem:[#allocation1 + $0x38] sm:$0xff pattern:$0x75316420]
  %2531 = vst [vmem:[#allocation1] ss:$2 sm:$0xff] %v2502
  %v2532 = vld.sshfl [vmem:[#allocation1] sm:$0xff pattern:$0x75316420]
  %2533 = vrot.lane.b32.xlu0 %v2523, 62
  %v2534 = vpop.permute.xlu0 %2533
  %2535 = vrot.lane.b32.xlu0 %v2524, 62
  %v2536 = vpop.permute.xlu0 %2535
  %2537 = vrot.lane.b32.xlu0 %v2525, 62
  %v2538 = vpop.permute.xlu0 %2537
  %2539 = vrot.lane.b32.xlu0 %v2526, 62
  %v2540 = vpop.permute.xlu0 %2539
  %2541 = vrot.lane.b32.xlu0 %v2527, 62
  %v2542 = vpop.permute.xlu0 %2541
  %2543 = vrot.lane.b32.xlu0 %v2528, 62
  %v2544 = vpop.permute.xlu0 %2543
  %2545 = vrot.lane.b32.xlu0 %v2529, 62
  %v2546 = vpop.permute.xlu0 %2545
  %2547 = vrot.lane.b32.xlu0 %v2530, 62
  %v2548 = vpop.permute.xlu0 %2547
  %2549 = vrot.lane.b32.xlu0 %v2532, 62
  %v2550 = vpop.permute.xlu0 %2549
  %vm2551 = vcmask 506880
  %v2552 = vsel %vm2551, %v2534, %v2536
  %v2553 = vsel %vm2551, %v2536, %v2538
  %v2554 = vsel %vm2551, %v2538, %v2540
  %v2555 = vsel %vm2551, %v2540, %v2542
  %v2556 = vsel %vm2551, %v2542, %v2544
  %v2557 = vsel %vm2551, %v2544, %v2546
  %v2558 = vsel %vm2551, %v2546, %v2548
  %v2559 = vsel %vm2551, %v2548, %v2550
  %v2560 = vsel %vm212, %v2508, 0
  %v2562 = vsel %vm212, %v2510, 0
  %v2564 = vsel %vm217, %v2552, 0
  %v2566 = vsel %vm217, %v2553, 0
  %v2568 = vsel %vm217, %v2554, 0
  %v2570 = vsel %vm217, %v2555, 0
  %v2572 = vsel %vm217, %v2556, 0
  %v2574 = vsel %vm217, %v2557, 0
  %v2576 = vsel %vm217, %v2558, 0
  %v2578 = vsel %vm217, %v2559, 0
  %2580 = vmatpush.msra.mxu0 0.0
  %2581 = vmatpush.msra.mxu0 0.0
  %2582 = vmatpush.msra.mxu0 0.0
  %2583 = vmatpush.msra.mxu0 0.0
  %2584 = vmatpush.msra.mxu0 0.0
  %2585 = vmatpush.msra.mxu0 0.0
  %2586 = vmatpush.msra.mxu0 0.0
  %2587 = vmatpush.msra.mxu0 0.0
  %2588 = vmatpush.msra.mxu0 0.0
  %2589 = vmatpush.msra.mxu0 0.0
  %2590 = vmatpush.msra.mxu0 0.0
  %2591 = vmatpush.msra.mxu0 0.0
  %2592 = vmatpush.msra.mxu0 0.0
  %2593 = vmatpush.msra.mxu0 0.0
  %2594 = vmatpush.msra.mxu0 0.0
  %2595 = vmatpush.msra.mxu0 %v2564
  %2596 = vmatmul.f32.gmra.mxu0 %v2560
  %v2597 = vpop.f32.mrf.mxu0
  %v2598 = vadd.f32 0.0, %v2597
  %2599 = vmatmul.f32.gmra.mxu0 %v2562
  %v2600 = vpop.f32.mrf.mxu0
  %v2601 = vadd.f32 0.0, %v2600
  %2602 = vdwg.mxu0
  %2603 = vmatpush.msra.mxu0 0.0
  %2604 = vmatpush.msra.mxu0 0.0
  %2605 = vmatpush.msra.mxu0 0.0
  %2606 = vmatpush.msra.mxu0 0.0
  %2607 = vmatpush.msra.mxu0 0.0
  %2608 = vmatpush.msra.mxu0 0.0
  %2609 = vmatpush.msra.mxu0 0.0
  %2610 = vmatpush.msra.mxu0 0.0
  %2611 = vmatpush.msra.mxu0 0.0
  %2612 = vmatpush.msra.mxu0 0.0
  %2613 = vmatpush.msra.mxu0 0.0
  %2614 = vmatpush.msra.mxu0 0.0
  %2615 = vmatpush.msra.mxu0 0.0
  %2616 = vmatpush.msra.mxu0 0.0
  %2617 = vmatpush.msra.mxu0 0.0
  %2618 = vmatpush.msra.mxu0 %v2566
  %2619 = vmatmul.f32.gmra.mxu0 %v2560
  %v2620 = vpop.f32.mrf.mxu0
  %v2621 = vadd.f32 0.0, %v2620
  %2622 = vmatmul.f32.gmra.mxu0 %v2562
  %v2623 = vpop.f32.mrf.mxu0
  %v2624 = vadd.f32 0.0, %v2623
  %2625 = vdwg.mxu0
  %2626 = vmatpush.msra.mxu0 0.0
  %2627 = vmatpush.msra.mxu0 0.0
  %2628 = vmatpush.msra.mxu0 0.0
  %2629 = vmatpush.msra.mxu0 0.0
  %2630 = vmatpush.msra.mxu0 0.0
  %2631 = vmatpush.msra.mxu0 0.0
  %2632 = vmatpush.msra.mxu0 0.0
  %2633 = vmatpush.msra.mxu0 0.0
  %2634 = vmatpush.msra.mxu0 0.0
  %2635 = vmatpush.msra.mxu0 0.0
  %2636 = vmatpush.msra.mxu0 0.0
  %2637 = vmatpush.msra.mxu0 0.0
  %2638 = vmatpush.msra.mxu0 0.0
  %2639 = vmatpush.msra.mxu0 0.0
  %2640 = vmatpush.msra.mxu0 0.0
  %2641 = vmatpush.msra.mxu0 %v2568
  %2642 = vmatmul.f32.gmra.mxu0 %v2560
  %v2643 = vpop.f32.mrf.mxu0
  %v2644 = vadd.f32 0.0, %v2643
  %2645 = vmatmul.f32.gmra.mxu0 %v2562
  %v2646 = vpop.f32.mrf.mxu0
  %v2647 = vadd.f32 0.0, %v2646
  %2648 = vdwg.mxu0
  %2649 = vmatpush.msra.mxu0 0.0
  %2650 = vmatpush.msra.mxu0 0.0
  %2651 = vmatpush.msra.mxu0 0.0
  %2652 = vmatpush.msra.mxu0 0.0
  %2653 = vmatpush.msra.mxu0 0.0
  %2654 = vmatpush.msra.mxu0 0.0
  %2655 = vmatpush.msra.mxu0 0.0
  %2656 = vmatpush.msra.mxu0 0.0
  %2657 = vmatpush.msra.mxu0 0.0
  %2658 = vmatpush.msra.mxu0 0.0
  %2659 = vmatpush.msra.mxu0 0.0
  %2660 = vmatpush.msra.mxu0 0.0
  %2661 = vmatpush.msra.mxu0 0.0
  %2662 = vmatpush.msra.mxu0 0.0
  %2663 = vmatpush.msra.mxu0 0.0
  %2664 = vmatpush.msra.mxu0 %v2570
  %2665 = vmatmul.f32.gmra.mxu0 %v2560
  %v2666 = vpop.f32.mrf.mxu0
  %v2667 = vadd.f32 0.0, %v2666
  %2668 = vmatmul.f32.gmra.mxu0 %v2562
  %v2669 = vpop.f32.mrf.mxu0
  %v2670 = vadd.f32 0.0, %v2669
  %2671 = vdwg.mxu0
  %2672 = vmatpush.msra.mxu0 0.0
  %2673 = vmatpush.msra.mxu0 0.0
  %2674 = vmatpush.msra.mxu0 0.0
  %2675 = vmatpush.msra.mxu0 0.0
  %2676 = vmatpush.msra.mxu0 0.0
  %2677 = vmatpush.msra.mxu0 0.0
  %2678 = vmatpush.msra.mxu0 0.0
  %2679 = vmatpush.msra.mxu0 0.0
  %2680 = vmatpush.msra.mxu0 0.0
  %2681 = vmatpush.msra.mxu0 0.0
  %2682 = vmatpush.msra.mxu0 0.0
  %2683 = vmatpush.msra.mxu0 0.0
  %2684 = vmatpush.msra.mxu0 0.0
  %2685 = vmatpush.msra.mxu0 0.0
  %2686 = vmatpush.msra.mxu0 0.0
  %2687 = vmatpush.msra.mxu0 %v2572
  %2688 = vmatmul.f32.gmra.mxu0 %v2560
  %v2689 = vpop.f32.mrf.mxu0
  %v2690 = vadd.f32 0.0, %v2689
  %2691 = vmatmul.f32.gmra.mxu0 %v2562
  %v2692 = vpop.f32.mrf.mxu0
  %v2693 = vadd.f32 0.0, %v2692
  %2694 = vdwg.mxu0
  %2695 = vmatpush.msra.mxu0 0.0
  %2696 = vmatpush.msra.mxu0 0.0
  %2697 = vmatpush.msra.mxu0 0.0
  %2698 = vmatpush.msra.mxu0 0.0
  %2699 = vmatpush.msra.mxu0 0.0
  %2700 = vmatpush.msra.mxu0 0.0
  %2701 = vmatpush.msra.mxu0 0.0
  %2702 = vmatpush.msra.mxu0 0.0
  %2703 = vmatpush.msra.mxu0 0.0
  %2704 = vmatpush.msra.mxu0 0.0
  %2705 = vmatpush.msra.mxu0 0.0
  %2706 = vmatpush.msra.mxu0 0.0
  %2707 = vmatpush.msra.mxu0 0.0
  %2708 = vmatpush.msra.mxu0 0.0
  %2709 = vmatpush.msra.mxu0 0.0
  %2710 = vmatpush.msra.mxu0 %v2574
  %2711 = vmatmul.f32.gmra.mxu0 %v2560
  %v2712 = vpop.f32.mrf.mxu0
  %v2713 = vadd.f32 0.0, %v2712
  %2714 = vmatmul.f32.gmra.mxu0 %v2562
  %v2715 = vpop.f32.mrf.mxu0
  %v2716 = vadd.f32 0.0, %v2715
  %2717 = vdwg.mxu0
  %2718 = vmatpush.msra.mxu0 0.0
  %2719 = vmatpush.msra.mxu0 0.0
  %2720 = vmatpush.msra.mxu0 0.0
  %2721 = vmatpush.msra.mxu0 0.0
  %2722 = vmatpush.msra.mxu0 0.0
  %2723 = vmatpush.msra.mxu0 0.0
  %2724 = vmatpush.msra.mxu0 0.0
  %2725 = vmatpush.msra.mxu0 0.0
  %2726 = vmatpush.msra.mxu0 0.0
  %2727 = vmatpush.msra.mxu0 0.0
  %2728 = vmatpush.msra.mxu0 0.0
  %2729 = vmatpush.msra.mxu0 0.0
  %2730 = vmatpush.msra.mxu0 0.0
  %2731 = vmatpush.msra.mxu0 0.0
  %2732 = vmatpush.msra.mxu0 0.0
  %2733 = vmatpush.msra.mxu0 %v2576
  %2734 = vmatmul.f32.gmra.mxu0 %v2560
  %v2735 = vpop.f32.mrf.mxu0
  %v2736 = vadd.f32 0.0, %v2735
  %2737 = vmatmul.f32.gmra.mxu0 %v2562
  %v2738 = vpop.f32.mrf.mxu0
  %v2739 = vadd.f32 0.0, %v2738
  %2740 = vdwg.mxu0
  %2741 = vmatpush.msra.mxu0 0.0
  %2742 = vmatpush.msra.mxu0 0.0
  %2743 = vmatpush.msra.mxu0 0.0
  %2744 = vmatpush.msra.mxu0 0.0
  %2745 = vmatpush.msra.mxu0 0.0
  %2746 = vmatpush.msra.mxu0 0.0
  %2747 = vmatpush.msra.mxu0 0.0
  %2748 = vmatpush.msra.mxu0 0.0
  %2749 = vmatpush.msra.mxu0 0.0
  %2750 = vmatpush.msra.mxu0 0.0
  %2751 = vmatpush.msra.mxu0 0.0
  %2752 = vmatpush.msra.mxu0 0.0
  %2753 = vmatpush.msra.mxu0 0.0
  %2754 = vmatpush.msra.mxu0 0.0
  %2755 = vmatpush.msra.mxu0 0.0
  %2756 = vmatpush.msra.mxu0 %v2578
  %2757 = vmatmul.f32.gmra.mxu0 %v2560
  %v2758 = vpop.f32.mrf.mxu0
  %v2759 = vadd.f32 0.0, %v2758
  %2760 = vmatmul.f32.gmra.mxu0 %v2562
  %v2761 = vpop.f32.mrf.mxu0
  %v2762 = vadd.f32 0.0, %v2761
  %2763 = vdwg.mxu0
  %v2764 = vadd.f32 %v2452, %v2598
  %v2765 = vadd.f32 %v2453, %v2621
  %v2766 = vadd.f32 %v2454, %v2644
  %v2767 = vadd.f32 %v2455, %v2667
  %v2768 = vadd.f32 %v2456, %v2690
  %v2769 = vadd.f32 %v2457, %v2713
  %v2770 = vadd.f32 %v2458, %v2736
  %v2771 = vadd.f32 %v2459, %v2759
  %v2772 = vadd.f32 %v2460, %v2601
  %v2773 = vadd.f32 %v2461, %v2624
  %v2774 = vadd.f32 %v2462, %v2647
  %v2775 = vadd.f32 %v2463, %v2670
  %v2776 = vadd.f32 %v2464, %v2693
  %v2777 = vadd.f32 %v2465, %v2716
  %v2778 = vadd.f32 %v2466, %v2739
  %v2779 = vadd.f32 %v2467, %v2762
  %v2780 = vld [vmem:[%s2] sm:$0xff]
  %v2781 = vld [vmem:[%s2 + $0x8] sm:$0xff]
  %2783 = vset.pattern.permute.xlu0 0
  %2784 = vperm.xlu0 %2783, %v2780
  %v2785 = vpop.permute.xlu0 %2784
  %2788 = vset.pattern.permute.xlu0 0
  %2789 = vperm.xlu0 %2788, %v2781
  %v2790 = vpop.permute.xlu0 %2789
  %v2792 = vadd.f32 %v2764, %v2785
  %v2793 = vadd.f32 %v2765, %v2785
  %v2794 = vadd.f32 %v2766, %v2785
  %v2795 = vadd.f32 %v2767, %v2785
  %v2796 = vadd.f32 %v2768, %v2785
  %v2797 = vadd.f32 %v2769, %v2785
  %v2798 = vadd.f32 %v2770, %v2785
  %v2799 = vadd.f32 %v2771, %v2785
  %v2800 = vadd.f32 %v2772, %v2790
  %v2801 = vadd.f32 %v2773, %v2790
  %v2802 = vadd.f32 %v2774, %v2790
  %v2803 = vadd.f32 %v2775, %v2790
  %v2804 = vadd.f32 %v2776, %v2790
  %v2805 = vadd.f32 %v2777, %v2790
  %v2806 = vadd.f32 %v2778, %v2790
  %v2807 = vadd.f32 %v2779, %v2790
  %v2808 = vmax.f32 %v2792, 0.0
  %v2809 = vmax.f32 %v2793, 0.0
  %v2810 = vmax.f32 %v2794, 0.0
  %v2811 = vmax.f32 %v2795, 0.0
  %v2812 = vmax.f32 %v2796, 0.0
  %v2813 = vmax.f32 %v2797, 0.0
  %v2814 = vmax.f32 %v2798, 0.0
  %v2815 = vmax.f32 %v2799, 0.0
  %v2816 = vmax.f32 %v2800, 0.0
  %v2817 = vmax.f32 %v2801, 0.0
  %v2818 = vmax.f32 %v2802, 0.0
  %v2819 = vmax.f32 %v2803, 0.0
  %v2820 = vmax.f32 %v2804, 0.0
  %v2821 = vmax.f32 %v2805, 0.0
  %v2822 = vmax.f32 %v2806, 0.0
  %v2823 = vmax.f32 %v2807, 0.0
  %2824 = vst [vmem:[#allocation2] sm:$0xff] 0.0
  %2825 = vst [vmem:[#allocation2 + $0x8] sm:$0xff] 0.0
  %2826 = vst [vmem:[#allocation2 + $0x10] sm:$0xff] 0.0
  %2827 = vst [vmem:[#allocation2 + $0x18] sm:$0xff] 0.0
  %2828 = vst [vmem:[#allocation2 + $0x20] sm:$0xff] 0.0
  %2829 = vst [vmem:[#allocation2 + $0x28] sm:$0xff] 0.0
  %2830 = vst [vmem:[#allocation2 + $0x30] sm:$0xff] 0.0
  %2831 = vst [vmem:[#allocation2 + $0x38] sm:$0xff] 0.0
  %2832 = vst.msk [vmem:[#allocation2 + $0x40] sm:$0xff] %vm2485, 0.0
  %2833 = vst [vmem:[#allocation2 + $0x48] sm:$0xff] 0.0
  %2834 = vst [vmem:[#allocation2 + $0x50] sm:$0xff] 0.0
  %2835 = vst [vmem:[#allocation2 + $0x58] sm:$0xff] 0.0
  %2836 = vst [vmem:[#allocation2 + $0x60] sm:$0xff] 0.0
  %2837 = vst [vmem:[#allocation2 + $0x68] sm:$0xff] 0.0
  %2838 = vst [vmem:[#allocation2 + $0x70] sm:$0xff] 0.0
  %2839 = vst [vmem:[#allocation2 + $0x78] sm:$0xff] 0.0
  %2840 = vst [vmem:[#allocation2 + $0x80] sm:$0xff] 0.0
  %2841 = vst.msk [vmem:[#allocation2 + $0x88] sm:$0xff] %vm2485, 0.0
  %2858 = vrot.lane.b32.xlu0 %v2808, 33
  %v2859 = vpop.permute.xlu0 %2858
  %2860 = vrot.lane.b32.xlu0 %v2809, 33
  %v2861 = vpop.permute.xlu0 %2860
  %2862 = vrot.lane.b32.xlu0 %v2810, 33
  %v2863 = vpop.permute.xlu0 %2862
  %2864 = vrot.lane.b32.xlu0 %v2811, 33
  %v2865 = vpop.permute.xlu0 %2864
  %2866 = vrot.lane.b32.xlu0 %v2812, 33
  %v2867 = vpop.permute.xlu0 %2866
  %2868 = vrot.lane.b32.xlu0 %v2813, 33
  %v2869 = vpop.permute.xlu0 %2868
  %2870 = vrot.lane.b32.xlu0 %v2814, 33
  %v2871 = vpop.permute.xlu0 %2870
  %2872 = vrot.lane.b32.xlu0 %v2815, 33
  %v2873 = vpop.permute.xlu0 %2872
  %2874 = vrot.lane.b32.xlu0 %v2816, 33
  %v2875 = vpop.permute.xlu0 %2874
  %2876 = vrot.lane.b32.xlu0 %v2817, 33
  %v2877 = vpop.permute.xlu0 %2876
  %2878 = vrot.lane.b32.xlu0 %v2818, 33
  %v2879 = vpop.permute.xlu0 %2878
  %2880 = vrot.lane.b32.xlu0 %v2819, 33
  %v2881 = vpop.permute.xlu0 %2880
  %2882 = vrot.lane.b32.xlu0 %v2820, 33
  %v2883 = vpop.permute.xlu0 %2882
  %2884 = vrot.lane.b32.xlu0 %v2821, 33
  %v2885 = vpop.permute.xlu0 %2884
  %2886 = vrot.lane.b32.xlu0 %v2822, 33
  %v2887 = vpop.permute.xlu0 %2886
  %2888 = vrot.lane.b32.xlu0 %v2823, 33
  %v2889 = vpop.permute.xlu0 %2888
  %vm2890 = vcmask 269312
  %v2891 = vsel %vm2890, %v2859, %v2861
  %v2892 = vsel %vm2890, %v2861, %v2863
  %v2893 = vsel %vm2890, %v2863, %v2865
  %v2894 = vsel %vm2890, %v2865, %v2867
  %v2895 = vsel %vm2890, %v2867, %v2869
  %v2896 = vsel %vm2890, %v2869, %v2871
  %v2897 = vsel %vm2890, %v2871, %v2873
  %v2898 = vsel %vm2890, %v2875, %v2877
  %v2899 = vsel %vm2890, %v2877, %v2879
  %v2900 = vsel %vm2890, %v2879, %v2881
  %v2901 = vsel %vm2890, %v2881, %v2883
  %v2902 = vsel %vm2890, %v2883, %v2885
  %v2903 = vsel %vm2890, %v2885, %v2887
  %v2904 = vsel %vm2890, %v2887, %v2889
  %vm2923 = vcmask 1047816
  %2924 = vst.msk [vmem:[#allocation2] sm:$0xff] %vm2923, %v2859
  %2925 = vst [vmem:[#allocation2 + $0x8] sm:$0xff] %v2891
  %2926 = vst [vmem:[#allocation2 + $0x10] sm:$0xff] %v2892
  %2927 = vst [vmem:[#allocation2 + $0x18] sm:$0xff] %v2893
  %2928 = vst [vmem:[#allocation2 + $0x20] sm:$0xff] %v2894
  %2929 = vst [vmem:[#allocation2 + $0x28] sm:$0xff] %v2895
  %2930 = vst [vmem:[#allocation2 + $0x30] sm:$0xff] %v2896
  %2931 = vst [vmem:[#allocation2 + $0x38] sm:$0xff] %v2897
  %2932 = vst.msk [vmem:[#allocation2 + $0x40] sm:$0xff] %vm2890, %v2873
  %2933 = vst.msk [vmem:[#allocation2 + $0x48] sm:$0xff] %vm2923, %v2875
  %2934 = vst [vmem:[#allocation2 + $0x50] sm:$0xff] %v2898
  %2935 = vst [vmem:[#allocation2 + $0x58] sm:$0xff] %v2899
  %2936 = vst [vmem:[#allocation2 + $0x60] sm:$0xff] %v2900
  %2937 = vst [vmem:[#allocation2 + $0x68] sm:$0xff] %v2901
  %2938 = vst [vmem:[#allocation2 + $0x70] sm:$0xff] %v2902
  %2939 = vst [vmem:[#allocation2 + $0x78] sm:$0xff] %v2903
  %2940 = vst [vmem:[#allocation2 + $0x80] sm:$0xff] %v2904
  %2941 = vst.msk [vmem:[#allocation2 + $0x88] sm:$0xff] %vm2890, %v2889
  %v2942 = vld [vmem:[#allocation2] sm:$0xff]
  %v2943 = vld [vmem:[#allocation2 + $0x8] sm:$0xff]
  %v2944 = vld [vmem:[#allocation2 + $0x10] sm:$0xff]
  %v2945 = vld [vmem:[#allocation2 + $0x18] sm:$0xff]
  %v2946 = vld [vmem:[#allocation2 + $0x20] sm:$0xff]
  %v2947 = vld [vmem:[#allocation2 + $0x28] sm:$0xff]
  %v2948 = vld [vmem:[#allocation2 + $0x30] sm:$0xff]
  %v2949 = vld [vmem:[#allocation2 + $0x38] sm:$0xff]
  %v2950 = vld [vmem:[#allocation2 + $0x48] sm:$0xff]
  %v2951 = vld [vmem:[#allocation2 + $0x50] sm:$0xff]
  %v2952 = vld [vmem:[#allocation2 + $0x58] sm:$0xff]
  %v2953 = vld [vmem:[#allocation2 + $0x60] sm:$0xff]
  %v2954 = vld [vmem:[#allocation2 + $0x68] sm:$0xff]
  %v2955 = vld [vmem:[#allocation2 + $0x70] sm:$0xff]
  %v2956 = vld [vmem:[#allocation2 + $0x78] sm:$0xff]
  %v2957 = vld [vmem:[#allocation2 + $0x80] sm:$0xff]
  %v2958 = vmul.f32 %v2942, %v93
  %v2959 = vmul.f32 %v2943, %v94
  %v2960 = vmul.f32 %v2944, %v95
  %v2961 = vmul.f32 %v2945, %v96
  %v2962 = vmul.f32 %v2946, %v97
  %v2963 = vmul.f32 %v2947, %v98
  %v2964 = vmul.f32 %v2948, %v99
  %v2965 = vmul.f32 %v2949, %v100
  %v2966 = vmul.f32 %v2950, %v93
  %v2967 = vmul.f32 %v2951, %v94
  %v2968 = vmul.f32 %v2952, %v95
  %v2969 = vmul.f32 %v2953, %v96
  %v2970 = vmul.f32 %v2954, %v97
  %v2971 = vmul.f32 %v2955, %v98
  %v2972 = vmul.f32 %v2956, %v99
  %v2973 = vmul.f32 %v2957, %v100
  %v2974 = vld [vmem:[%s3] sm:$0xff]
  %v2975 = vld [vmem:[%s3 + $0x10] sm:$0xff]
  %v2976 = vld [vmem:[%s3 + $0x20] sm:$0xff]
  %v2977 = vld [vmem:[%s3 + $0x30] sm:$0xff]
  %v2978 = vld [vmem:[#allocation2 + $0x40] sm:$0xff]
  %v2979 = vld [vmem:[#allocation2 + $0x88] sm:$0xff]
  %2984 = vrot.lane.b32.xlu0 %v2974, 112
  %v2985 = vpop.permute.xlu0 %2984
  %2986 = vrot.lane.b32.xlu0 %v2975, 112
  %v2987 = vpop.permute.xlu0 %2986
  %2988 = vrot.lane.b32.xlu0 %v2976, 112
  %v2989 = vpop.permute.xlu0 %2988
  %2990 = vrot.lane.b32.xlu0 %v2977, 112
  %v2991 = vpop.permute.xlu0 %2990
  %3010 = vrot.lane.b32.xlu0 %v2942, 127
  %v3011 = vpop.permute.xlu0 %3010
  %3012 = vrot.lane.b32.xlu0 %v2943, 127
  %v3013 = vpop.permute.xlu0 %3012
  %3014 = vrot.lane.b32.xlu0 %v2944, 127
  %v3015 = vpop.permute.xlu0 %3014
  %3016 = vrot.lane.b32.xlu0 %v2945, 127
  %v3017 = vpop.permute.xlu0 %3016
  %3018 = vrot.lane.b32.xlu0 %v2946, 127
  %v3019 = vpop.permute.xlu0 %3018
  %3020 = vrot.lane.b32.xlu0 %v2947, 127
  %v3021 = vpop.permute.xlu0 %3020
  %3022 = vrot.lane.b32.xlu0 %v2948, 127
  %v3023 = vpop.permute.xlu0 %3022
  %3024 = vrot.lane.b32.xlu0 %v2949, 127
  %v3025 = vpop.permute.xlu0 %3024
  %3026 = vrot.lane.b32.xlu0 %v2978, 127
  %v3027 = vpop.permute.xlu0 %3026
  %3028 = vrot.lane.b32.xlu0 %v2950, 127
  %v3029 = vpop.permute.xlu0 %3028
  %3030 = vrot.lane.b32.xlu0 %v2951, 127
  %v3031 = vpop.permute.xlu0 %3030
  %3032 = vrot.lane.b32.xlu0 %v2952, 127
  %v3033 = vpop.permute.xlu0 %3032
  %3034 = vrot.lane.b32.xlu0 %v2953, 127
  %v3035 = vpop.permute.xlu0 %3034
  %3036 = vrot.lane.b32.xlu0 %v2954, 127
  %v3037 = vpop.permute.xlu0 %3036
  %3038 = vrot.lane.b32.xlu0 %v2955, 127
  %v3039 = vpop.permute.xlu0 %3038
  %3040 = vrot.lane.b32.xlu0 %v2956, 127
  %v3041 = vpop.permute.xlu0 %3040
  %3042 = vrot.lane.b32.xlu0 %v2957, 127
  %v3043 = vpop.permute.xlu0 %3042
  %3044 = vrot.lane.b32.xlu0 %v2979, 127
  %v3045 = vpop.permute.xlu0 %3044
  %v3046 = vsel %vm203, %v3011, %v3013
  %v3047 = vsel %vm203, %v3013, %v3015
  %v3048 = vsel %vm203, %v3015, %v3017
  %v3049 = vsel %vm203, %v3017, %v3019
  %v3050 = vsel %vm203, %v3019, %v3021
  %v3051 = vsel %vm203, %v3021, %v3023
  %v3052 = vsel %vm203, %v3023, %v3025
  %v3053 = vsel %vm203, %v3025, %v3027
  %v3054 = vsel %vm203, %v3029, %v3031
  %v3055 = vsel %vm203, %v3031, %v3033
  %v3056 = vsel %vm203, %v3033, %v3035
  %v3057 = vsel %vm203, %v3035, %v3037
  %v3058 = vsel %vm203, %v3037, %v3039
  %v3059 = vsel %vm203, %v3039, %v3041
  %v3060 = vsel %vm203, %v3041, %v3043
  %v3061 = vsel %vm203, %v3043, %v3045
  %vm3078 = vcmask 130048
  %v3079 = vsel %vm3078, %v2985, 0
  %v3081 = vsel %vm3078, %v2987, 0
  %v3083 = vsel %vm3078, %v2989, 0
  %v3085 = vsel %vm3078, %v2991, 0
  %3087 = vmatpush.msra.mxu0 0.0
  %3088 = vmatpush.msra.mxu0 0.0
  %3089 = vmatpush.msra.mxu0 0.0
  %3090 = vmatpush.msra.mxu0 0.0
  %3091 = vmatpush.msra.mxu0 0.0
  %3092 = vmatpush.msra.mxu0 0.0
  %3093 = vmatpush.msra.mxu0 0.0
  %3094 = vmatpush.msra.mxu0 0.0
  %3095 = vmatpush.msra.mxu0 0.0
  %3096 = vmatpush.msra.mxu0 0.0
  %3097 = vmatpush.msra.mxu0 0.0
  %3098 = vmatpush.msra.mxu0 0.0
  %3099 = vmatpush.msra.mxu0 0.0
  %3100 = vmatpush.msra.mxu0 0.0
  %3101 = vmatpush.msra.mxu0 %v3054
  %3102 = vmatpush.msra.mxu0 %v3046
  %3103 = vmatmul.f32.gmra.mxu0 %v3079
  %v3104 = vpop.f32.mrf.mxu0
  %v3105 = vadd.f32 0.0, %v3104
  %3106 = vmatmul.f32.gmra.mxu0 %v3081
  %v3107 = vpop.f32.mrf.mxu0
  %v3108 = vadd.f32 0.0, %v3107
  %3109 = vmatmul.f32.gmra.mxu0 %v3083
  %v3110 = vpop.f32.mrf.mxu0
  %v3111 = vadd.f32 0.0, %v3110
  %3112 = vmatmul.f32.gmra.mxu0 %v3085
  %v3113 = vpop.f32.mrf.mxu0
  %v3114 = vadd.f32 0.0, %v3113
  %3115 = vdwg.mxu0
  %3116 = vmatpush.msra.mxu0 0.0
  %3117 = vmatpush.msra.mxu0 0.0
  %3118 = vmatpush.msra.mxu0 0.0
  %3119 = vmatpush.msra.mxu0 0.0
  %3120 = vmatpush.msra.mxu0 0.0
  %3121 = vmatpush.msra.mxu0 0.0
  %3122 = vmatpush.msra.mxu0 0.0
  %3123 = vmatpush.msra.mxu0 0.0
  %3124 = vmatpush.msra.mxu0 0.0
  %3125 = vmatpush.msra.mxu0 0.0
  %3126 = vmatpush.msra.mxu0 0.0
  %3127 = vmatpush.msra.mxu0 0.0
  %3128 = vmatpush.msra.mxu0 0.0
  %3129 = vmatpush.msra.mxu0 0.0
  %3130 = vmatpush.msra.mxu0 %v3055
  %3131 = vmatpush.msra.mxu0 %v3047
  %3132 = vmatmul.f32.gmra.mxu0 %v3079
  %v3133 = vpop.f32.mrf.mxu0
  %v3134 = vadd.f32 0.0, %v3133
  %3135 = vmatmul.f32.gmra.mxu0 %v3081
  %v3136 = vpop.f32.mrf.mxu0
  %v3137 = vadd.f32 0.0, %v3136
  %3138 = vmatmul.f32.gmra.mxu0 %v3083
  %v3139 = vpop.f32.mrf.mxu0
  %v3140 = vadd.f32 0.0, %v3139
  %3141 = vmatmul.f32.gmra.mxu0 %v3085
  %v3142 = vpop.f32.mrf.mxu0
  %v3143 = vadd.f32 0.0, %v3142
  %3144 = vdwg.mxu0
  %3145 = vmatpush.msra.mxu0 0.0
  %3146 = vmatpush.msra.mxu0 0.0
  %3147 = vmatpush.msra.mxu0 0.0
  %3148 = vmatpush.msra.mxu0 0.0
  %3149 = vmatpush.msra.mxu0 0.0
  %3150 = vmatpush.msra.mxu0 0.0
  %3151 = vmatpush.msra.mxu0 0.0
  %3152 = vmatpush.msra.mxu0 0.0
  %3153 = vmatpush.msra.mxu0 0.0
  %3154 = vmatpush.msra.mxu0 0.0
  %3155 = vmatpush.msra.mxu0 0.0
  %3156 = vmatpush.msra.mxu0 0.0
  %3157 = vmatpush.msra.mxu0 0.0
  %3158 = vmatpush.msra.mxu0 0.0
  %3159 = vmatpush.msra.mxu0 %v3056
  %3160 = vmatpush.msra.mxu0 %v3048
  %3161 = vmatmul.f32.gmra.mxu0 %v3079
  %v3162 = vpop.f32.mrf.mxu0
  %v3163 = vadd.f32 0.0, %v3162
  %3164 = vmatmul.f32.gmra.mxu0 %v3081
  %v3165 = vpop.f32.mrf.mxu0
  %v3166 = vadd.f32 0.0, %v3165
  %3167 = vmatmul.f32.gmra.mxu0 %v3083
  %v3168 = vpop.f32.mrf.mxu0
  %v3169 = vadd.f32 0.0, %v3168
  %3170 = vmatmul.f32.gmra.mxu0 %v3085
  %v3171 = vpop.f32.mrf.mxu0
  %v3172 = vadd.f32 0.0, %v3171
  %3173 = vdwg.mxu0
  %3174 = vmatpush.msra.mxu0 0.0
  %3175 = vmatpush.msra.mxu0 0.0
  %3176 = vmatpush.msra.mxu0 0.0
  %3177 = vmatpush.msra.mxu0 0.0
  %3178 = vmatpush.msra.mxu0 0.0
  %3179 = vmatpush.msra.mxu0 0.0
  %3180 = vmatpush.msra.mxu0 0.0
  %3181 = vmatpush.msra.mxu0 0.0
  %3182 = vmatpush.msra.mxu0 0.0
  %3183 = vmatpush.msra.mxu0 0.0
  %3184 = vmatpush.msra.mxu0 0.0
  %3185 = vmatpush.msra.mxu0 0.0
  %3186 = vmatpush.msra.mxu0 0.0
  %3187 = vmatpush.msra.mxu0 0.0
  %3188 = vmatpush.msra.mxu0 %v3057
  %3189 = vmatpush.msra.mxu0 %v3049
  %3190 = vmatmul.f32.gmra.mxu0 %v3079
  %v3191 = vpop.f32.mrf.mxu0
  %v3192 = vadd.f32 0.0, %v3191
  %3193 = vmatmul.f32.gmra.mxu0 %v3081
  %v3194 = vpop.f32.mrf.mxu0
  %v3195 = vadd.f32 0.0, %v3194
  %3196 = vmatmul.f32.gmra.mxu0 %v3083
  %v3197 = vpop.f32.mrf.mxu0
  %v3198 = vadd.f32 0.0, %v3197
  %3199 = vmatmul.f32.gmra.mxu0 %v3085
  %v3200 = vpop.f32.mrf.mxu0
  %v3201 = vadd.f32 0.0, %v3200
  %3202 = vdwg.mxu0
  %3203 = vmatpush.msra.mxu0 0.0
  %3204 = vmatpush.msra.mxu0 0.0
  %3205 = vmatpush.msra.mxu0 0.0
  %3206 = vmatpush.msra.mxu0 0.0
  %3207 = vmatpush.msra.mxu0 0.0
  %3208 = vmatpush.msra.mxu0 0.0
  %3209 = vmatpush.msra.mxu0 0.0
  %3210 = vmatpush.msra.mxu0 0.0
  %3211 = vmatpush.msra.mxu0 0.0
  %3212 = vmatpush.msra.mxu0 0.0
  %3213 = vmatpush.msra.mxu0 0.0
  %3214 = vmatpush.msra.mxu0 0.0
  %3215 = vmatpush.msra.mxu0 0.0
  %3216 = vmatpush.msra.mxu0 0.0
  %3217 = vmatpush.msra.mxu0 %v3058
  %3218 = vmatpush.msra.mxu0 %v3050
  %3219 = vmatmul.f32.gmra.mxu0 %v3079
  %v3220 = vpop.f32.mrf.mxu0
  %v3221 = vadd.f32 0.0, %v3220
  %3222 = vmatmul.f32.gmra.mxu0 %v3081
  %v3223 = vpop.f32.mrf.mxu0
  %v3224 = vadd.f32 0.0, %v3223
  %3225 = vmatmul.f32.gmra.mxu0 %v3083
  %v3226 = vpop.f32.mrf.mxu0
  %v3227 = vadd.f32 0.0, %v3226
  %3228 = vmatmul.f32.gmra.mxu0 %v3085
  %v3229 = vpop.f32.mrf.mxu0
  %v3230 = vadd.f32 0.0, %v3229
  %3231 = vdwg.mxu0
  %3232 = vmatpush.msra.mxu0 0.0
  %3233 = vmatpush.msra.mxu0 0.0
  %3234 = vmatpush.msra.mxu0 0.0
  %3235 = vmatpush.msra.mxu0 0.0
  %3236 = vmatpush.msra.mxu0 0.0
  %3237 = vmatpush.msra.mxu0 0.0
  %3238 = vmatpush.msra.mxu0 0.0
  %3239 = vmatpush.msra.mxu0 0.0
  %3240 = vmatpush.msra.mxu0 0.0
  %3241 = vmatpush.msra.mxu0 0.0
  %3242 = vmatpush.msra.mxu0 0.0
  %3243 = vmatpush.msra.mxu0 0.0
  %3244 = vmatpush.msra.mxu0 0.0
  %3245 = vmatpush.msra.mxu0 0.0
  %3246 = vmatpush.msra.mxu0 %v3059
  %3247 = vmatpush.msra.mxu0 %v3051
  %3248 = vmatmul.f32.gmra.mxu0 %v3079
  %v3249 = vpop.f32.mrf.mxu0
  %v3250 = vadd.f32 0.0, %v3249
  %3251 = vmatmul.f32.gmra.mxu0 %v3081
  %v3252 = vpop.f32.mrf.mxu0
  %v3253 = vadd.f32 0.0, %v3252
  %3254 = vmatmul.f32.gmra.mxu0 %v3083
  %v3255 = vpop.f32.mrf.mxu0
  %v3256 = vadd.f32 0.0, %v3255
  %3257 = vmatmul.f32.gmra.mxu0 %v3085
  %v3258 = vpop.f32.mrf.mxu0
  %v3259 = vadd.f32 0.0, %v3258
  %3260 = vdwg.mxu0
  %3261 = vmatpush.msra.mxu0 0.0
  %3262 = vmatpush.msra.mxu0 0.0
  %3263 = vmatpush.msra.mxu0 0.0
  %3264 = vmatpush.msra.mxu0 0.0
  %3265 = vmatpush.msra.mxu0 0.0
  %3266 = vmatpush.msra.mxu0 0.0
  %3267 = vmatpush.msra.mxu0 0.0
  %3268 = vmatpush.msra.mxu0 0.0
  %3269 = vmatpush.msra.mxu0 0.0
  %3270 = vmatpush.msra.mxu0 0.0
  %3271 = vmatpush.msra.mxu0 0.0
  %3272 = vmatpush.msra.mxu0 0.0
  %3273 = vmatpush.msra.mxu0 0.0
  %3274 = vmatpush.msra.mxu0 0.0
  %3275 = vmatpush.msra.mxu0 %v3060
  %3276 = vmatpush.msra.mxu0 %v3052
  %3277 = vmatmul.f32.gmra.mxu0 %v3079
  %v3278 = vpop.f32.mrf.mxu0
  %v3279 = vadd.f32 0.0, %v3278
  %3280 = vmatmul.f32.gmra.mxu0 %v3081
  %v3281 = vpop.f32.mrf.mxu0
  %v3282 = vadd.f32 0.0, %v3281
  %3283 = vmatmul.f32.gmra.mxu0 %v3083
  %v3284 = vpop.f32.mrf.mxu0
  %v3285 = vadd.f32 0.0, %v3284
  %3286 = vmatmul.f32.gmra.mxu0 %v3085
  %v3287 = vpop.f32.mrf.mxu0
  %v3288 = vadd.f32 0.0, %v3287
  %3289 = vdwg.mxu0
  %3290 = vmatpush.msra.mxu0 0.0
  %3291 = vmatpush.msra.mxu0 0.0
  %3292 = vmatpush.msra.mxu0 0.0
  %3293 = vmatpush.msra.mxu0 0.0
  %3294 = vmatpush.msra.mxu0 0.0
  %3295 = vmatpush.msra.mxu0 0.0
  %3296 = vmatpush.msra.mxu0 0.0
  %3297 = vmatpush.msra.mxu0 0.0
  %3298 = vmatpush.msra.mxu0 0.0
  %3299 = vmatpush.msra.mxu0 0.0
  %3300 = vmatpush.msra.mxu0 0.0
  %3301 = vmatpush.msra.mxu0 0.0
  %3302 = vmatpush.msra.mxu0 0.0
  %3303 = vmatpush.msra.mxu0 0.0
  %3304 = vmatpush.msra.mxu0 %v3061
  %3305 = vmatpush.msra.mxu0 %v3053
  %3306 = vmatmul.f32.gmra.mxu0 %v3079
  %v3307 = vpop.f32.mrf.mxu0
  %v3308 = vadd.f32 0.0, %v3307
  %3309 = vmatmul.f32.gmra.mxu0 %v3081
  %v3310 = vpop.f32.mrf.mxu0
  %v3311 = vadd.f32 0.0, %v3310
  %3312 = vmatmul.f32.gmra.mxu0 %v3083
  %v3313 = vpop.f32.mrf.mxu0
  %v3314 = vadd.f32 0.0, %v3313
  %3315 = vmatmul.f32.gmra.mxu0 %v3085
  %v3316 = vpop.f32.mrf.mxu0
  %v3317 = vadd.f32 0.0, %v3316
  %3318 = vdwg.mxu0
  %v3319 = vsel %vm3078, %v2974, 0
  %v3321 = vsel %vm3078, %v2975, 0
  %v3323 = vsel %vm3078, %v2976, 0
  %v3325 = vsel %vm3078, %v2977, 0
  %3327 = vmatpush.msra.mxu0 0.0
  %3328 = vmatpush.msra.mxu0 0.0
  %3329 = vmatpush.msra.mxu0 0.0
  %3330 = vmatpush.msra.mxu0 0.0
  %3331 = vmatpush.msra.mxu0 0.0
  %3332 = vmatpush.msra.mxu0 0.0
  %3333 = vmatpush.msra.mxu0 0.0
  %3334 = vmatpush.msra.mxu0 0.0
  %3335 = vmatpush.msra.mxu0 0.0
  %3336 = vmatpush.msra.mxu0 0.0
  %3337 = vmatpush.msra.mxu0 0.0
  %3338 = vmatpush.msra.mxu0 0.0
  %3339 = vmatpush.msra.mxu0 0.0
  %3340 = vmatpush.msra.mxu0 0.0
  %3341 = vmatpush.msra.mxu0 %v2966
  %3342 = vmatpush.msra.mxu0 %v2958
  %3343 = vmatmul.f32.gmra.mxu0 %v3319
  %v3344 = vpop.f32.mrf.mxu0
  %v3345 = vadd.f32 %v3105, %v3344
  %3346 = vmatmul.f32.gmra.mxu0 %v3321
  %v3347 = vpop.f32.mrf.mxu0
  %v3348 = vadd.f32 %v3108, %v3347
  %3349 = vmatmul.f32.gmra.mxu0 %v3323
  %v3350 = vpop.f32.mrf.mxu0
  %v3351 = vadd.f32 %v3111, %v3350
  %3352 = vmatmul.f32.gmra.mxu0 %v3325
  %v3353 = vpop.f32.mrf.mxu0
  %v3354 = vadd.f32 %v3114, %v3353
  %3355 = vdwg.mxu0
  %3356 = vmatpush.msra.mxu0 0.0
  %3357 = vmatpush.msra.mxu0 0.0
  %3358 = vmatpush.msra.mxu0 0.0
  %3359 = vmatpush.msra.mxu0 0.0
  %3360 = vmatpush.msra.mxu0 0.0
  %3361 = vmatpush.msra.mxu0 0.0
  %3362 = vmatpush.msra.mxu0 0.0
  %3363 = vmatpush.msra.mxu0 0.0
  %3364 = vmatpush.msra.mxu0 0.0
  %3365 = vmatpush.msra.mxu0 0.0
  %3366 = vmatpush.msra.mxu0 0.0
  %3367 = vmatpush.msra.mxu0 0.0
  %3368 = vmatpush.msra.mxu0 0.0
  %3369 = vmatpush.msra.mxu0 0.0
  %3370 = vmatpush.msra.mxu0 %v2967
  %3371 = vmatpush.msra.mxu0 %v2959
  %3372 = vmatmul.f32.gmra.mxu0 %v3319
  %v3373 = vpop.f32.mrf.mxu0
  %v3374 = vadd.f32 %v3134, %v3373
  %3375 = vmatmul.f32.gmra.mxu0 %v3321
  %v3376 = vpop.f32.mrf.mxu0
  %v3377 = vadd.f32 %v3137, %v3376
  %3378 = vmatmul.f32.gmra.mxu0 %v3323
  %v3379 = vpop.f32.mrf.mxu0
  %v3380 = vadd.f32 %v3140, %v3379
  %3381 = vmatmul.f32.gmra.mxu0 %v3325
  %v3382 = vpop.f32.mrf.mxu0
  %v3383 = vadd.f32 %v3143, %v3382
  %3384 = vdwg.mxu0
  %3385 = vmatpush.msra.mxu0 0.0
  %3386 = vmatpush.msra.mxu0 0.0
  %3387 = vmatpush.msra.mxu0 0.0
  %3388 = vmatpush.msra.mxu0 0.0
  %3389 = vmatpush.msra.mxu0 0.0
  %3390 = vmatpush.msra.mxu0 0.0
  %3391 = vmatpush.msra.mxu0 0.0
  %3392 = vmatpush.msra.mxu0 0.0
  %3393 = vmatpush.msra.mxu0 0.0
  %3394 = vmatpush.msra.mxu0 0.0
  %3395 = vmatpush.msra.mxu0 0.0
  %3396 = vmatpush.msra.mxu0 0.0
  %3397 = vmatpush.msra.mxu0 0.0
  %3398 = vmatpush.msra.mxu0 0.0
  %3399 = vmatpush.msra.mxu0 %v2968
  %3400 = vmatpush.msra.mxu0 %v2960
  %3401 = vmatmul.f32.gmra.mxu0 %v3319
  %v3402 = vpop.f32.mrf.mxu0
  %v3403 = vadd.f32 %v3163, %v3402
  %3404 = vmatmul.f32.gmra.mxu0 %v3321
  %v3405 = vpop.f32.mrf.mxu0
  %v3406 = vadd.f32 %v3166, %v3405
  %3407 = vmatmul.f32.gmra.mxu0 %v3323
  %v3408 = vpop.f32.mrf.mxu0
  %v3409 = vadd.f32 %v3169, %v3408
  %3410 = vmatmul.f32.gmra.mxu0 %v3325
  %v3411 = vpop.f32.mrf.mxu0
  %v3412 = vadd.f32 %v3172, %v3411
  %3413 = vdwg.mxu0
  %3414 = vmatpush.msra.mxu0 0.0
  %3415 = vmatpush.msra.mxu0 0.0
  %3416 = vmatpush.msra.mxu0 0.0
  %3417 = vmatpush.msra.mxu0 0.0
  %3418 = vmatpush.msra.mxu0 0.0
  %3419 = vmatpush.msra.mxu0 0.0
  %3420 = vmatpush.msra.mxu0 0.0
  %3421 = vmatpush.msra.mxu0 0.0
  %3422 = vmatpush.msra.mxu0 0.0
  %3423 = vmatpush.msra.mxu0 0.0
  %3424 = vmatpush.msra.mxu0 0.0
  %3425 = vmatpush.msra.mxu0 0.0
  %3426 = vmatpush.msra.mxu0 0.0
  %3427 = vmatpush.msra.mxu0 0.0
  %3428 = vmatpush.msra.mxu0 %v2969
  %3429 = vmatpush.msra.mxu0 %v2961
  %3430 = vmatmul.f32.gmra.mxu0 %v3319
  %v3431 = vpop.f32.mrf.mxu0
  %v3432 = vadd.f32 %v3192, %v3431
  %3433 = vmatmul.f32.gmra.mxu0 %v3321
  %v3434 = vpop.f32.mrf.mxu0
  %v3435 = vadd.f32 %v3195, %v3434
  %3436 = vmatmul.f32.gmra.mxu0 %v3323
  %v3437 = vpop.f32.mrf.mxu0
  %v3438 = vadd.f32 %v3198, %v3437
  %3439 = vmatmul.f32.gmra.mxu0 %v3325
  %v3440 = vpop.f32.mrf.mxu0
  %v3441 = vadd.f32 %v3201, %v3440
  %3442 = vdwg.mxu0
  %3443 = vmatpush.msra.mxu0 0.0
  %3444 = vmatpush.msra.mxu0 0.0
  %3445 = vmatpush.msra.mxu0 0.0
  %3446 = vmatpush.msra.mxu0 0.0
  %3447 = vmatpush.msra.mxu0 0.0
  %3448 = vmatpush.msra.mxu0 0.0
  %3449 = vmatpush.msra.mxu0 0.0
  %3450 = vmatpush.msra.mxu0 0.0
  %3451 = vmatpush.msra.mxu0 0.0
  %3452 = vmatpush.msra.mxu0 0.0
  %3453 = vmatpush.msra.mxu0 0.0
  %3454 = vmatpush.msra.mxu0 0.0
  %3455 = vmatpush.msra.mxu0 0.0
  %3456 = vmatpush.msra.mxu0 0.0
  %3457 = vmatpush.msra.mxu0 %v2970
  %3458 = vmatpush.msra.mxu0 %v2962
  %3459 = vmatmul.f32.gmra.mxu0 %v3319
  %v3460 = vpop.f32.mrf.mxu0
  %v3461 = vadd.f32 %v3221, %v3460
  %3462 = vmatmul.f32.gmra.mxu0 %v3321
  %v3463 = vpop.f32.mrf.mxu0
  %v3464 = vadd.f32 %v3224, %v3463
  %3465 = vmatmul.f32.gmra.mxu0 %v3323
  %v3466 = vpop.f32.mrf.mxu0
  %v3467 = vadd.f32 %v3227, %v3466
  %3468 = vmatmul.f32.gmra.mxu0 %v3325
  %v3469 = vpop.f32.mrf.mxu0
  %v3470 = vadd.f32 %v3230, %v3469
  %3471 = vdwg.mxu0
  %3472 = vmatpush.msra.mxu0 0.0
  %3473 = vmatpush.msra.mxu0 0.0
  %3474 = vmatpush.msra.mxu0 0.0
  %3475 = vmatpush.msra.mxu0 0.0
  %3476 = vmatpush.msra.mxu0 0.0
  %3477 = vmatpush.msra.mxu0 0.0
  %3478 = vmatpush.msra.mxu0 0.0
  %3479 = vmatpush.msra.mxu0 0.0
  %3480 = vmatpush.msra.mxu0 0.0
  %3481 = vmatpush.msra.mxu0 0.0
  %3482 = vmatpush.msra.mxu0 0.0
  %3483 = vmatpush.msra.mxu0 0.0
  %3484 = vmatpush.msra.mxu0 0.0
  %3485 = vmatpush.msra.mxu0 0.0
  %3486 = vmatpush.msra.mxu0 %v2971
  %3487 = vmatpush.msra.mxu0 %v2963
  %3488 = vmatmul.f32.gmra.mxu0 %v3319
  %v3489 = vpop.f32.mrf.mxu0
  %v3490 = vadd.f32 %v3250, %v3489
  %3491 = vmatmul.f32.gmra.mxu0 %v3321
  %v3492 = vpop.f32.mrf.mxu0
  %v3493 = vadd.f32 %v3253, %v3492
  %3494 = vmatmul.f32.gmra.mxu0 %v3323
  %v3495 = vpop.f32.mrf.mxu0
  %v3496 = vadd.f32 %v3256, %v3495
  %3497 = vmatmul.f32.gmra.mxu0 %v3325
  %v3498 = vpop.f32.mrf.mxu0
  %v3499 = vadd.f32 %v3259, %v3498
  %3500 = vdwg.mxu0
  %3501 = vmatpush.msra.mxu0 0.0
  %3502 = vmatpush.msra.mxu0 0.0
  %3503 = vmatpush.msra.mxu0 0.0
  %3504 = vmatpush.msra.mxu0 0.0
  %3505 = vmatpush.msra.mxu0 0.0
  %3506 = vmatpush.msra.mxu0 0.0
  %3507 = vmatpush.msra.mxu0 0.0
  %3508 = vmatpush.msra.mxu0 0.0
  %3509 = vmatpush.msra.mxu0 0.0
  %3510 = vmatpush.msra.mxu0 0.0
  %3511 = vmatpush.msra.mxu0 0.0
  %3512 = vmatpush.msra.mxu0 0.0
  %3513 = vmatpush.msra.mxu0 0.0
  %3514 = vmatpush.msra.mxu0 0.0
  %3515 = vmatpush.msra.mxu0 %v2972
  %3516 = vmatpush.msra.mxu0 %v2964
  %3517 = vmatmul.f32.gmra.mxu0 %v3319
  %v3518 = vpop.f32.mrf.mxu0
  %v3519 = vadd.f32 %v3279, %v3518
  %3520 = vmatmul.f32.gmra.mxu0 %v3321
  %v3521 = vpop.f32.mrf.mxu0
  %v3522 = vadd.f32 %v3282, %v3521
  %3523 = vmatmul.f32.gmra.mxu0 %v3323
  %v3524 = vpop.f32.mrf.mxu0
  %v3525 = vadd.f32 %v3285, %v3524
  %3526 = vmatmul.f32.gmra.mxu0 %v3325
  %v3527 = vpop.f32.mrf.mxu0
  %v3528 = vadd.f32 %v3288, %v3527
  %3529 = vdwg.mxu0
  %3530 = vmatpush.msra.mxu0 0.0
  %3531 = vmatpush.msra.mxu0 0.0
  %3532 = vmatpush.msra.mxu0 0.0
  %3533 = vmatpush.msra.mxu0 0.0
  %3534 = vmatpush.msra.mxu0 0.0
  %3535 = vmatpush.msra.mxu0 0.0
  %3536 = vmatpush.msra.mxu0 0.0
  %3537 = vmatpush.msra.mxu0 0.0
  %3538 = vmatpush.msra.mxu0 0.0
  %3539 = vmatpush.msra.mxu0 0.0
  %3540 = vmatpush.msra.mxu0 0.0
  %3541 = vmatpush.msra.mxu0 0.0
  %3542 = vmatpush.msra.mxu0 0.0
  %3543 = vmatpush.msra.mxu0 0.0
  %3544 = vmatpush.msra.mxu0 %v2973
  %3545 = vmatpush.msra.mxu0 %v2965
  %3546 = vmatmul.f32.gmra.mxu0 %v3319
  %v3547 = vpop.f32.mrf.mxu0
  %v3548 = vadd.f32 %v3308, %v3547
  %3549 = vmatmul.f32.gmra.mxu0 %v3321
  %v3550 = vpop.f32.mrf.mxu0
  %v3551 = vadd.f32 %v3311, %v3550
  %3552 = vmatmul.f32.gmra.mxu0 %v3323
  %v3553 = vpop.f32.mrf.mxu0
  %v3554 = vadd.f32 %v3314, %v3553
  %3555 = vmatmul.f32.gmra.mxu0 %v3325
  %v3556 = vpop.f32.mrf.mxu0
  %v3557 = vadd.f32 %v3317, %v3556
  %3558 = vdwg.mxu0
  %3559 = vrot.lane.b32.xlu0 %v117, 2
  %v3560 = vpop.permute.xlu0 %3559
  %3561 = vrot.lane.b32.xlu0 %v118, 2
  %v3562 = vpop.permute.xlu0 %3561
  %3563 = vrot.lane.b32.xlu0 %v119, 2
  %v3564 = vpop.permute.xlu0 %3563
  %3565 = vrot.lane.b32.xlu0 %v120, 2
  %v3566 = vpop.permute.xlu0 %3565
  %3567 = vrot.lane.b32.xlu0 %v121, 2
  %v3568 = vpop.permute.xlu0 %3567
  %3569 = vrot.lane.b32.xlu0 %v122, 2
  %v3570 = vpop.permute.xlu0 %3569
  %3571 = vrot.lane.b32.xlu0 %v123, 2
  %v3572 = vpop.permute.xlu0 %3571
  %3573 = vrot.lane.b32.xlu0 %v124, 2
  %v3574 = vpop.permute.xlu0 %3573
  %v3575 = vsel %vm674, %v3560, %v3562
  %v3576 = vsel %vm674, %v3562, %v3564
  %v3577 = vsel %vm674, %v3564, %v3566
  %v3578 = vsel %vm674, %v3566, %v3568
  %v3579 = vsel %vm674, %v3568, %v3570
  %v3580 = vsel %vm674, %v3570, %v3572
  %v3581 = vsel %vm674, %v3572, %v3574
  %v3591 = vmul.f32 %v2942, %v3560
  %v3592 = vmul.f32 %v2943, %v3575
  %v3593 = vmul.f32 %v2944, %v3576
  %v3594 = vmul.f32 %v2945, %v3577
  %v3595 = vmul.f32 %v2946, %v3578
  %v3596 = vmul.f32 %v2947, %v3579
  %v3597 = vmul.f32 %v2948, %v3580
  %v3598 = vmul.f32 %v2949, %v3581
  %v3599 = vmul.f32 %v2978, %v3574
  %v3600 = vmul.f32 %v2950, %v3560
  %v3601 = vmul.f32 %v2951, %v3575
  %v3602 = vmul.f32 %v2952, %v3576
  %v3603 = vmul.f32 %v2953, %v3577
  %v3604 = vmul.f32 %v2954, %v3578
  %v3605 = vmul.f32 %v2955, %v3579
  %v3606 = vmul.f32 %v2956, %v3580
  %v3607 = vmul.f32 %v2957, %v3581
  %v3608 = vmul.f32 %v2979, %v3574
  %3609 = vrot.lane.b32.xlu0 %v2974, 96
  %v3610 = vpop.permute.xlu0 %3609
  %3611 = vrot.lane.b32.xlu0 %v2975, 96
  %v3612 = vpop.permute.xlu0 %3611
  %3613 = vrot.lane.b32.xlu0 %v2976, 96
  %v3614 = vpop.permute.xlu0 %3613
  %3615 = vrot.lane.b32.xlu0 %v2977, 96
  %v3616 = vpop.permute.xlu0 %3615
  %3635 = vrot.lane.b32.xlu0 %v3591, 126
  %v3636 = vpop.permute.xlu0 %3635
  %3637 = vrot.lane.b32.xlu0 %v3592, 126
  %v3638 = vpop.permute.xlu0 %3637
  %3639 = vrot.lane.b32.xlu0 %v3593, 126
  %v3640 = vpop.permute.xlu0 %3639
  %3641 = vrot.lane.b32.xlu0 %v3594, 126
  %v3642 = vpop.permute.xlu0 %3641
  %3643 = vrot.lane.b32.xlu0 %v3595, 126
  %v3644 = vpop.permute.xlu0 %3643
  %3645 = vrot.lane.b32.xlu0 %v3596, 126
  %v3646 = vpop.permute.xlu0 %3645
  %3647 = vrot.lane.b32.xlu0 %v3597, 126
  %v3648 = vpop.permute.xlu0 %3647
  %3649 = vrot.lane.b32.xlu0 %v3598, 126
  %v3650 = vpop.permute.xlu0 %3649
  %3651 = vrot.lane.b32.xlu0 %v3599, 126
  %v3652 = vpop.permute.xlu0 %3651
  %3653 = vrot.lane.b32.xlu0 %v3600, 126
  %v3654 = vpop.permute.xlu0 %3653
  %3655 = vrot.lane.b32.xlu0 %v3601, 126
  %v3656 = vpop.permute.xlu0 %3655
  %3657 = vrot.lane.b32.xlu0 %v3602, 126
  %v3658 = vpop.permute.xlu0 %3657
  %3659 = vrot.lane.b32.xlu0 %v3603, 126
  %v3660 = vpop.permute.xlu0 %3659
  %3661 = vrot.lane.b32.xlu0 %v3604, 126
  %v3662 = vpop.permute.xlu0 %3661
  %3663 = vrot.lane.b32.xlu0 %v3605, 126
  %v3664 = vpop.permute.xlu0 %3663
  %3665 = vrot.lane.b32.xlu0 %v3606, 126
  %v3666 = vpop.permute.xlu0 %3665
  %3667 = vrot.lane.b32.xlu0 %v3607, 126
  %v3668 = vpop.permute.xlu0 %3667
  %3669 = vrot.lane.b32.xlu0 %v3608, 126
  %v3670 = vpop.permute.xlu0 %3669
  %v3671 = vsel %vm740, %v3636, %v3638
  %v3672 = vsel %vm740, %v3638, %v3640
  %v3673 = vsel %vm740, %v3640, %v3642
  %v3674 = vsel %vm740, %v3642, %v3644
  %v3675 = vsel %vm740, %v3644, %v3646
  %v3676 = vsel %vm740, %v3646, %v3648
  %v3677 = vsel %vm740, %v3648, %v3650
  %v3678 = vsel %vm740, %v3650, %v3652
  %v3679 = vsel %vm740, %v3654, %v3656
  %v3680 = vsel %vm740, %v3656, %v3658
  %v3681 = vsel %vm740, %v3658, %v3660
  %v3682 = vsel %vm740, %v3660, %v3662
  %v3683 = vsel %vm740, %v3662, %v3664
  %v3684 = vsel %vm740, %v3664, %v3666
  %v3685 = vsel %vm740, %v3666, %v3668
  %v3686 = vsel %vm740, %v3668, %v3670
  %v3703 = vsel %vm3078, %v3610, 0
  %v3705 = vsel %vm3078, %v3612, 0
  %v3707 = vsel %vm3078, %v3614, 0
  %v3709 = vsel %vm3078, %v3616, 0
  %3711 = vmatpush.msra.mxu0 0.0
  %3712 = vmatpush.msra.mxu0 0.0
  %3713 = vmatpush.msra.mxu0 0.0
  %3714 = vmatpush.msra.mxu0 0.0
  %3715 = vmatpush.msra.mxu0 0.0
  %3716 = vmatpush.msra.mxu0 0.0
  %3717 = vmatpush.msra.mxu0 0.0
  %3718 = vmatpush.msra.mxu0 0.0
  %3719 = vmatpush.msra.mxu0 0.0
  %3720 = vmatpush.msra.mxu0 0.0
  %3721 = vmatpush.msra.mxu0 0.0
  %3722 = vmatpush.msra.mxu0 0.0
  %3723 = vmatpush.msra.mxu0 0.0
  %3724 = vmatpush.msra.mxu0 0.0
  %3725 = vmatpush.msra.mxu0 %v3679
  %3726 = vmatpush.msra.mxu0 %v3671
  %3727 = vmatmul.f32.gmra.mxu0 %v3703
  %v3728 = vpop.f32.mrf.mxu0
  %v3729 = vadd.f32 0.0, %v3728
  %3730 = vmatmul.f32.gmra.mxu0 %v3705
  %v3731 = vpop.f32.mrf.mxu0
  %v3732 = vadd.f32 0.0, %v3731
  %3733 = vmatmul.f32.gmra.mxu0 %v3707
  %v3734 = vpop.f32.mrf.mxu0
  %v3735 = vadd.f32 0.0, %v3734
  %3736 = vmatmul.f32.gmra.mxu0 %v3709
  %v3737 = vpop.f32.mrf.mxu0
  %v3738 = vadd.f32 0.0, %v3737
  %3739 = vdwg.mxu0
  %3740 = vmatpush.msra.mxu0 0.0
  %3741 = vmatpush.msra.mxu0 0.0
  %3742 = vmatpush.msra.mxu0 0.0
  %3743 = vmatpush.msra.mxu0 0.0
  %3744 = vmatpush.msra.mxu0 0.0
  %3745 = vmatpush.msra.mxu0 0.0
  %3746 = vmatpush.msra.mxu0 0.0
  %3747 = vmatpush.msra.mxu0 0.0
  %3748 = vmatpush.msra.mxu0 0.0
  %3749 = vmatpush.msra.mxu0 0.0
  %3750 = vmatpush.msra.mxu0 0.0
  %3751 = vmatpush.msra.mxu0 0.0
  %3752 = vmatpush.msra.mxu0 0.0
  %3753 = vmatpush.msra.mxu0 0.0
  %3754 = vmatpush.msra.mxu0 %v3680
  %3755 = vmatpush.msra.mxu0 %v3672
  %3756 = vmatmul.f32.gmra.mxu0 %v3703
  %v3757 = vpop.f32.mrf.mxu0
  %v3758 = vadd.f32 0.0, %v3757
  %3759 = vmatmul.f32.gmra.mxu0 %v3705
  %v3760 = vpop.f32.mrf.mxu0
  %v3761 = vadd.f32 0.0, %v3760
  %3762 = vmatmul.f32.gmra.mxu0 %v3707
  %v3763 = vpop.f32.mrf.mxu0
  %v3764 = vadd.f32 0.0, %v3763
  %3765 = vmatmul.f32.gmra.mxu0 %v3709
  %v3766 = vpop.f32.mrf.mxu0
  %v3767 = vadd.f32 0.0, %v3766
  %3768 = vdwg.mxu0
  %3769 = vmatpush.msra.mxu0 0.0
  %3770 = vmatpush.msra.mxu0 0.0
  %3771 = vmatpush.msra.mxu0 0.0
  %3772 = vmatpush.msra.mxu0 0.0
  %3773 = vmatpush.msra.mxu0 0.0
  %3774 = vmatpush.msra.mxu0 0.0
  %3775 = vmatpush.msra.mxu0 0.0
  %3776 = vmatpush.msra.mxu0 0.0
  %3777 = vmatpush.msra.mxu0 0.0
  %3778 = vmatpush.msra.mxu0 0.0
  %3779 = vmatpush.msra.mxu0 0.0
  %3780 = vmatpush.msra.mxu0 0.0
  %3781 = vmatpush.msra.mxu0 0.0
  %3782 = vmatpush.msra.mxu0 0.0
  %3783 = vmatpush.msra.mxu0 %v3681
  %3784 = vmatpush.msra.mxu0 %v3673
  %3785 = vmatmul.f32.gmra.mxu0 %v3703
  %v3786 = vpop.f32.mrf.mxu0
  %v3787 = vadd.f32 0.0, %v3786
  %3788 = vmatmul.f32.gmra.mxu0 %v3705
  %v3789 = vpop.f32.mrf.mxu0
  %v3790 = vadd.f32 0.0, %v3789
  %3791 = vmatmul.f32.gmra.mxu0 %v3707
  %v3792 = vpop.f32.mrf.mxu0
  %v3793 = vadd.f32 0.0, %v3792
  %3794 = vmatmul.f32.gmra.mxu0 %v3709
  %v3795 = vpop.f32.mrf.mxu0
  %v3796 = vadd.f32 0.0, %v3795
  %3797 = vdwg.mxu0
  %3798 = vmatpush.msra.mxu0 0.0
  %3799 = vmatpush.msra.mxu0 0.0
  %3800 = vmatpush.msra.mxu0 0.0
  %3801 = vmatpush.msra.mxu0 0.0
  %3802 = vmatpush.msra.mxu0 0.0
  %3803 = vmatpush.msra.mxu0 0.0
  %3804 = vmatpush.msra.mxu0 0.0
  %3805 = vmatpush.msra.mxu0 0.0
  %3806 = vmatpush.msra.mxu0 0.0
  %3807 = vmatpush.msra.mxu0 0.0
  %3808 = vmatpush.msra.mxu0 0.0
  %3809 = vmatpush.msra.mxu0 0.0
  %3810 = vmatpush.msra.mxu0 0.0
  %3811 = vmatpush.msra.mxu0 0.0
  %3812 = vmatpush.msra.mxu0 %v3682
  %3813 = vmatpush.msra.mxu0 %v3674
  %3814 = vmatmul.f32.gmra.mxu0 %v3703
  %v3815 = vpop.f32.mrf.mxu0
  %v3816 = vadd.f32 0.0, %v3815
  %3817 = vmatmul.f32.gmra.mxu0 %v3705
  %v3818 = vpop.f32.mrf.mxu0
  %v3819 = vadd.f32 0.0, %v3818
  %3820 = vmatmul.f32.gmra.mxu0 %v3707
  %v3821 = vpop.f32.mrf.mxu0
  %v3822 = vadd.f32 0.0, %v3821
  %3823 = vmatmul.f32.gmra.mxu0 %v3709
  %v3824 = vpop.f32.mrf.mxu0
  %v3825 = vadd.f32 0.0, %v3824
  %3826 = vdwg.mxu0
  %3827 = vmatpush.msra.mxu0 0.0
  %3828 = vmatpush.msra.mxu0 0.0
  %3829 = vmatpush.msra.mxu0 0.0
  %3830 = vmatpush.msra.mxu0 0.0
  %3831 = vmatpush.msra.mxu0 0.0
  %3832 = vmatpush.msra.mxu0 0.0
  %3833 = vmatpush.msra.mxu0 0.0
  %3834 = vmatpush.msra.mxu0 0.0
  %3835 = vmatpush.msra.mxu0 0.0
  %3836 = vmatpush.msra.mxu0 0.0
  %3837 = vmatpush.msra.mxu0 0.0
  %3838 = vmatpush.msra.mxu0 0.0
  %3839 = vmatpush.msra.mxu0 0.0
  %3840 = vmatpush.msra.mxu0 0.0
  %3841 = vmatpush.msra.mxu0 %v3683
  %3842 = vmatpush.msra.mxu0 %v3675
  %3843 = vmatmul.f32.gmra.mxu0 %v3703
  %v3844 = vpop.f32.mrf.mxu0
  %v3845 = vadd.f32 0.0, %v3844
  %3846 = vmatmul.f32.gmra.mxu0 %v3705
  %v3847 = vpop.f32.mrf.mxu0
  %v3848 = vadd.f32 0.0, %v3847
  %3849 = vmatmul.f32.gmra.mxu0 %v3707
  %v3850 = vpop.f32.mrf.mxu0
  %v3851 = vadd.f32 0.0, %v3850
  %3852 = vmatmul.f32.gmra.mxu0 %v3709
  %v3853 = vpop.f32.mrf.mxu0
  %v3854 = vadd.f32 0.0, %v3853
  %3855 = vdwg.mxu0
  %3856 = vmatpush.msra.mxu0 0.0
  %3857 = vmatpush.msra.mxu0 0.0
  %3858 = vmatpush.msra.mxu0 0.0
  %3859 = vmatpush.msra.mxu0 0.0
  %3860 = vmatpush.msra.mxu0 0.0
  %3861 = vmatpush.msra.mxu0 0.0
  %3862 = vmatpush.msra.mxu0 0.0
  %3863 = vmatpush.msra.mxu0 0.0
  %3864 = vmatpush.msra.mxu0 0.0
  %3865 = vmatpush.msra.mxu0 0.0
  %3866 = vmatpush.msra.mxu0 0.0
  %3867 = vmatpush.msra.mxu0 0.0
  %3868 = vmatpush.msra.mxu0 0.0
  %3869 = vmatpush.msra.mxu0 0.0
  %3870 = vmatpush.msra.mxu0 %v3684
  %3871 = vmatpush.msra.mxu0 %v3676
  %3872 = vmatmul.f32.gmra.mxu0 %v3703
  %v3873 = vpop.f32.mrf.mxu0
  %v3874 = vadd.f32 0.0, %v3873
  %3875 = vmatmul.f32.gmra.mxu0 %v3705
  %v3876 = vpop.f32.mrf.mxu0
  %v3877 = vadd.f32 0.0, %v3876
  %3878 = vmatmul.f32.gmra.mxu0 %v3707
  %v3879 = vpop.f32.mrf.mxu0
  %v3880 = vadd.f32 0.0, %v3879
  %3881 = vmatmul.f32.gmra.mxu0 %v3709
  %v3882 = vpop.f32.mrf.mxu0
  %v3883 = vadd.f32 0.0, %v3882
  %3884 = vdwg.mxu0
  %3885 = vmatpush.msra.mxu0 0.0
  %3886 = vmatpush.msra.mxu0 0.0
  %3887 = vmatpush.msra.mxu0 0.0
  %3888 = vmatpush.msra.mxu0 0.0
  %3889 = vmatpush.msra.mxu0 0.0
  %3890 = vmatpush.msra.mxu0 0.0
  %3891 = vmatpush.msra.mxu0 0.0
  %3892 = vmatpush.msra.mxu0 0.0
  %3893 = vmatpush.msra.mxu0 0.0
  %3894 = vmatpush.msra.mxu0 0.0
  %3895 = vmatpush.msra.mxu0 0.0
  %3896 = vmatpush.msra.mxu0 0.0
  %3897 = vmatpush.msra.mxu0 0.0
  %3898 = vmatpush.msra.mxu0 0.0
  %3899 = vmatpush.msra.mxu0 %v3685
  %3900 = vmatpush.msra.mxu0 %v3677
  %3901 = vmatmul.f32.gmra.mxu0 %v3703
  %v3902 = vpop.f32.mrf.mxu0
  %v3903 = vadd.f32 0.0, %v3902
  %3904 = vmatmul.f32.gmra.mxu0 %v3705
  %v3905 = vpop.f32.mrf.mxu0
  %v3906 = vadd.f32 0.0, %v3905
  %3907 = vmatmul.f32.gmra.mxu0 %v3707
  %v3908 = vpop.f32.mrf.mxu0
  %v3909 = vadd.f32 0.0, %v3908
  %3910 = vmatmul.f32.gmra.mxu0 %v3709
  %v3911 = vpop.f32.mrf.mxu0
  %v3912 = vadd.f32 0.0, %v3911
  %3913 = vdwg.mxu0
  %3914 = vmatpush.msra.mxu0 0.0
  %3915 = vmatpush.msra.mxu0 0.0
  %3916 = vmatpush.msra.mxu0 0.0
  %3917 = vmatpush.msra.mxu0 0.0
  %3918 = vmatpush.msra.mxu0 0.0
  %3919 = vmatpush.msra.mxu0 0.0
  %3920 = vmatpush.msra.mxu0 0.0
  %3921 = vmatpush.msra.mxu0 0.0
  %3922 = vmatpush.msra.mxu0 0.0
  %3923 = vmatpush.msra.mxu0 0.0
  %3924 = vmatpush.msra.mxu0 0.0
  %3925 = vmatpush.msra.mxu0 0.0
  %3926 = vmatpush.msra.mxu0 0.0
  %3927 = vmatpush.msra.mxu0 0.0
  %3928 = vmatpush.msra.mxu0 %v3686
  %3929 = vmatpush.msra.mxu0 %v3678
  %3930 = vmatmul.f32.gmra.mxu0 %v3703
  %v3931 = vpop.f32.mrf.mxu0
  %v3932 = vadd.f32 0.0, %v3931
  %3933 = vmatmul.f32.gmra.mxu0 %v3705
  %v3934 = vpop.f32.mrf.mxu0
  %v3935 = vadd.f32 0.0, %v3934
  %3936 = vmatmul.f32.gmra.mxu0 %v3707
  %v3937 = vpop.f32.mrf.mxu0
  %v3938 = vadd.f32 0.0, %v3937
  %3939 = vmatmul.f32.gmra.mxu0 %v3709
  %v3940 = vpop.f32.mrf.mxu0
  %v3941 = vadd.f32 0.0, %v3940
  %3942 = vdwg.mxu0
  %v3943 = vadd.f32 %v3345, %v3729
  %v3944 = vadd.f32 %v3374, %v3758
  %v3945 = vadd.f32 %v3403, %v3787
  %v3946 = vadd.f32 %v3432, %v3816
  %v3947 = vadd.f32 %v3461, %v3845
  %v3948 = vadd.f32 %v3490, %v3874
  %v3949 = vadd.f32 %v3519, %v3903
  %v3950 = vadd.f32 %v3548, %v3932
  %v3951 = vadd.f32 %v3348, %v3732
  %v3952 = vadd.f32 %v3377, %v3761
  %v3953 = vadd.f32 %v3406, %v3790
  %v3954 = vadd.f32 %v3435, %v3819
  %v3955 = vadd.f32 %v3464, %v3848
  %v3956 = vadd.f32 %v3493, %v3877
  %v3957 = vadd.f32 %v3522, %v3906
  %v3958 = vadd.f32 %v3551, %v3935
  %v3959 = vadd.f32 %v3351, %v3735
  %v3960 = vadd.f32 %v3380, %v3764
  %v3961 = vadd.f32 %v3409, %v3793
  %v3962 = vadd.f32 %v3438, %v3822
  %v3963 = vadd.f32 %v3467, %v3851
  %v3964 = vadd.f32 %v3496, %v3880
  %v3965 = vadd.f32 %v3525, %v3909
  %v3966 = vadd.f32 %v3554, %v3938
  %v3967 = vadd.f32 %v3354, %v3738
  %v3968 = vadd.f32 %v3383, %v3767
  %v3969 = vadd.f32 %v3412, %v3796
  %v3970 = vadd.f32 %v3441, %v3825
  %v3971 = vadd.f32 %v3470, %v3854
  %v3972 = vadd.f32 %v3499, %v3883
  %v3973 = vadd.f32 %v3528, %v3912
  %v3974 = vadd.f32 %v3557, %v3941
  %3975 = vrot.lane.b32.xlu0 %v93, 32
  %v3976 = vpop.permute.xlu0 %3975
  %3977 = vrot.lane.b32.xlu0 %v94, 32
  %v3978 = vpop.permute.xlu0 %3977
  %3979 = vrot.lane.b32.xlu0 %v95, 32
  %v3980 = vpop.permute.xlu0 %3979
  %3981 = vrot.lane.b32.xlu0 %v96, 32
  %v3982 = vpop.permute.xlu0 %3981
  %3983 = vrot.lane.b32.xlu0 %v97, 32
  %v3984 = vpop.permute.xlu0 %3983
  %3985 = vrot.lane.b32.xlu0 %v98, 32
  %v3986 = vpop.permute.xlu0 %3985
  %3987 = vrot.lane.b32.xlu0 %v99, 32
  %v3988 = vpop.permute.xlu0 %3987
  %3989 = vrot.lane.b32.xlu0 %v100, 32
  %v3990 = vpop.permute.xlu0 %3989
  %v3991 = vsel %vm986, %v3976, %v3978
  %v3992 = vsel %vm986, %v3978, %v3980
  %v3993 = vsel %vm986, %v3980, %v3982
  %v3994 = vsel %vm986, %v3982, %v3984
  %v3995 = vsel %vm986, %v3984, %v3986
  %v3996 = vsel %vm986, %v3986, %v3988
  %v3997 = vsel %vm986, %v3988, %v3990
  %v4007 = vmul.f32 %v2942, %v3976
  %v4008 = vmul.f32 %v2943, %v3991
  %v4009 = vmul.f32 %v2944, %v3992
  %v4010 = vmul.f32 %v2945, %v3993
  %v4011 = vmul.f32 %v2946, %v3994
  %v4012 = vmul.f32 %v2947, %v3995
  %v4013 = vmul.f32 %v2948, %v3996
  %v4014 = vmul.f32 %v2949, %v3997
  %v4015 = vmul.f32 %v2978, %v3990
  %v4016 = vmul.f32 %v2950, %v3976
  %v4017 = vmul.f32 %v2951, %v3991
  %v4018 = vmul.f32 %v2952, %v3992
  %v4019 = vmul.f32 %v2953, %v3993
  %v4020 = vmul.f32 %v2954, %v3994
  %v4021 = vmul.f32 %v2955, %v3995
  %v4022 = vmul.f32 %v2956, %v3996
  %v4023 = vmul.f32 %v2957, %v3997
  %v4024 = vmul.f32 %v2979, %v3990
  %4025 = vrot.lane.b32.xlu0 %v2974, 80
  %v4026 = vpop.permute.xlu0 %4025
  %4027 = vrot.lane.b32.xlu0 %v2975, 80
  %v4028 = vpop.permute.xlu0 %4027
  %4029 = vrot.lane.b32.xlu0 %v2976, 80
  %v4030 = vpop.permute.xlu0 %4029
  %4031 = vrot.lane.b32.xlu0 %v2977, 80
  %v4032 = vpop.permute.xlu0 %4031
  %4051 = vrot.lane.b32.xlu0 %v4007, 96
  %v4052 = vpop.permute.xlu0 %4051
  %4053 = vrot.lane.b32.xlu0 %v4008, 96
  %v4054 = vpop.permute.xlu0 %4053
  %4055 = vrot.lane.b32.xlu0 %v4009, 96
  %v4056 = vpop.permute.xlu0 %4055
  %4057 = vrot.lane.b32.xlu0 %v4010, 96
  %v4058 = vpop.permute.xlu0 %4057
  %4059 = vrot.lane.b32.xlu0 %v4011, 96
  %v4060 = vpop.permute.xlu0 %4059
  %4061 = vrot.lane.b32.xlu0 %v4012, 96
  %v4062 = vpop.permute.xlu0 %4061
  %4063 = vrot.lane.b32.xlu0 %v4013, 96
  %v4064 = vpop.permute.xlu0 %4063
  %4065 = vrot.lane.b32.xlu0 %v4014, 96
  %v4066 = vpop.permute.xlu0 %4065
  %4067 = vrot.lane.b32.xlu0 %v4015, 96
  %v4068 = vpop.permute.xlu0 %4067
  %4069 = vrot.lane.b32.xlu0 %v4016, 96
  %v4070 = vpop.permute.xlu0 %4069
  %4071 = vrot.lane.b32.xlu0 %v4017, 96
  %v4072 = vpop.permute.xlu0 %4071
  %4073 = vrot.lane.b32.xlu0 %v4018, 96
  %v4074 = vpop.permute.xlu0 %4073
  %4075 = vrot.lane.b32.xlu0 %v4019, 96
  %v4076 = vpop.permute.xlu0 %4075
  %4077 = vrot.lane.b32.xlu0 %v4020, 96
  %v4078 = vpop.permute.xlu0 %4077
  %4079 = vrot.lane.b32.xlu0 %v4021, 96
  %v4080 = vpop.permute.xlu0 %4079
  %4081 = vrot.lane.b32.xlu0 %v4022, 96
  %v4082 = vpop.permute.xlu0 %4081
  %4083 = vrot.lane.b32.xlu0 %v4023, 96
  %v4084 = vpop.permute.xlu0 %4083
  %4085 = vrot.lane.b32.xlu0 %v4024, 96
  %v4086 = vpop.permute.xlu0 %4085
  %v4087 = vsel %vm1052, %v4052, %v4054
  %v4088 = vsel %vm1052, %v4054, %v4056
  %v4089 = vsel %vm1052, %v4056, %v4058
  %v4090 = vsel %vm1052, %v4058, %v4060
  %v4091 = vsel %vm1052, %v4060, %v4062
  %v4092 = vsel %vm1052, %v4062, %v4064
  %v4093 = vsel %vm1052, %v4064, %v4066
  %v4094 = vsel %vm1052, %v4066, %v4068
  %v4095 = vsel %vm1052, %v4070, %v4072
  %v4096 = vsel %vm1052, %v4072, %v4074
  %v4097 = vsel %vm1052, %v4074, %v4076
  %v4098 = vsel %vm1052, %v4076, %v4078
  %v4099 = vsel %vm1052, %v4078, %v4080
  %v4100 = vsel %vm1052, %v4080, %v4082
  %v4101 = vsel %vm1052, %v4082, %v4084
  %v4102 = vsel %vm1052, %v4084, %v4086
  %v4119 = vsel %vm3078, %v4026, 0
  %v4121 = vsel %vm3078, %v4028, 0
  %v4123 = vsel %vm3078, %v4030, 0
  %v4125 = vsel %vm3078, %v4032, 0
  %4127 = vmatpush.msra.mxu0 0.0
  %4128 = vmatpush.msra.mxu0 0.0
  %4129 = vmatpush.msra.mxu0 0.0
  %4130 = vmatpush.msra.mxu0 0.0
  %4131 = vmatpush.msra.mxu0 0.0
  %4132 = vmatpush.msra.mxu0 0.0
  %4133 = vmatpush.msra.mxu0 0.0
  %4134 = vmatpush.msra.mxu0 0.0
  %4135 = vmatpush.msra.mxu0 0.0
  %4136 = vmatpush.msra.mxu0 0.0
  %4137 = vmatpush.msra.mxu0 0.0
  %4138 = vmatpush.msra.mxu0 0.0
  %4139 = vmatpush.msra.mxu0 0.0
  %4140 = vmatpush.msra.mxu0 0.0
  %4141 = vmatpush.msra.mxu0 %v4095
  %4142 = vmatpush.msra.mxu0 %v4087
  %4143 = vmatmul.f32.gmra.mxu0 %v4119
  %v4144 = vpop.f32.mrf.mxu0
  %v4145 = vadd.f32 0.0, %v4144
  %4146 = vmatmul.f32.gmra.mxu0 %v4121
  %v4147 = vpop.f32.mrf.mxu0
  %v4148 = vadd.f32 0.0, %v4147
  %4149 = vmatmul.f32.gmra.mxu0 %v4123
  %v4150 = vpop.f32.mrf.mxu0
  %v4151 = vadd.f32 0.0, %v4150
  %4152 = vmatmul.f32.gmra.mxu0 %v4125
  %v4153 = vpop.f32.mrf.mxu0
  %v4154 = vadd.f32 0.0, %v4153
  %4155 = vdwg.mxu0
  %4156 = vmatpush.msra.mxu0 0.0
  %4157 = vmatpush.msra.mxu0 0.0
  %4158 = vmatpush.msra.mxu0 0.0
  %4159 = vmatpush.msra.mxu0 0.0
  %4160 = vmatpush.msra.mxu0 0.0
  %4161 = vmatpush.msra.mxu0 0.0
  %4162 = vmatpush.msra.mxu0 0.0
  %4163 = vmatpush.msra.mxu0 0.0
  %4164 = vmatpush.msra.mxu0 0.0
  %4165 = vmatpush.msra.mxu0 0.0
  %4166 = vmatpush.msra.mxu0 0.0
  %4167 = vmatpush.msra.mxu0 0.0
  %4168 = vmatpush.msra.mxu0 0.0
  %4169 = vmatpush.msra.mxu0 0.0
  %4170 = vmatpush.msra.mxu0 %v4096
  %4171 = vmatpush.msra.mxu0 %v4088
  %4172 = vmatmul.f32.gmra.mxu0 %v4119
  %v4173 = vpop.f32.mrf.mxu0
  %v4174 = vadd.f32 0.0, %v4173
  %4175 = vmatmul.f32.gmra.mxu0 %v4121
  %v4176 = vpop.f32.mrf.mxu0
  %v4177 = vadd.f32 0.0, %v4176
  %4178 = vmatmul.f32.gmra.mxu0 %v4123
  %v4179 = vpop.f32.mrf.mxu0
  %v4180 = vadd.f32 0.0, %v4179
  %4181 = vmatmul.f32.gmra.mxu0 %v4125
  %v4182 = vpop.f32.mrf.mxu0
  %v4183 = vadd.f32 0.0, %v4182
  %4184 = vdwg.mxu0
  %4185 = vmatpush.msra.mxu0 0.0
  %4186 = vmatpush.msra.mxu0 0.0
  %4187 = vmatpush.msra.mxu0 0.0
  %4188 = vmatpush.msra.mxu0 0.0
  %4189 = vmatpush.msra.mxu0 0.0
  %4190 = vmatpush.msra.mxu0 0.0
  %4191 = vmatpush.msra.mxu0 0.0
  %4192 = vmatpush.msra.mxu0 0.0
  %4193 = vmatpush.msra.mxu0 0.0
  %4194 = vmatpush.msra.mxu0 0.0
  %4195 = vmatpush.msra.mxu0 0.0
  %4196 = vmatpush.msra.mxu0 0.0
  %4197 = vmatpush.msra.mxu0 0.0
  %4198 = vmatpush.msra.mxu0 0.0
  %4199 = vmatpush.msra.mxu0 %v4097
  %4200 = vmatpush.msra.mxu0 %v4089
  %4201 = vmatmul.f32.gmra.mxu0 %v4119
  %v4202 = vpop.f32.mrf.mxu0
  %v4203 = vadd.f32 0.0, %v4202
  %4204 = vmatmul.f32.gmra.mxu0 %v4121
  %v4205 = vpop.f32.mrf.mxu0
  %v4206 = vadd.f32 0.0, %v4205
  %4207 = vmatmul.f32.gmra.mxu0 %v4123
  %v4208 = vpop.f32.mrf.mxu0
  %v4209 = vadd.f32 0.0, %v4208
  %4210 = vmatmul.f32.gmra.mxu0 %v4125
  %v4211 = vpop.f32.mrf.mxu0
  %v4212 = vadd.f32 0.0, %v4211
  %4213 = vdwg.mxu0
  %4214 = vmatpush.msra.mxu0 0.0
  %4215 = vmatpush.msra.mxu0 0.0
  %4216 = vmatpush.msra.mxu0 0.0
  %4217 = vmatpush.msra.mxu0 0.0
  %4218 = vmatpush.msra.mxu0 0.0
  %4219 = vmatpush.msra.mxu0 0.0
  %4220 = vmatpush.msra.mxu0 0.0
  %4221 = vmatpush.msra.mxu0 0.0
  %4222 = vmatpush.msra.mxu0 0.0
  %4223 = vmatpush.msra.mxu0 0.0
  %4224 = vmatpush.msra.mxu0 0.0
  %4225 = vmatpush.msra.mxu0 0.0
  %4226 = vmatpush.msra.mxu0 0.0
  %4227 = vmatpush.msra.mxu0 0.0
  %4228 = vmatpush.msra.mxu0 %v4098
  %4229 = vmatpush.msra.mxu0 %v4090
  %4230 = vmatmul.f32.gmra.mxu0 %v4119
  %v4231 = vpop.f32.mrf.mxu0
  %v4232 = vadd.f32 0.0, %v4231
  %4233 = vmatmul.f32.gmra.mxu0 %v4121
  %v4234 = vpop.f32.mrf.mxu0
  %v4235 = vadd.f32 0.0, %v4234
  %4236 = vmatmul.f32.gmra.mxu0 %v4123
  %v4237 = vpop.f32.mrf.mxu0
  %v4238 = vadd.f32 0.0, %v4237
  %4239 = vmatmul.f32.gmra.mxu0 %v4125
  %v4240 = vpop.f32.mrf.mxu0
  %v4241 = vadd.f32 0.0, %v4240
  %4242 = vdwg.mxu0
  %4243 = vmatpush.msra.mxu0 0.0
  %4244 = vmatpush.msra.mxu0 0.0
  %4245 = vmatpush.msra.mxu0 0.0
  %4246 = vmatpush.msra.mxu0 0.0
  %4247 = vmatpush.msra.mxu0 0.0
  %4248 = vmatpush.msra.mxu0 0.0
  %4249 = vmatpush.msra.mxu0 0.0
  %4250 = vmatpush.msra.mxu0 0.0
  %4251 = vmatpush.msra.mxu0 0.0
  %4252 = vmatpush.msra.mxu0 0.0
  %4253 = vmatpush.msra.mxu0 0.0
  %4254 = vmatpush.msra.mxu0 0.0
  %4255 = vmatpush.msra.mxu0 0.0
  %4256 = vmatpush.msra.mxu0 0.0
  %4257 = vmatpush.msra.mxu0 %v4099
  %4258 = vmatpush.msra.mxu0 %v4091
  %4259 = vmatmul.f32.gmra.mxu0 %v4119
  %v4260 = vpop.f32.mrf.mxu0
  %v4261 = vadd.f32 0.0, %v4260
  %4262 = vmatmul.f32.gmra.mxu0 %v4121
  %v4263 = vpop.f32.mrf.mxu0
  %v4264 = vadd.f32 0.0, %v4263
  %4265 = vmatmul.f32.gmra.mxu0 %v4123
  %v4266 = vpop.f32.mrf.mxu0
  %v4267 = vadd.f32 0.0, %v4266
  %4268 = vmatmul.f32.gmra.mxu0 %v4125
  %v4269 = vpop.f32.mrf.mxu0
  %v4270 = vadd.f32 0.0, %v4269
  %4271 = vdwg.mxu0
  %4272 = vmatpush.msra.mxu0 0.0
  %4273 = vmatpush.msra.mxu0 0.0
  %4274 = vmatpush.msra.mxu0 0.0
  %4275 = vmatpush.msra.mxu0 0.0
  %4276 = vmatpush.msra.mxu0 0.0
  %4277 = vmatpush.msra.mxu0 0.0
  %4278 = vmatpush.msra.mxu0 0.0
  %4279 = vmatpush.msra.mxu0 0.0
  %4280 = vmatpush.msra.mxu0 0.0
  %4281 = vmatpush.msra.mxu0 0.0
  %4282 = vmatpush.msra.mxu0 0.0
  %4283 = vmatpush.msra.mxu0 0.0
  %4284 = vmatpush.msra.mxu0 0.0
  %4285 = vmatpush.msra.mxu0 0.0
  %4286 = vmatpush.msra.mxu0 %v4100
  %4287 = vmatpush.msra.mxu0 %v4092
  %4288 = vmatmul.f32.gmra.mxu0 %v4119
  %v4289 = vpop.f32.mrf.mxu0
  %v4290 = vadd.f32 0.0, %v4289
  %4291 = vmatmul.f32.gmra.mxu0 %v4121
  %v4292 = vpop.f32.mrf.mxu0
  %v4293 = vadd.f32 0.0, %v4292
  %4294 = vmatmul.f32.gmra.mxu0 %v4123
  %v4295 = vpop.f32.mrf.mxu0
  %v4296 = vadd.f32 0.0, %v4295
  %4297 = vmatmul.f32.gmra.mxu0 %v4125
  %v4298 = vpop.f32.mrf.mxu0
  %v4299 = vadd.f32 0.0, %v4298
  %4300 = vdwg.mxu0
  %4301 = vmatpush.msra.mxu0 0.0
  %4302 = vmatpush.msra.mxu0 0.0
  %4303 = vmatpush.msra.mxu0 0.0
  %4304 = vmatpush.msra.mxu0 0.0
  %4305 = vmatpush.msra.mxu0 0.0
  %4306 = vmatpush.msra.mxu0 0.0
  %4307 = vmatpush.msra.mxu0 0.0
  %4308 = vmatpush.msra.mxu0 0.0
  %4309 = vmatpush.msra.mxu0 0.0
  %4310 = vmatpush.msra.mxu0 0.0
  %4311 = vmatpush.msra.mxu0 0.0
  %4312 = vmatpush.msra.mxu0 0.0
  %4313 = vmatpush.msra.mxu0 0.0
  %4314 = vmatpush.msra.mxu0 0.0
  %4315 = vmatpush.msra.mxu0 %v4101
  %4316 = vmatpush.msra.mxu0 %v4093
  %4317 = vmatmul.f32.gmra.mxu0 %v4119
  %v4318 = vpop.f32.mrf.mxu0
  %v4319 = vadd.f32 0.0, %v4318
  %4320 = vmatmul.f32.gmra.mxu0 %v4121
  %v4321 = vpop.f32.mrf.mxu0
  %v4322 = vadd.f32 0.0, %v4321
  %4323 = vmatmul.f32.gmra.mxu0 %v4123
  %v4324 = vpop.f32.mrf.mxu0
  %v4325 = vadd.f32 0.0, %v4324
  %4326 = vmatmul.f32.gmra.mxu0 %v4125
  %v4327 = vpop.f32.mrf.mxu0
  %v4328 = vadd.f32 0.0, %v4327
  %4329 = vdwg.mxu0
  %4330 = vmatpush.msra.mxu0 0.0
  %4331 = vmatpush.msra.mxu0 0.0
  %4332 = vmatpush.msra.mxu0 0.0
  %4333 = vmatpush.msra.mxu0 0.0
  %4334 = vmatpush.msra.mxu0 0.0
  %4335 = vmatpush.msra.mxu0 0.0
  %4336 = vmatpush.msra.mxu0 0.0
  %4337 = vmatpush.msra.mxu0 0.0
  %4338 = vmatpush.msra.mxu0 0.0
  %4339 = vmatpush.msra.mxu0 0.0
  %4340 = vmatpush.msra.mxu0 0.0
  %4341 = vmatpush.msra.mxu0 0.0
  %4342 = vmatpush.msra.mxu0 0.0
  %4343 = vmatpush.msra.mxu0 0.0
  %4344 = vmatpush.msra.mxu0 %v4102
  %4345 = vmatpush.msra.mxu0 %v4094
  %4346 = vmatmul.f32.gmra.mxu0 %v4119
  %v4347 = vpop.f32.mrf.mxu0
  %v4348 = vadd.f32 0.0, %v4347
  %4349 = vmatmul.f32.gmra.mxu0 %v4121
  %v4350 = vpop.f32.mrf.mxu0
  %v4351 = vadd.f32 0.0, %v4350
  %4352 = vmatmul.f32.gmra.mxu0 %v4123
  %v4353 = vpop.f32.mrf.mxu0
  %v4354 = vadd.f32 0.0, %v4353
  %4355 = vmatmul.f32.gmra.mxu0 %v4125
  %v4356 = vpop.f32.mrf.mxu0
  %v4357 = vadd.f32 0.0, %v4356
  %4358 = vdwg.mxu0
  %v4359 = vadd.f32 %v3943, %v4145
  %v4360 = vadd.f32 %v3944, %v4174
  %v4361 = vadd.f32 %v3945, %v4203
  %v4362 = vadd.f32 %v3946, %v4232
  %v4363 = vadd.f32 %v3947, %v4261
  %v4364 = vadd.f32 %v3948, %v4290
  %v4365 = vadd.f32 %v3949, %v4319
  %v4366 = vadd.f32 %v3950, %v4348
  %v4367 = vadd.f32 %v3951, %v4148
  %v4368 = vadd.f32 %v3952, %v4177
  %v4369 = vadd.f32 %v3953, %v4206
  %v4370 = vadd.f32 %v3954, %v4235
  %v4371 = vadd.f32 %v3955, %v4264
  %v4372 = vadd.f32 %v3956, %v4293
  %v4373 = vadd.f32 %v3957, %v4322
  %v4374 = vadd.f32 %v3958, %v4351
  %v4375 = vadd.f32 %v3959, %v4151
  %v4376 = vadd.f32 %v3960, %v4180
  %v4377 = vadd.f32 %v3961, %v4209
  %v4378 = vadd.f32 %v3962, %v4238
  %v4379 = vadd.f32 %v3963, %v4267
  %v4380 = vadd.f32 %v3964, %v4296
  %v4381 = vadd.f32 %v3965, %v4325
  %v4382 = vadd.f32 %v3966, %v4354
  %v4383 = vadd.f32 %v3967, %v4154
  %v4384 = vadd.f32 %v3968, %v4183
  %v4385 = vadd.f32 %v3969, %v4212
  %v4386 = vadd.f32 %v3970, %v4241
  %v4387 = vadd.f32 %v3971, %v4270
  %v4388 = vadd.f32 %v3972, %v4299
  %v4389 = vadd.f32 %v3973, %v4328
  %v4390 = vadd.f32 %v3974, %v4357
  %4391 = vrot.lane.b32.xlu0 %v2974, 64
  %v4392 = vpop.permute.xlu0 %4391
  %4393 = vrot.lane.b32.xlu0 %v2975, 64
  %v4394 = vpop.permute.xlu0 %4393
  %4395 = vrot.lane.b32.xlu0 %v2976, 64
  %v4396 = vpop.permute.xlu0 %4395
  %4397 = vrot.lane.b32.xlu0 %v2977, 64
  %v4398 = vpop.permute.xlu0 %4397
  %4399 = vrot.lane.b32.xlu0 %v2942, 95
  %v4400 = vpop.permute.xlu0 %4399
  %4401 = vrot.lane.b32.xlu0 %v2943, 95
  %v4402 = vpop.permute.xlu0 %4401
  %4403 = vrot.lane.b32.xlu0 %v2944, 95
  %v4404 = vpop.permute.xlu0 %4403
  %4405 = vrot.lane.b32.xlu0 %v2945, 95
  %v4406 = vpop.permute.xlu0 %4405
  %4407 = vrot.lane.b32.xlu0 %v2946, 95
  %v4408 = vpop.permute.xlu0 %4407
  %4409 = vrot.lane.b32.xlu0 %v2947, 95
  %v4410 = vpop.permute.xlu0 %4409
  %4411 = vrot.lane.b32.xlu0 %v2948, 95
  %v4412 = vpop.permute.xlu0 %4411
  %4413 = vrot.lane.b32.xlu0 %v2949, 95
  %v4414 = vpop.permute.xlu0 %4413
  %4415 = vrot.lane.b32.xlu0 %v2978, 95
  %v4416 = vpop.permute.xlu0 %4415
  %4417 = vrot.lane.b32.xlu0 %v2950, 95
  %v4418 = vpop.permute.xlu0 %4417
  %4419 = vrot.lane.b32.xlu0 %v2951, 95
  %v4420 = vpop.permute.xlu0 %4419
  %4421 = vrot.lane.b32.xlu0 %v2952, 95
  %v4422 = vpop.permute.xlu0 %4421
  %4423 = vrot.lane.b32.xlu0 %v2953, 95
  %v4424 = vpop.permute.xlu0 %4423
  %4425 = vrot.lane.b32.xlu0 %v2954, 95
  %v4426 = vpop.permute.xlu0 %4425
  %4427 = vrot.lane.b32.xlu0 %v2955, 95
  %v4428 = vpop.permute.xlu0 %4427
  %4429 = vrot.lane.b32.xlu0 %v2956, 95
  %v4430 = vpop.permute.xlu0 %4429
  %4431 = vrot.lane.b32.xlu0 %v2957, 95
  %v4432 = vpop.permute.xlu0 %4431
  %4433 = vrot.lane.b32.xlu0 %v2979, 95
  %v4434 = vpop.permute.xlu0 %4433
  %v4435 = vsel %vm1334, %v4400, %v4402
  %v4436 = vsel %vm1334, %v4402, %v4404
  %v4437 = vsel %vm1334, %v4404, %v4406
  %v4438 = vsel %vm1334, %v4406, %v4408
  %v4439 = vsel %vm1334, %v4408, %v4410
  %v4440 = vsel %vm1334, %v4410, %v4412
  %v4441 = vsel %vm1334, %v4412, %v4414
  %v4442 = vsel %vm1334, %v4414, %v4416
  %v4443 = vsel %vm1334, %v4418, %v4420
  %v4444 = vsel %vm1334, %v4420, %v4422
  %v4445 = vsel %vm1334, %v4422, %v4424
  %v4446 = vsel %vm1334, %v4424, %v4426
  %v4447 = vsel %vm1334, %v4426, %v4428
  %v4448 = vsel %vm1334, %v4428, %v4430
  %v4449 = vsel %vm1334, %v4430, %v4432
  %v4450 = vsel %vm1334, %v4432, %v4434
  %v4467 = vsel %vm3078, %v4392, 0
  %v4469 = vsel %vm3078, %v4394, 0
  %v4471 = vsel %vm3078, %v4396, 0
  %v4473 = vsel %vm3078, %v4398, 0
  %4475 = vmatpush.msra.mxu0 0.0
  %4476 = vmatpush.msra.mxu0 0.0
  %4477 = vmatpush.msra.mxu0 0.0
  %4478 = vmatpush.msra.mxu0 0.0
  %4479 = vmatpush.msra.mxu0 0.0
  %4480 = vmatpush.msra.mxu0 0.0
  %4481 = vmatpush.msra.mxu0 0.0
  %4482 = vmatpush.msra.mxu0 0.0
  %4483 = vmatpush.msra.mxu0 0.0
  %4484 = vmatpush.msra.mxu0 0.0
  %4485 = vmatpush.msra.mxu0 0.0
  %4486 = vmatpush.msra.mxu0 0.0
  %4487 = vmatpush.msra.mxu0 0.0
  %4488 = vmatpush.msra.mxu0 0.0
  %4489 = vmatpush.msra.mxu0 %v4443
  %4490 = vmatpush.msra.mxu0 %v4435
  %4491 = vmatmul.f32.gmra.mxu0 %v4467
  %v4492 = vpop.f32.mrf.mxu0
  %v4493 = vadd.f32 0.0, %v4492
  %4494 = vmatmul.f32.gmra.mxu0 %v4469
  %v4495 = vpop.f32.mrf.mxu0
  %v4496 = vadd.f32 0.0, %v4495
  %4497 = vmatmul.f32.gmra.mxu0 %v4471
  %v4498 = vpop.f32.mrf.mxu0
  %v4499 = vadd.f32 0.0, %v4498
  %4500 = vmatmul.f32.gmra.mxu0 %v4473
  %v4501 = vpop.f32.mrf.mxu0
  %v4502 = vadd.f32 0.0, %v4501
  %4503 = vdwg.mxu0
  %4504 = vmatpush.msra.mxu0 0.0
  %4505 = vmatpush.msra.mxu0 0.0
  %4506 = vmatpush.msra.mxu0 0.0
  %4507 = vmatpush.msra.mxu0 0.0
  %4508 = vmatpush.msra.mxu0 0.0
  %4509 = vmatpush.msra.mxu0 0.0
  %4510 = vmatpush.msra.mxu0 0.0
  %4511 = vmatpush.msra.mxu0 0.0
  %4512 = vmatpush.msra.mxu0 0.0
  %4513 = vmatpush.msra.mxu0 0.0
  %4514 = vmatpush.msra.mxu0 0.0
  %4515 = vmatpush.msra.mxu0 0.0
  %4516 = vmatpush.msra.mxu0 0.0
  %4517 = vmatpush.msra.mxu0 0.0
  %4518 = vmatpush.msra.mxu0 %v4444
  %4519 = vmatpush.msra.mxu0 %v4436
  %4520 = vmatmul.f32.gmra.mxu0 %v4467
  %v4521 = vpop.f32.mrf.mxu0
  %v4522 = vadd.f32 0.0, %v4521
  %4523 = vmatmul.f32.gmra.mxu0 %v4469
  %v4524 = vpop.f32.mrf.mxu0
  %v4525 = vadd.f32 0.0, %v4524
  %4526 = vmatmul.f32.gmra.mxu0 %v4471
  %v4527 = vpop.f32.mrf.mxu0
  %v4528 = vadd.f32 0.0, %v4527
  %4529 = vmatmul.f32.gmra.mxu0 %v4473
  %v4530 = vpop.f32.mrf.mxu0
  %v4531 = vadd.f32 0.0, %v4530
  %4532 = vdwg.mxu0
  %4533 = vmatpush.msra.mxu0 0.0
  %4534 = vmatpush.msra.mxu0 0.0
  %4535 = vmatpush.msra.mxu0 0.0
  %4536 = vmatpush.msra.mxu0 0.0
  %4537 = vmatpush.msra.mxu0 0.0
  %4538 = vmatpush.msra.mxu0 0.0
  %4539 = vmatpush.msra.mxu0 0.0
  %4540 = vmatpush.msra.mxu0 0.0
  %4541 = vmatpush.msra.mxu0 0.0
  %4542 = vmatpush.msra.mxu0 0.0
  %4543 = vmatpush.msra.mxu0 0.0
  %4544 = vmatpush.msra.mxu0 0.0
  %4545 = vmatpush.msra.mxu0 0.0
  %4546 = vmatpush.msra.mxu0 0.0
  %4547 = vmatpush.msra.mxu0 %v4445
  %4548 = vmatpush.msra.mxu0 %v4437
  %4549 = vmatmul.f32.gmra.mxu0 %v4467
  %v4550 = vpop.f32.mrf.mxu0
  %v4551 = vadd.f32 0.0, %v4550
  %4552 = vmatmul.f32.gmra.mxu0 %v4469
  %v4553 = vpop.f32.mrf.mxu0
  %v4554 = vadd.f32 0.0, %v4553
  %4555 = vmatmul.f32.gmra.mxu0 %v4471
  %v4556 = vpop.f32.mrf.mxu0
  %v4557 = vadd.f32 0.0, %v4556
  %4558 = vmatmul.f32.gmra.mxu0 %v4473
  %v4559 = vpop.f32.mrf.mxu0
  %v4560 = vadd.f32 0.0, %v4559
  %4561 = vdwg.mxu0
  %4562 = vmatpush.msra.mxu0 0.0
  %4563 = vmatpush.msra.mxu0 0.0
  %4564 = vmatpush.msra.mxu0 0.0
  %4565 = vmatpush.msra.mxu0 0.0
  %4566 = vmatpush.msra.mxu0 0.0
  %4567 = vmatpush.msra.mxu0 0.0
  %4568 = vmatpush.msra.mxu0 0.0
  %4569 = vmatpush.msra.mxu0 0.0
  %4570 = vmatpush.msra.mxu0 0.0
  %4571 = vmatpush.msra.mxu0 0.0
  %4572 = vmatpush.msra.mxu0 0.0
  %4573 = vmatpush.msra.mxu0 0.0
  %4574 = vmatpush.msra.mxu0 0.0
  %4575 = vmatpush.msra.mxu0 0.0
  %4576 = vmatpush.msra.mxu0 %v4446
  %4577 = vmatpush.msra.mxu0 %v4438
  %4578 = vmatmul.f32.gmra.mxu0 %v4467
  %v4579 = vpop.f32.mrf.mxu0
  %v4580 = vadd.f32 0.0, %v4579
  %4581 = vmatmul.f32.gmra.mxu0 %v4469
  %v4582 = vpop.f32.mrf.mxu0
  %v4583 = vadd.f32 0.0, %v4582
  %4584 = vmatmul.f32.gmra.mxu0 %v4471
  %v4585 = vpop.f32.mrf.mxu0
  %v4586 = vadd.f32 0.0, %v4585
  %4587 = vmatmul.f32.gmra.mxu0 %v4473
  %v4588 = vpop.f32.mrf.mxu0
  %v4589 = vadd.f32 0.0, %v4588
  %4590 = vdwg.mxu0
  %4591 = vmatpush.msra.mxu0 0.0
  %4592 = vmatpush.msra.mxu0 0.0
  %4593 = vmatpush.msra.mxu0 0.0
  %4594 = vmatpush.msra.mxu0 0.0
  %4595 = vmatpush.msra.mxu0 0.0
  %4596 = vmatpush.msra.mxu0 0.0
  %4597 = vmatpush.msra.mxu0 0.0
  %4598 = vmatpush.msra.mxu0 0.0
  %4599 = vmatpush.msra.mxu0 0.0
  %4600 = vmatpush.msra.mxu0 0.0
  %4601 = vmatpush.msra.mxu0 0.0
  %4602 = vmatpush.msra.mxu0 0.0
  %4603 = vmatpush.msra.mxu0 0.0
  %4604 = vmatpush.msra.mxu0 0.0
  %4605 = vmatpush.msra.mxu0 %v4447
  %4606 = vmatpush.msra.mxu0 %v4439
  %4607 = vmatmul.f32.gmra.mxu0 %v4467
  %v4608 = vpop.f32.mrf.mxu0
  %v4609 = vadd.f32 0.0, %v4608
  %4610 = vmatmul.f32.gmra.mxu0 %v4469
  %v4611 = vpop.f32.mrf.mxu0
  %v4612 = vadd.f32 0.0, %v4611
  %4613 = vmatmul.f32.gmra.mxu0 %v4471
  %v4614 = vpop.f32.mrf.mxu0
  %v4615 = vadd.f32 0.0, %v4614
  %4616 = vmatmul.f32.gmra.mxu0 %v4473
  %v4617 = vpop.f32.mrf.mxu0
  %v4618 = vadd.f32 0.0, %v4617
  %4619 = vdwg.mxu0
  %4620 = vmatpush.msra.mxu0 0.0
  %4621 = vmatpush.msra.mxu0 0.0
  %4622 = vmatpush.msra.mxu0 0.0
  %4623 = vmatpush.msra.mxu0 0.0
  %4624 = vmatpush.msra.mxu0 0.0
  %4625 = vmatpush.msra.mxu0 0.0
  %4626 = vmatpush.msra.mxu0 0.0
  %4627 = vmatpush.msra.mxu0 0.0
  %4628 = vmatpush.msra.mxu0 0.0
  %4629 = vmatpush.msra.mxu0 0.0
  %4630 = vmatpush.msra.mxu0 0.0
  %4631 = vmatpush.msra.mxu0 0.0
  %4632 = vmatpush.msra.mxu0 0.0
  %4633 = vmatpush.msra.mxu0 0.0
  %4634 = vmatpush.msra.mxu0 %v4448
  %4635 = vmatpush.msra.mxu0 %v4440
  %4636 = vmatmul.f32.gmra.mxu0 %v4467
  %v4637 = vpop.f32.mrf.mxu0
  %v4638 = vadd.f32 0.0, %v4637
  %4639 = vmatmul.f32.gmra.mxu0 %v4469
  %v4640 = vpop.f32.mrf.mxu0
  %v4641 = vadd.f32 0.0, %v4640
  %4642 = vmatmul.f32.gmra.mxu0 %v4471
  %v4643 = vpop.f32.mrf.mxu0
  %v4644 = vadd.f32 0.0, %v4643
  %4645 = vmatmul.f32.gmra.mxu0 %v4473
  %v4646 = vpop.f32.mrf.mxu0
  %v4647 = vadd.f32 0.0, %v4646
  %4648 = vdwg.mxu0
  %4649 = vmatpush.msra.mxu0 0.0
  %4650 = vmatpush.msra.mxu0 0.0
  %4651 = vmatpush.msra.mxu0 0.0
  %4652 = vmatpush.msra.mxu0 0.0
  %4653 = vmatpush.msra.mxu0 0.0
  %4654 = vmatpush.msra.mxu0 0.0
  %4655 = vmatpush.msra.mxu0 0.0
  %4656 = vmatpush.msra.mxu0 0.0
  %4657 = vmatpush.msra.mxu0 0.0
  %4658 = vmatpush.msra.mxu0 0.0
  %4659 = vmatpush.msra.mxu0 0.0
  %4660 = vmatpush.msra.mxu0 0.0
  %4661 = vmatpush.msra.mxu0 0.0
  %4662 = vmatpush.msra.mxu0 0.0
  %4663 = vmatpush.msra.mxu0 %v4449
  %4664 = vmatpush.msra.mxu0 %v4441
  %4665 = vmatmul.f32.gmra.mxu0 %v4467
  %v4666 = vpop.f32.mrf.mxu0
  %v4667 = vadd.f32 0.0, %v4666
  %4668 = vmatmul.f32.gmra.mxu0 %v4469
  %v4669 = vpop.f32.mrf.mxu0
  %v4670 = vadd.f32 0.0, %v4669
  %4671 = vmatmul.f32.gmra.mxu0 %v4471
  %v4672 = vpop.f32.mrf.mxu0
  %v4673 = vadd.f32 0.0, %v4672
  %4674 = vmatmul.f32.gmra.mxu0 %v4473
  %v4675 = vpop.f32.mrf.mxu0
  %v4676 = vadd.f32 0.0, %v4675
  %4677 = vdwg.mxu0
  %4678 = vmatpush.msra.mxu0 0.0
  %4679 = vmatpush.msra.mxu0 0.0
  %4680 = vmatpush.msra.mxu0 0.0
  %4681 = vmatpush.msra.mxu0 0.0
  %4682 = vmatpush.msra.mxu0 0.0
  %4683 = vmatpush.msra.mxu0 0.0
  %4684 = vmatpush.msra.mxu0 0.0
  %4685 = vmatpush.msra.mxu0 0.0
  %4686 = vmatpush.msra.mxu0 0.0
  %4687 = vmatpush.msra.mxu0 0.0
  %4688 = vmatpush.msra.mxu0 0.0
  %4689 = vmatpush.msra.mxu0 0.0
  %4690 = vmatpush.msra.mxu0 0.0
  %4691 = vmatpush.msra.mxu0 0.0
  %4692 = vmatpush.msra.mxu0 %v4450
  %4693 = vmatpush.msra.mxu0 %v4442
  %4694 = vmatmul.f32.gmra.mxu0 %v4467
  %v4695 = vpop.f32.mrf.mxu0
  %v4696 = vadd.f32 0.0, %v4695
  %4697 = vmatmul.f32.gmra.mxu0 %v4469
  %v4698 = vpop.f32.mrf.mxu0
  %v4699 = vadd.f32 0.0, %v4698
  %4700 = vmatmul.f32.gmra.mxu0 %v4471
  %v4701 = vpop.f32.mrf.mxu0
  %v4702 = vadd.f32 0.0, %v4701
  %4703 = vmatmul.f32.gmra.mxu0 %v4473
  %v4704 = vpop.f32.mrf.mxu0
  %v4705 = vadd.f32 0.0, %v4704
  %4706 = vdwg.mxu0
  %v4707 = vadd.f32 %v4359, %v4493
  %v4708 = vadd.f32 %v4360, %v4522
  %v4709 = vadd.f32 %v4361, %v4551
  %v4710 = vadd.f32 %v4362, %v4580
  %v4711 = vadd.f32 %v4363, %v4609
  %v4712 = vadd.f32 %v4364, %v4638
  %v4713 = vadd.f32 %v4365, %v4667
  %v4714 = vadd.f32 %v4366, %v4696
  %v4715 = vadd.f32 %v4367, %v4496
  %v4716 = vadd.f32 %v4368, %v4525
  %v4717 = vadd.f32 %v4369, %v4554
  %v4718 = vadd.f32 %v4370, %v4583
  %v4719 = vadd.f32 %v4371, %v4612
  %v4720 = vadd.f32 %v4372, %v4641
  %v4721 = vadd.f32 %v4373, %v4670
  %v4722 = vadd.f32 %v4374, %v4699
  %v4723 = vadd.f32 %v4375, %v4499
  %v4724 = vadd.f32 %v4376, %v4528
  %v4725 = vadd.f32 %v4377, %v4557
  %v4726 = vadd.f32 %v4378, %v4586
  %v4727 = vadd.f32 %v4379, %v4615
  %v4728 = vadd.f32 %v4380, %v4644
  %v4729 = vadd.f32 %v4381, %v4673
  %v4730 = vadd.f32 %v4382, %v4702
  %v4731 = vadd.f32 %v4383, %v4502
  %v4732 = vadd.f32 %v4384, %v4531
  %v4733 = vadd.f32 %v4385, %v4560
  %v4734 = vadd.f32 %v4386, %v4589
  %v4735 = vadd.f32 %v4387, %v4618
  %v4736 = vadd.f32 %v4388, %v4647
  %v4737 = vadd.f32 %v4389, %v4676
  %v4738 = vadd.f32 %v4390, %v4705
  %4739 = vrot.lane.b32.xlu0 %v117, 34
  %v4740 = vpop.permute.xlu0 %4739
  %4741 = vrot.lane.b32.xlu0 %v118, 34
  %v4742 = vpop.permute.xlu0 %4741
  %4743 = vrot.lane.b32.xlu0 %v119, 34
  %v4744 = vpop.permute.xlu0 %4743
  %4745 = vrot.lane.b32.xlu0 %v120, 34
  %v4746 = vpop.permute.xlu0 %4745
  %4747 = vrot.lane.b32.xlu0 %v121, 34
  %v4748 = vpop.permute.xlu0 %4747
  %4749 = vrot.lane.b32.xlu0 %v122, 34
  %v4750 = vpop.permute.xlu0 %4749
  %4751 = vrot.lane.b32.xlu0 %v123, 34
  %v4752 = vpop.permute.xlu0 %4751
  %4753 = vrot.lane.b32.xlu0 %v124, 34
  %v4754 = vpop.permute.xlu0 %4753
  %v4755 = vsel %vm1580, %v4740, %v4742
  %v4756 = vsel %vm1580, %v4742, %v4744
  %v4757 = vsel %vm1580, %v4744, %v4746
  %v4758 = vsel %vm1580, %v4746, %v4748
  %v4759 = vsel %vm1580, %v4748, %v4750
  %v4760 = vsel %vm1580, %v4750, %v4752
  %v4761 = vsel %vm1580, %v4752, %v4754
  %v4771 = vmul.f32 %v2942, %v4740
  %v4772 = vmul.f32 %v2943, %v4755
  %v4773 = vmul.f32 %v2944, %v4756
  %v4774 = vmul.f32 %v2945, %v4757
  %v4775 = vmul.f32 %v2946, %v4758
  %v4776 = vmul.f32 %v2947, %v4759
  %v4777 = vmul.f32 %v2948, %v4760
  %v4778 = vmul.f32 %v2949, %v4761
  %v4779 = vmul.f32 %v2978, %v4754
  %v4780 = vmul.f32 %v2950, %v4740
  %v4781 = vmul.f32 %v2951, %v4755
  %v4782 = vmul.f32 %v2952, %v4756
  %v4783 = vmul.f32 %v2953, %v4757
  %v4784 = vmul.f32 %v2954, %v4758
  %v4785 = vmul.f32 %v2955, %v4759
  %v4786 = vmul.f32 %v2956, %v4760
  %v4787 = vmul.f32 %v2957, %v4761
  %v4788 = vmul.f32 %v2979, %v4754
  %4789 = vrot.lane.b32.xlu0 %v2974, 48
  %v4790 = vpop.permute.xlu0 %4789
  %4791 = vrot.lane.b32.xlu0 %v2975, 48
  %v4792 = vpop.permute.xlu0 %4791
  %4793 = vrot.lane.b32.xlu0 %v2976, 48
  %v4794 = vpop.permute.xlu0 %4793
  %4795 = vrot.lane.b32.xlu0 %v2977, 48
  %v4796 = vpop.permute.xlu0 %4795
  %4815 = vrot.lane.b32.xlu0 %v4771, 94
  %v4816 = vpop.permute.xlu0 %4815
  %4817 = vrot.lane.b32.xlu0 %v4772, 94
  %v4818 = vpop.permute.xlu0 %4817
  %4819 = vrot.lane.b32.xlu0 %v4773, 94
  %v4820 = vpop.permute.xlu0 %4819
  %4821 = vrot.lane.b32.xlu0 %v4774, 94
  %v4822 = vpop.permute.xlu0 %4821
  %4823 = vrot.lane.b32.xlu0 %v4775, 94
  %v4824 = vpop.permute.xlu0 %4823
  %4825 = vrot.lane.b32.xlu0 %v4776, 94
  %v4826 = vpop.permute.xlu0 %4825
  %4827 = vrot.lane.b32.xlu0 %v4777, 94
  %v4828 = vpop.permute.xlu0 %4827
  %4829 = vrot.lane.b32.xlu0 %v4778, 94
  %v4830 = vpop.permute.xlu0 %4829
  %4831 = vrot.lane.b32.xlu0 %v4779, 94
  %v4832 = vpop.permute.xlu0 %4831
  %4833 = vrot.lane.b32.xlu0 %v4780, 94
  %v4834 = vpop.permute.xlu0 %4833
  %4835 = vrot.lane.b32.xlu0 %v4781, 94
  %v4836 = vpop.permute.xlu0 %4835
  %4837 = vrot.lane.b32.xlu0 %v4782, 94
  %v4838 = vpop.permute.xlu0 %4837
  %4839 = vrot.lane.b32.xlu0 %v4783, 94
  %v4840 = vpop.permute.xlu0 %4839
  %4841 = vrot.lane.b32.xlu0 %v4784, 94
  %v4842 = vpop.permute.xlu0 %4841
  %4843 = vrot.lane.b32.xlu0 %v4785, 94
  %v4844 = vpop.permute.xlu0 %4843
  %4845 = vrot.lane.b32.xlu0 %v4786, 94
  %v4846 = vpop.permute.xlu0 %4845
  %4847 = vrot.lane.b32.xlu0 %v4787, 94
  %v4848 = vpop.permute.xlu0 %4847
  %4849 = vrot.lane.b32.xlu0 %v4788, 94
  %v4850 = vpop.permute.xlu0 %4849
  %v4851 = vsel %vm1646, %v4816, %v4818
  %v4852 = vsel %vm1646, %v4818, %v4820
  %v4853 = vsel %vm1646, %v4820, %v4822
  %v4854 = vsel %vm1646, %v4822, %v4824
  %v4855 = vsel %vm1646, %v4824, %v4826
  %v4856 = vsel %vm1646, %v4826, %v4828
  %v4857 = vsel %vm1646, %v4828, %v4830
  %v4858 = vsel %vm1646, %v4830, %v4832
  %v4859 = vsel %vm1646, %v4834, %v4836
  %v4860 = vsel %vm1646, %v4836, %v4838
  %v4861 = vsel %vm1646, %v4838, %v4840
  %v4862 = vsel %vm1646, %v4840, %v4842
  %v4863 = vsel %vm1646, %v4842, %v4844
  %v4864 = vsel %vm1646, %v4844, %v4846
  %v4865 = vsel %vm1646, %v4846, %v4848
  %v4866 = vsel %vm1646, %v4848, %v4850
  %v4883 = vsel %vm3078, %v4790, 0
  %v4885 = vsel %vm3078, %v4792, 0
  %v4887 = vsel %vm3078, %v4794, 0
  %v4889 = vsel %vm3078, %v4796, 0
  %4891 = vmatpush.msra.mxu0 0.0
  %4892 = vmatpush.msra.mxu0 0.0
  %4893 = vmatpush.msra.mxu0 0.0
  %4894 = vmatpush.msra.mxu0 0.0
  %4895 = vmatpush.msra.mxu0 0.0
  %4896 = vmatpush.msra.mxu0 0.0
  %4897 = vmatpush.msra.mxu0 0.0
  %4898 = vmatpush.msra.mxu0 0.0
  %4899 = vmatpush.msra.mxu0 0.0
  %4900 = vmatpush.msra.mxu0 0.0
  %4901 = vmatpush.msra.mxu0 0.0
  %4902 = vmatpush.msra.mxu0 0.0
  %4903 = vmatpush.msra.mxu0 0.0
  %4904 = vmatpush.msra.mxu0 0.0
  %4905 = vmatpush.msra.mxu0 %v4859
  %4906 = vmatpush.msra.mxu0 %v4851
  %4907 = vmatmul.f32.gmra.mxu0 %v4883
  %v4908 = vpop.f32.mrf.mxu0
  %v4909 = vadd.f32 0.0, %v4908
  %4910 = vmatmul.f32.gmra.mxu0 %v4885
  %v4911 = vpop.f32.mrf.mxu0
  %v4912 = vadd.f32 0.0, %v4911
  %4913 = vmatmul.f32.gmra.mxu0 %v4887
  %v4914 = vpop.f32.mrf.mxu0
  %v4915 = vadd.f32 0.0, %v4914
  %4916 = vmatmul.f32.gmra.mxu0 %v4889
  %v4917 = vpop.f32.mrf.mxu0
  %v4918 = vadd.f32 0.0, %v4917
  %4919 = vdwg.mxu0
  %4920 = vmatpush.msra.mxu0 0.0
  %4921 = vmatpush.msra.mxu0 0.0
  %4922 = vmatpush.msra.mxu0 0.0
  %4923 = vmatpush.msra.mxu0 0.0
  %4924 = vmatpush.msra.mxu0 0.0
  %4925 = vmatpush.msra.mxu0 0.0
  %4926 = vmatpush.msra.mxu0 0.0
  %4927 = vmatpush.msra.mxu0 0.0
  %4928 = vmatpush.msra.mxu0 0.0
  %4929 = vmatpush.msra.mxu0 0.0
  %4930 = vmatpush.msra.mxu0 0.0
  %4931 = vmatpush.msra.mxu0 0.0
  %4932 = vmatpush.msra.mxu0 0.0
  %4933 = vmatpush.msra.mxu0 0.0
  %4934 = vmatpush.msra.mxu0 %v4860
  %4935 = vmatpush.msra.mxu0 %v4852
  %4936 = vmatmul.f32.gmra.mxu0 %v4883
  %v4937 = vpop.f32.mrf.mxu0
  %v4938 = vadd.f32 0.0, %v4937
  %4939 = vmatmul.f32.gmra.mxu0 %v4885
  %v4940 = vpop.f32.mrf.mxu0
  %v4941 = vadd.f32 0.0, %v4940
  %4942 = vmatmul.f32.gmra.mxu0 %v4887
  %v4943 = vpop.f32.mrf.mxu0
  %v4944 = vadd.f32 0.0, %v4943
  %4945 = vmatmul.f32.gmra.mxu0 %v4889
  %v4946 = vpop.f32.mrf.mxu0
  %v4947 = vadd.f32 0.0, %v4946
  %4948 = vdwg.mxu0
  %4949 = vmatpush.msra.mxu0 0.0
  %4950 = vmatpush.msra.mxu0 0.0
  %4951 = vmatpush.msra.mxu0 0.0
  %4952 = vmatpush.msra.mxu0 0.0
  %4953 = vmatpush.msra.mxu0 0.0
  %4954 = vmatpush.msra.mxu0 0.0
  %4955 = vmatpush.msra.mxu0 0.0
  %4956 = vmatpush.msra.mxu0 0.0
  %4957 = vmatpush.msra.mxu0 0.0
  %4958 = vmatpush.msra.mxu0 0.0
  %4959 = vmatpush.msra.mxu0 0.0
  %4960 = vmatpush.msra.mxu0 0.0
  %4961 = vmatpush.msra.mxu0 0.0
  %4962 = vmatpush.msra.mxu0 0.0
  %4963 = vmatpush.msra.mxu0 %v4861
  %4964 = vmatpush.msra.mxu0 %v4853
  %4965 = vmatmul.f32.gmra.mxu0 %v4883
  %v4966 = vpop.f32.mrf.mxu0
  %v4967 = vadd.f32 0.0, %v4966
  %4968 = vmatmul.f32.gmra.mxu0 %v4885
  %v4969 = vpop.f32.mrf.mxu0
  %v4970 = vadd.f32 0.0, %v4969
  %4971 = vmatmul.f32.gmra.mxu0 %v4887
  %v4972 = vpop.f32.mrf.mxu0
  %v4973 = vadd.f32 0.0, %v4972
  %4974 = vmatmul.f32.gmra.mxu0 %v4889
  %v4975 = vpop.f32.mrf.mxu0
  %v4976 = vadd.f32 0.0, %v4975
  %4977 = vdwg.mxu0
  %4978 = vmatpush.msra.mxu0 0.0
  %4979 = vmatpush.msra.mxu0 0.0
  %4980 = vmatpush.msra.mxu0 0.0
  %4981 = vmatpush.msra.mxu0 0.0
  %4982 = vmatpush.msra.mxu0 0.0
  %4983 = vmatpush.msra.mxu0 0.0
  %4984 = vmatpush.msra.mxu0 0.0
  %4985 = vmatpush.msra.mxu0 0.0
  %4986 = vmatpush.msra.mxu0 0.0
  %4987 = vmatpush.msra.mxu0 0.0
  %4988 = vmatpush.msra.mxu0 0.0
  %4989 = vmatpush.msra.mxu0 0.0
  %4990 = vmatpush.msra.mxu0 0.0
  %4991 = vmatpush.msra.mxu0 0.0
  %4992 = vmatpush.msra.mxu0 %v4862
  %4993 = vmatpush.msra.mxu0 %v4854
  %4994 = vmatmul.f32.gmra.mxu0 %v4883
  %v4995 = vpop.f32.mrf.mxu0
  %v4996 = vadd.f32 0.0, %v4995
  %4997 = vmatmul.f32.gmra.mxu0 %v4885
  %v4998 = vpop.f32.mrf.mxu0
  %v4999 = vadd.f32 0.0, %v4998
  %5000 = vmatmul.f32.gmra.mxu0 %v4887
  %v5001 = vpop.f32.mrf.mxu0
  %v5002 = vadd.f32 0.0, %v5001
  %5003 = vmatmul.f32.gmra.mxu0 %v4889
  %v5004 = vpop.f32.mrf.mxu0
  %v5005 = vadd.f32 0.0, %v5004
  %5006 = vdwg.mxu0
  %5007 = vmatpush.msra.mxu0 0.0
  %5008 = vmatpush.msra.mxu0 0.0
  %5009 = vmatpush.msra.mxu0 0.0
  %5010 = vmatpush.msra.mxu0 0.0
  %5011 = vmatpush.msra.mxu0 0.0
  %5012 = vmatpush.msra.mxu0 0.0
  %5013 = vmatpush.msra.mxu0 0.0
  %5014 = vmatpush.msra.mxu0 0.0
  %5015 = vmatpush.msra.mxu0 0.0
  %5016 = vmatpush.msra.mxu0 0.0
  %5017 = vmatpush.msra.mxu0 0.0
  %5018 = vmatpush.msra.mxu0 0.0
  %5019 = vmatpush.msra.mxu0 0.0
  %5020 = vmatpush.msra.mxu0 0.0
  %5021 = vmatpush.msra.mxu0 %v4863
  %5022 = vmatpush.msra.mxu0 %v4855
  %5023 = vmatmul.f32.gmra.mxu0 %v4883
  %v5024 = vpop.f32.mrf.mxu0
  %v5025 = vadd.f32 0.0, %v5024
  %5026 = vmatmul.f32.gmra.mxu0 %v4885
  %v5027 = vpop.f32.mrf.mxu0
  %v5028 = vadd.f32 0.0, %v5027
  %5029 = vmatmul.f32.gmra.mxu0 %v4887
  %v5030 = vpop.f32.mrf.mxu0
  %v5031 = vadd.f32 0.0, %v5030
  %5032 = vmatmul.f32.gmra.mxu0 %v4889
  %v5033 = vpop.f32.mrf.mxu0
  %v5034 = vadd.f32 0.0, %v5033
  %5035 = vdwg.mxu0
  %5036 = vmatpush.msra.mxu0 0.0
  %5037 = vmatpush.msra.mxu0 0.0
  %5038 = vmatpush.msra.mxu0 0.0
  %5039 = vmatpush.msra.mxu0 0.0
  %5040 = vmatpush.msra.mxu0 0.0
  %5041 = vmatpush.msra.mxu0 0.0
  %5042 = vmatpush.msra.mxu0 0.0
  %5043 = vmatpush.msra.mxu0 0.0
  %5044 = vmatpush.msra.mxu0 0.0
  %5045 = vmatpush.msra.mxu0 0.0
  %5046 = vmatpush.msra.mxu0 0.0
  %5047 = vmatpush.msra.mxu0 0.0
  %5048 = vmatpush.msra.mxu0 0.0
  %5049 = vmatpush.msra.mxu0 0.0
  %5050 = vmatpush.msra.mxu0 %v4864
  %5051 = vmatpush.msra.mxu0 %v4856
  %5052 = vmatmul.f32.gmra.mxu0 %v4883
  %v5053 = vpop.f32.mrf.mxu0
  %v5054 = vadd.f32 0.0, %v5053
  %5055 = vmatmul.f32.gmra.mxu0 %v4885
  %v5056 = vpop.f32.mrf.mxu0
  %v5057 = vadd.f32 0.0, %v5056
  %5058 = vmatmul.f32.gmra.mxu0 %v4887
  %v5059 = vpop.f32.mrf.mxu0
  %v5060 = vadd.f32 0.0, %v5059
  %5061 = vmatmul.f32.gmra.mxu0 %v4889
  %v5062 = vpop.f32.mrf.mxu0
  %v5063 = vadd.f32 0.0, %v5062
  %5064 = vdwg.mxu0
  %5065 = vmatpush.msra.mxu0 0.0
  %5066 = vmatpush.msra.mxu0 0.0
  %5067 = vmatpush.msra.mxu0 0.0
  %5068 = vmatpush.msra.mxu0 0.0
  %5069 = vmatpush.msra.mxu0 0.0
  %5070 = vmatpush.msra.mxu0 0.0
  %5071 = vmatpush.msra.mxu0 0.0
  %5072 = vmatpush.msra.mxu0 0.0
  %5073 = vmatpush.msra.mxu0 0.0
  %5074 = vmatpush.msra.mxu0 0.0
  %5075 = vmatpush.msra.mxu0 0.0
  %5076 = vmatpush.msra.mxu0 0.0
  %5077 = vmatpush.msra.mxu0 0.0
  %5078 = vmatpush.msra.mxu0 0.0
  %5079 = vmatpush.msra.mxu0 %v4865
  %5080 = vmatpush.msra.mxu0 %v4857
  %5081 = vmatmul.f32.gmra.mxu0 %v4883
  %v5082 = vpop.f32.mrf.mxu0
  %v5083 = vadd.f32 0.0, %v5082
  %5084 = vmatmul.f32.gmra.mxu0 %v4885
  %v5085 = vpop.f32.mrf.mxu0
  %v5086 = vadd.f32 0.0, %v5085
  %5087 = vmatmul.f32.gmra.mxu0 %v4887
  %v5088 = vpop.f32.mrf.mxu0
  %v5089 = vadd.f32 0.0, %v5088
  %5090 = vmatmul.f32.gmra.mxu0 %v4889
  %v5091 = vpop.f32.mrf.mxu0
  %v5092 = vadd.f32 0.0, %v5091
  %5093 = vdwg.mxu0
  %5094 = vmatpush.msra.mxu0 0.0
  %5095 = vmatpush.msra.mxu0 0.0
  %5096 = vmatpush.msra.mxu0 0.0
  %5097 = vmatpush.msra.mxu0 0.0
  %5098 = vmatpush.msra.mxu0 0.0
  %5099 = vmatpush.msra.mxu0 0.0
  %5100 = vmatpush.msra.mxu0 0.0
  %5101 = vmatpush.msra.mxu0 0.0
  %5102 = vmatpush.msra.mxu0 0.0
  %5103 = vmatpush.msra.mxu0 0.0
  %5104 = vmatpush.msra.mxu0 0.0
  %5105 = vmatpush.msra.mxu0 0.0
  %5106 = vmatpush.msra.mxu0 0.0
  %5107 = vmatpush.msra.mxu0 0.0
  %5108 = vmatpush.msra.mxu0 %v4866
  %5109 = vmatpush.msra.mxu0 %v4858
  %5110 = vmatmul.f32.gmra.mxu0 %v4883
  %v5111 = vpop.f32.mrf.mxu0
  %v5112 = vadd.f32 0.0, %v5111
  %5113 = vmatmul.f32.gmra.mxu0 %v4885
  %v5114 = vpop.f32.mrf.mxu0
  %v5115 = vadd.f32 0.0, %v5114
  %5116 = vmatmul.f32.gmra.mxu0 %v4887
  %v5117 = vpop.f32.mrf.mxu0
  %v5118 = vadd.f32 0.0, %v5117
  %5119 = vmatmul.f32.gmra.mxu0 %v4889
  %v5120 = vpop.f32.mrf.mxu0
  %v5121 = vadd.f32 0.0, %v5120
  %5122 = vdwg.mxu0
  %v5123 = vadd.f32 %v4707, %v4909
  %v5124 = vadd.f32 %v4708, %v4938
  %v5125 = vadd.f32 %v4709, %v4967
  %v5126 = vadd.f32 %v4710, %v4996
  %v5127 = vadd.f32 %v4711, %v5025
  %v5128 = vadd.f32 %v4712, %v5054
  %v5129 = vadd.f32 %v4713, %v5083
  %v5130 = vadd.f32 %v4714, %v5112
  %v5131 = vadd.f32 %v4715, %v4912
  %v5132 = vadd.f32 %v4716, %v4941
  %v5133 = vadd.f32 %v4717, %v4970
  %v5134 = vadd.f32 %v4718, %v4999
  %v5135 = vadd.f32 %v4719, %v5028
  %v5136 = vadd.f32 %v4720, %v5057
  %v5137 = vadd.f32 %v4721, %v5086
  %v5138 = vadd.f32 %v4722, %v5115
  %v5139 = vadd.f32 %v4723, %v4915
  %v5140 = vadd.f32 %v4724, %v4944
  %v5141 = vadd.f32 %v4725, %v4973
  %v5142 = vadd.f32 %v4726, %v5002
  %v5143 = vadd.f32 %v4727, %v5031
  %v5144 = vadd.f32 %v4728, %v5060
  %v5145 = vadd.f32 %v4729, %v5089
  %v5146 = vadd.f32 %v4730, %v5118
  %v5147 = vadd.f32 %v4731, %v4918
  %v5148 = vadd.f32 %v4732, %v4947
  %v5149 = vadd.f32 %v4733, %v4976
  %v5150 = vadd.f32 %v4734, %v5005
  %v5151 = vadd.f32 %v4735, %v5034
  %v5152 = vadd.f32 %v4736, %v5063
  %v5153 = vadd.f32 %v4737, %v5092
  %v5154 = vadd.f32 %v4738, %v5121
  %5155 = vrot.lane.b32.xlu0 %v93, 64
  %v5156 = vpop.permute.xlu0 %5155
  %5157 = vrot.lane.b32.xlu0 %v94, 64
  %v5158 = vpop.permute.xlu0 %5157
  %5159 = vrot.lane.b32.xlu0 %v95, 64
  %v5160 = vpop.permute.xlu0 %5159
  %5161 = vrot.lane.b32.xlu0 %v96, 64
  %v5162 = vpop.permute.xlu0 %5161
  %5163 = vrot.lane.b32.xlu0 %v97, 64
  %v5164 = vpop.permute.xlu0 %5163
  %5165 = vrot.lane.b32.xlu0 %v98, 64
  %v5166 = vpop.permute.xlu0 %5165
  %5167 = vrot.lane.b32.xlu0 %v99, 64
  %v5168 = vpop.permute.xlu0 %5167
  %5169 = vrot.lane.b32.xlu0 %v100, 64
  %v5170 = vpop.permute.xlu0 %5169
  %v5171 = vsel %vm1892, %v5156, %v5158
  %v5172 = vsel %vm1892, %v5158, %v5160
  %v5173 = vsel %vm1892, %v5160, %v5162
  %v5174 = vsel %vm1892, %v5162, %v5164
  %v5175 = vsel %vm1892, %v5164, %v5166
  %v5176 = vsel %vm1892, %v5166, %v5168
  %v5177 = vsel %vm1892, %v5168, %v5170
  %v5187 = vmul.f32 %v2942, %v5156
  %v5188 = vmul.f32 %v2943, %v5171
  %v5189 = vmul.f32 %v2944, %v5172
  %v5190 = vmul.f32 %v2945, %v5173
  %v5191 = vmul.f32 %v2946, %v5174
  %v5192 = vmul.f32 %v2947, %v5175
  %v5193 = vmul.f32 %v2948, %v5176
  %v5194 = vmul.f32 %v2949, %v5177
  %v5195 = vmul.f32 %v2978, %v5170
  %v5196 = vmul.f32 %v2950, %v5156
  %v5197 = vmul.f32 %v2951, %v5171
  %v5198 = vmul.f32 %v2952, %v5172
  %v5199 = vmul.f32 %v2953, %v5173
  %v5200 = vmul.f32 %v2954, %v5174
  %v5201 = vmul.f32 %v2955, %v5175
  %v5202 = vmul.f32 %v2956, %v5176
  %v5203 = vmul.f32 %v2957, %v5177
  %v5204 = vmul.f32 %v2979, %v5170
  %5205 = vrot.lane.b32.xlu0 %v2974, 32
  %v5206 = vpop.permute.xlu0 %5205
  %5207 = vrot.lane.b32.xlu0 %v2975, 32
  %v5208 = vpop.permute.xlu0 %5207
  %5209 = vrot.lane.b32.xlu0 %v2976, 32
  %v5210 = vpop.permute.xlu0 %5209
  %5211 = vrot.lane.b32.xlu0 %v2977, 32
  %v5212 = vpop.permute.xlu0 %5211
  %5231 = vrot.lane.b32.xlu0 %v5187, 64
  %v5232 = vpop.permute.xlu0 %5231
  %5233 = vrot.lane.b32.xlu0 %v5188, 64
  %v5234 = vpop.permute.xlu0 %5233
  %5235 = vrot.lane.b32.xlu0 %v5189, 64
  %v5236 = vpop.permute.xlu0 %5235
  %5237 = vrot.lane.b32.xlu0 %v5190, 64
  %v5238 = vpop.permute.xlu0 %5237
  %5239 = vrot.lane.b32.xlu0 %v5191, 64
  %v5240 = vpop.permute.xlu0 %5239
  %5241 = vrot.lane.b32.xlu0 %v5192, 64
  %v5242 = vpop.permute.xlu0 %5241
  %5243 = vrot.lane.b32.xlu0 %v5193, 64
  %v5244 = vpop.permute.xlu0 %5243
  %5245 = vrot.lane.b32.xlu0 %v5194, 64
  %v5246 = vpop.permute.xlu0 %5245
  %5247 = vrot.lane.b32.xlu0 %v5195, 64
  %v5248 = vpop.permute.xlu0 %5247
  %5249 = vrot.lane.b32.xlu0 %v5196, 64
  %v5250 = vpop.permute.xlu0 %5249
  %5251 = vrot.lane.b32.xlu0 %v5197, 64
  %v5252 = vpop.permute.xlu0 %5251
  %5253 = vrot.lane.b32.xlu0 %v5198, 64
  %v5254 = vpop.permute.xlu0 %5253
  %5255 = vrot.lane.b32.xlu0 %v5199, 64
  %v5256 = vpop.permute.xlu0 %5255
  %5257 = vrot.lane.b32.xlu0 %v5200, 64
  %v5258 = vpop.permute.xlu0 %5257
  %5259 = vrot.lane.b32.xlu0 %v5201, 64
  %v5260 = vpop.permute.xlu0 %5259
  %5261 = vrot.lane.b32.xlu0 %v5202, 64
  %v5262 = vpop.permute.xlu0 %5261
  %5263 = vrot.lane.b32.xlu0 %v5203, 64
  %v5264 = vpop.permute.xlu0 %5263
  %5265 = vrot.lane.b32.xlu0 %v5204, 64
  %v5266 = vpop.permute.xlu0 %5265
  %v5267 = vsel %vm1892, %v5232, %v5234
  %v5268 = vsel %vm1892, %v5234, %v5236
  %v5269 = vsel %vm1892, %v5236, %v5238
  %v5270 = vsel %vm1892, %v5238, %v5240
  %v5271 = vsel %vm1892, %v5240, %v5242
  %v5272 = vsel %vm1892, %v5242, %v5244
  %v5273 = vsel %vm1892, %v5244, %v5246
  %v5274 = vsel %vm1892, %v5246, %v5248
  %v5275 = vsel %vm1892, %v5250, %v5252
  %v5276 = vsel %vm1892, %v5252, %v5254
  %v5277 = vsel %vm1892, %v5254, %v5256
  %v5278 = vsel %vm1892, %v5256, %v5258
  %v5279 = vsel %vm1892, %v5258, %v5260
  %v5280 = vsel %vm1892, %v5260, %v5262
  %v5281 = vsel %vm1892, %v5262, %v5264
  %v5282 = vsel %vm1892, %v5264, %v5266
  %v5299 = vsel %vm3078, %v5206, 0
  %v5301 = vsel %vm3078, %v5208, 0
  %v5303 = vsel %vm3078, %v5210, 0
  %v5305 = vsel %vm3078, %v5212, 0
  %5307 = vmatpush.msra.mxu0 0.0
  %5308 = vmatpush.msra.mxu0 0.0
  %5309 = vmatpush.msra.mxu0 0.0
  %5310 = vmatpush.msra.mxu0 0.0
  %5311 = vmatpush.msra.mxu0 0.0
  %5312 = vmatpush.msra.mxu0 0.0
  %5313 = vmatpush.msra.mxu0 0.0
  %5314 = vmatpush.msra.mxu0 0.0
  %5315 = vmatpush.msra.mxu0 0.0
  %5316 = vmatpush.msra.mxu0 0.0
  %5317 = vmatpush.msra.mxu0 0.0
  %5318 = vmatpush.msra.mxu0 0.0
  %5319 = vmatpush.msra.mxu0 0.0
  %5320 = vmatpush.msra.mxu0 0.0
  %5321 = vmatpush.msra.mxu0 %v5275
  %5322 = vmatpush.msra.mxu0 %v5267
  %5323 = vmatmul.f32.gmra.mxu0 %v5299
  %v5324 = vpop.f32.mrf.mxu0
  %v5325 = vadd.f32 0.0, %v5324
  %5326 = vmatmul.f32.gmra.mxu0 %v5301
  %v5327 = vpop.f32.mrf.mxu0
  %v5328 = vadd.f32 0.0, %v5327
  %5329 = vmatmul.f32.gmra.mxu0 %v5303
  %v5330 = vpop.f32.mrf.mxu0
  %v5331 = vadd.f32 0.0, %v5330
  %5332 = vmatmul.f32.gmra.mxu0 %v5305
  %v5333 = vpop.f32.mrf.mxu0
  %v5334 = vadd.f32 0.0, %v5333
  %5335 = vdwg.mxu0
  %5336 = vmatpush.msra.mxu0 0.0
  %5337 = vmatpush.msra.mxu0 0.0
  %5338 = vmatpush.msra.mxu0 0.0
  %5339 = vmatpush.msra.mxu0 0.0
  %5340 = vmatpush.msra.mxu0 0.0
  %5341 = vmatpush.msra.mxu0 0.0
  %5342 = vmatpush.msra.mxu0 0.0
  %5343 = vmatpush.msra.mxu0 0.0
  %5344 = vmatpush.msra.mxu0 0.0
  %5345 = vmatpush.msra.mxu0 0.0
  %5346 = vmatpush.msra.mxu0 0.0
  %5347 = vmatpush.msra.mxu0 0.0
  %5348 = vmatpush.msra.mxu0 0.0
  %5349 = vmatpush.msra.mxu0 0.0
  %5350 = vmatpush.msra.mxu0 %v5276
  %5351 = vmatpush.msra.mxu0 %v5268
  %5352 = vmatmul.f32.gmra.mxu0 %v5299
  %v5353 = vpop.f32.mrf.mxu0
  %v5354 = vadd.f32 0.0, %v5353
  %5355 = vmatmul.f32.gmra.mxu0 %v5301
  %v5356 = vpop.f32.mrf.mxu0
  %v5357 = vadd.f32 0.0, %v5356
  %5358 = vmatmul.f32.gmra.mxu0 %v5303
  %v5359 = vpop.f32.mrf.mxu0
  %v5360 = vadd.f32 0.0, %v5359
  %5361 = vmatmul.f32.gmra.mxu0 %v5305
  %v5362 = vpop.f32.mrf.mxu0
  %v5363 = vadd.f32 0.0, %v5362
  %5364 = vdwg.mxu0
  %5365 = vmatpush.msra.mxu0 0.0
  %5366 = vmatpush.msra.mxu0 0.0
  %5367 = vmatpush.msra.mxu0 0.0
  %5368 = vmatpush.msra.mxu0 0.0
  %5369 = vmatpush.msra.mxu0 0.0
  %5370 = vmatpush.msra.mxu0 0.0
  %5371 = vmatpush.msra.mxu0 0.0
  %5372 = vmatpush.msra.mxu0 0.0
  %5373 = vmatpush.msra.mxu0 0.0
  %5374 = vmatpush.msra.mxu0 0.0
  %5375 = vmatpush.msra.mxu0 0.0
  %5376 = vmatpush.msra.mxu0 0.0
  %5377 = vmatpush.msra.mxu0 0.0
  %5378 = vmatpush.msra.mxu0 0.0
  %5379 = vmatpush.msra.mxu0 %v5277
  %5380 = vmatpush.msra.mxu0 %v5269
  %5381 = vmatmul.f32.gmra.mxu0 %v5299
  %v5382 = vpop.f32.mrf.mxu0
  %v5383 = vadd.f32 0.0, %v5382
  %5384 = vmatmul.f32.gmra.mxu0 %v5301
  %v5385 = vpop.f32.mrf.mxu0
  %v5386 = vadd.f32 0.0, %v5385
  %5387 = vmatmul.f32.gmra.mxu0 %v5303
  %v5388 = vpop.f32.mrf.mxu0
  %v5389 = vadd.f32 0.0, %v5388
  %5390 = vmatmul.f32.gmra.mxu0 %v5305
  %v5391 = vpop.f32.mrf.mxu0
  %v5392 = vadd.f32 0.0, %v5391
  %5393 = vdwg.mxu0
  %5394 = vmatpush.msra.mxu0 0.0
  %5395 = vmatpush.msra.mxu0 0.0
  %5396 = vmatpush.msra.mxu0 0.0
  %5397 = vmatpush.msra.mxu0 0.0
  %5398 = vmatpush.msra.mxu0 0.0
  %5399 = vmatpush.msra.mxu0 0.0
  %5400 = vmatpush.msra.mxu0 0.0
  %5401 = vmatpush.msra.mxu0 0.0
  %5402 = vmatpush.msra.mxu0 0.0
  %5403 = vmatpush.msra.mxu0 0.0
  %5404 = vmatpush.msra.mxu0 0.0
  %5405 = vmatpush.msra.mxu0 0.0
  %5406 = vmatpush.msra.mxu0 0.0
  %5407 = vmatpush.msra.mxu0 0.0
  %5408 = vmatpush.msra.mxu0 %v5278
  %5409 = vmatpush.msra.mxu0 %v5270
  %5410 = vmatmul.f32.gmra.mxu0 %v5299
  %v5411 = vpop.f32.mrf.mxu0
  %v5412 = vadd.f32 0.0, %v5411
  %5413 = vmatmul.f32.gmra.mxu0 %v5301
  %v5414 = vpop.f32.mrf.mxu0
  %v5415 = vadd.f32 0.0, %v5414
  %5416 = vmatmul.f32.gmra.mxu0 %v5303
  %v5417 = vpop.f32.mrf.mxu0
  %v5418 = vadd.f32 0.0, %v5417
  %5419 = vmatmul.f32.gmra.mxu0 %v5305
  %v5420 = vpop.f32.mrf.mxu0
  %v5421 = vadd.f32 0.0, %v5420
  %5422 = vdwg.mxu0
  %5423 = vmatpush.msra.mxu0 0.0
  %5424 = vmatpush.msra.mxu0 0.0
  %5425 = vmatpush.msra.mxu0 0.0
  %5426 = vmatpush.msra.mxu0 0.0
  %5427 = vmatpush.msra.mxu0 0.0
  %5428 = vmatpush.msra.mxu0 0.0
  %5429 = vmatpush.msra.mxu0 0.0
  %5430 = vmatpush.msra.mxu0 0.0
  %5431 = vmatpush.msra.mxu0 0.0
  %5432 = vmatpush.msra.mxu0 0.0
  %5433 = vmatpush.msra.mxu0 0.0
  %5434 = vmatpush.msra.mxu0 0.0
  %5435 = vmatpush.msra.mxu0 0.0
  %5436 = vmatpush.msra.mxu0 0.0
  %5437 = vmatpush.msra.mxu0 %v5279
  %5438 = vmatpush.msra.mxu0 %v5271
  %5439 = vmatmul.f32.gmra.mxu0 %v5299
  %v5440 = vpop.f32.mrf.mxu0
  %v5441 = vadd.f32 0.0, %v5440
  %5442 = vmatmul.f32.gmra.mxu0 %v5301
  %v5443 = vpop.f32.mrf.mxu0
  %v5444 = vadd.f32 0.0, %v5443
  %5445 = vmatmul.f32.gmra.mxu0 %v5303
  %v5446 = vpop.f32.mrf.mxu0
  %v5447 = vadd.f32 0.0, %v5446
  %5448 = vmatmul.f32.gmra.mxu0 %v5305
  %v5449 = vpop.f32.mrf.mxu0
  %v5450 = vadd.f32 0.0, %v5449
  %5451 = vdwg.mxu0
  %5452 = vmatpush.msra.mxu0 0.0
  %5453 = vmatpush.msra.mxu0 0.0
  %5454 = vmatpush.msra.mxu0 0.0
  %5455 = vmatpush.msra.mxu0 0.0
  %5456 = vmatpush.msra.mxu0 0.0
  %5457 = vmatpush.msra.mxu0 0.0
  %5458 = vmatpush.msra.mxu0 0.0
  %5459 = vmatpush.msra.mxu0 0.0
  %5460 = vmatpush.msra.mxu0 0.0
  %5461 = vmatpush.msra.mxu0 0.0
  %5462 = vmatpush.msra.mxu0 0.0
  %5463 = vmatpush.msra.mxu0 0.0
  %5464 = vmatpush.msra.mxu0 0.0
  %5465 = vmatpush.msra.mxu0 0.0
  %5466 = vmatpush.msra.mxu0 %v5280
  %5467 = vmatpush.msra.mxu0 %v5272
  %5468 = vmatmul.f32.gmra.mxu0 %v5299
  %v5469 = vpop.f32.mrf.mxu0
  %v5470 = vadd.f32 0.0, %v5469
  %5471 = vmatmul.f32.gmra.mxu0 %v5301
  %v5472 = vpop.f32.mrf.mxu0
  %v5473 = vadd.f32 0.0, %v5472
  %5474 = vmatmul.f32.gmra.mxu0 %v5303
  %v5475 = vpop.f32.mrf.mxu0
  %v5476 = vadd.f32 0.0, %v5475
  %5477 = vmatmul.f32.gmra.mxu0 %v5305
  %v5478 = vpop.f32.mrf.mxu0
  %v5479 = vadd.f32 0.0, %v5478
  %5480 = vdwg.mxu0
  %5481 = vmatpush.msra.mxu0 0.0
  %5482 = vmatpush.msra.mxu0 0.0
  %5483 = vmatpush.msra.mxu0 0.0
  %5484 = vmatpush.msra.mxu0 0.0
  %5485 = vmatpush.msra.mxu0 0.0
  %5486 = vmatpush.msra.mxu0 0.0
  %5487 = vmatpush.msra.mxu0 0.0
  %5488 = vmatpush.msra.mxu0 0.0
  %5489 = vmatpush.msra.mxu0 0.0
  %5490 = vmatpush.msra.mxu0 0.0
  %5491 = vmatpush.msra.mxu0 0.0
  %5492 = vmatpush.msra.mxu0 0.0
  %5493 = vmatpush.msra.mxu0 0.0
  %5494 = vmatpush.msra.mxu0 0.0
  %5495 = vmatpush.msra.mxu0 %v5281
  %5496 = vmatpush.msra.mxu0 %v5273
  %5497 = vmatmul.f32.gmra.mxu0 %v5299
  %v5498 = vpop.f32.mrf.mxu0
  %v5499 = vadd.f32 0.0, %v5498
  %5500 = vmatmul.f32.gmra.mxu0 %v5301
  %v5501 = vpop.f32.mrf.mxu0
  %v5502 = vadd.f32 0.0, %v5501
  %5503 = vmatmul.f32.gmra.mxu0 %v5303
  %v5504 = vpop.f32.mrf.mxu0
  %v5505 = vadd.f32 0.0, %v5504
  %5506 = vmatmul.f32.gmra.mxu0 %v5305
  %v5507 = vpop.f32.mrf.mxu0
  %v5508 = vadd.f32 0.0, %v5507
  %5509 = vdwg.mxu0
  %5510 = vmatpush.msra.mxu0 0.0
  %5511 = vmatpush.msra.mxu0 0.0
  %5512 = vmatpush.msra.mxu0 0.0
  %5513 = vmatpush.msra.mxu0 0.0
  %5514 = vmatpush.msra.mxu0 0.0
  %5515 = vmatpush.msra.mxu0 0.0
  %5516 = vmatpush.msra.mxu0 0.0
  %5517 = vmatpush.msra.mxu0 0.0
  %5518 = vmatpush.msra.mxu0 0.0
  %5519 = vmatpush.msra.mxu0 0.0
  %5520 = vmatpush.msra.mxu0 0.0
  %5521 = vmatpush.msra.mxu0 0.0
  %5522 = vmatpush.msra.mxu0 0.0
  %5523 = vmatpush.msra.mxu0 0.0
  %5524 = vmatpush.msra.mxu0 %v5282
  %5525 = vmatpush.msra.mxu0 %v5274
  %5526 = vmatmul.f32.gmra.mxu0 %v5299
  %v5527 = vpop.f32.mrf.mxu0
  %v5528 = vadd.f32 0.0, %v5527
  %5529 = vmatmul.f32.gmra.mxu0 %v5301
  %v5530 = vpop.f32.mrf.mxu0
  %v5531 = vadd.f32 0.0, %v5530
  %5532 = vmatmul.f32.gmra.mxu0 %v5303
  %v5533 = vpop.f32.mrf.mxu0
  %v5534 = vadd.f32 0.0, %v5533
  %5535 = vmatmul.f32.gmra.mxu0 %v5305
  %v5536 = vpop.f32.mrf.mxu0
  %v5537 = vadd.f32 0.0, %v5536
  %5538 = vdwg.mxu0
  %v5539 = vadd.f32 %v5123, %v5325
  %v5540 = vadd.f32 %v5124, %v5354
  %v5541 = vadd.f32 %v5125, %v5383
  %v5542 = vadd.f32 %v5126, %v5412
  %v5543 = vadd.f32 %v5127, %v5441
  %v5544 = vadd.f32 %v5128, %v5470
  %v5545 = vadd.f32 %v5129, %v5499
  %v5546 = vadd.f32 %v5130, %v5528
  %v5547 = vadd.f32 %v5131, %v5328
  %v5548 = vadd.f32 %v5132, %v5357
  %v5549 = vadd.f32 %v5133, %v5386
  %v5550 = vadd.f32 %v5134, %v5415
  %v5551 = vadd.f32 %v5135, %v5444
  %v5552 = vadd.f32 %v5136, %v5473
  %v5553 = vadd.f32 %v5137, %v5502
  %v5554 = vadd.f32 %v5138, %v5531
  %v5555 = vadd.f32 %v5139, %v5331
  %v5556 = vadd.f32 %v5140, %v5360
  %v5557 = vadd.f32 %v5141, %v5389
  %v5558 = vadd.f32 %v5142, %v5418
  %v5559 = vadd.f32 %v5143, %v5447
  %v5560 = vadd.f32 %v5144, %v5476
  %v5561 = vadd.f32 %v5145, %v5505
  %v5562 = vadd.f32 %v5146, %v5534
  %v5563 = vadd.f32 %v5147, %v5334
  %v5564 = vadd.f32 %v5148, %v5363
  %v5565 = vadd.f32 %v5149, %v5392
  %v5566 = vadd.f32 %v5150, %v5421
  %v5567 = vadd.f32 %v5151, %v5450
  %v5568 = vadd.f32 %v5152, %v5479
  %v5569 = vadd.f32 %v5153, %v5508
  %v5570 = vadd.f32 %v5154, %v5537
  %5571 = vrot.lane.b32.xlu0 %v2974, 16
  %v5572 = vpop.permute.xlu0 %5571
  %5573 = vrot.lane.b32.xlu0 %v2975, 16
  %v5574 = vpop.permute.xlu0 %5573
  %5575 = vrot.lane.b32.xlu0 %v2976, 16
  %v5576 = vpop.permute.xlu0 %5575
  %5577 = vrot.lane.b32.xlu0 %v2977, 16
  %v5578 = vpop.permute.xlu0 %5577
  %5579 = vrot.lane.b32.xlu0 %v2942, 63
  %v5580 = vpop.permute.xlu0 %5579
  %5581 = vrot.lane.b32.xlu0 %v2943, 63
  %v5582 = vpop.permute.xlu0 %5581
  %5583 = vrot.lane.b32.xlu0 %v2944, 63
  %v5584 = vpop.permute.xlu0 %5583
  %5585 = vrot.lane.b32.xlu0 %v2945, 63
  %v5586 = vpop.permute.xlu0 %5585
  %5587 = vrot.lane.b32.xlu0 %v2946, 63
  %v5588 = vpop.permute.xlu0 %5587
  %5589 = vrot.lane.b32.xlu0 %v2947, 63
  %v5590 = vpop.permute.xlu0 %5589
  %5591 = vrot.lane.b32.xlu0 %v2948, 63
  %v5592 = vpop.permute.xlu0 %5591
  %5593 = vrot.lane.b32.xlu0 %v2949, 63
  %v5594 = vpop.permute.xlu0 %5593
  %5595 = vrot.lane.b32.xlu0 %v2978, 63
  %v5596 = vpop.permute.xlu0 %5595
  %5597 = vrot.lane.b32.xlu0 %v2950, 63
  %v5598 = vpop.permute.xlu0 %5597
  %5599 = vrot.lane.b32.xlu0 %v2951, 63
  %v5600 = vpop.permute.xlu0 %5599
  %5601 = vrot.lane.b32.xlu0 %v2952, 63
  %v5602 = vpop.permute.xlu0 %5601
  %5603 = vrot.lane.b32.xlu0 %v2953, 63
  %v5604 = vpop.permute.xlu0 %5603
  %5605 = vrot.lane.b32.xlu0 %v2954, 63
  %v5606 = vpop.permute.xlu0 %5605
  %5607 = vrot.lane.b32.xlu0 %v2955, 63
  %v5608 = vpop.permute.xlu0 %5607
  %5609 = vrot.lane.b32.xlu0 %v2956, 63
  %v5610 = vpop.permute.xlu0 %5609
  %5611 = vrot.lane.b32.xlu0 %v2957, 63
  %v5612 = vpop.permute.xlu0 %5611
  %5613 = vrot.lane.b32.xlu0 %v2979, 63
  %v5614 = vpop.permute.xlu0 %5613
  %v5615 = vsel %vm2239, %v5580, %v5582
  %v5616 = vsel %vm2239, %v5582, %v5584
  %v5617 = vsel %vm2239, %v5584, %v5586
  %v5618 = vsel %vm2239, %v5586, %v5588
  %v5619 = vsel %vm2239, %v5588, %v5590
  %v5620 = vsel %vm2239, %v5590, %v5592
  %v5621 = vsel %vm2239, %v5592, %v5594
  %v5622 = vsel %vm2239, %v5594, %v5596
  %v5623 = vsel %vm2239, %v5598, %v5600
  %v5624 = vsel %vm2239, %v5600, %v5602
  %v5625 = vsel %vm2239, %v5602, %v5604
  %v5626 = vsel %vm2239, %v5604, %v5606
  %v5627 = vsel %vm2239, %v5606, %v5608
  %v5628 = vsel %vm2239, %v5608, %v5610
  %v5629 = vsel %vm2239, %v5610, %v5612
  %v5630 = vsel %vm2239, %v5612, %v5614
  %v5647 = vsel %vm3078, %v5572, 0
  %v5649 = vsel %vm3078, %v5574, 0
  %v5651 = vsel %vm3078, %v5576, 0
  %v5653 = vsel %vm3078, %v5578, 0
  %5655 = vmatpush.msra.mxu0 0.0
  %5656 = vmatpush.msra.mxu0 0.0
  %5657 = vmatpush.msra.mxu0 0.0
  %5658 = vmatpush.msra.mxu0 0.0
  %5659 = vmatpush.msra.mxu0 0.0
  %5660 = vmatpush.msra.mxu0 0.0
  %5661 = vmatpush.msra.mxu0 0.0
  %5662 = vmatpush.msra.mxu0 0.0
  %5663 = vmatpush.msra.mxu0 0.0
  %5664 = vmatpush.msra.mxu0 0.0
  %5665 = vmatpush.msra.mxu0 0.0
  %5666 = vmatpush.msra.mxu0 0.0
  %5667 = vmatpush.msra.mxu0 0.0
  %5668 = vmatpush.msra.mxu0 0.0
  %5669 = vmatpush.msra.mxu0 %v5623
  %5670 = vmatpush.msra.mxu0 %v5615
  %5671 = vmatmul.f32.gmra.mxu0 %v5647
  %v5672 = vpop.f32.mrf.mxu0
  %v5673 = vadd.f32 0.0, %v5672
  %5674 = vmatmul.f32.gmra.mxu0 %v5649
  %v5675 = vpop.f32.mrf.mxu0
  %v5676 = vadd.f32 0.0, %v5675
  %5677 = vmatmul.f32.gmra.mxu0 %v5651
  %v5678 = vpop.f32.mrf.mxu0
  %v5679 = vadd.f32 0.0, %v5678
  %5680 = vmatmul.f32.gmra.mxu0 %v5653
  %v5681 = vpop.f32.mrf.mxu0
  %v5682 = vadd.f32 0.0, %v5681
  %5683 = vdwg.mxu0
  %5684 = vmatpush.msra.mxu0 0.0
  %5685 = vmatpush.msra.mxu0 0.0
  %5686 = vmatpush.msra.mxu0 0.0
  %5687 = vmatpush.msra.mxu0 0.0
  %5688 = vmatpush.msra.mxu0 0.0
  %5689 = vmatpush.msra.mxu0 0.0
  %5690 = vmatpush.msra.mxu0 0.0
  %5691 = vmatpush.msra.mxu0 0.0
  %5692 = vmatpush.msra.mxu0 0.0
  %5693 = vmatpush.msra.mxu0 0.0
  %5694 = vmatpush.msra.mxu0 0.0
  %5695 = vmatpush.msra.mxu0 0.0
  %5696 = vmatpush.msra.mxu0 0.0
  %5697 = vmatpush.msra.mxu0 0.0
  %5698 = vmatpush.msra.mxu0 %v5624
  %5699 = vmatpush.msra.mxu0 %v5616
  %5700 = vmatmul.f32.gmra.mxu0 %v5647
  %v5701 = vpop.f32.mrf.mxu0
  %v5702 = vadd.f32 0.0, %v5701
  %5703 = vmatmul.f32.gmra.mxu0 %v5649
  %v5704 = vpop.f32.mrf.mxu0
  %v5705 = vadd.f32 0.0, %v5704
  %5706 = vmatmul.f32.gmra.mxu0 %v5651
  %v5707 = vpop.f32.mrf.mxu0
  %v5708 = vadd.f32 0.0, %v5707
  %5709 = vmatmul.f32.gmra.mxu0 %v5653
  %v5710 = vpop.f32.mrf.mxu0
  %v5711 = vadd.f32 0.0, %v5710
  %5712 = vdwg.mxu0
  %5713 = vmatpush.msra.mxu0 0.0
  %5714 = vmatpush.msra.mxu0 0.0
  %5715 = vmatpush.msra.mxu0 0.0
  %5716 = vmatpush.msra.mxu0 0.0
  %5717 = vmatpush.msra.mxu0 0.0
  %5718 = vmatpush.msra.mxu0 0.0
  %5719 = vmatpush.msra.mxu0 0.0
  %5720 = vmatpush.msra.mxu0 0.0
  %5721 = vmatpush.msra.mxu0 0.0
  %5722 = vmatpush.msra.mxu0 0.0
  %5723 = vmatpush.msra.mxu0 0.0
  %5724 = vmatpush.msra.mxu0 0.0
  %5725 = vmatpush.msra.mxu0 0.0
  %5726 = vmatpush.msra.mxu0 0.0
  %5727 = vmatpush.msra.mxu0 %v5625
  %5728 = vmatpush.msra.mxu0 %v5617
  %5729 = vmatmul.f32.gmra.mxu0 %v5647
  %v5730 = vpop.f32.mrf.mxu0
  %v5731 = vadd.f32 0.0, %v5730
  %5732 = vmatmul.f32.gmra.mxu0 %v5649
  %v5733 = vpop.f32.mrf.mxu0
  %v5734 = vadd.f32 0.0, %v5733
  %5735 = vmatmul.f32.gmra.mxu0 %v5651
  %v5736 = vpop.f32.mrf.mxu0
  %v5737 = vadd.f32 0.0, %v5736
  %5738 = vmatmul.f32.gmra.mxu0 %v5653
  %v5739 = vpop.f32.mrf.mxu0
  %v5740 = vadd.f32 0.0, %v5739
  %5741 = vdwg.mxu0
  %5742 = vmatpush.msra.mxu0 0.0
  %5743 = vmatpush.msra.mxu0 0.0
  %5744 = vmatpush.msra.mxu0 0.0
  %5745 = vmatpush.msra.mxu0 0.0
  %5746 = vmatpush.msra.mxu0 0.0
  %5747 = vmatpush.msra.mxu0 0.0
  %5748 = vmatpush.msra.mxu0 0.0
  %5749 = vmatpush.msra.mxu0 0.0
  %5750 = vmatpush.msra.mxu0 0.0
  %5751 = vmatpush.msra.mxu0 0.0
  %5752 = vmatpush.msra.mxu0 0.0
  %5753 = vmatpush.msra.mxu0 0.0
  %5754 = vmatpush.msra.mxu0 0.0
  %5755 = vmatpush.msra.mxu0 0.0
  %5756 = vmatpush.msra.mxu0 %v5626
  %5757 = vmatpush.msra.mxu0 %v5618
  %5758 = vmatmul.f32.gmra.mxu0 %v5647
  %v5759 = vpop.f32.mrf.mxu0
  %v5760 = vadd.f32 0.0, %v5759
  %5761 = vmatmul.f32.gmra.mxu0 %v5649
  %v5762 = vpop.f32.mrf.mxu0
  %v5763 = vadd.f32 0.0, %v5762
  %5764 = vmatmul.f32.gmra.mxu0 %v5651
  %v5765 = vpop.f32.mrf.mxu0
  %v5766 = vadd.f32 0.0, %v5765
  %5767 = vmatmul.f32.gmra.mxu0 %v5653
  %v5768 = vpop.f32.mrf.mxu0
  %v5769 = vadd.f32 0.0, %v5768
  %5770 = vdwg.mxu0
  %5771 = vmatpush.msra.mxu0 0.0
  %5772 = vmatpush.msra.mxu0 0.0
  %5773 = vmatpush.msra.mxu0 0.0
  %5774 = vmatpush.msra.mxu0 0.0
  %5775 = vmatpush.msra.mxu0 0.0
  %5776 = vmatpush.msra.mxu0 0.0
  %5777 = vmatpush.msra.mxu0 0.0
  %5778 = vmatpush.msra.mxu0 0.0
  %5779 = vmatpush.msra.mxu0 0.0
  %5780 = vmatpush.msra.mxu0 0.0
  %5781 = vmatpush.msra.mxu0 0.0
  %5782 = vmatpush.msra.mxu0 0.0
  %5783 = vmatpush.msra.mxu0 0.0
  %5784 = vmatpush.msra.mxu0 0.0
  %5785 = vmatpush.msra.mxu0 %v5627
  %5786 = vmatpush.msra.mxu0 %v5619
  %5787 = vmatmul.f32.gmra.mxu0 %v5647
  %v5788 = vpop.f32.mrf.mxu0
  %v5789 = vadd.f32 0.0, %v5788
  %5790 = vmatmul.f32.gmra.mxu0 %v5649
  %v5791 = vpop.f32.mrf.mxu0
  %v5792 = vadd.f32 0.0, %v5791
  %5793 = vmatmul.f32.gmra.mxu0 %v5651
  %v5794 = vpop.f32.mrf.mxu0
  %v5795 = vadd.f32 0.0, %v5794
  %5796 = vmatmul.f32.gmra.mxu0 %v5653
  %v5797 = vpop.f32.mrf.mxu0
  %v5798 = vadd.f32 0.0, %v5797
  %5799 = vdwg.mxu0
  %5800 = vmatpush.msra.mxu0 0.0
  %5801 = vmatpush.msra.mxu0 0.0
  %5802 = vmatpush.msra.mxu0 0.0
  %5803 = vmatpush.msra.mxu0 0.0
  %5804 = vmatpush.msra.mxu0 0.0
  %5805 = vmatpush.msra.mxu0 0.0
  %5806 = vmatpush.msra.mxu0 0.0
  %5807 = vmatpush.msra.mxu0 0.0
  %5808 = vmatpush.msra.mxu0 0.0
  %5809 = vmatpush.msra.mxu0 0.0
  %5810 = vmatpush.msra.mxu0 0.0
  %5811 = vmatpush.msra.mxu0 0.0
  %5812 = vmatpush.msra.mxu0 0.0
  %5813 = vmatpush.msra.mxu0 0.0
  %5814 = vmatpush.msra.mxu0 %v5628
  %5815 = vmatpush.msra.mxu0 %v5620
  %5816 = vmatmul.f32.gmra.mxu0 %v5647
  %v5817 = vpop.f32.mrf.mxu0
  %v5818 = vadd.f32 0.0, %v5817
  %5819 = vmatmul.f32.gmra.mxu0 %v5649
  %v5820 = vpop.f32.mrf.mxu0
  %v5821 = vadd.f32 0.0, %v5820
  %5822 = vmatmul.f32.gmra.mxu0 %v5651
  %v5823 = vpop.f32.mrf.mxu0
  %v5824 = vadd.f32 0.0, %v5823
  %5825 = vmatmul.f32.gmra.mxu0 %v5653
  %v5826 = vpop.f32.mrf.mxu0
  %v5827 = vadd.f32 0.0, %v5826
  %5828 = vdwg.mxu0
  %5829 = vmatpush.msra.mxu0 0.0
  %5830 = vmatpush.msra.mxu0 0.0
  %5831 = vmatpush.msra.mxu0 0.0
  %5832 = vmatpush.msra.mxu0 0.0
  %5833 = vmatpush.msra.mxu0 0.0
  %5834 = vmatpush.msra.mxu0 0.0
  %5835 = vmatpush.msra.mxu0 0.0
  %5836 = vmatpush.msra.mxu0 0.0
  %5837 = vmatpush.msra.mxu0 0.0
  %5838 = vmatpush.msra.mxu0 0.0
  %5839 = vmatpush.msra.mxu0 0.0
  %5840 = vmatpush.msra.mxu0 0.0
  %5841 = vmatpush.msra.mxu0 0.0
  %5842 = vmatpush.msra.mxu0 0.0
  %5843 = vmatpush.msra.mxu0 %v5629
  %5844 = vmatpush.msra.mxu0 %v5621
  %5845 = vmatmul.f32.gmra.mxu0 %v5647
  %v5846 = vpop.f32.mrf.mxu0
  %v5847 = vadd.f32 0.0, %v5846
  %5848 = vmatmul.f32.gmra.mxu0 %v5649
  %v5849 = vpop.f32.mrf.mxu0
  %v5850 = vadd.f32 0.0, %v5849
  %5851 = vmatmul.f32.gmra.mxu0 %v5651
  %v5852 = vpop.f32.mrf.mxu0
  %v5853 = vadd.f32 0.0, %v5852
  %5854 = vmatmul.f32.gmra.mxu0 %v5653
  %v5855 = vpop.f32.mrf.mxu0
  %v5856 = vadd.f32 0.0, %v5855
  %5857 = vdwg.mxu0
  %5858 = vmatpush.msra.mxu0 0.0
  %5859 = vmatpush.msra.mxu0 0.0
  %5860 = vmatpush.msra.mxu0 0.0
  %5861 = vmatpush.msra.mxu0 0.0
  %5862 = vmatpush.msra.mxu0 0.0
  %5863 = vmatpush.msra.mxu0 0.0
  %5864 = vmatpush.msra.mxu0 0.0
  %5865 = vmatpush.msra.mxu0 0.0
  %5866 = vmatpush.msra.mxu0 0.0
  %5867 = vmatpush.msra.mxu0 0.0
  %5868 = vmatpush.msra.mxu0 0.0
  %5869 = vmatpush.msra.mxu0 0.0
  %5870 = vmatpush.msra.mxu0 0.0
  %5871 = vmatpush.msra.mxu0 0.0
  %5872 = vmatpush.msra.mxu0 %v5630
  %5873 = vmatpush.msra.mxu0 %v5622
  %5874 = vmatmul.f32.gmra.mxu0 %v5647
  %v5875 = vpop.f32.mrf.mxu0
  %v5876 = vadd.f32 0.0, %v5875
  %5877 = vmatmul.f32.gmra.mxu0 %v5649
  %v5878 = vpop.f32.mrf.mxu0
  %v5879 = vadd.f32 0.0, %v5878
  %5880 = vmatmul.f32.gmra.mxu0 %v5651
  %v5881 = vpop.f32.mrf.mxu0
  %v5882 = vadd.f32 0.0, %v5881
  %5883 = vmatmul.f32.gmra.mxu0 %v5653
  %v5884 = vpop.f32.mrf.mxu0
  %v5885 = vadd.f32 0.0, %v5884
  %5886 = vdwg.mxu0
  %v5887 = vadd.f32 %v5539, %v5673
  %v5888 = vadd.f32 %v5540, %v5702
  %v5889 = vadd.f32 %v5541, %v5731
  %v5890 = vadd.f32 %v5542, %v5760
  %v5891 = vadd.f32 %v5543, %v5789
  %v5892 = vadd.f32 %v5544, %v5818
  %v5893 = vadd.f32 %v5545, %v5847
  %v5894 = vadd.f32 %v5546, %v5876
  %v5895 = vadd.f32 %v5547, %v5676
  %v5896 = vadd.f32 %v5548, %v5705
  %v5897 = vadd.f32 %v5549, %v5734
  %v5898 = vadd.f32 %v5550, %v5763
  %v5899 = vadd.f32 %v5551, %v5792
  %v5900 = vadd.f32 %v5552, %v5821
  %v5901 = vadd.f32 %v5553, %v5850
  %v5902 = vadd.f32 %v5554, %v5879
  %v5903 = vadd.f32 %v5555, %v5679
  %v5904 = vadd.f32 %v5556, %v5708
  %v5905 = vadd.f32 %v5557, %v5737
  %v5906 = vadd.f32 %v5558, %v5766
  %v5907 = vadd.f32 %v5559, %v5795
  %v5908 = vadd.f32 %v5560, %v5824
  %v5909 = vadd.f32 %v5561, %v5853
  %v5910 = vadd.f32 %v5562, %v5882
  %v5911 = vadd.f32 %v5563, %v5682
  %v5912 = vadd.f32 %v5564, %v5711
  %v5913 = vadd.f32 %v5565, %v5740
  %v5914 = vadd.f32 %v5566, %v5769
  %v5915 = vadd.f32 %v5567, %v5798
  %v5916 = vadd.f32 %v5568, %v5827
  %v5917 = vadd.f32 %v5569, %v5856
  %v5918 = vadd.f32 %v5570, %v5885
  %5919 = vrot.lane.b32.xlu0 %v117, 66
  %v5920 = vpop.permute.xlu0 %5919
  %5921 = vrot.lane.b32.xlu0 %v118, 66
  %v5922 = vpop.permute.xlu0 %5921
  %5923 = vrot.lane.b32.xlu0 %v119, 66
  %v5924 = vpop.permute.xlu0 %5923
  %5925 = vrot.lane.b32.xlu0 %v120, 66
  %v5926 = vpop.permute.xlu0 %5925
  %5927 = vrot.lane.b32.xlu0 %v121, 66
  %v5928 = vpop.permute.xlu0 %5927
  %5929 = vrot.lane.b32.xlu0 %v122, 66
  %v5930 = vpop.permute.xlu0 %5929
  %5931 = vrot.lane.b32.xlu0 %v123, 66
  %v5932 = vpop.permute.xlu0 %5931
  %5933 = vrot.lane.b32.xlu0 %v124, 66
  %v5934 = vpop.permute.xlu0 %5933
  %v5935 = vsel %vm2485, %v5920, %v5922
  %v5936 = vsel %vm2485, %v5922, %v5924
  %v5937 = vsel %vm2485, %v5924, %v5926
  %v5938 = vsel %vm2485, %v5926, %v5928
  %v5939 = vsel %vm2485, %v5928, %v5930
  %v5940 = vsel %vm2485, %v5930, %v5932
  %v5941 = vsel %vm2485, %v5932, %v5934
  %v5951 = vmul.f32 %v2942, %v5920
  %v5952 = vmul.f32 %v2943, %v5935
  %v5953 = vmul.f32 %v2944, %v5936
  %v5954 = vmul.f32 %v2945, %v5937
  %v5955 = vmul.f32 %v2946, %v5938
  %v5956 = vmul.f32 %v2947, %v5939
  %v5957 = vmul.f32 %v2948, %v5940
  %v5958 = vmul.f32 %v2949, %v5941
  %v5959 = vmul.f32 %v2978, %v5934
  %v5960 = vmul.f32 %v2950, %v5920
  %v5961 = vmul.f32 %v2951, %v5935
  %v5962 = vmul.f32 %v2952, %v5936
  %v5963 = vmul.f32 %v2953, %v5937
  %v5964 = vmul.f32 %v2954, %v5938
  %v5965 = vmul.f32 %v2955, %v5939
  %v5966 = vmul.f32 %v2956, %v5940
  %v5967 = vmul.f32 %v2957, %v5941
  %v5968 = vmul.f32 %v2979, %v5934
  %v5969 = vld [vmem:[%s3 + $0x8] sm:$0xff]
  %v5970 = vld [vmem:[%s3 + $0x18] sm:$0xff]
  %v5971 = vld [vmem:[%s3 + $0x28] sm:$0xff]
  %v5972 = vld [vmem:[%s3 + $0x38] sm:$0xff]
  %5991 = vrot.lane.b32.xlu0 %v5951, 62
  %v5992 = vpop.permute.xlu0 %5991
  %5993 = vrot.lane.b32.xlu0 %v5952, 62
  %v5994 = vpop.permute.xlu0 %5993
  %5995 = vrot.lane.b32.xlu0 %v5953, 62
  %v5996 = vpop.permute.xlu0 %5995
  %5997 = vrot.lane.b32.xlu0 %v5954, 62
  %v5998 = vpop.permute.xlu0 %5997
  %5999 = vrot.lane.b32.xlu0 %v5955, 62
  %v6000 = vpop.permute.xlu0 %5999
  %6001 = vrot.lane.b32.xlu0 %v5956, 62
  %v6002 = vpop.permute.xlu0 %6001
  %6003 = vrot.lane.b32.xlu0 %v5957, 62
  %v6004 = vpop.permute.xlu0 %6003
  %6005 = vrot.lane.b32.xlu0 %v5958, 62
  %v6006 = vpop.permute.xlu0 %6005
  %6007 = vrot.lane.b32.xlu0 %v5959, 62
  %v6008 = vpop.permute.xlu0 %6007
  %6009 = vrot.lane.b32.xlu0 %v5960, 62
  %v6010 = vpop.permute.xlu0 %6009
  %6011 = vrot.lane.b32.xlu0 %v5961, 62
  %v6012 = vpop.permute.xlu0 %6011
  %6013 = vrot.lane.b32.xlu0 %v5962, 62
  %v6014 = vpop.permute.xlu0 %6013
  %6015 = vrot.lane.b32.xlu0 %v5963, 62
  %v6016 = vpop.permute.xlu0 %6015
  %6017 = vrot.lane.b32.xlu0 %v5964, 62
  %v6018 = vpop.permute.xlu0 %6017
  %6019 = vrot.lane.b32.xlu0 %v5965, 62
  %v6020 = vpop.permute.xlu0 %6019
  %6021 = vrot.lane.b32.xlu0 %v5966, 62
  %v6022 = vpop.permute.xlu0 %6021
  %6023 = vrot.lane.b32.xlu0 %v5967, 62
  %v6024 = vpop.permute.xlu0 %6023
  %6025 = vrot.lane.b32.xlu0 %v5968, 62
  %v6026 = vpop.permute.xlu0 %6025
  %v6027 = vsel %vm2551, %v5992, %v5994
  %v6028 = vsel %vm2551, %v5994, %v5996
  %v6029 = vsel %vm2551, %v5996, %v5998
  %v6030 = vsel %vm2551, %v5998, %v6000
  %v6031 = vsel %vm2551, %v6000, %v6002
  %v6032 = vsel %vm2551, %v6002, %v6004
  %v6033 = vsel %vm2551, %v6004, %v6006
  %v6034 = vsel %vm2551, %v6006, %v6008
  %v6035 = vsel %vm2551, %v6010, %v6012
  %v6036 = vsel %vm2551, %v6012, %v6014
  %v6037 = vsel %vm2551, %v6014, %v6016
  %v6038 = vsel %vm2551, %v6016, %v6018
  %v6039 = vsel %vm2551, %v6018, %v6020
  %v6040 = vsel %vm2551, %v6020, %v6022
  %v6041 = vsel %vm2551, %v6022, %v6024
  %v6042 = vsel %vm2551, %v6024, %v6026
  %v6060 = vsel %vm3078, %v5969, 0
  %v6063 = vsel %vm3078, %v5970, 0
  %v6066 = vsel %vm3078, %v5971, 0
  %v6069 = vsel %vm3078, %v5972, 0
  %6071 = vmatpush.msra.mxu0 0.0
  %6072 = vmatpush.msra.mxu0 0.0
  %6073 = vmatpush.msra.mxu0 0.0
  %6074 = vmatpush.msra.mxu0 0.0
  %6075 = vmatpush.msra.mxu0 0.0
  %6076 = vmatpush.msra.mxu0 0.0
  %6077 = vmatpush.msra.mxu0 0.0
  %6078 = vmatpush.msra.mxu0 0.0
  %6079 = vmatpush.msra.mxu0 0.0
  %6080 = vmatpush.msra.mxu0 0.0
  %6081 = vmatpush.msra.mxu0 0.0
  %6082 = vmatpush.msra.mxu0 0.0
  %6083 = vmatpush.msra.mxu0 0.0
  %6084 = vmatpush.msra.mxu0 0.0
  %6085 = vmatpush.msra.mxu0 %v6035
  %6086 = vmatpush.msra.mxu0 %v6027
  %6087 = vmatmul.f32.gmra.mxu0 %v6060
  %v6088 = vpop.f32.mrf.mxu0
  %v6089 = vadd.f32 0.0, %v6088
  %6090 = vmatmul.f32.gmra.mxu0 %v6063
  %v6091 = vpop.f32.mrf.mxu0
  %v6092 = vadd.f32 0.0, %v6091
  %6093 = vmatmul.f32.gmra.mxu0 %v6066
  %v6094 = vpop.f32.mrf.mxu0
  %v6095 = vadd.f32 0.0, %v6094
  %6096 = vmatmul.f32.gmra.mxu0 %v6069
  %v6097 = vpop.f32.mrf.mxu0
  %v6098 = vadd.f32 0.0, %v6097
  %6099 = vdwg.mxu0
  %6100 = vmatpush.msra.mxu0 0.0
  %6101 = vmatpush.msra.mxu0 0.0
  %6102 = vmatpush.msra.mxu0 0.0
  %6103 = vmatpush.msra.mxu0 0.0
  %6104 = vmatpush.msra.mxu0 0.0
  %6105 = vmatpush.msra.mxu0 0.0
  %6106 = vmatpush.msra.mxu0 0.0
  %6107 = vmatpush.msra.mxu0 0.0
  %6108 = vmatpush.msra.mxu0 0.0
  %6109 = vmatpush.msra.mxu0 0.0
  %6110 = vmatpush.msra.mxu0 0.0
  %6111 = vmatpush.msra.mxu0 0.0
  %6112 = vmatpush.msra.mxu0 0.0
  %6113 = vmatpush.msra.mxu0 0.0
  %6114 = vmatpush.msra.mxu0 %v6036
  %6115 = vmatpush.msra.mxu0 %v6028
  %6116 = vmatmul.f32.gmra.mxu0 %v6060
  %v6117 = vpop.f32.mrf.mxu0
  %v6118 = vadd.f32 0.0, %v6117
  %6119 = vmatmul.f32.gmra.mxu0 %v6063
  %v6120 = vpop.f32.mrf.mxu0
  %v6121 = vadd.f32 0.0, %v6120
  %6122 = vmatmul.f32.gmra.mxu0 %v6066
  %v6123 = vpop.f32.mrf.mxu0
  %v6124 = vadd.f32 0.0, %v6123
  %6125 = vmatmul.f32.gmra.mxu0 %v6069
  %v6126 = vpop.f32.mrf.mxu0
  %v6127 = vadd.f32 0.0, %v6126
  %6128 = vdwg.mxu0
  %6129 = vmatpush.msra.mxu0 0.0
  %6130 = vmatpush.msra.mxu0 0.0
  %6131 = vmatpush.msra.mxu0 0.0
  %6132 = vmatpush.msra.mxu0 0.0
  %6133 = vmatpush.msra.mxu0 0.0
  %6134 = vmatpush.msra.mxu0 0.0
  %6135 = vmatpush.msra.mxu0 0.0
  %6136 = vmatpush.msra.mxu0 0.0
  %6137 = vmatpush.msra.mxu0 0.0
  %6138 = vmatpush.msra.mxu0 0.0
  %6139 = vmatpush.msra.mxu0 0.0
  %6140 = vmatpush.msra.mxu0 0.0
  %6141 = vmatpush.msra.mxu0 0.0
  %6142 = vmatpush.msra.mxu0 0.0
  %6143 = vmatpush.msra.mxu0 %v6037
  %6144 = vmatpush.msra.mxu0 %v6029
  %6145 = vmatmul.f32.gmra.mxu0 %v6060
  %v6146 = vpop.f32.mrf.mxu0
  %v6147 = vadd.f32 0.0, %v6146
  %6148 = vmatmul.f32.gmra.mxu0 %v6063
  %v6149 = vpop.f32.mrf.mxu0
  %v6150 = vadd.f32 0.0, %v6149
  %6151 = vmatmul.f32.gmra.mxu0 %v6066
  %v6152 = vpop.f32.mrf.mxu0
  %v6153 = vadd.f32 0.0, %v6152
  %6154 = vmatmul.f32.gmra.mxu0 %v6069
  %v6155 = vpop.f32.mrf.mxu0
  %v6156 = vadd.f32 0.0, %v6155
  %6157 = vdwg.mxu0
  %6158 = vmatpush.msra.mxu0 0.0
  %6159 = vmatpush.msra.mxu0 0.0
  %6160 = vmatpush.msra.mxu0 0.0
  %6161 = vmatpush.msra.mxu0 0.0
  %6162 = vmatpush.msra.mxu0 0.0
  %6163 = vmatpush.msra.mxu0 0.0
  %6164 = vmatpush.msra.mxu0 0.0
  %6165 = vmatpush.msra.mxu0 0.0
  %6166 = vmatpush.msra.mxu0 0.0
  %6167 = vmatpush.msra.mxu0 0.0
  %6168 = vmatpush.msra.mxu0 0.0
  %6169 = vmatpush.msra.mxu0 0.0
  %6170 = vmatpush.msra.mxu0 0.0
  %6171 = vmatpush.msra.mxu0 0.0
  %6172 = vmatpush.msra.mxu0 %v6038
  %6173 = vmatpush.msra.mxu0 %v6030
  %6174 = vmatmul.f32.gmra.mxu0 %v6060
  %v6175 = vpop.f32.mrf.mxu0
  %v6176 = vadd.f32 0.0, %v6175
  %6177 = vmatmul.f32.gmra.mxu0 %v6063
  %v6178 = vpop.f32.mrf.mxu0
  %v6179 = vadd.f32 0.0, %v6178
  %6180 = vmatmul.f32.gmra.mxu0 %v6066
  %v6181 = vpop.f32.mrf.mxu0
  %v6182 = vadd.f32 0.0, %v6181
  %6183 = vmatmul.f32.gmra.mxu0 %v6069
  %v6184 = vpop.f32.mrf.mxu0
  %v6185 = vadd.f32 0.0, %v6184
  %6186 = vdwg.mxu0
  %6187 = vmatpush.msra.mxu0 0.0
  %6188 = vmatpush.msra.mxu0 0.0
  %6189 = vmatpush.msra.mxu0 0.0
  %6190 = vmatpush.msra.mxu0 0.0
  %6191 = vmatpush.msra.mxu0 0.0
  %6192 = vmatpush.msra.mxu0 0.0
  %6193 = vmatpush.msra.mxu0 0.0
  %6194 = vmatpush.msra.mxu0 0.0
  %6195 = vmatpush.msra.mxu0 0.0
  %6196 = vmatpush.msra.mxu0 0.0
  %6197 = vmatpush.msra.mxu0 0.0
  %6198 = vmatpush.msra.mxu0 0.0
  %6199 = vmatpush.msra.mxu0 0.0
  %6200 = vmatpush.msra.mxu0 0.0
  %6201 = vmatpush.msra.mxu0 %v6039
  %6202 = vmatpush.msra.mxu0 %v6031
  %6203 = vmatmul.f32.gmra.mxu0 %v6060
  %v6204 = vpop.f32.mrf.mxu0
  %v6205 = vadd.f32 0.0, %v6204
  %6206 = vmatmul.f32.gmra.mxu0 %v6063
  %v6207 = vpop.f32.mrf.mxu0
  %v6208 = vadd.f32 0.0, %v6207
  %6209 = vmatmul.f32.gmra.mxu0 %v6066
  %v6210 = vpop.f32.mrf.mxu0
  %v6211 = vadd.f32 0.0, %v6210
  %6212 = vmatmul.f32.gmra.mxu0 %v6069
  %v6213 = vpop.f32.mrf.mxu0
  %v6214 = vadd.f32 0.0, %v6213
  %6215 = vdwg.mxu0
  %6216 = vmatpush.msra.mxu0 0.0
  %6217 = vmatpush.msra.mxu0 0.0
  %6218 = vmatpush.msra.mxu0 0.0
  %6219 = vmatpush.msra.mxu0 0.0
  %6220 = vmatpush.msra.mxu0 0.0
  %6221 = vmatpush.msra.mxu0 0.0
  %6222 = vmatpush.msra.mxu0 0.0
  %6223 = vmatpush.msra.mxu0 0.0
  %6224 = vmatpush.msra.mxu0 0.0
  %6225 = vmatpush.msra.mxu0 0.0
  %6226 = vmatpush.msra.mxu0 0.0
  %6227 = vmatpush.msra.mxu0 0.0
  %6228 = vmatpush.msra.mxu0 0.0
  %6229 = vmatpush.msra.mxu0 0.0
  %6230 = vmatpush.msra.mxu0 %v6040
  %6231 = vmatpush.msra.mxu0 %v6032
  %6232 = vmatmul.f32.gmra.mxu0 %v6060
  %v6233 = vpop.f32.mrf.mxu0
  %v6234 = vadd.f32 0.0, %v6233
  %6235 = vmatmul.f32.gmra.mxu0 %v6063
  %v6236 = vpop.f32.mrf.mxu0
  %v6237 = vadd.f32 0.0, %v6236
  %6238 = vmatmul.f32.gmra.mxu0 %v6066
  %v6239 = vpop.f32.mrf.mxu0
  %v6240 = vadd.f32 0.0, %v6239
  %6241 = vmatmul.f32.gmra.mxu0 %v6069
  %v6242 = vpop.f32.mrf.mxu0
  %v6243 = vadd.f32 0.0, %v6242
  %6244 = vdwg.mxu0
  %6245 = vmatpush.msra.mxu0 0.0
  %6246 = vmatpush.msra.mxu0 0.0
  %6247 = vmatpush.msra.mxu0 0.0
  %6248 = vmatpush.msra.mxu0 0.0
  %6249 = vmatpush.msra.mxu0 0.0
  %6250 = vmatpush.msra.mxu0 0.0
  %6251 = vmatpush.msra.mxu0 0.0
  %6252 = vmatpush.msra.mxu0 0.0
  %6253 = vmatpush.msra.mxu0 0.0
  %6254 = vmatpush.msra.mxu0 0.0
  %6255 = vmatpush.msra.mxu0 0.0
  %6256 = vmatpush.msra.mxu0 0.0
  %6257 = vmatpush.msra.mxu0 0.0
  %6258 = vmatpush.msra.mxu0 0.0
  %6259 = vmatpush.msra.mxu0 %v6041
  %6260 = vmatpush.msra.mxu0 %v6033
  %6261 = vmatmul.f32.gmra.mxu0 %v6060
  %v6262 = vpop.f32.mrf.mxu0
  %v6263 = vadd.f32 0.0, %v6262
  %6264 = vmatmul.f32.gmra.mxu0 %v6063
  %v6265 = vpop.f32.mrf.mxu0
  %v6266 = vadd.f32 0.0, %v6265
  %6267 = vmatmul.f32.gmra.mxu0 %v6066
  %v6268 = vpop.f32.mrf.mxu0
  %v6269 = vadd.f32 0.0, %v6268
  %6270 = vmatmul.f32.gmra.mxu0 %v6069
  %v6271 = vpop.f32.mrf.mxu0
  %v6272 = vadd.f32 0.0, %v6271
  %6273 = vdwg.mxu0
  %6274 = vmatpush.msra.mxu0 0.0
  %6275 = vmatpush.msra.mxu0 0.0
  %6276 = vmatpush.msra.mxu0 0.0
  %6277 = vmatpush.msra.mxu0 0.0
  %6278 = vmatpush.msra.mxu0 0.0
  %6279 = vmatpush.msra.mxu0 0.0
  %6280 = vmatpush.msra.mxu0 0.0
  %6281 = vmatpush.msra.mxu0 0.0
  %6282 = vmatpush.msra.mxu0 0.0
  %6283 = vmatpush.msra.mxu0 0.0
  %6284 = vmatpush.msra.mxu0 0.0
  %6285 = vmatpush.msra.mxu0 0.0
  %6286 = vmatpush.msra.mxu0 0.0
  %6287 = vmatpush.msra.mxu0 0.0
  %6288 = vmatpush.msra.mxu0 %v6042
  %6289 = vmatpush.msra.mxu0 %v6034
  %6290 = vmatmul.f32.gmra.mxu0 %v6060
  %v6291 = vpop.f32.mrf.mxu0
  %v6292 = vadd.f32 0.0, %v6291
  %6293 = vmatmul.f32.gmra.mxu0 %v6063
  %v6294 = vpop.f32.mrf.mxu0
  %v6295 = vadd.f32 0.0, %v6294
  %6296 = vmatmul.f32.gmra.mxu0 %v6066
  %v6297 = vpop.f32.mrf.mxu0
  %v6298 = vadd.f32 0.0, %v6297
  %6299 = vmatmul.f32.gmra.mxu0 %v6069
  %v6300 = vpop.f32.mrf.mxu0
  %v6301 = vadd.f32 0.0, %v6300
  %6302 = vdwg.mxu0
  %v6303 = vadd.f32 %v5887, %v6089
  %v6304 = vadd.f32 %v5888, %v6118
  %v6305 = vadd.f32 %v5889, %v6147
  %v6306 = vadd.f32 %v5890, %v6176
  %v6307 = vadd.f32 %v5891, %v6205
  %v6308 = vadd.f32 %v5892, %v6234
  %v6309 = vadd.f32 %v5893, %v6263
  %v6310 = vadd.f32 %v5894, %v6292
  %v6311 = vadd.f32 %v5895, %v6092
  %v6312 = vadd.f32 %v5896, %v6121
  %v6313 = vadd.f32 %v5897, %v6150
  %v6314 = vadd.f32 %v5898, %v6179
  %v6315 = vadd.f32 %v5899, %v6208
  %v6316 = vadd.f32 %v5900, %v6237
  %v6317 = vadd.f32 %v5901, %v6266
  %v6318 = vadd.f32 %v5902, %v6295
  %v6319 = vadd.f32 %v5903, %v6095
  %v6320 = vadd.f32 %v5904, %v6124
  %v6321 = vadd.f32 %v5905, %v6153
  %v6322 = vadd.f32 %v5906, %v6182
  %v6323 = vadd.f32 %v5907, %v6211
  %v6324 = vadd.f32 %v5908, %v6240
  %v6325 = vadd.f32 %v5909, %v6269
  %v6326 = vadd.f32 %v5910, %v6298
  %v6327 = vadd.f32 %v5911, %v6098
  %v6328 = vadd.f32 %v5912, %v6127
  %v6329 = vadd.f32 %v5913, %v6156
  %v6330 = vadd.f32 %v5914, %v6185
  %v6331 = vadd.f32 %v5915, %v6214
  %v6332 = vadd.f32 %v5916, %v6243
  %v6333 = vadd.f32 %v5917, %v6272
  %v6334 = vadd.f32 %v5918, %v6301
  %v6335 = vld [vmem:[%s4] sm:$0xff]
  %v6336 = vld [vmem:[%s4 + $0x8] sm:$0xff]
  %v6337 = vld [vmem:[%s4 + $0x10] sm:$0xff]
  %v6338 = vld [vmem:[%s4 + $0x18] sm:$0xff]
  %6340 = vset.pattern.permute.xlu0 0
  %6341 = vperm.xlu0 %6340, %v6335
  %v6342 = vpop.permute.xlu0 %6341
  %6345 = vset.pattern.permute.xlu0 0
  %6346 = vperm.xlu0 %6345, %v6336
  %v6347 = vpop.permute.xlu0 %6346
  %6350 = vset.pattern.permute.xlu0 0
  %6351 = vperm.xlu0 %6350, %v6337
  %v6352 = vpop.permute.xlu0 %6351
  %6355 = vset.pattern.permute.xlu0 0
  %6356 = vperm.xlu0 %6355, %v6338
  %v6357 = vpop.permute.xlu0 %6356
  %v6359 = vadd.f32 %v6303, %v6342
  %v6360 = vadd.f32 %v6304, %v6342
  %v6361 = vadd.f32 %v6305, %v6342
  %v6362 = vadd.f32 %v6306, %v6342
  %v6363 = vadd.f32 %v6307, %v6342
  %v6364 = vadd.f32 %v6308, %v6342
  %v6365 = vadd.f32 %v6309, %v6342
  %v6366 = vadd.f32 %v6310, %v6342
  %v6367 = vadd.f32 %v6311, %v6347
  %v6368 = vadd.f32 %v6312, %v6347
  %v6369 = vadd.f32 %v6313, %v6347
  %v6370 = vadd.f32 %v6314, %v6347
  %v6371 = vadd.f32 %v6315, %v6347
  %v6372 = vadd.f32 %v6316, %v6347
  %v6373 = vadd.f32 %v6317, %v6347
  %v6374 = vadd.f32 %v6318, %v6347
  %v6375 = vadd.f32 %v6319, %v6352
  %v6376 = vadd.f32 %v6320, %v6352
  %v6377 = vadd.f32 %v6321, %v6352
  %v6378 = vadd.f32 %v6322, %v6352
  %v6379 = vadd.f32 %v6323, %v6352
  %v6380 = vadd.f32 %v6324, %v6352
  %v6381 = vadd.f32 %v6325, %v6352
  %v6382 = vadd.f32 %v6326, %v6352
  %v6383 = vadd.f32 %v6327, %v6357
  %v6384 = vadd.f32 %v6328, %v6357
  %v6385 = vadd.f32 %v6329, %v6357
  %v6386 = vadd.f32 %v6330, %v6357
  %v6387 = vadd.f32 %v6331, %v6357
  %v6388 = vadd.f32 %v6332, %v6357
  %v6389 = vadd.f32 %v6333, %v6357
  %v6390 = vadd.f32 %v6334, %v6357
  %v6391 = vmax.f32 %v6359, 0.0
  %v6392 = vmax.f32 %v6360, 0.0
  %v6393 = vmax.f32 %v6361, 0.0
  %v6394 = vmax.f32 %v6362, 0.0
  %v6395 = vmax.f32 %v6363, 0.0
  %v6396 = vmax.f32 %v6364, 0.0
  %v6397 = vmax.f32 %v6365, 0.0
  %v6398 = vmax.f32 %v6366, 0.0
  %v6399 = vmax.f32 %v6367, 0.0
  %v6400 = vmax.f32 %v6368, 0.0
  %v6401 = vmax.f32 %v6369, 0.0
  %v6402 = vmax.f32 %v6370, 0.0
  %v6403 = vmax.f32 %v6371, 0.0
  %v6404 = vmax.f32 %v6372, 0.0
  %v6405 = vmax.f32 %v6373, 0.0
  %v6406 = vmax.f32 %v6374, 0.0
  %v6407 = vmax.f32 %v6375, 0.0
  %v6408 = vmax.f32 %v6376, 0.0
  %v6409 = vmax.f32 %v6377, 0.0
  %v6410 = vmax.f32 %v6378, 0.0
  %v6411 = vmax.f32 %v6379, 0.0
  %v6412 = vmax.f32 %v6380, 0.0
  %v6413 = vmax.f32 %v6381, 0.0
  %v6414 = vmax.f32 %v6382, 0.0
  %v6415 = vmax.f32 %v6383, 0.0
  %v6416 = vmax.f32 %v6384, 0.0
  %v6417 = vmax.f32 %v6385, 0.0
  %v6418 = vmax.f32 %v6386, 0.0
  %v6419 = vmax.f32 %v6387, 0.0
  %v6420 = vmax.f32 %v6388, 0.0
  %v6421 = vmax.f32 %v6389, 0.0
  %v6422 = vmax.f32 %v6390, 0.0
  %6423 = vst [vmem:[%s8] sm:$0xff] %v6391
  %6424 = vst [vmem:[%s8 + $0x8] sm:$0xff] %v6392
  %6425 = vst [vmem:[%s8 + $0x10] sm:$0xff] %v6393
  %6426 = vst [vmem:[%s8 + $0x18] sm:$0xff] %v6394
  %6427 = vst [vmem:[%s8 + $0x20] sm:$0xff] %v6395
  %6428 = vst [vmem:[%s8 + $0x28] sm:$0xff] %v6396
  %6429 = vst [vmem:[%s8 + $0x30] sm:$0xff] %v6397
  %6430 = vst [vmem:[%s8 + $0x38] sm:$0xff] %v6398
  %6431 = vst [vmem:[%s8 + $0x40] sm:$0xff] %v6399
  %6432 = vst [vmem:[%s8 + $0x48] sm:$0xff] %v6400
  %6433 = vst [vmem:[%s8 + $0x50] sm:$0xff] %v6401
  %6434 = vst [vmem:[%s8 + $0x58] sm:$0xff] %v6402
  %6435 = vst [vmem:[%s8 + $0x60] sm:$0xff] %v6403
  %6436 = vst [vmem:[%s8 + $0x68] sm:$0xff] %v6404
  %6437 = vst [vmem:[%s8 + $0x70] sm:$0xff] %v6405
  %6438 = vst [vmem:[%s8 + $0x78] sm:$0xff] %v6406
  %6439 = vst [vmem:[%s8 + $0x80] sm:$0xff] %v6407
  %6440 = vst [vmem:[%s8 + $0x88] sm:$0xff] %v6408
  %6441 = vst [vmem:[%s8 + $0x90] sm:$0xff] %v6409
  %6442 = vst [vmem:[%s8 + $0x98] sm:$0xff] %v6410
  %6443 = vst [vmem:[%s8 + $0xa0] sm:$0xff] %v6411
  %6444 = vst [vmem:[%s8 + $0xa8] sm:$0xff] %v6412
  %6445 = vst [vmem:[%s8 + $0xb0] sm:$0xff] %v6413
  %6446 = vst [vmem:[%s8 + $0xb8] sm:$0xff] %v6414
  %6447 = vst [vmem:[%s8 + $0xc0] sm:$0xff] %v6415
  %6448 = vst [vmem:[%s8 + $0xc8] sm:$0xff] %v6416
  %6449 = vst [vmem:[%s8 + $0xd0] sm:$0xff] %v6417
  %6450 = vst [vmem:[%s8 + $0xd8] sm:$0xff] %v6418
  %6451 = vst [vmem:[%s8 + $0xe0] sm:$0xff] %v6419
  %6452 = vst [vmem:[%s8 + $0xe8] sm:$0xff] %v6420
  %6453 = vst [vmem:[%s8 + $0xf0] sm:$0xff] %v6421
  %6454 = vst [vmem:[%s8 + $0xf8] sm:$0xff] %v6422
  %v6455 = vld [vmem:[%s5] sm:$0x3]
  %v6456 = vld [vmem:[%s6] sm:$0x3]
  %6458 = vset.pattern.permute.xlu0 0
  %6459 = vperm.xlu0 %6458, %v6456
  %v6460 = vpop.permute.xlu0 %6459
  %v6463 = vsel %vm986, %v6455, 0
  %6465 = vmatpush.msra.mxu0 0.0
  %6466 = vmatpush.msra.mxu0 0.0
  %6467 = vmatpush.msra.mxu0 0.0
  %6468 = vmatpush.msra.mxu0 0.0
  %6469 = vmatpush.msra.mxu0 0.0
  %6470 = vmatpush.msra.mxu0 0.0
  %6471 = vmatpush.msra.mxu0 0.0
  %6472 = vmatpush.msra.mxu0 0.0
  %6473 = vmatpush.msra.mxu0 0.0
  %6474 = vmatpush.msra.mxu0 0.0
  %6475 = vmatpush.msra.mxu0 0.0
  %6476 = vmatpush.msra.mxu0 0.0
  %6477 = vmatpush.msra.mxu0 %v6415
  %6478 = vmatpush.msra.mxu0 %v6407
  %6479 = vmatpush.msra.mxu0 %v6399
  %6480 = vmatpush.msra.mxu0 %v6391
  %6481 = vmatmul.f32.gmra.mxu0 %v6463
  %v6482 = vpop.f32.mrf.mxu0
  %v6483 = vadd.f32 %v6460, %v6482
  %6484 = vdwg.mxu0
  %6485 = vmatpush.msra.mxu0 0.0
  %6486 = vmatpush.msra.mxu0 0.0
  %6487 = vmatpush.msra.mxu0 0.0
  %6488 = vmatpush.msra.mxu0 0.0
  %6489 = vmatpush.msra.mxu0 0.0
  %6490 = vmatpush.msra.mxu0 0.0
  %6491 = vmatpush.msra.mxu0 0.0
  %6492 = vmatpush.msra.mxu0 0.0
  %6493 = vmatpush.msra.mxu0 0.0
  %6494 = vmatpush.msra.mxu0 0.0
  %6495 = vmatpush.msra.mxu0 0.0
  %6496 = vmatpush.msra.mxu0 0.0
  %6497 = vmatpush.msra.mxu0 %v6416
  %6498 = vmatpush.msra.mxu0 %v6408
  %6499 = vmatpush.msra.mxu0 %v6400
  %6500 = vmatpush.msra.mxu0 %v6392
  %6501 = vmatmul.f32.gmra.mxu0 %v6463
  %v6502 = vpop.f32.mrf.mxu0
  %v6503 = vadd.f32 %v6460, %v6502
  %6504 = vdwg.mxu0
  %6505 = vmatpush.msra.mxu0 0.0
  %6506 = vmatpush.msra.mxu0 0.0
  %6507 = vmatpush.msra.mxu0 0.0
  %6508 = vmatpush.msra.mxu0 0.0
  %6509 = vmatpush.msra.mxu0 0.0
  %6510 = vmatpush.msra.mxu0 0.0
  %6511 = vmatpush.msra.mxu0 0.0
  %6512 = vmatpush.msra.mxu0 0.0
  %6513 = vmatpush.msra.mxu0 0.0
  %6514 = vmatpush.msra.mxu0 0.0
  %6515 = vmatpush.msra.mxu0 0.0
  %6516 = vmatpush.msra.mxu0 0.0
  %6517 = vmatpush.msra.mxu0 %v6417
  %6518 = vmatpush.msra.mxu0 %v6409
  %6519 = vmatpush.msra.mxu0 %v6401
  %6520 = vmatpush.msra.mxu0 %v6393
  %6521 = vmatmul.f32.gmra.mxu0 %v6463
  %v6522 = vpop.f32.mrf.mxu0
  %v6523 = vadd.f32 %v6460, %v6522
  %6524 = vdwg.mxu0
  %6525 = vmatpush.msra.mxu0 0.0
  %6526 = vmatpush.msra.mxu0 0.0
  %6527 = vmatpush.msra.mxu0 0.0
  %6528 = vmatpush.msra.mxu0 0.0
  %6529 = vmatpush.msra.mxu0 0.0
  %6530 = vmatpush.msra.mxu0 0.0
  %6531 = vmatpush.msra.mxu0 0.0
  %6532 = vmatpush.msra.mxu0 0.0
  %6533 = vmatpush.msra.mxu0 0.0
  %6534 = vmatpush.msra.mxu0 0.0
  %6535 = vmatpush.msra.mxu0 0.0
  %6536 = vmatpush.msra.mxu0 0.0
  %6537 = vmatpush.msra.mxu0 %v6418
  %6538 = vmatpush.msra.mxu0 %v6410
  %6539 = vmatpush.msra.mxu0 %v6402
  %6540 = vmatpush.msra.mxu0 %v6394
  %6541 = vmatmul.f32.gmra.mxu0 %v6463
  %v6542 = vpop.f32.mrf.mxu0
  %v6543 = vadd.f32 %v6460, %v6542
  %6544 = vdwg.mxu0
  %6545 = vmatpush.msra.mxu0 0.0
  %6546 = vmatpush.msra.mxu0 0.0
  %6547 = vmatpush.msra.mxu0 0.0
  %6548 = vmatpush.msra.mxu0 0.0
  %6549 = vmatpush.msra.mxu0 0.0
  %6550 = vmatpush.msra.mxu0 0.0
  %6551 = vmatpush.msra.mxu0 0.0
  %6552 = vmatpush.msra.mxu0 0.0
  %6553 = vmatpush.msra.mxu0 0.0
  %6554 = vmatpush.msra.mxu0 0.0
  %6555 = vmatpush.msra.mxu0 0.0
  %6556 = vmatpush.msra.mxu0 0.0
  %6557 = vmatpush.msra.mxu0 %v6419
  %6558 = vmatpush.msra.mxu0 %v6411
  %6559 = vmatpush.msra.mxu0 %v6403
  %6560 = vmatpush.msra.mxu0 %v6395
  %6561 = vmatmul.f32.gmra.mxu0 %v6463
  %v6562 = vpop.f32.mrf.mxu0
  %v6563 = vadd.f32 %v6460, %v6562
  %6564 = vdwg.mxu0
  %6565 = vmatpush.msra.mxu0 0.0
  %6566 = vmatpush.msra.mxu0 0.0
  %6567 = vmatpush.msra.mxu0 0.0
  %6568 = vmatpush.msra.mxu0 0.0
  %6569 = vmatpush.msra.mxu0 0.0
  %6570 = vmatpush.msra.mxu0 0.0
  %6571 = vmatpush.msra.mxu0 0.0
  %6572 = vmatpush.msra.mxu0 0.0
  %6573 = vmatpush.msra.mxu0 0.0
  %6574 = vmatpush.msra.mxu0 0.0
  %6575 = vmatpush.msra.mxu0 0.0
  %6576 = vmatpush.msra.mxu0 0.0
  %6577 = vmatpush.msra.mxu0 %v6420
  %6578 = vmatpush.msra.mxu0 %v6412
  %6579 = vmatpush.msra.mxu0 %v6404
  %6580 = vmatpush.msra.mxu0 %v6396
  %6581 = vmatmul.f32.gmra.mxu0 %v6463
  %v6582 = vpop.f32.mrf.mxu0
  %v6583 = vadd.f32 %v6460, %v6582
  %6584 = vdwg.mxu0
  %6585 = vmatpush.msra.mxu0 0.0
  %6586 = vmatpush.msra.mxu0 0.0
  %6587 = vmatpush.msra.mxu0 0.0
  %6588 = vmatpush.msra.mxu0 0.0
  %6589 = vmatpush.msra.mxu0 0.0
  %6590 = vmatpush.msra.mxu0 0.0
  %6591 = vmatpush.msra.mxu0 0.0
  %6592 = vmatpush.msra.mxu0 0.0
  %6593 = vmatpush.msra.mxu0 0.0
  %6594 = vmatpush.msra.mxu0 0.0
  %6595 = vmatpush.msra.mxu0 0.0
  %6596 = vmatpush.msra.mxu0 0.0
  %6597 = vmatpush.msra.mxu0 %v6421
  %6598 = vmatpush.msra.mxu0 %v6413
  %6599 = vmatpush.msra.mxu0 %v6405
  %6600 = vmatpush.msra.mxu0 %v6397
  %6601 = vmatmul.f32.gmra.mxu0 %v6463
  %v6602 = vpop.f32.mrf.mxu0
  %v6603 = vadd.f32 %v6460, %v6602
  %6604 = vdwg.mxu0
  %6605 = vmatpush.msra.mxu0 0.0
  %6606 = vmatpush.msra.mxu0 0.0
  %6607 = vmatpush.msra.mxu0 0.0
  %6608 = vmatpush.msra.mxu0 0.0
  %6609 = vmatpush.msra.mxu0 0.0
  %6610 = vmatpush.msra.mxu0 0.0
  %6611 = vmatpush.msra.mxu0 0.0
  %6612 = vmatpush.msra.mxu0 0.0
  %6613 = vmatpush.msra.mxu0 0.0
  %6614 = vmatpush.msra.mxu0 0.0
  %6615 = vmatpush.msra.mxu0 0.0
  %6616 = vmatpush.msra.mxu0 0.0
  %6617 = vmatpush.msra.mxu0 %v6422
  %6618 = vmatpush.msra.mxu0 %v6414
  %6619 = vmatpush.msra.mxu0 %v6406
  %6620 = vmatpush.msra.mxu0 %v6398
  %6621 = vmatmul.f32.gmra.mxu0 %v6463
  %v6622 = vpop.f32.mrf.mxu0
  %v6623 = vadd.f32 %v6460, %v6622
  %6624 = vdwg.mxu0
  %v6625 = vxor.u32 %v6483, 2147483648
  %v6626 = vxor.u32 %v6503, 2147483648
  %v6627 = vxor.u32 %v6523, 2147483648
  %v6628 = vxor.u32 %v6543, 2147483648
  %v6629 = vxor.u32 %v6563, 2147483648
  %v6630 = vxor.u32 %v6583, 2147483648
  %v6631 = vxor.u32 %v6603, 2147483648
  %v6632 = vxor.u32 %v6623, 2147483648
  %v6633 = vmul.f32 %v6625, 1.442695
  %v6634 = vpow.pop %v6633
  %v6635 = vmul.f32 %v6626, 1.442695
  %v6636 = vpow.pop %v6635
  %v6637 = vmul.f32 %v6627, 1.442695
  %v6638 = vpow.pop %v6637
  %v6639 = vmul.f32 %v6628, 1.442695
  %v6640 = vpow.pop %v6639
  %v6641 = vmul.f32 %v6629, 1.442695
  %v6642 = vpow.pop %v6641
  %v6643 = vmul.f32 %v6630, 1.442695
  %v6644 = vpow.pop %v6643
  %v6645 = vmul.f32 %v6631, 1.442695
  %v6646 = vpow.pop %v6645
  %v6647 = vmul.f32 %v6632, 1.442695
  %v6648 = vpow.pop %v6647
  %v6649 = vadd.f32 %v6634, 1.0
  %v6650 = vadd.f32 %v6636, 1.0
  %v6651 = vadd.f32 %v6638, 1.0
  %v6652 = vadd.f32 %v6640, 1.0
  %v6653 = vadd.f32 %v6642, 1.0
  %v6654 = vadd.f32 %v6644, 1.0
  %v6655 = vadd.f32 %v6646, 1.0
  %v6656 = vadd.f32 %v6648, 1.0
  %v6657 = vrcp.pop %v6649
  %v6658 = vmul.f32 %v6649, %v6657
  %v6659 = vsub.f32 1.0, %v6658
  %v6660 = vmul.f32 %v6657, %v6659
  %v6661 = vadd.f32 %v6657, %v6660
  %vm6662 = vweird.f32 %v6649
  %vm6663 = vweird.f32 %v6657
  %vm6664 = vmor %vm6662, %vm6663
  %v6665 = vsel %vm6664, %v6657, %v6661
  %v6666 = vand.u32 2147483647, %v6649
  %vm6667 = vcmp.eq.f32.partialorder %v6666, 8.507059e+37
  %v6668 = vand.u32 %v6649, 2147483648
  %v6669 = vor.u32 1.1754944e-38, %v6668
  %v6670 = vsel %vm6667, %v6669, %v6665
  %v6671 = vmul.f32 1.0, %v6670
  %v6672 = vrcp.pop %v6650
  %v6673 = vmul.f32 %v6650, %v6672
  %v6674 = vsub.f32 1.0, %v6673
  %v6675 = vmul.f32 %v6672, %v6674
  %v6676 = vadd.f32 %v6672, %v6675
  %vm6677 = vweird.f32 %v6650
  %vm6678 = vweird.f32 %v6672
  %vm6679 = vmor %vm6677, %vm6678
  %v6680 = vsel %vm6679, %v6672, %v6676
  %v6681 = vand.u32 2147483647, %v6650
  %vm6682 = vcmp.eq.f32.partialorder %v6681, 8.507059e+37
  %v6683 = vand.u32 %v6650, 2147483648
  %v6684 = vor.u32 1.1754944e-38, %v6683
  %v6685 = vsel %vm6682, %v6684, %v6680
  %v6686 = vmul.f32 1.0, %v6685
  %v6687 = vrcp.pop %v6651
  %v6688 = vmul.f32 %v6651, %v6687
  %v6689 = vsub.f32 1.0, %v6688
  %v6690 = vmul.f32 %v6687, %v6689
  %v6691 = vadd.f32 %v6687, %v6690
  %vm6692 = vweird.f32 %v6651
  %vm6693 = vweird.f32 %v6687
  %vm6694 = vmor %vm6692, %vm6693
  %v6695 = vsel %vm6694, %v6687, %v6691
  %v6696 = vand.u32 2147483647, %v6651
  %vm6697 = vcmp.eq.f32.partialorder %v6696, 8.507059e+37
  %v6698 = vand.u32 %v6651, 2147483648
  %v6699 = vor.u32 1.1754944e-38, %v6698
  %v6700 = vsel %vm6697, %v6699, %v6695
  %v6701 = vmul.f32 1.0, %v6700
  %v6702 = vrcp.pop %v6652
  %v6703 = vmul.f32 %v6652, %v6702
  %v6704 = vsub.f32 1.0, %v6703
  %v6705 = vmul.f32 %v6702, %v6704
  %v6706 = vadd.f32 %v6702, %v6705
  %vm6707 = vweird.f32 %v6652
  %vm6708 = vweird.f32 %v6702
  %vm6709 = vmor %vm6707, %vm6708
  %v6710 = vsel %vm6709, %v6702, %v6706
  %v6711 = vand.u32 2147483647, %v6652
  %vm6712 = vcmp.eq.f32.partialorder %v6711, 8.507059e+37
  %v6713 = vand.u32 %v6652, 2147483648
  %v6714 = vor.u32 1.1754944e-38, %v6713
  %v6715 = vsel %vm6712, %v6714, %v6710
  %v6716 = vmul.f32 1.0, %v6715
  %v6717 = vrcp.pop %v6653
  %v6718 = vmul.f32 %v6653, %v6717
  %v6719 = vsub.f32 1.0, %v6718
  %v6720 = vmul.f32 %v6717, %v6719
  %v6721 = vadd.f32 %v6717, %v6720
  %vm6722 = vweird.f32 %v6653
  %vm6723 = vweird.f32 %v6717
  %vm6724 = vmor %vm6722, %vm6723
  %v6725 = vsel %vm6724, %v6717, %v6721
  %v6726 = vand.u32 2147483647, %v6653
  %vm6727 = vcmp.eq.f32.partialorder %v6726, 8.507059e+37
  %v6728 = vand.u32 %v6653, 2147483648
  %v6729 = vor.u32 1.1754944e-38, %v6728
  %v6730 = vsel %vm6727, %v6729, %v6725
  %v6731 = vmul.f32 1.0, %v6730
  %v6732 = vrcp.pop %v6654
  %v6733 = vmul.f32 %v6654, %v6732
  %v6734 = vsub.f32 1.0, %v6733
  %v6735 = vmul.f32 %v6732, %v6734
  %v6736 = vadd.f32 %v6732, %v6735
  %vm6737 = vweird.f32 %v6654
  %vm6738 = vweird.f32 %v6732
  %vm6739 = vmor %vm6737, %vm6738
  %v6740 = vsel %vm6739, %v6732, %v6736
  %v6741 = vand.u32 2147483647, %v6654
  %vm6742 = vcmp.eq.f32.partialorder %v6741, 8.507059e+37
  %v6743 = vand.u32 %v6654, 2147483648
  %v6744 = vor.u32 1.1754944e-38, %v6743
  %v6745 = vsel %vm6742, %v6744, %v6740
  %v6746 = vmul.f32 1.0, %v6745
  %v6747 = vrcp.pop %v6655
  %v6748 = vmul.f32 %v6655, %v6747
  %v6749 = vsub.f32 1.0, %v6748
  %v6750 = vmul.f32 %v6747, %v6749
  %v6751 = vadd.f32 %v6747, %v6750
  %vm6752 = vweird.f32 %v6655
  %vm6753 = vweird.f32 %v6747
  %vm6754 = vmor %vm6752, %vm6753
  %v6755 = vsel %vm6754, %v6747, %v6751
  %v6756 = vand.u32 2147483647, %v6655
  %vm6757 = vcmp.eq.f32.partialorder %v6756, 8.507059e+37
  %v6758 = vand.u32 %v6655, 2147483648
  %v6759 = vor.u32 1.1754944e-38, %v6758
  %v6760 = vsel %vm6757, %v6759, %v6755
  %v6761 = vmul.f32 1.0, %v6760
  %v6762 = vrcp.pop %v6656
  %v6763 = vmul.f32 %v6656, %v6762
  %v6764 = vsub.f32 1.0, %v6763
  %v6765 = vmul.f32 %v6762, %v6764
  %v6766 = vadd.f32 %v6762, %v6765
  %vm6767 = vweird.f32 %v6656
  %vm6768 = vweird.f32 %v6762
  %vm6769 = vmor %vm6767, %vm6768
  %v6770 = vsel %vm6769, %v6762, %v6766
  %v6771 = vand.u32 2147483647, %v6656
  %vm6772 = vcmp.eq.f32.partialorder %v6771, 8.507059e+37
  %v6773 = vand.u32 %v6656, 2147483648
  %v6774 = vor.u32 1.1754944e-38, %v6773
  %v6775 = vsel %vm6772, %v6774, %v6770
  %v6776 = vmul.f32 1.0, %v6775
  %v6785 = vrot.slane %v6686, 6
  %v6786 = vrot.slane %v6701, 4
  %v6787 = vrot.slane %v6716, 2
  %v6788 = vrot.slane %v6746, 6
  %v6789 = vrot.slane %v6761, 4
  %v6790 = vrot.slane %v6776, 2
  %vm6791 = vcmask 1041408
  %v6792 = vsel %vm6791, %v6671, %v6785
  %vm6793 = vcmask 1045508
  %v6794 = vsel %vm6793, %v6786, %v6787
  %v6795 = vsel %vm141, %v6792, %v6794
  %v6796 = vsel %vm6791, %v6731, %v6788
  %v6797 = vsel %vm6793, %v6789, %v6790
  %v6798 = vsel %vm141, %v6796, %v6797
  %6801 = vst [vmem:[%s7] sm:$0xff] %v6795
  %6802 = vst [vmem:[%s7 + $0x8] sm:$0xff] %v6798
  // Predicated region
  $region30: #{_forward_device.1} parent=0 // pred_check
    _
  $region31: #{_forward_device.1} parent=0 // pred_check_branch
    %6804 = sbr.rel (0) target = $region33
  $region32: #{_forward_device.1} parent=0 // pred_region
    _
  $region33: #{_forward_device.1} parent=0 // pred_fallthru
    _
  // Predicated region
  $region34: #{_forward_device.1} parent=0 // pred_check
    _
  $region35: #{_forward_device.1} parent=0 // pred_check_branch
    %6806 = sbr.rel (0) target = $region37
  $region36: #{_forward_device.1} parent=0 // pred_region
    _
  $region37: #{_forward_device.1} parent=0 // pred_fallthru
    _
  // Predicated region
  $region38: #{_forward_device.1} parent=0 // pred_check
    _
  $region39: #{_forward_device.1} parent=0 // pred_check_branch
    %6808 = sbr.rel (0) target = $region41
  $region40: #{_forward_device.1} parent=0 // pred_region
    _
  $region41: #{_forward_device.1} parent=0 // pred_fallthru
    _
  // Predicated region
  $region42: #{_forward_device.1} parent=0 // pred_check
    _
  $region43: #{_forward_device.1} parent=0 // pred_check_branch
    %6810 = sbr.rel (0) target = $region45
  $region44: #{_forward_device.1} parent=0 // pred_region
    _
  $region45: #{_forward_device.1} parent=0 // pred_fallthru
    _

</llo_original>
